<compile_context>
chip_gen: v7x
topology: tpu7x:2x2x1
jax: 0.10.0
libtpu: 0.0.40
codegen_flags: <defaults>
</compile_context>

<pallas_src>
import functools
import math

import numpy as np
import jax
import jax.numpy as jnp
from jax import lax
from jax.experimental import pallas as pl
from jax.experimental.pallas import tpu as pltpu

_WIN = 11
_PAD = _WIN // 2          # 5
_SIGMA = 1.5
_C1 = 0.01 ** 2
_C2 = 0.03 ** 2

# 1-D Gaussian, normalized in float32 (mirrors torch.FloatTensor(...) / sum()).
_g64 = np.array([math.exp(-((i - _WIN // 2) ** 2) / (2.0 * _SIGMA ** 2)) for i in range(_WIN)])
_G1D = _g64.astype(np.float32)
_G1D = _G1D / _G1D.sum(dtype=np.float32)
_G = tuple(float(v) for v in _G1D)


def _l_ssim5_kernel(a_ref, b_ref, c_ref, d_ref, e_ref, f_ref, out_ref,
                    pbuf, mu2_ref, s2_ref, gacc, sacc, *, H, W, N):
    P = _PAD
    i = pl.program_id(0)

    @pl.when(i == 0)
    def _():
        # Zero once: the pbuf border stays zero for every later fill (only the interior is
        # rewritten), providing free zero 'same' padding for both the 3x3 and 11x11 convs.
        pbuf[...] = jnp.zeros_like(pbuf)
        gacc[...] = jnp.zeros_like(gacc)
        sacc[...] = jnp.zeros_like(sacc)

    def fill(x):
        # Place the (H, W) tile inside the zero halo.
        pbuf[P:P + H, P:P + W] = x

    def gauss():
        # Separable 11-tap Gaussian over the zero-padded buffer (reads the VMEM ref directly).
        t = _G[0] * pbuf[0:H, :]                      # vertical pass -> (H, W + 2P)
        for k in range(1, _WIN):
            t = t + _G[k] * pbuf[k:k + H, :]
        o = _G[0] * t[:, 0:W]                         # horizontal pass -> (H, W)
        for k in range(1, _WIN):
            o = o + _G[k] * t[:, k:k + W]
        return o

    f = f_ref[0]                                      # (H, W)

    # Fused-image statistics, shared by all five SSIM terms (stored in VMEM to keep
    # vreg pressure low across the unrolled source loop).
    fill(f)
    mu2 = gauss()
    fill(f * f)
    s2 = gauss() - mu2 * mu2
    mu2_ref[...] = mu2
    s2_ref[...] = s2

    for s, x_ref in enumerate((a_ref, b_ref, c_ref, d_ref, e_ref)):
        x = x_ref[0]                                  # (H, W)
        fill(x)

        # --- Sobel gradient magnitude (separable; pad=1 supplied by the pbuf zero halo) ---
        r0 = pbuf[P - 1:P - 1 + H, P - 1:P + W + 1]   # (H, W + 2)
        r1 = pbuf[P:P + H,         P - 1:P + W + 1]
        r2 = pbuf[P + 1:P + 1 + H, P - 1:P + W + 1]
        t1 = r0 + 2.0 * r1 + r2                       # vertical smooth [1, 2, 1]
        t2 = r0 - r2                                  # vertical diff   [1, 0, -1]
        sx = t1[:, 2:2 + W] - t1[:, 0:W]              # horizontal [-1, 0, 1]
        sy = t2[:, 0:W] + 2.0 * t2[:, 1:1 + W] + t2[:, 2:2 + W]   # horizontal [1, 2, 1]
        grad = jnp.abs(sx) + jnp.abs(sy)
        gacc[s:s + 1, :] = gacc[s:s + 1, :] + jnp.sum(grad)

        # --- SSIM(X, fused) statistics ---
        mu1 = gauss()                                 # pbuf still holds x
        fill(x * x)
        s1 = gauss() - mu1 * mu1
        mu2v = mu2_ref[...]
        s2v = s2_ref[...]
        fill(x * f)
        s12 = gauss() - mu1 * mu2v

        num = (2.0 * mu1 * mu2v + _C1) * (2.0 * s12 + _C2)
        den = (mu1 * mu1 + mu2v * mu2v + _C1) * (s1 + s2v + _C2)
        ssim_map = num / den
        sacc[s:s + 1, :] = sacc[s:s + 1, :] + jnp.sum(ssim_map)

    @pl.when(i == pl.num_programs(0) - 1)
    def _():
        inv_cnt = 1.0 / float(N * H * W)
        g = [gacc[s:s + 1, 0:1] * inv_cnt for s in range(5)]     # mean Sobel gradients
        sm = [sacc[s:s + 1, 0:1] * inv_cnt for s in range(5)]    # ssim(X, fused) means
        den_ab = g[0] + g[1]
        tail = g[2] + g[3] + g[4]
        loss = (g[0] / den_ab + tail) * sm[0]
        for s in range(1, 5):
            loss = loss + (g[s] / den_ab + tail) * sm[s]
        out_ref[...] = loss


def l_ssim5(image_A, image_B, image_C, image_D, image_E, image_fused):
    """image_*: (N, 1, H, W) float32 (NCHW, single channel).  Returns scalar loss."""
    N, C, H, W = image_A.shape
    assert C == 1, "Sobelxy weight is [1,1,3,3] => single-channel inputs"

    # No wrapper-side padding: the channel squeeze is a free reshape; conv halos are
    # provided in-kernel by a zero-bordered VMEM scratch (no extra HBM traffic).
    def prep(x):
        return x[:, 0].astype(jnp.float32)

    args = tuple(prep(x) for x in (image_A, image_B, image_C, image_D, image_E, image_fused))

    img_spec = pl.BlockSpec((1, H, W), lambda i: (i, 0, 0))

    # Explicit VMEM budget for large images (v7x: 64 MiB/TC physical, 32 MiB scoped default).
    blk = H * W * 4
    est = 6 * 2 * blk + (H + 2 * _PAD) * (W + 2 * _PAD) * 4 + 2 * blk + 2 * 8 * 128 * 4
    vmem_limit = None if est < 24 * 1024 * 1024 else min(2 * est, 56 * 1024 * 1024)

    out = pl.pallas_call(
        functools.partial(_l_ssim5_kernel, H=H, W=W, N=N),
        out_shape=jax.ShapeDtypeStruct((1, 1), jnp.float32),
        grid_spec=pltpu.PrefetchScalarGridSpec(
            num_scalar_prefetch=0,
            grid=(N,),
            in_specs=[img_spec] * 6,
            out_specs=pl.BlockSpec((1, 1), lambda i: (0, 0)),
            scratch_shapes=[
                pltpu.VMEM((H + 2 * _PAD, W + 2 * _PAD), jnp.float32),  # zero-halo conv buffer
                pltpu.VMEM((H, W), jnp.float32),                        # mu2 (fused local mean)
                pltpu.VMEM((H, W), jnp.float32),                        # sigma2_sq (fused)
                pltpu.VMEM((8, 128), jnp.float32),                      # per-source grad sums
                pltpu.VMEM((8, 128), jnp.float32),                      # per-source ssim sums
            ],
        ),
        compiler_params=pltpu.CompilerParams(
            dimension_semantics=("arbitrary",),   # batch axis carries the accumulators
            vmem_limit_bytes=vmem_limit,
        ),
    )(*args)
    return out[0, 0]


def _l_ssim5_reference(image_A, image_B, image_C, image_D, image_E, image_fused):
    """Pure-JAX reference mirroring the PyTorch module (F.conv2d, NCHW, zero padding)."""
    kx = jnp.array([[-1., 0., 1.], [-2., 0., 2.], [-1., 0., 1.]], jnp.float32).reshape(1, 1, 3, 3)
    ky = jnp.array([[1., 2., 1.], [0., 0., 0.], [-1., -2., -1.]], jnp.float32).reshape(1, 1, 3, 3)
    win = jnp.asarray(np.outer(_G1D, _G1D), jnp.float32).reshape(1, 1, _WIN, _WIN)

    def conv(x, w, pad):
        return lax.conv_general_dilated(x, w, (1, 1), ((pad, pad), (pad, pad)),
                                        dimension_numbers=("NCHW", "OIHW", "NCHW"))

    def sobel_mean(x):
        return jnp.mean(jnp.abs(conv(x, kx, 1)) + jnp.abs(conv(x, ky, 1)))

    def ssim(x, y):
        mu1 = conv(x, win, _PAD)
        mu2 = conv(y, win, _PAD)
        mu1_sq, mu2_sq, mu1_mu2 = mu1 * mu1, mu2 * mu2, mu1 * mu2
        s1 = conv(x * x, win, _PAD) - mu1_sq
        s2 = conv(y * y, win, _PAD) - mu2_sq
        s12 = conv(x * y, win, _PAD) - mu1_mu2
        m = ((2 * mu1_mu2 + _C1) * (2 * s12 + _C2)) / ((mu1_sq + mu2_sq + _C1) * (s1 + s2 + _C2))
        return jnp.mean(m)

    gA, gB, gC, gD, gE = (sobel_mean(x) for x in (image_A, image_B, image_C, image_D, image_E))
    den = gA + gB
    tail = gC + gD + gE
    wA, wB, wC, wD, wE = (g / den + tail for g in (gA, gB, gC, gD, gE))
    return (wA * ssim(image_A, image_fused) + wB * ssim(image_B, image_fused)
            + wC * ssim(image_C, image_fused) + wD * ssim(image_D, image_fused)
            + wE * ssim(image_E, image_fused))


if __name__ == "__main__":
    key = jax.random.PRNGKey(0)
    keys = jax.random.split(key, 6)
    N, C, H, W = 2, 1, 16, 16
    image_A, image_B, image_C, image_D, image_E, image_fused = (
        jax.random.uniform(k, (N, C, H, W), jnp.float32) for k in keys)

    loss = l_ssim5(image_A, image_B, image_C, image_D, image_E, image_fused)
    loss = jax.block_until_ready(loss)

    ref = _l_ssim5_reference(image_A, image_B, image_C, image_D, image_E, image_fused)
    assert jnp.allclose(loss, ref, rtol=1e-4, atol=1e-5), (loss, ref)

    print("KERNEL_OK")
</pallas_src>

<mosaic_0001>
module attributes {stable_mosaic.version = 11 : i64} {
  func.func @_l_ssim5_kernel(%arg0: i32, %arg1: memref<1x16x16xf32, #tpu.memory_space<vmem>>, %arg2: memref<1x16x16xf32, #tpu.memory_space<vmem>>, %arg3: memref<1x16x16xf32, #tpu.memory_space<vmem>>, %arg4: memref<1x16x16xf32, #tpu.memory_space<vmem>>, %arg5: memref<1x16x16xf32, #tpu.memory_space<vmem>>, %arg6: memref<1x16x16xf32, #tpu.memory_space<vmem>>, %arg7: memref<1x1xf32, #tpu.memory_space<vmem>>, %arg8: memref<26x26xf32, #tpu.memory_space<vmem>>, %arg9: memref<16x16xf32, #tpu.memory_space<vmem>>, %arg10: memref<16x16xf32, #tpu.memory_space<vmem>>, %arg11: memref<8x128xf32, #tpu.memory_space<vmem>>, %arg12: memref<8x128xf32, #tpu.memory_space<vmem>>) attributes {dimension_semantics = [#tpu.dimension_semantics<arbitrary>], iteration_bounds = array<i64: 2>, scalar_prefetch = 0 : i64, scratch_operands = 5 : i64, tpu.core_type = #tpu.core_type<tc>, window_params = [{transform_indices = @transform_0, window_bounds = array<i64: 1, 16, 16>}, {transform_indices = @transform_1, window_bounds = array<i64: 1, 16, 16>}, {transform_indices = @transform_2, window_bounds = array<i64: 1, 16, 16>}, {transform_indices = @transform_3, window_bounds = array<i64: 1, 16, 16>}, {transform_indices = @transform_4, window_bounds = array<i64: 1, 16, 16>}, {transform_indices = @transform_5, window_bounds = array<i64: 1, 16, 16>}, {pipeline_mode = #tpu.pipeline_mode<synchronous>, transform_indices = @transform_6, window_bounds = array<i64: 1, 1>}]} {
    %c0_i32 = arith.constant 0 : i32
    %0 = arith.cmpi eq, %arg0, %c0_i32 : i32
    %1 = arith.extui %0 : i1 to i32
    %c0_i32_0 = arith.constant 0 : i32
    %2 = arith.cmpi ne, %1, %c0_i32_0 : i32
    scf.if %2 {
      %cst_934 = arith.constant 0.000000e+00 : f32
      %1827 = vector.broadcast %cst_934 : f32 to vector<26x26xf32>
      %c0_935 = arith.constant 0 : index
      %c0_936 = arith.constant 0 : index
      %1828 = vector.load %arg8[%c0_935, %c0_936] : memref<26x26xf32, #tpu.memory_space<vmem>>, vector<26x26xf32>
      tpu.vector_store %arg8[%c0_935, %c0_936], %1827 {strides = array<i32>} : memref<26x26xf32, #tpu.memory_space<vmem>>, vector<26x26xf32>,
      %cst_937 = arith.constant 0.000000e+00 : f32
      %1829 = vector.broadcast %cst_937 : f32 to vector<8x128xf32>
      %c0_938 = arith.constant 0 : index
      %c0_939 = arith.constant 0 : index
      %1830 = vector.load %arg11[%c0_938, %c0_939] : memref<8x128xf32, #tpu.memory_space<vmem>>, vector<8x128xf32>
      tpu.vector_store %arg11[%c0_938, %c0_939], %1829 {strides = array<i32>} : memref<8x128xf32, #tpu.memory_space<vmem>>, vector<8x128xf32>,
      %cst_940 = arith.constant 0.000000e+00 : f32
      %1831 = vector.broadcast %cst_940 : f32 to vector<8x128xf32>
      %c0_941 = arith.constant 0 : index
      %c0_942 = arith.constant 0 : index
      %1832 = vector.load %arg12[%c0_941, %c0_942] : memref<8x128xf32, #tpu.memory_space<vmem>>, vector<8x128xf32>
      tpu.vector_store %arg12[%c0_941, %c0_942], %1831 {strides = array<i32>} : memref<8x128xf32, #tpu.memory_space<vmem>>, vector<8x128xf32>,
    } else {
    }
    %c0 = arith.constant 0 : index
    %c0_1 = arith.constant 0 : index
    %c0_2 = arith.constant 0 : index
    %3 = vector.load %arg6[%c0, %c0_1, %c0_2] : memref<1x16x16xf32, #tpu.memory_space<vmem>>, vector<1x16x16xf32>
    %4 = vector.shape_cast %3 : vector<1x16x16xf32> to vector<16x16xf32>
    %c5 = arith.constant 5 : index
    %c5_3 = arith.constant 5 : index
    %5 = vector.load %arg8[%c5, %c5_3] : memref<26x26xf32, #tpu.memory_space<vmem>>, vector<16x16xf32>
    tpu.vector_store %arg8[%c5, %c5_3], %4 {strides = array<i32>} : memref<26x26xf32, #tpu.memory_space<vmem>>, vector<16x16xf32>,
    %c0_4 = arith.constant 0 : index
    %c0_5 = arith.constant 0 : index
    %6 = vector.load %arg8[%c0_4, %c0_5] : memref<26x26xf32, #tpu.memory_space<vmem>>, vector<16x26xf32>
    %cst = arith.constant 0.00102838024 : f32
    %7 = vector.broadcast %cst : f32 to vector<16x26xf32>
    %8 = arith.mulf %7, %6 : vector<16x26xf32>
    %c1 = arith.constant 1 : index
    %c0_6 = arith.constant 0 : index
    %9 = vector.load %arg8[%c1, %c0_6] : memref<26x26xf32, #tpu.memory_space<vmem>>, vector<16x26xf32>
    %cst_7 = arith.constant 0.00759875868 : f32
    %10 = vector.broadcast %cst_7 : f32 to vector<16x26xf32>
    %11 = arith.mulf %10, %9 : vector<16x26xf32>
    %12 = arith.addf %8, %11 : vector<16x26xf32>
    %c2 = arith.constant 2 : index
    %c0_8 = arith.constant 0 : index
    %13 = vector.load %arg8[%c2, %c0_8] : memref<26x26xf32, #tpu.memory_space<vmem>>, vector<16x26xf32>
    %cst_9 = arith.constant 0.0360007733 : f32
    %14 = vector.broadcast %cst_9 : f32 to vector<16x26xf32>
    %15 = arith.mulf %14, %13 : vector<16x26xf32>
    %16 = arith.addf %12, %15 : vector<16x26xf32>
    %c3 = arith.constant 3 : index
    %c0_10 = arith.constant 0 : index
    %17 = vector.load %arg8[%c3, %c0_10] : memref<26x26xf32, #tpu.memory_space<vmem>>, vector<16x26xf32>
    %cst_11 = arith.constant 0.109360695 : f32
    %18 = vector.broadcast %cst_11 : f32 to vector<16x26xf32>
    %19 = arith.mulf %18, %17 : vector<16x26xf32>
    %20 = arith.addf %16, %19 : vector<16x26xf32>
    %c4 = arith.constant 4 : index
    %c0_12 = arith.constant 0 : index
    %21 = vector.load %arg8[%c4, %c0_12] : memref<26x26xf32, #tpu.memory_space<vmem>>, vector<16x26xf32>
    %cst_13 = arith.constant 0.213005543 : f32
    %22 = vector.broadcast %cst_13 : f32 to vector<16x26xf32>
    %23 = arith.mulf %22, %21 : vector<16x26xf32>
    %24 = arith.addf %20, %23 : vector<16x26xf32>
    %c5_14 = arith.constant 5 : index
    %c0_15 = arith.constant 0 : index
    %25 = vector.load %arg8[%c5_14, %c0_15] : memref<26x26xf32, #tpu.memory_space<vmem>>, vector<16x26xf32>
    %cst_16 = arith.constant 0.266011745 : f32
    %26 = vector.broadcast %cst_16 : f32 to vector<16x26xf32>
    %27 = arith.mulf %26, %25 : vector<16x26xf32>
    %28 = arith.addf %24, %27 : vector<16x26xf32>
    %c6 = arith.constant 6 : index
    %c0_17 = arith.constant 0 : index
    %29 = vector.load %arg8[%c6, %c0_17] : memref<26x26xf32, #tpu.memory_space<vmem>>, vector<16x26xf32>
    %cst_18 = arith.constant 0.213005543 : f32
    %30 = vector.broadcast %cst_18 : f32 to vector<16x26xf32>
    %31 = arith.mulf %30, %29 : vector<16x26xf32>
    %32 = arith.addf %28, %31 : vector<16x26xf32>
    %c7 = arith.constant 7 : index
    %c0_19 = arith.constant 0 : index
    %33 = vector.load %arg8[%c7, %c0_19] : memref<26x26xf32, #tpu.memory_space<vmem>>, vector<16x26xf32>
    %cst_20 = arith.constant 0.109360695 : f32
    %34 = vector.broadcast %cst_20 : f32 to vector<16x26xf32>
    %35 = arith.mulf %34, %33 : vector<16x26xf32>
    %36 = arith.addf %32, %35 : vector<16x26xf32>
    %c8 = arith.constant 8 : index
    %c0_21 = arith.constant 0 : index
    %37 = vector.load %arg8[%c8, %c0_21] : memref<26x26xf32, #tpu.memory_space<vmem>>, vector<16x26xf32>
    %cst_22 = arith.constant 0.0360007733 : f32
    %38 = vector.broadcast %cst_22 : f32 to vector<16x26xf32>
    %39 = arith.mulf %38, %37 : vector<16x26xf32>
    %40 = arith.addf %36, %39 : vector<16x26xf32>
    %c9 = arith.constant 9 : index
    %c0_23 = arith.constant 0 : index
    %41 = vector.load %arg8[%c9, %c0_23] : memref<26x26xf32, #tpu.memory_space<vmem>>, vector<16x26xf32>
    %cst_24 = arith.constant 0.00759875868 : f32
    %42 = vector.broadcast %cst_24 : f32 to vector<16x26xf32>
    %43 = arith.mulf %42, %41 : vector<16x26xf32>
    %44 = arith.addf %40, %43 : vector<16x26xf32>
    %c10 = arith.constant 10 : index
    %c0_25 = arith.constant 0 : index
    %45 = vector.load %arg8[%c10, %c0_25] : memref<26x26xf32, #tpu.memory_space<vmem>>, vector<16x26xf32>
    %cst_26 = arith.constant 0.00102838024 : f32
    %46 = vector.broadcast %cst_26 : f32 to vector<16x26xf32>
    %47 = arith.mulf %46, %45 : vector<16x26xf32>
    %48 = arith.addf %44, %47 : vector<16x26xf32>
    %49 = vector.extract_strided_slice %48 {offsets = [0, 0], sizes = [16, 16], strides = [1, 1]} : vector<16x26xf32> to vector<16x16xf32>
    %cst_27 = arith.constant 0.00102838024 : f32
    %50 = vector.broadcast %cst_27 : f32 to vector<16x16xf32>
    %51 = arith.mulf %50, %49 : vector<16x16xf32>
    %52 = vector.extract_strided_slice %48 {offsets = [0, 1], sizes = [16, 16], strides = [1, 1]} : vector<16x26xf32> to vector<16x16xf32>
    %cst_28 = arith.constant 0.00759875868 : f32
    %53 = vector.broadcast %cst_28 : f32 to vector<16x16xf32>
    %54 = arith.mulf %53, %52 : vector<16x16xf32>
    %55 = arith.addf %51, %54 : vector<16x16xf32>
    %56 = vector.extract_strided_slice %48 {offsets = [0, 2], sizes = [16, 16], strides = [1, 1]} : vector<16x26xf32> to vector<16x16xf32>
    %cst_29 = arith.constant 0.0360007733 : f32
    %57 = vector.broadcast %cst_29 : f32 to vector<16x16xf32>
    %58 = arith.mulf %57, %56 : vector<16x16xf32>
    %59 = arith.addf %55, %58 : vector<16x16xf32>
    %60 = vector.extract_strided_slice %48 {offsets = [0, 3], sizes = [16, 16], strides = [1, 1]} : vector<16x26xf32> to vector<16x16xf32>
    %cst_30 = arith.constant 0.109360695 : f32
    %61 = vector.broadcast %cst_30 : f32 to vector<16x16xf32>
    %62 = arith.mulf %61, %60 : vector<16x16xf32>
    %63 = arith.addf %59, %62 : vector<16x16xf32>
    %64 = vector.extract_strided_slice %48 {offsets = [0, 4], sizes = [16, 16], strides = [1, 1]} : vector<16x26xf32> to vector<16x16xf32>
    %cst_31 = arith.constant 0.213005543 : f32
    %65 = vector.broadcast %cst_31 : f32 to vector<16x16xf32>
    %66 = arith.mulf %65, %64 : vector<16x16xf32>
    %67 = arith.addf %63, %66 : vector<16x16xf32>
    %68 = vector.extract_strided_slice %48 {offsets = [0, 5], sizes = [16, 16], strides = [1, 1]} : vector<16x26xf32> to vector<16x16xf32>
    %cst_32 = arith.constant 0.266011745 : f32
    %69 = vector.broadcast %cst_32 : f32 to vector<16x16xf32>
    %70 = arith.mulf %69, %68 : vector<16x16xf32>
    %71 = arith.addf %67, %70 : vector<16x16xf32>
    %72 = vector.extract_strided_slice %48 {offsets = [0, 6], sizes = [16, 16], strides = [1, 1]} : vector<16x26xf32> to vector<16x16xf32>
    %cst_33 = arith.constant 0.213005543 : f32
    %73 = vector.broadcast %cst_33 : f32 to vector<16x16xf32>
    %74 = arith.mulf %73, %72 : vector<16x16xf32>
    %75 = arith.addf %71, %74 : vector<16x16xf32>
    %76 = vector.extract_strided_slice %48 {offsets = [0, 7], sizes = [16, 16], strides = [1, 1]} : vector<16x26xf32> to vector<16x16xf32>
    %cst_34 = arith.constant 0.109360695 : f32
    %77 = vector.broadcast %cst_34 : f32 to vector<16x16xf32>
    %78 = arith.mulf %77, %76 : vector<16x16xf32>
    %79 = arith.addf %75, %78 : vector<16x16xf32>
    %80 = vector.extract_strided_slice %48 {offsets = [0, 8], sizes = [16, 16], strides = [1, 1]} : vector<16x26xf32> to vector<16x16xf32>
    %cst_35 = arith.constant 0.0360007733 : f32
    %81 = vector.broadcast %cst_35 : f32 to vector<16x16xf32>
    %82 = arith.mulf %81, %80 : vector<16x16xf32>
    %83 = arith.addf %79, %82 : vector<16x16xf32>
    %84 = vector.extract_strided_slice %48 {offsets = [0, 9], sizes = [16, 16], strides = [1, 1]} : vector<16x26xf32> to vector<16x16xf32>
    %cst_36 = arith.constant 0.00759875868 : f32
    %85 = vector.broadcast %cst_36 : f32 to vector<16x16xf32>
    %86 = arith.mulf %85, %84 : vector<16x16xf32>
    %87 = arith.addf %83, %86 : vector<16x16xf32>
    %88 = vector.extract_strided_slice %48 {offsets = [0, 10], sizes = [16, 16], strides = [1, 1]} : vector<16x26xf32> to vector<16x16xf32>
    %cst_37 = arith.constant 0.00102838024 : f32
    %89 = vector.broadcast %cst_37 : f32 to vector<16x16xf32>
    %90 = arith.mulf %89, %88 : vector<16x16xf32>
    %91 = arith.addf %87, %90 : vector<16x16xf32>
    %92 = arith.mulf %4, %4 : vector<16x16xf32>
    %c5_38 = arith.constant 5 : index
    %c5_39 = arith.constant 5 : index
    %93 = vector.load %arg8[%c5_38, %c5_39] : memref<26x26xf32, #tpu.memory_space<vmem>>, vector<16x16xf32>
    tpu.vector_store %arg8[%c5_38, %c5_39], %92 {strides = array<i32>} : memref<26x26xf32, #tpu.memory_space<vmem>>, vector<16x16xf32>,
    %c0_40 = arith.constant 0 : index
    %c0_41 = arith.constant 0 : index
    %94 = vector.load %arg8[%c0_40, %c0_41] : memref<26x26xf32, #tpu.memory_space<vmem>>, vector<16x26xf32>
    %cst_42 = arith.constant 0.00102838024 : f32
    %95 = vector.broadcast %cst_42 : f32 to vector<16x26xf32>
    %96 = arith.mulf %95, %94 : vector<16x26xf32>
    %c1_43 = arith.constant 1 : index
    %c0_44 = arith.constant 0 : index
    %97 = vector.load %arg8[%c1_43, %c0_44] : memref<26x26xf32, #tpu.memory_space<vmem>>, vector<16x26xf32>
    %cst_45 = arith.constant 0.00759875868 : f32
    %98 = vector.broadcast %cst_45 : f32 to vector<16x26xf32>
    %99 = arith.mulf %98, %97 : vector<16x26xf32>
    %100 = arith.addf %96, %99 : vector<16x26xf32>
    %c2_46 = arith.constant 2 : index
    %c0_47 = arith.constant 0 : index
    %101 = vector.load %arg8[%c2_46, %c0_47] : memref<26x26xf32, #tpu.memory_space<vmem>>, vector<16x26xf32>
    %cst_48 = arith.constant 0.0360007733 : f32
    %102 = vector.broadcast %cst_48 : f32 to vector<16x26xf32>
    %103 = arith.mulf %102, %101 : vector<16x26xf32>
    %104 = arith.addf %100, %103 : vector<16x26xf32>
    %c3_49 = arith.constant 3 : index
    %c0_50 = arith.constant 0 : index
    %105 = vector.load %arg8[%c3_49, %c0_50] : memref<26x26xf32, #tpu.memory_space<vmem>>, vector<16x26xf32>
    %cst_51 = arith.constant 0.109360695 : f32
    %106 = vector.broadcast %cst_51 : f32 to vector<16x26xf32>
    %107 = arith.mulf %106, %105 : vector<16x26xf32>
    %108 = arith.addf %104, %107 : vector<16x26xf32>
    %c4_52 = arith.constant 4 : index
    %c0_53 = arith.constant 0 : index
    %109 = vector.load %arg8[%c4_52, %c0_53] : memref<26x26xf32, #tpu.memory_space<vmem>>, vector<16x26xf32>
    %cst_54 = arith.constant 0.213005543 : f32
    %110 = vector.broadcast %cst_54 : f32 to vector<16x26xf32>
    %111 = arith.mulf %110, %109 : vector<16x26xf32>
    %112 = arith.addf %108, %111 : vector<16x26xf32>
    %c5_55 = arith.constant 5 : index
    %c0_56 = arith.constant 0 : index
    %113 = vector.load %arg8[%c5_55, %c0_56] : memref<26x26xf32, #tpu.memory_space<vmem>>, vector<16x26xf32>
    %cst_57 = arith.constant 0.266011745 : f32
    %114 = vector.broadcast %cst_57 : f32 to vector<16x26xf32>
    %115 = arith.mulf %114, %113 : vector<16x26xf32>
    %116 = arith.addf %112, %115 : vector<16x26xf32>
    %c6_58 = arith.constant 6 : index
    %c0_59 = arith.constant 0 : index
    %117 = vector.load %arg8[%c6_58, %c0_59] : memref<26x26xf32, #tpu.memory_space<vmem>>, vector<16x26xf32>
    %cst_60 = arith.constant 0.213005543 : f32
    %118 = vector.broadcast %cst_60 : f32 to vector<16x26xf32>
    %119 = arith.mulf %118, %117 : vector<16x26xf32>
    %120 = arith.addf %116, %119 : vector<16x26xf32>
    %c7_61 = arith.constant 7 : index
    %c0_62 = arith.constant 0 : index
    %121 = vector.load %arg8[%c7_61, %c0_62] : memref<26x26xf32, #tpu.memory_space<vmem>>, vector<16x26xf32>
    %cst_63 = arith.constant 0.109360695 : f32
    %122 = vector.broadcast %cst_63 : f32 to vector<16x26xf32>
    %123 = arith.mulf %122, %121 : vector<16x26xf32>
    %124 = arith.addf %120, %123 : vector<16x26xf32>
    %c8_64 = arith.constant 8 : index
    %c0_65 = arith.constant 0 : index
    %125 = vector.load %arg8[%c8_64, %c0_65] : memref<26x26xf32, #tpu.memory_space<vmem>>, vector<16x26xf32>
    %cst_66 = arith.constant 0.0360007733 : f32
    %126 = vector.broadcast %cst_66 : f32 to vector<16x26xf32>
    %127 = arith.mulf %126, %125 : vector<16x26xf32>
    %128 = arith.addf %124, %127 : vector<16x26xf32>
    %c9_67 = arith.constant 9 : index
    %c0_68 = arith.constant 0 : index
    %129 = vector.load %arg8[%c9_67, %c0_68] : memref<26x26xf32, #tpu.memory_space<vmem>>, vector<16x26xf32>
    %cst_69 = arith.constant 0.00759875868 : f32
    %130 = vector.broadcast %cst_69 : f32 to vector<16x26xf32>
    %131 = arith.mulf %130, %129 : vector<16x26xf32>
    %132 = arith.addf %128, %131 : vector<16x26xf32>
    %c10_70 = arith.constant 10 : index
    %c0_71 = arith.constant 0 : index
    %133 = vector.load %arg8[%c10_70, %c0_71] : memref<26x26xf32, #tpu.memory_space<vmem>>, vector<16x26xf32>
    %cst_72 = arith.constant 0.00102838024 : f32
    %134 = vector.broadcast %cst_72 : f32 to vector<16x26xf32>
    %135 = arith.mulf %134, %133 : vector<16x26xf32>
    %136 = arith.addf %132, %135 : vector<16x26xf32>
    %137 = vector.extract_strided_slice %136 {offsets = [0, 0], sizes = [16, 16], strides = [1, 1]} : vector<16x26xf32> to vector<16x16xf32>
    %cst_73 = arith.constant 0.00102838024 : f32
    %138 = vector.broadcast %cst_73 : f32 to vector<16x16xf32>
    %139 = arith.mulf %138, %137 : vector<16x16xf32>
    %140 = vector.extract_strided_slice %136 {offsets = [0, 1], sizes = [16, 16], strides = [1, 1]} : vector<16x26xf32> to vector<16x16xf32>
    %cst_74 = arith.constant 0.00759875868 : f32
    %141 = vector.broadcast %cst_74 : f32 to vector<16x16xf32>
    %142 = arith.mulf %141, %140 : vector<16x16xf32>
    %143 = arith.addf %139, %142 : vector<16x16xf32>
    %144 = vector.extract_strided_slice %136 {offsets = [0, 2], sizes = [16, 16], strides = [1, 1]} : vector<16x26xf32> to vector<16x16xf32>
    %cst_75 = arith.constant 0.0360007733 : f32
    %145 = vector.broadcast %cst_75 : f32 to vector<16x16xf32>
    %146 = arith.mulf %145, %144 : vector<16x16xf32>
    %147 = arith.addf %143, %146 : vector<16x16xf32>
    %148 = vector.extract_strided_slice %136 {offsets = [0, 3], sizes = [16, 16], strides = [1, 1]} : vector<16x26xf32> to vector<16x16xf32>
    %cst_76 = arith.constant 0.109360695 : f32
    %149 = vector.broadcast %cst_76 : f32 to vector<16x16xf32>
    %150 = arith.mulf %149, %148 : vector<16x16xf32>
    %151 = arith.addf %147, %150 : vector<16x16xf32>
    %152 = vector.extract_strided_slice %136 {offsets = [0, 4], sizes = [16, 16], strides = [1, 1]} : vector<16x26xf32> to vector<16x16xf32>
    %cst_77 = arith.constant 0.213005543 : f32
    %153 = vector.broadcast %cst_77 : f32 to vector<16x16xf32>
    %154 = arith.mulf %153, %152 : vector<16x16xf32>
    %155 = arith.addf %151, %154 : vector<16x16xf32>
    %156 = vector.extract_strided_slice %136 {offsets = [0, 5], sizes = [16, 16], strides = [1, 1]} : vector<16x26xf32> to vector<16x16xf32>
    %cst_78 = arith.constant 0.266011745 : f32
    %157 = vector.broadcast %cst_78 : f32 to vector<16x16xf32>
    %158 = arith.mulf %157, %156 : vector<16x16xf32>
    %159 = arith.addf %155, %158 : vector<16x16xf32>
    %160 = vector.extract_strided_slice %136 {offsets = [0, 6], sizes = [16, 16], strides = [1, 1]} : vector<16x26xf32> to vector<16x16xf32>
    %cst_79 = arith.constant 0.213005543 : f32
    %161 = vector.broadcast %cst_79 : f32 to vector<16x16xf32>
    %162 = arith.mulf %161, %160 : vector<16x16xf32>
    %163 = arith.addf %159, %162 : vector<16x16xf32>
    %164 = vector.extract_strided_slice %136 {offsets = [0, 7], sizes = [16, 16], strides = [1, 1]} : vector<16x26xf32> to vector<16x16xf32>
    %cst_80 = arith.constant 0.109360695 : f32
    %165 = vector.broadcast %cst_80 : f32 to vector<16x16xf32>
    %166 = arith.mulf %165, %164 : vector<16x16xf32>
    %167 = arith.addf %163, %166 : vector<16x16xf32>
    %168 = vector.extract_strided_slice %136 {offsets = [0, 8], sizes = [16, 16], strides = [1, 1]} : vector<16x26xf32> to vector<16x16xf32>
    %cst_81 = arith.constant 0.0360007733 : f32
    %169 = vector.broadcast %cst_81 : f32 to vector<16x16xf32>
    %170 = arith.mulf %169, %168 : vector<16x16xf32>
    %171 = arith.addf %167, %170 : vector<16x16xf32>
    %172 = vector.extract_strided_slice %136 {offsets = [0, 9], sizes = [16, 16], strides = [1, 1]} : vector<16x26xf32> to vector<16x16xf32>
    %cst_82 = arith.constant 0.00759875868 : f32
    %173 = vector.broadcast %cst_82 : f32 to vector<16x16xf32>
    %174 = arith.mulf %173, %172 : vector<16x16xf32>
    %175 = arith.addf %171, %174 : vector<16x16xf32>
    %176 = vector.extract_strided_slice %136 {offsets = [0, 10], sizes = [16, 16], strides = [1, 1]} : vector<16x26xf32> to vector<16x16xf32>
    %cst_83 = arith.constant 0.00102838024 : f32
    %177 = vector.broadcast %cst_83 : f32 to vector<16x16xf32>
    %178 = arith.mulf %177, %176 : vector<16x16xf32>
    %179 = arith.addf %175, %178 : vector<16x16xf32>
    %180 = arith.mulf %91, %91 : vector<16x16xf32>
    %181 = arith.subf %179, %180 : vector<16x16xf32>
    %c0_84 = arith.constant 0 : index
    %c0_85 = arith.constant 0 : index
    %182 = vector.load %arg9[%c0_84, %c0_85] : memref<16x16xf32, #tpu.memory_space<vmem>>, vector<16x16xf32>
    tpu.vector_store %arg9[%c0_84, %c0_85], %91 {strides = array<i32>} : memref<16x16xf32, #tpu.memory_space<vmem>>, vector<16x16xf32>,
    %c0_86 = arith.constant 0 : index
    %c0_87 = arith.constant 0 : index
    %183 = vector.load %arg10[%c0_86, %c0_87] : memref<16x16xf32, #tpu.memory_space<vmem>>, vector<16x16xf32>
    tpu.vector_store %arg10[%c0_86, %c0_87], %181 {strides = array<i32>} : memref<16x16xf32, #tpu.memory_space<vmem>>, vector<16x16xf32>,
    %c0_88 = arith.constant 0 : index
    %c0_89 = arith.constant 0 : index
    %c0_90 = arith.constant 0 : index
    %184 = vector.load %arg1[%c0_88, %c0_89, %c0_90] : memref<1x16x16xf32, #tpu.memory_space<vmem>>, vector<1x16x16xf32>
    %185 = vector.shape_cast %184 : vector<1x16x16xf32> to vector<16x16xf32>
    %c5_91 = arith.constant 5 : index
    %c5_92 = arith.constant 5 : index
    %186 = vector.load %arg8[%c5_91, %c5_92] : memref<26x26xf32, #tpu.memory_space<vmem>>, vector<16x16xf32>
    tpu.vector_store %arg8[%c5_91, %c5_92], %185 {strides = array<i32>} : memref<26x26xf32, #tpu.memory_space<vmem>>, vector<16x16xf32>,
    %c4_93 = arith.constant 4 : index
    %c4_94 = arith.constant 4 : index
    %187 = vector.load %arg8[%c4_93, %c4_94] : memref<26x26xf32, #tpu.memory_space<vmem>>, vector<16x18xf32>
    %c5_95 = arith.constant 5 : index
    %c4_96 = arith.constant 4 : index
    %188 = vector.load %arg8[%c5_95, %c4_96] : memref<26x26xf32, #tpu.memory_space<vmem>>, vector<16x18xf32>
    %c6_97 = arith.constant 6 : index
    %c4_98 = arith.constant 4 : index
    %189 = vector.load %arg8[%c6_97, %c4_98] : memref<26x26xf32, #tpu.memory_space<vmem>>, vector<16x18xf32>
    %cst_99 = arith.constant 2.000000e+00 : f32
    %190 = vector.broadcast %cst_99 : f32 to vector<16x18xf32>
    %191 = arith.mulf %190, %188 : vector<16x18xf32>
    %192 = arith.addf %187, %191 : vector<16x18xf32>
    %193 = arith.addf %192, %189 : vector<16x18xf32>
    %194 = arith.subf %187, %189 : vector<16x18xf32>
    %195 = vector.extract_strided_slice %193 {offsets = [0, 2], sizes = [16, 16], strides = [1, 1]} : vector<16x18xf32> to vector<16x16xf32>
    %196 = vector.extract_strided_slice %193 {offsets = [0, 0], sizes = [16, 16], strides = [1, 1]} : vector<16x18xf32> to vector<16x16xf32>
    %197 = arith.subf %195, %196 : vector<16x16xf32>
    %198 = vector.extract_strided_slice %194 {offsets = [0, 0], sizes = [16, 16], strides = [1, 1]} : vector<16x18xf32> to vector<16x16xf32>
    %199 = vector.extract_strided_slice %194 {offsets = [0, 1], sizes = [16, 16], strides = [1, 1]} : vector<16x18xf32> to vector<16x16xf32>
    %cst_100 = arith.constant 2.000000e+00 : f32
    %200 = vector.broadcast %cst_100 : f32 to vector<16x16xf32>
    %201 = arith.mulf %200, %199 : vector<16x16xf32>
    %202 = arith.addf %198, %201 : vector<16x16xf32>
    %203 = vector.extract_strided_slice %194 {offsets = [0, 2], sizes = [16, 16], strides = [1, 1]} : vector<16x18xf32> to vector<16x16xf32>
    %204 = arith.addf %202, %203 : vector<16x16xf32>
    %205 = math.absf %197 : vector<16x16xf32>
    %206 = math.absf %204 : vector<16x16xf32>
    %207 = arith.addf %205, %206 : vector<16x16xf32>
    %c0_101 = arith.constant 0 : index
    %c0_102 = arith.constant 0 : index
    %208 = vector.load %arg11[%c0_101, %c0_102] : memref<8x128xf32, #tpu.memory_space<vmem>>, vector<1x128xf32>
    %209 = vector.shape_cast %207 : vector<16x16xf32> to vector<1x16x16xf32>
    %cst_103 = arith.constant dense<0.000000e+00> : vector<1xf32>
    %210 = vector.multi_reduction <add>, %209, %cst_103 [1, 2] : vector<1x16x16xf32> to vector<1xf32>
    %211 = vector.shape_cast %210 : vector<1xf32> to vector<1x1x1xf32>
    %212 = vector.extract %211[0, 0, 0] : f32 from vector<1x1x1xf32>
    %213 = vector.broadcast %212 : f32 to vector<1x128xf32>
    %214 = arith.addf %208, %213 : vector<1x128xf32>
    %c0_104 = arith.constant 0 : index
    %c0_105 = arith.constant 0 : index
    %215 = vector.load %arg11[%c0_104, %c0_105] : memref<8x128xf32, #tpu.memory_space<vmem>>, vector<1x128xf32>
    tpu.vector_store %arg11[%c0_104, %c0_105], %214 {strides = array<i32>} : memref<8x128xf32, #tpu.memory_space<vmem>>, vector<1x128xf32>,
    %c0_106 = arith.constant 0 : index
    %c0_107 = arith.constant 0 : index
    %216 = vector.load %arg8[%c0_106, %c0_107] : memref<26x26xf32, #tpu.memory_space<vmem>>, vector<16x26xf32>
    %cst_108 = arith.constant 0.00102838024 : f32
    %217 = vector.broadcast %cst_108 : f32 to vector<16x26xf32>
    %218 = arith.mulf %217, %216 : vector<16x26xf32>
    %c1_109 = arith.constant 1 : index
    %c0_110 = arith.constant 0 : index
    %219 = vector.load %arg8[%c1_109, %c0_110] : memref<26x26xf32, #tpu.memory_space<vmem>>, vector<16x26xf32>
    %cst_111 = arith.constant 0.00759875868 : f32
    %220 = vector.broadcast %cst_111 : f32 to vector<16x26xf32>
    %221 = arith.mulf %220, %219 : vector<16x26xf32>
    %222 = arith.addf %218, %221 : vector<16x26xf32>
    %c2_112 = arith.constant 2 : index
    %c0_113 = arith.constant 0 : index
    %223 = vector.load %arg8[%c2_112, %c0_113] : memref<26x26xf32, #tpu.memory_space<vmem>>, vector<16x26xf32>
    %cst_114 = arith.constant 0.0360007733 : f32
    %224 = vector.broadcast %cst_114 : f32 to vector<16x26xf32>
    %225 = arith.mulf %224, %223 : vector<16x26xf32>
    %226 = arith.addf %222, %225 : vector<16x26xf32>
    %c3_115 = arith.constant 3 : index
    %c0_116 = arith.constant 0 : index
    %227 = vector.load %arg8[%c3_115, %c0_116] : memref<26x26xf32, #tpu.memory_space<vmem>>, vector<16x26xf32>
    %cst_117 = arith.constant 0.109360695 : f32
    %228 = vector.broadcast %cst_117 : f32 to vector<16x26xf32>
    %229 = arith.mulf %228, %227 : vector<16x26xf32>
    %230 = arith.addf %226, %229 : vector<16x26xf32>
    %c4_118 = arith.constant 4 : index
    %c0_119 = arith.constant 0 : index
    %231 = vector.load %arg8[%c4_118, %c0_119] : memref<26x26xf32, #tpu.memory_space<vmem>>, vector<16x26xf32>
    %cst_120 = arith.constant 0.213005543 : f32
    %232 = vector.broadcast %cst_120 : f32 to vector<16x26xf32>
    %233 = arith.mulf %232, %231 : vector<16x26xf32>
    %234 = arith.addf %230, %233 : vector<16x26xf32>
    %c5_121 = arith.constant 5 : index
    %c0_122 = arith.constant 0 : index
    %235 = vector.load %arg8[%c5_121, %c0_122] : memref<26x26xf32, #tpu.memory_space<vmem>>, vector<16x26xf32>
    %cst_123 = arith.constant 0.266011745 : f32
    %236 = vector.broadcast %cst_123 : f32 to vector<16x26xf32>
    %237 = arith.mulf %236, %235 : vector<16x26xf32>
    %238 = arith.addf %234, %237 : vector<16x26xf32>
    %c6_124 = arith.constant 6 : index
    %c0_125 = arith.constant 0 : index
    %239 = vector.load %arg8[%c6_124, %c0_125] : memref<26x26xf32, #tpu.memory_space<vmem>>, vector<16x26xf32>
    %cst_126 = arith.constant 0.213005543 : f32
    %240 = vector.broadcast %cst_126 : f32 to vector<16x26xf32>
    %241 = arith.mulf %240, %239 : vector<16x26xf32>
    %242 = arith.addf %238, %241 : vector<16x26xf32>
    %c7_127 = arith.constant 7 : index
    %c0_128 = arith.constant 0 : index
    %243 = vector.load %arg8[%c7_127, %c0_128] : memref<26x26xf32, #tpu.memory_space<vmem>>, vector<16x26xf32>
    %cst_129 = arith.constant 0.109360695 : f32
    %244 = vector.broadcast %cst_129 : f32 to vector<16x26xf32>
    %245 = arith.mulf %244, %243 : vector<16x26xf32>
    %246 = arith.addf %242, %245 : vector<16x26xf32>
    %c8_130 = arith.constant 8 : index
    %c0_131 = arith.constant 0 : index
    %247 = vector.load %arg8[%c8_130, %c0_131] : memref<26x26xf32, #tpu.memory_space<vmem>>, vector<16x26xf32>
    %cst_132 = arith.constant 0.0360007733 : f32
    %248 = vector.broadcast %cst_132 : f32 to vector<16x26xf32>
    %249 = arith.mulf %248, %247 : vector<16x26xf32>
    %250 = arith.addf %246, %249 : vector<16x26xf32>
    %c9_133 = arith.constant 9 : index
    %c0_134 = arith.constant 0 : index
    %251 = vector.load %arg8[%c9_133, %c0_134] : memref<26x26xf32, #tpu.memory_space<vmem>>, vector<16x26xf32>
    %cst_135 = arith.constant 0.00759875868 : f32
    %252 = vector.broadcast %cst_135 : f32 to vector<16x26xf32>
    %253 = arith.mulf %252, %251 : vector<16x26xf32>
    %254 = arith.addf %250, %253 : vector<16x26xf32>
    %c10_136 = arith.constant 10 : index
    %c0_137 = arith.constant 0 : index
    %255 = vector.load %arg8[%c10_136, %c0_137] : memref<26x26xf32, #tpu.memory_space<vmem>>, vector<16x26xf32>
    %cst_138 = arith.constant 0.00102838024 : f32
    %256 = vector.broadcast %cst_138 : f32 to vector<16x26xf32>
    %257 = arith.mulf %256, %255 : vector<16x26xf32>
    %258 = arith.addf %254, %257 : vector<16x26xf32>
    %259 = vector.extract_strided_slice %258 {offsets = [0, 0], sizes = [16, 16], strides = [1, 1]} : vector<16x26xf32> to vector<16x16xf32>
    %cst_139 = arith.constant 0.00102838024 : f32
    %260 = vector.broadcast %cst_139 : f32 to vector<16x16xf32>
    %261 = arith.mulf %260, %259 : vector<16x16xf32>
    %262 = vector.extract_strided_slice %258 {offsets = [0, 1], sizes = [16, 16], strides = [1, 1]} : vector<16x26xf32> to vector<16x16xf32>
    %cst_140 = arith.constant 0.00759875868 : f32
    %263 = vector.broadcast %cst_140 : f32 to vector<16x16xf32>
    %264 = arith.mulf %263, %262 : vector<16x16xf32>
    %265 = arith.addf %261, %264 : vector<16x16xf32>
    %266 = vector.extract_strided_slice %258 {offsets = [0, 2], sizes = [16, 16], strides = [1, 1]} : vector<16x26xf32> to vector<16x16xf32>
    %cst_141 = arith.constant 0.0360007733 : f32
    %267 = vector.broadcast %cst_141 : f32 to vector<16x16xf32>
    %268 = arith.mulf %267, %266 : vector<16x16xf32>
    %269 = arith.addf %265, %268 : vector<16x16xf32>
    %270 = vector.extract_strided_slice %258 {offsets = [0, 3], sizes = [16, 16], strides = [1, 1]} : vector<16x26xf32> to vector<16x16xf32>
    %cst_142 = arith.constant 0.109360695 : f32
    %271 = vector.broadcast %cst_142 : f32 to vector<16x16xf32>
    %272 = arith.mulf %271, %270 : vector<16x16xf32>
    %273 = arith.addf %269, %272 : vector<16x16xf32>
    %274 = vector.extract_strided_slice %258 {offsets = [0, 4], sizes = [16, 16], strides = [1, 1]} : vector<16x26xf32> to vector<16x16xf32>
    %cst_143 = arith.constant 0.213005543 : f32
    %275 = vector.broadcast %cst_143 : f32 to vector<16x16xf32>
    %276 = arith.mulf %275, %274 : vector<16x16xf32>
    %277 = arith.addf %273, %276 : vector<16x16xf32>
    %278 = vector.extract_strided_slice %258 {offsets = [0, 5], sizes = [16, 16], strides = [1, 1]} : vector<16x26xf32> to vector<16x16xf32>
    %cst_144 = arith.constant 0.266011745 : f32
    %279 = vector.broadcast %cst_144 : f32 to vector<16x16xf32>
    %280 = arith.mulf %279, %278 : vector<16x16xf32>
    %281 = arith.addf %277, %280 : vector<16x16xf32>
    %282 = vector.extract_strided_slice %258 {offsets = [0, 6], sizes = [16, 16], strides = [1, 1]} : vector<16x26xf32> to vector<16x16xf32>
    %cst_145 = arith.constant 0.213005543 : f32
    %283 = vector.broadcast %cst_145 : f32 to vector<16x16xf32>
    %284 = arith.mulf %283, %282 : vector<16x16xf32>
    %285 = arith.addf %281, %284 : vector<16x16xf32>
    %286 = vector.extract_strided_slice %258 {offsets = [0, 7], sizes = [16, 16], strides = [1, 1]} : vector<16x26xf32> to vector<16x16xf32>
    %cst_146 = arith.constant 0.109360695 : f32
    %287 = vector.broadcast %cst_146 : f32 to vector<16x16xf32>
    %288 = arith.mulf %287, %286 : vector<16x16xf32>
    %289 = arith.addf %285, %288 : vector<16x16xf32>
    %290 = vector.extract_strided_slice %258 {offsets = [0, 8], sizes = [16, 16], strides = [1, 1]} : vector<16x26xf32> to vector<16x16xf32>
    %cst_147 = arith.constant 0.0360007733 : f32
    %291 = vector.broadcast %cst_147 : f32 to vector<16x16xf32>
    %292 = arith.mulf %291, %290 : vector<16x16xf32>
    %293 = arith.addf %289, %292 : vector<16x16xf32>
    %294 = vector.extract_strided_slice %258 {offsets = [0, 9], sizes = [16, 16], strides = [1, 1]} : vector<16x26xf32> to vector<16x16xf32>
    %cst_148 = arith.constant 0.00759875868 : f32
    %295 = vector.broadcast %cst_148 : f32 to vector<16x16xf32>
    %296 = arith.mulf %295, %294 : vector<16x16xf32>
    %297 = arith.addf %293, %296 : vector<16x16xf32>
    %298 = vector.extract_strided_slice %258 {offsets = [0, 10], sizes = [16, 16], strides = [1, 1]} : vector<16x26xf32> to vector<16x16xf32>
    %cst_149 = arith.constant 0.00102838024 : f32
    %299 = vector.broadcast %cst_149 : f32 to vector<16x16xf32>
    %300 = arith.mulf %299, %298 : vector<16x16xf32>
    %301 = arith.addf %297, %300 : vector<16x16xf32>
    %302 = arith.mulf %185, %185 : vector<16x16xf32>
    %c5_150 = arith.constant 5 : index
    %c5_151 = arith.constant 5 : index
    %303 = vector.load %arg8[%c5_150, %c5_151] : memref<26x26xf32, #tpu.memory_space<vmem>>, vector<16x16xf32>
    tpu.vector_store %arg8[%c5_150, %c5_151], %302 {strides = array<i32>} : memref<26x26xf32, #tpu.memory_space<vmem>>, vector<16x16xf32>,
    %c0_152 = arith.constant 0 : index
    %c0_153 = arith.constant 0 : index
    %304 = vector.load %arg8[%c0_152, %c0_153] : memref<26x26xf32, #tpu.memory_space<vmem>>, vector<16x26xf32>
    %cst_154 = arith.constant 0.00102838024 : f32
    %305 = vector.broadcast %cst_154 : f32 to vector<16x26xf32>
    %306 = arith.mulf %305, %304 : vector<16x26xf32>
    %c1_155 = arith.constant 1 : index
    %c0_156 = arith.constant 0 : index
    %307 = vector.load %arg8[%c1_155, %c0_156] : memref<26x26xf32, #tpu.memory_space<vmem>>, vector<16x26xf32>
    %cst_157 = arith.constant 0.00759875868 : f32
    %308 = vector.broadcast %cst_157 : f32 to vector<16x26xf32>
    %309 = arith.mulf %308, %307 : vector<16x26xf32>
    %310 = arith.addf %306, %309 : vector<16x26xf32>
    %c2_158 = arith.constant 2 : index
    %c0_159 = arith.constant 0 : index
    %311 = vector.load %arg8[%c2_158, %c0_159] : memref<26x26xf32, #tpu.memory_space<vmem>>, vector<16x26xf32>
    %cst_160 = arith.constant 0.0360007733 : f32
    %312 = vector.broadcast %cst_160 : f32 to vector<16x26xf32>
    %313 = arith.mulf %312, %311 : vector<16x26xf32>
    %314 = arith.addf %310, %313 : vector<16x26xf32>
    %c3_161 = arith.constant 3 : index
    %c0_162 = arith.constant 0 : index
    %315 = vector.load %arg8[%c3_161, %c0_162] : memref<26x26xf32, #tpu.memory_space<vmem>>, vector<16x26xf32>
    %cst_163 = arith.constant 0.109360695 : f32
    %316 = vector.broadcast %cst_163 : f32 to vector<16x26xf32>
    %317 = arith.mulf %316, %315 : vector<16x26xf32>
    %318 = arith.addf %314, %317 : vector<16x26xf32>
    %c4_164 = arith.constant 4 : index
    %c0_165 = arith.constant 0 : index
    %319 = vector.load %arg8[%c4_164, %c0_165] : memref<26x26xf32, #tpu.memory_space<vmem>>, vector<16x26xf32>
    %cst_166 = arith.constant 0.213005543 : f32
    %320 = vector.broadcast %cst_166 : f32 to vector<16x26xf32>
    %321 = arith.mulf %320, %319 : vector<16x26xf32>
    %322 = arith.addf %318, %321 : vector<16x26xf32>
    %c5_167 = arith.constant 5 : index
    %c0_168 = arith.constant 0 : index
    %323 = vector.load %arg8[%c5_167, %c0_168] : memref<26x26xf32, #tpu.memory_space<vmem>>, vector<16x26xf32>
    %cst_169 = arith.constant 0.266011745 : f32
    %324 = vector.broadcast %cst_169 : f32 to vector<16x26xf32>
    %325 = arith.mulf %324, %323 : vector<16x26xf32>
    %326 = arith.addf %322, %325 : vector<16x26xf32>
    %c6_170 = arith.constant 6 : index
    %c0_171 = arith.constant 0 : index
    %327 = vector.load %arg8[%c6_170, %c0_171] : memref<26x26xf32, #tpu.memory_space<vmem>>, vector<16x26xf32>
    %cst_172 = arith.constant 0.213005543 : f32
    %328 = vector.broadcast %cst_172 : f32 to vector<16x26xf32>
    %329 = arith.mulf %328, %327 : vector<16x26xf32>
    %330 = arith.addf %326, %329 : vector<16x26xf32>
    %c7_173 = arith.constant 7 : index
    %c0_174 = arith.constant 0 : index
    %331 = vector.load %arg8[%c7_173, %c0_174] : memref<26x26xf32, #tpu.memory_space<vmem>>, vector<16x26xf32>
    %cst_175 = arith.constant 0.109360695 : f32
    %332 = vector.broadcast %cst_175 : f32 to vector<16x26xf32>
    %333 = arith.mulf %332, %331 : vector<16x26xf32>
    %334 = arith.addf %330, %333 : vector<16x26xf32>
    %c8_176 = arith.constant 8 : index
    %c0_177 = arith.constant 0 : index
    %335 = vector.load %arg8[%c8_176, %c0_177] : memref<26x26xf32, #tpu.memory_space<vmem>>, vector<16x26xf32>
    %cst_178 = arith.constant 0.0360007733 : f32
    %336 = vector.broadcast %cst_178 : f32 to vector<16x26xf32>
    %337 = arith.mulf %336, %335 : vector<16x26xf32>
    %338 = arith.addf %334, %337 : vector<16x26xf32>
    %c9_179 = arith.constant 9 : index
    %c0_180 = arith.constant 0 : index
    %339 = vector.load %arg8[%c9_179, %c0_180] : memref<26x26xf32, #tpu.memory_space<vmem>>, vector<16x26xf32>
    %cst_181 = arith.constant 0.00759875868 : f32
    %340 = vector.broadcast %cst_181 : f32 to vector<16x26xf32>
    %341 = arith.mulf %340, %339 : vector<16x26xf32>
    %342 = arith.addf %338, %341 : vector<16x26xf32>
    %c10_182 = arith.constant 10 : index
    %c0_183 = arith.constant 0 : index
    %343 = vector.load %arg8[%c10_182, %c0_183] : memref<26x26xf32, #tpu.memory_space<vmem>>, vector<16x26xf32>
    %cst_184 = arith.constant 0.00102838024 : f32
    %344 = vector.broadcast %cst_184 : f32 to vector<16x26xf32>
    %345 = arith.mulf %344, %343 : vector<16x26xf32>
    %346 = arith.addf %342, %345 : vector<16x26xf32>
    %347 = vector.extract_strided_slice %346 {offsets = [0, 0], sizes = [16, 16], strides = [1, 1]} : vector<16x26xf32> to vector<16x16xf32>
    %cst_185 = arith.constant 0.00102838024 : f32
    %348 = vector.broadcast %cst_185 : f32 to vector<16x16xf32>
    %349 = arith.mulf %348, %347 : vector<16x16xf32>
    %350 = vector.extract_strided_slice %346 {offsets = [0, 1], sizes = [16, 16], strides = [1, 1]} : vector<16x26xf32> to vector<16x16xf32>
    %cst_186 = arith.constant 0.00759875868 : f32
    %351 = vector.broadcast %cst_186 : f32 to vector<16x16xf32>
    %352 = arith.mulf %351, %350 : vector<16x16xf32>
    %353 = arith.addf %349, %352 : vector<16x16xf32>
    %354 = vector.extract_strided_slice %346 {offsets = [0, 2], sizes = [16, 16], strides = [1, 1]} : vector<16x26xf32> to vector<16x16xf32>
    %cst_187 = arith.constant 0.0360007733 : f32
    %355 = vector.broadcast %cst_187 : f32 to vector<16x16xf32>
    %356 = arith.mulf %355, %354 : vector<16x16xf32>
    %357 = arith.addf %353, %356 : vector<16x16xf32>
    %358 = vector.extract_strided_slice %346 {offsets = [0, 3], sizes = [16, 16], strides = [1, 1]} : vector<16x26xf32> to vector<16x16xf32>
    %cst_188 = arith.constant 0.109360695 : f32
    %359 = vector.broadcast %cst_188 : f32 to vector<16x16xf32>
    %360 = arith.mulf %359, %358 : vector<16x16xf32>
    %361 = arith.addf %357, %360 : vector<16x16xf32>
    %362 = vector.extract_strided_slice %346 {offsets = [0, 4], sizes = [16, 16], strides = [1, 1]} : vector<16x26xf32> to vector<16x16xf32>
    %cst_189 = arith.constant 0.213005543 : f32
    %363 = vector.broadcast %cst_189 : f32 to vector<16x16xf32>
    %364 = arith.mulf %363, %362 : vector<16x16xf32>
    %365 = arith.addf %361, %364 : vector<16x16xf32>
    %366 = vector.extract_strided_slice %346 {offsets = [0, 5], sizes = [16, 16], strides = [1, 1]} : vector<16x26xf32> to vector<16x16xf32>
    %cst_190 = arith.constant 0.266011745 : f32
    %367 = vector.broadcast %cst_190 : f32 to vector<16x16xf32>
    %368 = arith.mulf %367, %366 : vector<16x16xf32>
    %369 = arith.addf %365, %368 : vector<16x16xf32>
    %370 = vector.extract_strided_slice %346 {offsets = [0, 6], sizes = [16, 16], strides = [1, 1]} : vector<16x26xf32> to vector<16x16xf32>
    %cst_191 = arith.constant 0.213005543 : f32
    %371 = vector.broadcast %cst_191 : f32 to vector<16x16xf32>
    %372 = arith.mulf %371, %370 : vector<16x16xf32>
    %373 = arith.addf %369, %372 : vector<16x16xf32>
    %374 = vector.extract_strided_slice %346 {offsets = [0, 7], sizes = [16, 16], strides = [1, 1]} : vector<16x26xf32> to vector<16x16xf32>
    %cst_192 = arith.constant 0.109360695 : f32
    %375 = vector.broadcast %cst_192 : f32 to vector<16x16xf32>
    %376 = arith.mulf %375, %374 : vector<16x16xf32>
    %377 = arith.addf %373, %376 : vector<16x16xf32>
    %378 = vector.extract_strided_slice %346 {offsets = [0, 8], sizes = [16, 16], strides = [1, 1]} : vector<16x26xf32> to vector<16x16xf32>
    %cst_193 = arith.constant 0.0360007733 : f32
    %379 = vector.broadcast %cst_193 : f32 to vector<16x16xf32>
    %380 = arith.mulf %379, %378 : vector<16x16xf32>
    %381 = arith.addf %377, %380 : vector<16x16xf32>
    %382 = vector.extract_strided_slice %346 {offsets = [0, 9], sizes = [16, 16], strides = [1, 1]} : vector<16x26xf32> to vector<16x16xf32>
    %cst_194 = arith.constant 0.00759875868 : f32
    %383 = vector.broadcast %cst_194 : f32 to vector<16x16xf32>
    %384 = arith.mulf %383, %382 : vector<16x16xf32>
    %385 = arith.addf %381, %384 : vector<16x16xf32>
    %386 = vector.extract_strided_slice %346 {offsets = [0, 10], sizes = [16, 16], strides = [1, 1]} : vector<16x26xf32> to vector<16x16xf32>
    %cst_195 = arith.constant 0.00102838024 : f32
    %387 = vector.broadcast %cst_195 : f32 to vector<16x16xf32>
    %388 = arith.mulf %387, %386 : vector<16x16xf32>
    %389 = arith.addf %385, %388 : vector<16x16xf32>
    %390 = arith.mulf %301, %301 : vector<16x16xf32>
    %391 = arith.subf %389, %390 : vector<16x16xf32>
    %c0_196 = arith.constant 0 : index
    %c0_197 = arith.constant 0 : index
    %392 = vector.load %arg9[%c0_196, %c0_197] : memref<16x16xf32, #tpu.memory_space<vmem>>, vector<16x16xf32>
    %c0_198 = arith.constant 0 : index
    %c0_199 = arith.constant 0 : index
    %393 = vector.load %arg10[%c0_198, %c0_199] : memref<16x16xf32, #tpu.memory_space<vmem>>, vector<16x16xf32>
    %394 = arith.mulf %185, %4 : vector<16x16xf32>
    %c5_200 = arith.constant 5 : index
    %c5_201 = arith.constant 5 : index
    %395 = vector.load %arg8[%c5_200, %c5_201] : memref<26x26xf32, #tpu.memory_space<vmem>>, vector<16x16xf32>
    tpu.vector_store %arg8[%c5_200, %c5_201], %394 {strides = array<i32>} : memref<26x26xf32, #tpu.memory_space<vmem>>, vector<16x16xf32>,
    %c0_202 = arith.constant 0 : index
    %c0_203 = arith.constant 0 : index
    %396 = vector.load %arg8[%c0_202, %c0_203] : memref<26x26xf32, #tpu.memory_space<vmem>>, vector<16x26xf32>
    %cst_204 = arith.constant 0.00102838024 : f32
    %397 = vector.broadcast %cst_204 : f32 to vector<16x26xf32>
    %398 = arith.mulf %397, %396 : vector<16x26xf32>
    %c1_205 = arith.constant 1 : index
    %c0_206 = arith.constant 0 : index
    %399 = vector.load %arg8[%c1_205, %c0_206] : memref<26x26xf32, #tpu.memory_space<vmem>>, vector<16x26xf32>
    %cst_207 = arith.constant 0.00759875868 : f32
    %400 = vector.broadcast %cst_207 : f32 to vector<16x26xf32>
    %401 = arith.mulf %400, %399 : vector<16x26xf32>
    %402 = arith.addf %398, %401 : vector<16x26xf32>
    %c2_208 = arith.constant 2 : index
    %c0_209 = arith.constant 0 : index
    %403 = vector.load %arg8[%c2_208, %c0_209] : memref<26x26xf32, #tpu.memory_space<vmem>>, vector<16x26xf32>
    %cst_210 = arith.constant 0.0360007733 : f32
    %404 = vector.broadcast %cst_210 : f32 to vector<16x26xf32>
    %405 = arith.mulf %404, %403 : vector<16x26xf32>
    %406 = arith.addf %402, %405 : vector<16x26xf32>
    %c3_211 = arith.constant 3 : index
    %c0_212 = arith.constant 0 : index
    %407 = vector.load %arg8[%c3_211, %c0_212] : memref<26x26xf32, #tpu.memory_space<vmem>>, vector<16x26xf32>
    %cst_213 = arith.constant 0.109360695 : f32
    %408 = vector.broadcast %cst_213 : f32 to vector<16x26xf32>
    %409 = arith.mulf %408, %407 : vector<16x26xf32>
    %410 = arith.addf %406, %409 : vector<16x26xf32>
    %c4_214 = arith.constant 4 : index
    %c0_215 = arith.constant 0 : index
    %411 = vector.load %arg8[%c4_214, %c0_215] : memref<26x26xf32, #tpu.memory_space<vmem>>, vector<16x26xf32>
    %cst_216 = arith.constant 0.213005543 : f32
    %412 = vector.broadcast %cst_216 : f32 to vector<16x26xf32>
    %413 = arith.mulf %412, %411 : vector<16x26xf32>
    %414 = arith.addf %410, %413 : vector<16x26xf32>
    %c5_217 = arith.constant 5 : index
    %c0_218 = arith.constant 0 : index
    %415 = vector.load %arg8[%c5_217, %c0_218] : memref<26x26xf32, #tpu.memory_space<vmem>>, vector<16x26xf32>
    %cst_219 = arith.constant 0.266011745 : f32
    %416 = vector.broadcast %cst_219 : f32 to vector<16x26xf32>
    %417 = arith.mulf %416, %415 : vector<16x26xf32>
    %418 = arith.addf %414, %417 : vector<16x26xf32>
    %c6_220 = arith.constant 6 : index
    %c0_221 = arith.constant 0 : index
    %419 = vector.load %arg8[%c6_220, %c0_221] : memref<26x26xf32, #tpu.memory_space<vmem>>, vector<16x26xf32>
    %cst_222 = arith.constant 0.213005543 : f32
    %420 = vector.broadcast %cst_222 : f32 to vector<16x26xf32>
    %421 = arith.mulf %420, %419 : vector<16x26xf32>
    %422 = arith.addf %418, %421 : vector<16x26xf32>
    %c7_223 = arith.constant 7 : index
    %c0_224 = arith.constant 0 : index
    %423 = vector.load %arg8[%c7_223, %c0_224] : memref<26x26xf32, #tpu.memory_space<vmem>>, vector<16x26xf32>
    %cst_225 = arith.constant 0.109360695 : f32
    %424 = vector.broadcast %cst_225 : f32 to vector<16x26xf32>
    %425 = arith.mulf %424, %423 : vector<16x26xf32>
    %426 = arith.addf %422, %425 : vector<16x26xf32>
    %c8_226 = arith.constant 8 : index
    %c0_227 = arith.constant 0 : index
    %427 = vector.load %arg8[%c8_226, %c0_227] : memref<26x26xf32, #tpu.memory_space<vmem>>, vector<16x26xf32>
    %cst_228 = arith.constant 0.0360007733 : f32
    %428 = vector.broadcast %cst_228 : f32 to vector<16x26xf32>
    %429 = arith.mulf %428, %427 : vector<16x26xf32>
    %430 = arith.addf %426, %429 : vector<16x26xf32>
    %c9_229 = arith.constant 9 : index
    %c0_230 = arith.constant 0 : index
    %431 = vector.load %arg8[%c9_229, %c0_230] : memref<26x26xf32, #tpu.memory_space<vmem>>, vector<16x26xf32>
    %cst_231 = arith.constant 0.00759875868 : f32
    %432 = vector.broadcast %cst_231 : f32 to vector<16x26xf32>
    %433 = arith.mulf %432, %431 : vector<16x26xf32>
    %434 = arith.addf %430, %433 : vector<16x26xf32>
    %c10_232 = arith.constant 10 : index
    %c0_233 = arith.constant 0 : index
    %435 = vector.load %arg8[%c10_232, %c0_233] : memref<26x26xf32, #tpu.memory_space<vmem>>, vector<16x26xf32>
    %cst_234 = arith.constant 0.00102838024 : f32
    %436 = vector.broadcast %cst_234 : f32 to vector<16x26xf32>
    %437 = arith.mulf %436, %435 : vector<16x26xf32>
    %438 = arith.addf %434, %437 : vector<16x26xf32>
    %439 = vector.extract_strided_slice %438 {offsets = [0, 0], sizes = [16, 16], strides = [1, 1]} : vector<16x26xf32> to vector<16x16xf32>
    %cst_235 = arith.constant 0.00102838024 : f32
    %440 = vector.broadcast %cst_235 : f32 to vector<16x16xf32>
    %441 = arith.mulf %440, %439 : vector<16x16xf32>
    %442 = vector.extract_strided_slice %438 {offsets = [0, 1], sizes = [16, 16], strides = [1, 1]} : vector<16x26xf32> to vector<16x16xf32>
    %cst_236 = arith.constant 0.00759875868 : f32
    %443 = vector.broadcast %cst_236 : f32 to vector<16x16xf32>
    %444 = arith.mulf %443, %442 : vector<16x16xf32>
    %445 = arith.addf %441, %444 : vector<16x16xf32>
    %446 = vector.extract_strided_slice %438 {offsets = [0, 2], sizes = [16, 16], strides = [1, 1]} : vector<16x26xf32> to vector<16x16xf32>
    %cst_237 = arith.constant 0.0360007733 : f32
    %447 = vector.broadcast %cst_237 : f32 to vector<16x16xf32>
    %448 = arith.mulf %447, %446 : vector<16x16xf32>
    %449 = arith.addf %445, %448 : vector<16x16xf32>
    %450 = vector.extract_strided_slice %438 {offsets = [0, 3], sizes = [16, 16], strides = [1, 1]} : vector<16x26xf32> to vector<16x16xf32>
    %cst_238 = arith.constant 0.109360695 : f32
    %451 = vector.broadcast %cst_238 : f32 to vector<16x16xf32>
    %452 = arith.mulf %451, %450 : vector<16x16xf32>
    %453 = arith.addf %449, %452 : vector<16x16xf32>
    %454 = vector.extract_strided_slice %438 {offsets = [0, 4], sizes = [16, 16], strides = [1, 1]} : vector<16x26xf32> to vector<16x16xf32>
    %cst_239 = arith.constant 0.213005543 : f32
    %455 = vector.broadcast %cst_239 : f32 to vector<16x16xf32>
    %456 = arith.mulf %455, %454 : vector<16x16xf32>
    %457 = arith.addf %453, %456 : vector<16x16xf32>
    %458 = vector.extract_strided_slice %438 {offsets = [0, 5], sizes = [16, 16], strides = [1, 1]} : vector<16x26xf32> to vector<16x16xf32>
    %cst_240 = arith.constant 0.266011745 : f32
    %459 = vector.broadcast %cst_240 : f32 to vector<16x16xf32>
    %460 = arith.mulf %459, %458 : vector<16x16xf32>
    %461 = arith.addf %457, %460 : vector<16x16xf32>
    %462 = vector.extract_strided_slice %438 {offsets = [0, 6], sizes = [16, 16], strides = [1, 1]} : vector<16x26xf32> to vector<16x16xf32>
    %cst_241 = arith.constant 0.213005543 : f32
    %463 = vector.broadcast %cst_241 : f32 to vector<16x16xf32>
    %464 = arith.mulf %463, %462 : vector<16x16xf32>
    %465 = arith.addf %461, %464 : vector<16x16xf32>
    %466 = vector.extract_strided_slice %438 {offsets = [0, 7], sizes = [16, 16], strides = [1, 1]} : vector<16x26xf32> to vector<16x16xf32>
    %cst_242 = arith.constant 0.109360695 : f32
    %467 = vector.broadcast %cst_242 : f32 to vector<16x16xf32>
    %468 = arith.mulf %467, %466 : vector<16x16xf32>
    %469 = arith.addf %465, %468 : vector<16x16xf32>
    %470 = vector.extract_strided_slice %438 {offsets = [0, 8], sizes = [16, 16], strides = [1, 1]} : vector<16x26xf32> to vector<16x16xf32>
    %cst_243 = arith.constant 0.0360007733 : f32
    %471 = vector.broadcast %cst_243 : f32 to vector<16x16xf32>
    %472 = arith.mulf %471, %470 : vector<16x16xf32>
    %473 = arith.addf %469, %472 : vector<16x16xf32>
    %474 = vector.extract_strided_slice %438 {offsets = [0, 9], sizes = [16, 16], strides = [1, 1]} : vector<16x26xf32> to vector<16x16xf32>
    %cst_244 = arith.constant 0.00759875868 : f32
    %475 = vector.broadcast %cst_244 : f32 to vector<16x16xf32>
    %476 = arith.mulf %475, %474 : vector<16x16xf32>
    %477 = arith.addf %473, %476 : vector<16x16xf32>
    %478 = vector.extract_strided_slice %438 {offsets = [0, 10], sizes = [16, 16], strides = [1, 1]} : vector<16x26xf32> to vector<16x16xf32>
    %cst_245 = arith.constant 0.00102838024 : f32
    %479 = vector.broadcast %cst_245 : f32 to vector<16x16xf32>
    %480 = arith.mulf %479, %478 : vector<16x16xf32>
    %481 = arith.addf %477, %480 : vector<16x16xf32>
    %482 = arith.mulf %301, %392 : vector<16x16xf32>
    %483 = arith.subf %481, %482 : vector<16x16xf32>
    %cst_246 = arith.constant 2.000000e+00 : f32
    %484 = vector.broadcast %cst_246 : f32 to vector<16x16xf32>
    %485 = arith.mulf %484, %301 : vector<16x16xf32>
    %486 = arith.mulf %485, %392 : vector<16x16xf32>
    %cst_247 = arith.constant 9.99999974E-5 : f32
    %487 = vector.broadcast %cst_247 : f32 to vector<16x16xf32>
    %488 = arith.addf %486, %487 : vector<16x16xf32>
    %cst_248 = arith.constant 2.000000e+00 : f32
    %489 = vector.broadcast %cst_248 : f32 to vector<16x16xf32>
    %490 = arith.mulf %489, %483 : vector<16x16xf32>
    %cst_249 = arith.constant 8.99999984E-4 : f32
    %491 = vector.broadcast %cst_249 : f32 to vector<16x16xf32>
    %492 = arith.addf %490, %491 : vector<16x16xf32>
    %493 = arith.mulf %488, %492 : vector<16x16xf32>
    %494 = arith.mulf %301, %301 : vector<16x16xf32>
    %495 = arith.mulf %392, %392 : vector<16x16xf32>
    %496 = arith.addf %494, %495 : vector<16x16xf32>
    %cst_250 = arith.constant 9.99999974E-5 : f32
    %497 = vector.broadcast %cst_250 : f32 to vector<16x16xf32>
    %498 = arith.addf %496, %497 : vector<16x16xf32>
    %499 = arith.addf %391, %393 : vector<16x16xf32>
    %cst_251 = arith.constant 8.99999984E-4 : f32
    %500 = vector.broadcast %cst_251 : f32 to vector<16x16xf32>
    %501 = arith.addf %499, %500 : vector<16x16xf32>
    %502 = arith.mulf %498, %501 : vector<16x16xf32>
    %503 = arith.divf %493, %502 : vector<16x16xf32>
    %c0_252 = arith.constant 0 : index
    %c0_253 = arith.constant 0 : index
    %504 = vector.load %arg12[%c0_252, %c0_253] : memref<8x128xf32, #tpu.memory_space<vmem>>, vector<1x128xf32>
    %505 = vector.shape_cast %503 : vector<16x16xf32> to vector<1x16x16xf32>
    %cst_254 = arith.constant dense<0.000000e+00> : vector<1xf32>
    %506 = vector.multi_reduction <add>, %505, %cst_254 [1, 2] : vector<1x16x16xf32> to vector<1xf32>
    %507 = vector.shape_cast %506 : vector<1xf32> to vector<1x1x1xf32>
    %508 = vector.extract %507[0, 0, 0] : f32 from vector<1x1x1xf32>
    %509 = vector.broadcast %508 : f32 to vector<1x128xf32>
    %510 = arith.addf %504, %509 : vector<1x128xf32>
    %c0_255 = arith.constant 0 : index
    %c0_256 = arith.constant 0 : index
    %511 = vector.load %arg12[%c0_255, %c0_256] : memref<8x128xf32, #tpu.memory_space<vmem>>, vector<1x128xf32>
    tpu.vector_store %arg12[%c0_255, %c0_256], %510 {strides = array<i32>} : memref<8x128xf32, #tpu.memory_space<vmem>>, vector<1x128xf32>,
    %c0_257 = arith.constant 0 : index
    %c0_258 = arith.constant 0 : index
    %c0_259 = arith.constant 0 : index
    %512 = vector.load %arg2[%c0_257, %c0_258, %c0_259] : memref<1x16x16xf32, #tpu.memory_space<vmem>>, vector<1x16x16xf32>
    %513 = vector.shape_cast %512 : vector<1x16x16xf32> to vector<16x16xf32>
    %c5_260 = arith.constant 5 : index
    %c5_261 = arith.constant 5 : index
    %514 = vector.load %arg8[%c5_260, %c5_261] : memref<26x26xf32, #tpu.memory_space<vmem>>, vector<16x16xf32>
    tpu.vector_store %arg8[%c5_260, %c5_261], %513 {strides = array<i32>} : memref<26x26xf32, #tpu.memory_space<vmem>>, vector<16x16xf32>,
    %c4_262 = arith.constant 4 : index
    %c4_263 = arith.constant 4 : index
    %515 = vector.load %arg8[%c4_262, %c4_263] : memref<26x26xf32, #tpu.memory_space<vmem>>, vector<16x18xf32>
    %c5_264 = arith.constant 5 : index
    %c4_265 = arith.constant 4 : index
    %516 = vector.load %arg8[%c5_264, %c4_265] : memref<26x26xf32, #tpu.memory_space<vmem>>, vector<16x18xf32>
    %c6_266 = arith.constant 6 : index
    %c4_267 = arith.constant 4 : index
    %517 = vector.load %arg8[%c6_266, %c4_267] : memref<26x26xf32, #tpu.memory_space<vmem>>, vector<16x18xf32>
    %cst_268 = arith.constant 2.000000e+00 : f32
    %518 = vector.broadcast %cst_268 : f32 to vector<16x18xf32>
    %519 = arith.mulf %518, %516 : vector<16x18xf32>
    %520 = arith.addf %515, %519 : vector<16x18xf32>
    %521 = arith.addf %520, %517 : vector<16x18xf32>
    %522 = arith.subf %515, %517 : vector<16x18xf32>
    %523 = vector.extract_strided_slice %521 {offsets = [0, 2], sizes = [16, 16], strides = [1, 1]} : vector<16x18xf32> to vector<16x16xf32>
    %524 = vector.extract_strided_slice %521 {offsets = [0, 0], sizes = [16, 16], strides = [1, 1]} : vector<16x18xf32> to vector<16x16xf32>
    %525 = arith.subf %523, %524 : vector<16x16xf32>
    %526 = vector.extract_strided_slice %522 {offsets = [0, 0], sizes = [16, 16], strides = [1, 1]} : vector<16x18xf32> to vector<16x16xf32>
    %527 = vector.extract_strided_slice %522 {offsets = [0, 1], sizes = [16, 16], strides = [1, 1]} : vector<16x18xf32> to vector<16x16xf32>
    %cst_269 = arith.constant 2.000000e+00 : f32
    %528 = vector.broadcast %cst_269 : f32 to vector<16x16xf32>
    %529 = arith.mulf %528, %527 : vector<16x16xf32>
    %530 = arith.addf %526, %529 : vector<16x16xf32>
    %531 = vector.extract_strided_slice %522 {offsets = [0, 2], sizes = [16, 16], strides = [1, 1]} : vector<16x18xf32> to vector<16x16xf32>
    %532 = arith.addf %530, %531 : vector<16x16xf32>
    %533 = math.absf %525 : vector<16x16xf32>
    %534 = math.absf %532 : vector<16x16xf32>
    %535 = arith.addf %533, %534 : vector<16x16xf32>
    %c1_270 = arith.constant 1 : index
    %c0_271 = arith.constant 0 : index
    %536 = vector.load %arg11[%c1_270, %c0_271] : memref<8x128xf32, #tpu.memory_space<vmem>>, vector<1x128xf32>
    %537 = vector.shape_cast %535 : vector<16x16xf32> to vector<1x16x16xf32>
    %cst_272 = arith.constant dense<0.000000e+00> : vector<1xf32>
    %538 = vector.multi_reduction <add>, %537, %cst_272 [1, 2] : vector<1x16x16xf32> to vector<1xf32>
    %539 = vector.shape_cast %538 : vector<1xf32> to vector<1x1x1xf32>
    %540 = vector.extract %539[0, 0, 0] : f32 from vector<1x1x1xf32>
    %541 = vector.broadcast %540 : f32 to vector<1x128xf32>
    %542 = arith.addf %536, %541 : vector<1x128xf32>
    %c1_273 = arith.constant 1 : index
    %c0_274 = arith.constant 0 : index
    %543 = vector.load %arg11[%c1_273, %c0_274] : memref<8x128xf32, #tpu.memory_space<vmem>>, vector<1x128xf32>
    tpu.vector_store %arg11[%c1_273, %c0_274], %542 {strides = array<i32>} : memref<8x128xf32, #tpu.memory_space<vmem>>, vector<1x128xf32>,
    %c0_275 = arith.constant 0 : index
    %c0_276 = arith.constant 0 : index
    %544 = vector.load %arg8[%c0_275, %c0_276] : memref<26x26xf32, #tpu.memory_space<vmem>>, vector<16x26xf32>
    %cst_277 = arith.constant 0.00102838024 : f32
    %545 = vector.broadcast %cst_277 : f32 to vector<16x26xf32>
    %546 = arith.mulf %545, %544 : vector<16x26xf32>
    %c1_278 = arith.constant 1 : index
    %c0_279 = arith.constant 0 : index
    %547 = vector.load %arg8[%c1_278, %c0_279] : memref<26x26xf32, #tpu.memory_space<vmem>>, vector<16x26xf32>
    %cst_280 = arith.constant 0.00759875868 : f32
    %548 = vector.broadcast %cst_280 : f32 to vector<16x26xf32>
    %549 = arith.mulf %548, %547 : vector<16x26xf32>
    %550 = arith.addf %546, %549 : vector<16x26xf32>
    %c2_281 = arith.constant 2 : index
    %c0_282 = arith.constant 0 : index
    %551 = vector.load %arg8[%c2_281, %c0_282] : memref<26x26xf32, #tpu.memory_space<vmem>>, vector<16x26xf32>
    %cst_283 = arith.constant 0.0360007733 : f32
    %552 = vector.broadcast %cst_283 : f32 to vector<16x26xf32>
    %553 = arith.mulf %552, %551 : vector<16x26xf32>
    %554 = arith.addf %550, %553 : vector<16x26xf32>
    %c3_284 = arith.constant 3 : index
    %c0_285 = arith.constant 0 : index
    %555 = vector.load %arg8[%c3_284, %c0_285] : memref<26x26xf32, #tpu.memory_space<vmem>>, vector<16x26xf32>
    %cst_286 = arith.constant 0.109360695 : f32
    %556 = vector.broadcast %cst_286 : f32 to vector<16x26xf32>
    %557 = arith.mulf %556, %555 : vector<16x26xf32>
    %558 = arith.addf %554, %557 : vector<16x26xf32>
    %c4_287 = arith.constant 4 : index
    %c0_288 = arith.constant 0 : index
    %559 = vector.load %arg8[%c4_287, %c0_288] : memref<26x26xf32, #tpu.memory_space<vmem>>, vector<16x26xf32>
    %cst_289 = arith.constant 0.213005543 : f32
    %560 = vector.broadcast %cst_289 : f32 to vector<16x26xf32>
    %561 = arith.mulf %560, %559 : vector<16x26xf32>
    %562 = arith.addf %558, %561 : vector<16x26xf32>
    %c5_290 = arith.constant 5 : index
    %c0_291 = arith.constant 0 : index
    %563 = vector.load %arg8[%c5_290, %c0_291] : memref<26x26xf32, #tpu.memory_space<vmem>>, vector<16x26xf32>
    %cst_292 = arith.constant 0.266011745 : f32
    %564 = vector.broadcast %cst_292 : f32 to vector<16x26xf32>
    %565 = arith.mulf %564, %563 : vector<16x26xf32>
    %566 = arith.addf %562, %565 : vector<16x26xf32>
    %c6_293 = arith.constant 6 : index
    %c0_294 = arith.constant 0 : index
    %567 = vector.load %arg8[%c6_293, %c0_294] : memref<26x26xf32, #tpu.memory_space<vmem>>, vector<16x26xf32>
    %cst_295 = arith.constant 0.213005543 : f32
    %568 = vector.broadcast %cst_295 : f32 to vector<16x26xf32>
    %569 = arith.mulf %568, %567 : vector<16x26xf32>
    %570 = arith.addf %566, %569 : vector<16x26xf32>
    %c7_296 = arith.constant 7 : index
    %c0_297 = arith.constant 0 : index
    %571 = vector.load %arg8[%c7_296, %c0_297] : memref<26x26xf32, #tpu.memory_space<vmem>>, vector<16x26xf32>
    %cst_298 = arith.constant 0.109360695 : f32
    %572 = vector.broadcast %cst_298 : f32 to vector<16x26xf32>
    %573 = arith.mulf %572, %571 : vector<16x26xf32>
    %574 = arith.addf %570, %573 : vector<16x26xf32>
    %c8_299 = arith.constant 8 : index
    %c0_300 = arith.constant 0 : index
    %575 = vector.load %arg8[%c8_299, %c0_300] : memref<26x26xf32, #tpu.memory_space<vmem>>, vector<16x26xf32>
    %cst_301 = arith.constant 0.0360007733 : f32
    %576 = vector.broadcast %cst_301 : f32 to vector<16x26xf32>
    %577 = arith.mulf %576, %575 : vector<16x26xf32>
    %578 = arith.addf %574, %577 : vector<16x26xf32>
    %c9_302 = arith.constant 9 : index
    %c0_303 = arith.constant 0 : index
    %579 = vector.load %arg8[%c9_302, %c0_303] : memref<26x26xf32, #tpu.memory_space<vmem>>, vector<16x26xf32>
    %cst_304 = arith.constant 0.00759875868 : f32
    %580 = vector.broadcast %cst_304 : f32 to vector<16x26xf32>
    %581 = arith.mulf %580, %579 : vector<16x26xf32>
    %582 = arith.addf %578, %581 : vector<16x26xf32>
    %c10_305 = arith.constant 10 : index
    %c0_306 = arith.constant 0 : index
    %583 = vector.load %arg8[%c10_305, %c0_306] : memref<26x26xf32, #tpu.memory_space<vmem>>, vector<16x26xf32>
    %cst_307 = arith.constant 0.00102838024 : f32
    %584 = vector.broadcast %cst_307 : f32 to vector<16x26xf32>
    %585 = arith.mulf %584, %583 : vector<16x26xf32>
    %586 = arith.addf %582, %585 : vector<16x26xf32>
    %587 = vector.extract_strided_slice %586 {offsets = [0, 0], sizes = [16, 16], strides = [1, 1]} : vector<16x26xf32> to vector<16x16xf32>
    %cst_308 = arith.constant 0.00102838024 : f32
    %588 = vector.broadcast %cst_308 : f32 to vector<16x16xf32>
    %589 = arith.mulf %588, %587 : vector<16x16xf32>
    %590 = vector.extract_strided_slice %586 {offsets = [0, 1], sizes = [16, 16], strides = [1, 1]} : vector<16x26xf32> to vector<16x16xf32>
    %cst_309 = arith.constant 0.00759875868 : f32
    %591 = vector.broadcast %cst_309 : f32 to vector<16x16xf32>
    %592 = arith.mulf %591, %590 : vector<16x16xf32>
    %593 = arith.addf %589, %592 : vector<16x16xf32>
    %594 = vector.extract_strided_slice %586 {offsets = [0, 2], sizes = [16, 16], strides = [1, 1]} : vector<16x26xf32> to vector<16x16xf32>
    %cst_310 = arith.constant 0.0360007733 : f32
    %595 = vector.broadcast %cst_310 : f32 to vector<16x16xf32>
    %596 = arith.mulf %595, %594 : vector<16x16xf32>
    %597 = arith.addf %593, %596 : vector<16x16xf32>
    %598 = vector.extract_strided_slice %586 {offsets = [0, 3], sizes = [16, 16], strides = [1, 1]} : vector<16x26xf32> to vector<16x16xf32>
    %cst_311 = arith.constant 0.109360695 : f32
    %599 = vector.broadcast %cst_311 : f32 to vector<16x16xf32>
    %600 = arith.mulf %599, %598 : vector<16x16xf32>
    %601 = arith.addf %597, %600 : vector<16x16xf32>
    %602 = vector.extract_strided_slice %586 {offsets = [0, 4], sizes = [16, 16], strides = [1, 1]} : vector<16x26xf32> to vector<16x16xf32>
    %cst_312 = arith.constant 0.213005543 : f32
    %603 = vector.broadcast %cst_312 : f32 to vector<16x16xf32>
    %604 = arith.mulf %603, %602 : vector<16x16xf32>
    %605 = arith.addf %601, %604 : vector<16x16xf32>
    %606 = vector.extract_strided_slice %586 {offsets = [0, 5], sizes = [16, 16], strides = [1, 1]} : vector<16x26xf32> to vector<16x16xf32>
    %cst_313 = arith.constant 0.266011745 : f32
    %607 = vector.broadcast %cst_313 : f32 to vector<16x16xf32>
    %608 = arith.mulf %607, %606 : vector<16x16xf32>
    %609 = arith.addf %605, %608 : vector<16x16xf32>
    %610 = vector.extract_strided_slice %586 {offsets = [0, 6], sizes = [16, 16], strides = [1, 1]} : vector<16x26xf32> to vector<16x16xf32>
    %cst_314 = arith.constant 0.213005543 : f32
    %611 = vector.broadcast %cst_314 : f32 to vector<16x16xf32>
    %612 = arith.mulf %611, %610 : vector<16x16xf32>
    %613 = arith.addf %609, %612 : vector<16x16xf32>
    %614 = vector.extract_strided_slice %586 {offsets = [0, 7], sizes = [16, 16], strides = [1, 1]} : vector<16x26xf32> to vector<16x16xf32>
    %cst_315 = arith.constant 0.109360695 : f32
    %615 = vector.broadcast %cst_315 : f32 to vector<16x16xf32>
    %616 = arith.mulf %615, %614 : vector<16x16xf32>
    %617 = arith.addf %613, %616 : vector<16x16xf32>
    %618 = vector.extract_strided_slice %586 {offsets = [0, 8], sizes = [16, 16], strides = [1, 1]} : vector<16x26xf32> to vector<16x16xf32>
    %cst_316 = arith.constant 0.0360007733 : f32
    %619 = vector.broadcast %cst_316 : f32 to vector<16x16xf32>
    %620 = arith.mulf %619, %618 : vector<16x16xf32>
    %621 = arith.addf %617, %620 : vector<16x16xf32>
    %622 = vector.extract_strided_slice %586 {offsets = [0, 9], sizes = [16, 16], strides = [1, 1]} : vector<16x26xf32> to vector<16x16xf32>
    %cst_317 = arith.constant 0.00759875868 : f32
    %623 = vector.broadcast %cst_317 : f32 to vector<16x16xf32>
    %624 = arith.mulf %623, %622 : vector<16x16xf32>
    %625 = arith.addf %621, %624 : vector<16x16xf32>
    %626 = vector.extract_strided_slice %586 {offsets = [0, 10], sizes = [16, 16], strides = [1, 1]} : vector<16x26xf32> to vector<16x16xf32>
    %cst_318 = arith.constant 0.00102838024 : f32
    %627 = vector.broadcast %cst_318 : f32 to vector<16x16xf32>
    %628 = arith.mulf %627, %626 : vector<16x16xf32>
    %629 = arith.addf %625, %628 : vector<16x16xf32>
    %630 = arith.mulf %513, %513 : vector<16x16xf32>
    %c5_319 = arith.constant 5 : index
    %c5_320 = arith.constant 5 : index
    %631 = vector.load %arg8[%c5_319, %c5_320] : memref<26x26xf32, #tpu.memory_space<vmem>>, vector<16x16xf32>
    tpu.vector_store %arg8[%c5_319, %c5_320], %630 {strides = array<i32>} : memref<26x26xf32, #tpu.memory_space<vmem>>, vector<16x16xf32>,
    %c0_321 = arith.constant 0 : index
    %c0_322 = arith.constant 0 : index
    %632 = vector.load %arg8[%c0_321, %c0_322] : memref<26x26xf32, #tpu.memory_space<vmem>>, vector<16x26xf32>
    %cst_323 = arith.constant 0.00102838024 : f32
    %633 = vector.broadcast %cst_323 : f32 to vector<16x26xf32>
    %634 = arith.mulf %633, %632 : vector<16x26xf32>
    %c1_324 = arith.constant 1 : index
    %c0_325 = arith.constant 0 : index
    %635 = vector.load %arg8[%c1_324, %c0_325] : memref<26x26xf32, #tpu.memory_space<vmem>>, vector<16x26xf32>
    %cst_326 = arith.constant 0.00759875868 : f32
    %636 = vector.broadcast %cst_326 : f32 to vector<16x26xf32>
    %637 = arith.mulf %636, %635 : vector<16x26xf32>
    %638 = arith.addf %634, %637 : vector<16x26xf32>
    %c2_327 = arith.constant 2 : index
    %c0_328 = arith.constant 0 : index
    %639 = vector.load %arg8[%c2_327, %c0_328] : memref<26x26xf32, #tpu.memory_space<vmem>>, vector<16x26xf32>
    %cst_329 = arith.constant 0.0360007733 : f32
    %640 = vector.broadcast %cst_329 : f32 to vector<16x26xf32>
    %641 = arith.mulf %640, %639 : vector<16x26xf32>
    %642 = arith.addf %638, %641 : vector<16x26xf32>
    %c3_330 = arith.constant 3 : index
    %c0_331 = arith.constant 0 : index
    %643 = vector.load %arg8[%c3_330, %c0_331] : memref<26x26xf32, #tpu.memory_space<vmem>>, vector<16x26xf32>
    %cst_332 = arith.constant 0.109360695 : f32
    %644 = vector.broadcast %cst_332 : f32 to vector<16x26xf32>
    %645 = arith.mulf %644, %643 : vector<16x26xf32>
    %646 = arith.addf %642, %645 : vector<16x26xf32>
    %c4_333 = arith.constant 4 : index
    %c0_334 = arith.constant 0 : index
    %647 = vector.load %arg8[%c4_333, %c0_334] : memref<26x26xf32, #tpu.memory_space<vmem>>, vector<16x26xf32>
    %cst_335 = arith.constant 0.213005543 : f32
    %648 = vector.broadcast %cst_335 : f32 to vector<16x26xf32>
    %649 = arith.mulf %648, %647 : vector<16x26xf32>
    %650 = arith.addf %646, %649 : vector<16x26xf32>
    %c5_336 = arith.constant 5 : index
    %c0_337 = arith.constant 0 : index
    %651 = vector.load %arg8[%c5_336, %c0_337] : memref<26x26xf32, #tpu.memory_space<vmem>>, vector<16x26xf32>
    %cst_338 = arith.constant 0.266011745 : f32
    %652 = vector.broadcast %cst_338 : f32 to vector<16x26xf32>
    %653 = arith.mulf %652, %651 : vector<16x26xf32>
    %654 = arith.addf %650, %653 : vector<16x26xf32>
    %c6_339 = arith.constant 6 : index
    %c0_340 = arith.constant 0 : index
    %655 = vector.load %arg8[%c6_339, %c0_340] : memref<26x26xf32, #tpu.memory_space<vmem>>, vector<16x26xf32>
    %cst_341 = arith.constant 0.213005543 : f32
    %656 = vector.broadcast %cst_341 : f32 to vector<16x26xf32>
    %657 = arith.mulf %656, %655 : vector<16x26xf32>
    %658 = arith.addf %654, %657 : vector<16x26xf32>
    %c7_342 = arith.constant 7 : index
    %c0_343 = arith.constant 0 : index
    %659 = vector.load %arg8[%c7_342, %c0_343] : memref<26x26xf32, #tpu.memory_space<vmem>>, vector<16x26xf32>
    %cst_344 = arith.constant 0.109360695 : f32
    %660 = vector.broadcast %cst_344 : f32 to vector<16x26xf32>
    %661 = arith.mulf %660, %659 : vector<16x26xf32>
    %662 = arith.addf %658, %661 : vector<16x26xf32>
    %c8_345 = arith.constant 8 : index
    %c0_346 = arith.constant 0 : index
    %663 = vector.load %arg8[%c8_345, %c0_346] : memref<26x26xf32, #tpu.memory_space<vmem>>, vector<16x26xf32>
    %cst_347 = arith.constant 0.0360007733 : f32
    %664 = vector.broadcast %cst_347 : f32 to vector<16x26xf32>
    %665 = arith.mulf %664, %663 : vector<16x26xf32>
    %666 = arith.addf %662, %665 : vector<16x26xf32>
    %c9_348 = arith.constant 9 : index
    %c0_349 = arith.constant 0 : index
    %667 = vector.load %arg8[%c9_348, %c0_349] : memref<26x26xf32, #tpu.memory_space<vmem>>, vector<16x26xf32>
    %cst_350 = arith.constant 0.00759875868 : f32
    %668 = vector.broadcast %cst_350 : f32 to vector<16x26xf32>
    %669 = arith.mulf %668, %667 : vector<16x26xf32>
    %670 = arith.addf %666, %669 : vector<16x26xf32>
    %c10_351 = arith.constant 10 : index
    %c0_352 = arith.constant 0 : index
    %671 = vector.load %arg8[%c10_351, %c0_352] : memref<26x26xf32, #tpu.memory_space<vmem>>, vector<16x26xf32>
    %cst_353 = arith.constant 0.00102838024 : f32
    %672 = vector.broadcast %cst_353 : f32 to vector<16x26xf32>
    %673 = arith.mulf %672, %671 : vector<16x26xf32>
    %674 = arith.addf %670, %673 : vector<16x26xf32>
    %675 = vector.extract_strided_slice %674 {offsets = [0, 0], sizes = [16, 16], strides = [1, 1]} : vector<16x26xf32> to vector<16x16xf32>
    %cst_354 = arith.constant 0.00102838024 : f32
    %676 = vector.broadcast %cst_354 : f32 to vector<16x16xf32>
    %677 = arith.mulf %676, %675 : vector<16x16xf32>
    %678 = vector.extract_strided_slice %674 {offsets = [0, 1], sizes = [16, 16], strides = [1, 1]} : vector<16x26xf32> to vector<16x16xf32>
    %cst_355 = arith.constant 0.00759875868 : f32
    %679 = vector.broadcast %cst_355 : f32 to vector<16x16xf32>
    %680 = arith.mulf %679, %678 : vector<16x16xf32>
    %681 = arith.addf %677, %680 : vector<16x16xf32>
    %682 = vector.extract_strided_slice %674 {offsets = [0, 2], sizes = [16, 16], strides = [1, 1]} : vector<16x26xf32> to vector<16x16xf32>
    %cst_356 = arith.constant 0.0360007733 : f32
    %683 = vector.broadcast %cst_356 : f32 to vector<16x16xf32>
    %684 = arith.mulf %683, %682 : vector<16x16xf32>
    %685 = arith.addf %681, %684 : vector<16x16xf32>
    %686 = vector.extract_strided_slice %674 {offsets = [0, 3], sizes = [16, 16], strides = [1, 1]} : vector<16x26xf32> to vector<16x16xf32>
    %cst_357 = arith.constant 0.109360695 : f32
    %687 = vector.broadcast %cst_357 : f32 to vector<16x16xf32>
    %688 = arith.mulf %687, %686 : vector<16x16xf32>
    %689 = arith.addf %685, %688 : vector<16x16xf32>
    %690 = vector.extract_strided_slice %674 {offsets = [0, 4], sizes = [16, 16], strides = [1, 1]} : vector<16x26xf32> to vector<16x16xf32>
    %cst_358 = arith.constant 0.213005543 : f32
    %691 = vector.broadcast %cst_358 : f32 to vector<16x16xf32>
    %692 = arith.mulf %691, %690 : vector<16x16xf32>
    %693 = arith.addf %689, %692 : vector<16x16xf32>
    %694 = vector.extract_strided_slice %674 {offsets = [0, 5], sizes = [16, 16], strides = [1, 1]} : vector<16x26xf32> to vector<16x16xf32>
    %cst_359 = arith.constant 0.266011745 : f32
    %695 = vector.broadcast %cst_359 : f32 to vector<16x16xf32>
    %696 = arith.mulf %695, %694 : vector<16x16xf32>
    %697 = arith.addf %693, %696 : vector<16x16xf32>
    %698 = vector.extract_strided_slice %674 {offsets = [0, 6], sizes = [16, 16], strides = [1, 1]} : vector<16x26xf32> to vector<16x16xf32>
    %cst_360 = arith.constant 0.213005543 : f32
    %699 = vector.broadcast %cst_360 : f32 to vector<16x16xf32>
    %700 = arith.mulf %699, %698 : vector<16x16xf32>
    %701 = arith.addf %697, %700 : vector<16x16xf32>
    %702 = vector.extract_strided_slice %674 {offsets = [0, 7], sizes = [16, 16], strides = [1, 1]} : vector<16x26xf32> to vector<16x16xf32>
    %cst_361 = arith.constant 0.109360695 : f32
    %703 = vector.broadcast %cst_361 : f32 to vector<16x16xf32>
    %704 = arith.mulf %703, %702 : vector<16x16xf32>
    %705 = arith.addf %701, %704 : vector<16x16xf32>
    %706 = vector.extract_strided_slice %674 {offsets = [0, 8], sizes = [16, 16], strides = [1, 1]} : vector<16x26xf32> to vector<16x16xf32>
    %cst_362 = arith.constant 0.0360007733 : f32
    %707 = vector.broadcast %cst_362 : f32 to vector<16x16xf32>
    %708 = arith.mulf %707, %706 : vector<16x16xf32>
    %709 = arith.addf %705, %708 : vector<16x16xf32>
    %710 = vector.extract_strided_slice %674 {offsets = [0, 9], sizes = [16, 16], strides = [1, 1]} : vector<16x26xf32> to vector<16x16xf32>
    %cst_363 = arith.constant 0.00759875868 : f32
    %711 = vector.broadcast %cst_363 : f32 to vector<16x16xf32>
    %712 = arith.mulf %711, %710 : vector<16x16xf32>
    %713 = arith.addf %709, %712 : vector<16x16xf32>
    %714 = vector.extract_strided_slice %674 {offsets = [0, 10], sizes = [16, 16], strides = [1, 1]} : vector<16x26xf32> to vector<16x16xf32>
    %cst_364 = arith.constant 0.00102838024 : f32
    %715 = vector.broadcast %cst_364 : f32 to vector<16x16xf32>
    %716 = arith.mulf %715, %714 : vector<16x16xf32>
    %717 = arith.addf %713, %716 : vector<16x16xf32>
    %718 = arith.mulf %629, %629 : vector<16x16xf32>
    %719 = arith.subf %717, %718 : vector<16x16xf32>
    %c0_365 = arith.constant 0 : index
    %c0_366 = arith.constant 0 : index
    %720 = vector.load %arg9[%c0_365, %c0_366] : memref<16x16xf32, #tpu.memory_space<vmem>>, vector<16x16xf32>
    %c0_367 = arith.constant 0 : index
    %c0_368 = arith.constant 0 : index
    %721 = vector.load %arg10[%c0_367, %c0_368] : memref<16x16xf32, #tpu.memory_space<vmem>>, vector<16x16xf32>
    %722 = arith.mulf %513, %4 : vector<16x16xf32>
    %c5_369 = arith.constant 5 : index
    %c5_370 = arith.constant 5 : index
    %723 = vector.load %arg8[%c5_369, %c5_370] : memref<26x26xf32, #tpu.memory_space<vmem>>, vector<16x16xf32>
    tpu.vector_store %arg8[%c5_369, %c5_370], %722 {strides = array<i32>} : memref<26x26xf32, #tpu.memory_space<vmem>>, vector<16x16xf32>,
    %c0_371 = arith.constant 0 : index
    %c0_372 = arith.constant 0 : index
    %724 = vector.load %arg8[%c0_371, %c0_372] : memref<26x26xf32, #tpu.memory_space<vmem>>, vector<16x26xf32>
    %cst_373 = arith.constant 0.00102838024 : f32
    %725 = vector.broadcast %cst_373 : f32 to vector<16x26xf32>
    %726 = arith.mulf %725, %724 : vector<16x26xf32>
    %c1_374 = arith.constant 1 : index
    %c0_375 = arith.constant 0 : index
    %727 = vector.load %arg8[%c1_374, %c0_375] : memref<26x26xf32, #tpu.memory_space<vmem>>, vector<16x26xf32>
    %cst_376 = arith.constant 0.00759875868 : f32
    %728 = vector.broadcast %cst_376 : f32 to vector<16x26xf32>
    %729 = arith.mulf %728, %727 : vector<16x26xf32>
    %730 = arith.addf %726, %729 : vector<16x26xf32>
    %c2_377 = arith.constant 2 : index
    %c0_378 = arith.constant 0 : index
    %731 = vector.load %arg8[%c2_377, %c0_378] : memref<26x26xf32, #tpu.memory_space<vmem>>, vector<16x26xf32>
    %cst_379 = arith.constant 0.0360007733 : f32
    %732 = vector.broadcast %cst_379 : f32 to vector<16x26xf32>
    %733 = arith.mulf %732, %731 : vector<16x26xf32>
    %734 = arith.addf %730, %733 : vector<16x26xf32>
    %c3_380 = arith.constant 3 : index
    %c0_381 = arith.constant 0 : index
    %735 = vector.load %arg8[%c3_380, %c0_381] : memref<26x26xf32, #tpu.memory_space<vmem>>, vector<16x26xf32>
    %cst_382 = arith.constant 0.109360695 : f32
    %736 = vector.broadcast %cst_382 : f32 to vector<16x26xf32>
    %737 = arith.mulf %736, %735 : vector<16x26xf32>
    %738 = arith.addf %734, %737 : vector<16x26xf32>
    %c4_383 = arith.constant 4 : index
    %c0_384 = arith.constant 0 : index
    %739 = vector.load %arg8[%c4_383, %c0_384] : memref<26x26xf32, #tpu.memory_space<vmem>>, vector<16x26xf32>
    %cst_385 = arith.constant 0.213005543 : f32
    %740 = vector.broadcast %cst_385 : f32 to vector<16x26xf32>
    %741 = arith.mulf %740, %739 : vector<16x26xf32>
    %742 = arith.addf %738, %741 : vector<16x26xf32>
    %c5_386 = arith.constant 5 : index
    %c0_387 = arith.constant 0 : index
    %743 = vector.load %arg8[%c5_386, %c0_387] : memref<26x26xf32, #tpu.memory_space<vmem>>, vector<16x26xf32>
    %cst_388 = arith.constant 0.266011745 : f32
    %744 = vector.broadcast %cst_388 : f32 to vector<16x26xf32>
    %745 = arith.mulf %744, %743 : vector<16x26xf32>
    %746 = arith.addf %742, %745 : vector<16x26xf32>
    %c6_389 = arith.constant 6 : index
    %c0_390 = arith.constant 0 : index
    %747 = vector.load %arg8[%c6_389, %c0_390] : memref<26x26xf32, #tpu.memory_space<vmem>>, vector<16x26xf32>
    %cst_391 = arith.constant 0.213005543 : f32
    %748 = vector.broadcast %cst_391 : f32 to vector<16x26xf32>
    %749 = arith.mulf %748, %747 : vector<16x26xf32>
    %750 = arith.addf %746, %749 : vector<16x26xf32>
    %c7_392 = arith.constant 7 : index
    %c0_393 = arith.constant 0 : index
    %751 = vector.load %arg8[%c7_392, %c0_393] : memref<26x26xf32, #tpu.memory_space<vmem>>, vector<16x26xf32>
    %cst_394 = arith.constant 0.109360695 : f32
    %752 = vector.broadcast %cst_394 : f32 to vector<16x26xf32>
    %753 = arith.mulf %752, %751 : vector<16x26xf32>
    %754 = arith.addf %750, %753 : vector<16x26xf32>
    %c8_395 = arith.constant 8 : index
    %c0_396 = arith.constant 0 : index
    %755 = vector.load %arg8[%c8_395, %c0_396] : memref<26x26xf32, #tpu.memory_space<vmem>>, vector<16x26xf32>
    %cst_397 = arith.constant 0.0360007733 : f32
    %756 = vector.broadcast %cst_397 : f32 to vector<16x26xf32>
    %757 = arith.mulf %756, %755 : vector<16x26xf32>
    %758 = arith.addf %754, %757 : vector<16x26xf32>
    %c9_398 = arith.constant 9 : index
    %c0_399 = arith.constant 0 : index
    %759 = vector.load %arg8[%c9_398, %c0_399] : memref<26x26xf32, #tpu.memory_space<vmem>>, vector<16x26xf32>
    %cst_400 = arith.constant 0.00759875868 : f32
    %760 = vector.broadcast %cst_400 : f32 to vector<16x26xf32>
    %761 = arith.mulf %760, %759 : vector<16x26xf32>
    %762 = arith.addf %758, %761 : vector<16x26xf32>
    %c10_401 = arith.constant 10 : index
    %c0_402 = arith.constant 0 : index
    %763 = vector.load %arg8[%c10_401, %c0_402] : memref<26x26xf32, #tpu.memory_space<vmem>>, vector<16x26xf32>
    %cst_403 = arith.constant 0.00102838024 : f32
    %764 = vector.broadcast %cst_403 : f32 to vector<16x26xf32>
    %765 = arith.mulf %764, %763 : vector<16x26xf32>
    %766 = arith.addf %762, %765 : vector<16x26xf32>
    %767 = vector.extract_strided_slice %766 {offsets = [0, 0], sizes = [16, 16], strides = [1, 1]} : vector<16x26xf32> to vector<16x16xf32>
    %cst_404 = arith.constant 0.00102838024 : f32
    %768 = vector.broadcast %cst_404 : f32 to vector<16x16xf32>
    %769 = arith.mulf %768, %767 : vector<16x16xf32>
    %770 = vector.extract_strided_slice %766 {offsets = [0, 1], sizes = [16, 16], strides = [1, 1]} : vector<16x26xf32> to vector<16x16xf32>
    %cst_405 = arith.constant 0.00759875868 : f32
    %771 = vector.broadcast %cst_405 : f32 to vector<16x16xf32>
    %772 = arith.mulf %771, %770 : vector<16x16xf32>
    %773 = arith.addf %769, %772 : vector<16x16xf32>
    %774 = vector.extract_strided_slice %766 {offsets = [0, 2], sizes = [16, 16], strides = [1, 1]} : vector<16x26xf32> to vector<16x16xf32>
    %cst_406 = arith.constant 0.0360007733 : f32
    %775 = vector.broadcast %cst_406 : f32 to vector<16x16xf32>
    %776 = arith.mulf %775, %774 : vector<16x16xf32>
    %777 = arith.addf %773, %776 : vector<16x16xf32>
    %778 = vector.extract_strided_slice %766 {offsets = [0, 3], sizes = [16, 16], strides = [1, 1]} : vector<16x26xf32> to vector<16x16xf32>
    %cst_407 = arith.constant 0.109360695 : f32
    %779 = vector.broadcast %cst_407 : f32 to vector<16x16xf32>
    %780 = arith.mulf %779, %778 : vector<16x16xf32>
    %781 = arith.addf %777, %780 : vector<16x16xf32>
    %782 = vector.extract_strided_slice %766 {offsets = [0, 4], sizes = [16, 16], strides = [1, 1]} : vector<16x26xf32> to vector<16x16xf32>
    %cst_408 = arith.constant 0.213005543 : f32
    %783 = vector.broadcast %cst_408 : f32 to vector<16x16xf32>
    %784 = arith.mulf %783, %782 : vector<16x16xf32>
    %785 = arith.addf %781, %784 : vector<16x16xf32>
    %786 = vector.extract_strided_slice %766 {offsets = [0, 5], sizes = [16, 16], strides = [1, 1]} : vector<16x26xf32> to vector<16x16xf32>
    %cst_409 = arith.constant 0.266011745 : f32
    %787 = vector.broadcast %cst_409 : f32 to vector<16x16xf32>
    %788 = arith.mulf %787, %786 : vector<16x16xf32>
    %789 = arith.addf %785, %788 : vector<16x16xf32>
    %790 = vector.extract_strided_slice %766 {offsets = [0, 6], sizes = [16, 16], strides = [1, 1]} : vector<16x26xf32> to vector<16x16xf32>
    %cst_410 = arith.constant 0.213005543 : f32
    %791 = vector.broadcast %cst_410 : f32 to vector<16x16xf32>
    %792 = arith.mulf %791, %790 : vector<16x16xf32>
    %793 = arith.addf %789, %792 : vector<16x16xf32>
    %794 = vector.extract_strided_slice %766 {offsets = [0, 7], sizes = [16, 16], strides = [1, 1]} : vector<16x26xf32> to vector<16x16xf32>
    %cst_411 = arith.constant 0.109360695 : f32
    %795 = vector.broadcast %cst_411 : f32 to vector<16x16xf32>
    %796 = arith.mulf %795, %794 : vector<16x16xf32>
    %797 = arith.addf %793, %796 : vector<16x16xf32>
    %798 = vector.extract_strided_slice %766 {offsets = [0, 8], sizes = [16, 16], strides = [1, 1]} : vector<16x26xf32> to vector<16x16xf32>
    %cst_412 = arith.constant 0.0360007733 : f32
    %799 = vector.broadcast %cst_412 : f32 to vector<16x16xf32>
    %800 = arith.mulf %799, %798 : vector<16x16xf32>
    %801 = arith.addf %797, %800 : vector<16x16xf32>
    %802 = vector.extract_strided_slice %766 {offsets = [0, 9], sizes = [16, 16], strides = [1, 1]} : vector<16x26xf32> to vector<16x16xf32>
    %cst_413 = arith.constant 0.00759875868 : f32
    %803 = vector.broadcast %cst_413 : f32 to vector<16x16xf32>
    %804 = arith.mulf %803, %802 : vector<16x16xf32>
    %805 = arith.addf %801, %804 : vector<16x16xf32>
    %806 = vector.extract_strided_slice %766 {offsets = [0, 10], sizes = [16, 16], strides = [1, 1]} : vector<16x26xf32> to vector<16x16xf32>
    %cst_414 = arith.constant 0.00102838024 : f32
    %807 = vector.broadcast %cst_414 : f32 to vector<16x16xf32>
    %808 = arith.mulf %807, %806 : vector<16x16xf32>
    %809 = arith.addf %805, %808 : vector<16x16xf32>
    %810 = arith.mulf %629, %720 : vector<16x16xf32>
    %811 = arith.subf %809, %810 : vector<16x16xf32>
    %cst_415 = arith.constant 2.000000e+00 : f32
    %812 = vector.broadcast %cst_415 : f32 to vector<16x16xf32>
    %813 = arith.mulf %812, %629 : vector<16x16xf32>
    %814 = arith.mulf %813, %720 : vector<16x16xf32>
    %cst_416 = arith.constant 9.99999974E-5 : f32
    %815 = vector.broadcast %cst_416 : f32 to vector<16x16xf32>
    %816 = arith.addf %814, %815 : vector<16x16xf32>
    %cst_417 = arith.constant 2.000000e+00 : f32
    %817 = vector.broadcast %cst_417 : f32 to vector<16x16xf32>
    %818 = arith.mulf %817, %811 : vector<16x16xf32>
    %cst_418 = arith.constant 8.99999984E-4 : f32
    %819 = vector.broadcast %cst_418 : f32 to vector<16x16xf32>
    %820 = arith.addf %818, %819 : vector<16x16xf32>
    %821 = arith.mulf %816, %820 : vector<16x16xf32>
    %822 = arith.mulf %629, %629 : vector<16x16xf32>
    %823 = arith.mulf %720, %720 : vector<16x16xf32>
    %824 = arith.addf %822, %823 : vector<16x16xf32>
    %cst_419 = arith.constant 9.99999974E-5 : f32
    %825 = vector.broadcast %cst_419 : f32 to vector<16x16xf32>
    %826 = arith.addf %824, %825 : vector<16x16xf32>
    %827 = arith.addf %719, %721 : vector<16x16xf32>
    %cst_420 = arith.constant 8.99999984E-4 : f32
    %828 = vector.broadcast %cst_420 : f32 to vector<16x16xf32>
    %829 = arith.addf %827, %828 : vector<16x16xf32>
    %830 = arith.mulf %826, %829 : vector<16x16xf32>
    %831 = arith.divf %821, %830 : vector<16x16xf32>
    %c1_421 = arith.constant 1 : index
    %c0_422 = arith.constant 0 : index
    %832 = vector.load %arg12[%c1_421, %c0_422] : memref<8x128xf32, #tpu.memory_space<vmem>>, vector<1x128xf32>
    %833 = vector.shape_cast %831 : vector<16x16xf32> to vector<1x16x16xf32>
    %cst_423 = arith.constant dense<0.000000e+00> : vector<1xf32>
    %834 = vector.multi_reduction <add>, %833, %cst_423 [1, 2] : vector<1x16x16xf32> to vector<1xf32>
    %835 = vector.shape_cast %834 : vector<1xf32> to vector<1x1x1xf32>
    %836 = vector.extract %835[0, 0, 0] : f32 from vector<1x1x1xf32>
    %837 = vector.broadcast %836 : f32 to vector<1x128xf32>
    %838 = arith.addf %832, %837 : vector<1x128xf32>
    %c1_424 = arith.constant 1 : index
    %c0_425 = arith.constant 0 : index
    %839 = vector.load %arg12[%c1_424, %c0_425] : memref<8x128xf32, #tpu.memory_space<vmem>>, vector<1x128xf32>
    tpu.vector_store %arg12[%c1_424, %c0_425], %838 {strides = array<i32>} : memref<8x128xf32, #tpu.memory_space<vmem>>, vector<1x128xf32>,
    %c0_426 = arith.constant 0 : index
    %c0_427 = arith.constant 0 : index
    %c0_428 = arith.constant 0 : index
    %840 = vector.load %arg3[%c0_426, %c0_427, %c0_428] : memref<1x16x16xf32, #tpu.memory_space<vmem>>, vector<1x16x16xf32>
    %841 = vector.shape_cast %840 : vector<1x16x16xf32> to vector<16x16xf32>
    %c5_429 = arith.constant 5 : index
    %c5_430 = arith.constant 5 : index
    %842 = vector.load %arg8[%c5_429, %c5_430] : memref<26x26xf32, #tpu.memory_space<vmem>>, vector<16x16xf32>
    tpu.vector_store %arg8[%c5_429, %c5_430], %841 {strides = array<i32>} : memref<26x26xf32, #tpu.memory_space<vmem>>, vector<16x16xf32>,
    %c4_431 = arith.constant 4 : index
    %c4_432 = arith.constant 4 : index
    %843 = vector.load %arg8[%c4_431, %c4_432] : memref<26x26xf32, #tpu.memory_space<vmem>>, vector<16x18xf32>
    %c5_433 = arith.constant 5 : index
    %c4_434 = arith.constant 4 : index
    %844 = vector.load %arg8[%c5_433, %c4_434] : memref<26x26xf32, #tpu.memory_space<vmem>>, vector<16x18xf32>
    %c6_435 = arith.constant 6 : index
    %c4_436 = arith.constant 4 : index
    %845 = vector.load %arg8[%c6_435, %c4_436] : memref<26x26xf32, #tpu.memory_space<vmem>>, vector<16x18xf32>
    %cst_437 = arith.constant 2.000000e+00 : f32
    %846 = vector.broadcast %cst_437 : f32 to vector<16x18xf32>
    %847 = arith.mulf %846, %844 : vector<16x18xf32>
    %848 = arith.addf %843, %847 : vector<16x18xf32>
    %849 = arith.addf %848, %845 : vector<16x18xf32>
    %850 = arith.subf %843, %845 : vector<16x18xf32>
    %851 = vector.extract_strided_slice %849 {offsets = [0, 2], sizes = [16, 16], strides = [1, 1]} : vector<16x18xf32> to vector<16x16xf32>
    %852 = vector.extract_strided_slice %849 {offsets = [0, 0], sizes = [16, 16], strides = [1, 1]} : vector<16x18xf32> to vector<16x16xf32>
    %853 = arith.subf %851, %852 : vector<16x16xf32>
    %854 = vector.extract_strided_slice %850 {offsets = [0, 0], sizes = [16, 16], strides = [1, 1]} : vector<16x18xf32> to vector<16x16xf32>
    %855 = vector.extract_strided_slice %850 {offsets = [0, 1], sizes = [16, 16], strides = [1, 1]} : vector<16x18xf32> to vector<16x16xf32>
    %cst_438 = arith.constant 2.000000e+00 : f32
    %856 = vector.broadcast %cst_438 : f32 to vector<16x16xf32>
    %857 = arith.mulf %856, %855 : vector<16x16xf32>
    %858 = arith.addf %854, %857 : vector<16x16xf32>
    %859 = vector.extract_strided_slice %850 {offsets = [0, 2], sizes = [16, 16], strides = [1, 1]} : vector<16x18xf32> to vector<16x16xf32>
    %860 = arith.addf %858, %859 : vector<16x16xf32>
    %861 = math.absf %853 : vector<16x16xf32>
    %862 = math.absf %860 : vector<16x16xf32>
    %863 = arith.addf %861, %862 : vector<16x16xf32>
    %c2_439 = arith.constant 2 : index
    %c0_440 = arith.constant 0 : index
    %864 = vector.load %arg11[%c2_439, %c0_440] : memref<8x128xf32, #tpu.memory_space<vmem>>, vector<1x128xf32>
    %865 = vector.shape_cast %863 : vector<16x16xf32> to vector<1x16x16xf32>
    %cst_441 = arith.constant dense<0.000000e+00> : vector<1xf32>
    %866 = vector.multi_reduction <add>, %865, %cst_441 [1, 2] : vector<1x16x16xf32> to vector<1xf32>
    %867 = vector.shape_cast %866 : vector<1xf32> to vector<1x1x1xf32>
    %868 = vector.extract %867[0, 0, 0] : f32 from vector<1x1x1xf32>
    %869 = vector.broadcast %868 : f32 to vector<1x128xf32>
    %870 = arith.addf %864, %869 : vector<1x128xf32>
    %c2_442 = arith.constant 2 : index
    %c0_443 = arith.constant 0 : index
    %871 = vector.load %arg11[%c2_442, %c0_443] : memref<8x128xf32, #tpu.memory_space<vmem>>, vector<1x128xf32>
    tpu.vector_store %arg11[%c2_442, %c0_443], %870 {strides = array<i32>} : memref<8x128xf32, #tpu.memory_space<vmem>>, vector<1x128xf32>,
    %c0_444 = arith.constant 0 : index
    %c0_445 = arith.constant 0 : index
    %872 = vector.load %arg8[%c0_444, %c0_445] : memref<26x26xf32, #tpu.memory_space<vmem>>, vector<16x26xf32>
    %cst_446 = arith.constant 0.00102838024 : f32
    %873 = vector.broadcast %cst_446 : f32 to vector<16x26xf32>
    %874 = arith.mulf %873, %872 : vector<16x26xf32>
    %c1_447 = arith.constant 1 : index
    %c0_448 = arith.constant 0 : index
    %875 = vector.load %arg8[%c1_447, %c0_448] : memref<26x26xf32, #tpu.memory_space<vmem>>, vector<16x26xf32>
    %cst_449 = arith.constant 0.00759875868 : f32
    %876 = vector.broadcast %cst_449 : f32 to vector<16x26xf32>
    %877 = arith.mulf %876, %875 : vector<16x26xf32>
    %878 = arith.addf %874, %877 : vector<16x26xf32>
    %c2_450 = arith.constant 2 : index
    %c0_451 = arith.constant 0 : index
    %879 = vector.load %arg8[%c2_450, %c0_451] : memref<26x26xf32, #tpu.memory_space<vmem>>, vector<16x26xf32>
    %cst_452 = arith.constant 0.0360007733 : f32
    %880 = vector.broadcast %cst_452 : f32 to vector<16x26xf32>
    %881 = arith.mulf %880, %879 : vector<16x26xf32>
    %882 = arith.addf %878, %881 : vector<16x26xf32>
    %c3_453 = arith.constant 3 : index
    %c0_454 = arith.constant 0 : index
    %883 = vector.load %arg8[%c3_453, %c0_454] : memref<26x26xf32, #tpu.memory_space<vmem>>, vector<16x26xf32>
    %cst_455 = arith.constant 0.109360695 : f32
    %884 = vector.broadcast %cst_455 : f32 to vector<16x26xf32>
    %885 = arith.mulf %884, %883 : vector<16x26xf32>
    %886 = arith.addf %882, %885 : vector<16x26xf32>
    %c4_456 = arith.constant 4 : index
    %c0_457 = arith.constant 0 : index
    %887 = vector.load %arg8[%c4_456, %c0_457] : memref<26x26xf32, #tpu.memory_space<vmem>>, vector<16x26xf32>
    %cst_458 = arith.constant 0.213005543 : f32
    %888 = vector.broadcast %cst_458 : f32 to vector<16x26xf32>
    %889 = arith.mulf %888, %887 : vector<16x26xf32>
    %890 = arith.addf %886, %889 : vector<16x26xf32>
    %c5_459 = arith.constant 5 : index
    %c0_460 = arith.constant 0 : index
    %891 = vector.load %arg8[%c5_459, %c0_460] : memref<26x26xf32, #tpu.memory_space<vmem>>, vector<16x26xf32>
    %cst_461 = arith.constant 0.266011745 : f32
    %892 = vector.broadcast %cst_461 : f32 to vector<16x26xf32>
    %893 = arith.mulf %892, %891 : vector<16x26xf32>
    %894 = arith.addf %890, %893 : vector<16x26xf32>
    %c6_462 = arith.constant 6 : index
    %c0_463 = arith.constant 0 : index
    %895 = vector.load %arg8[%c6_462, %c0_463] : memref<26x26xf32, #tpu.memory_space<vmem>>, vector<16x26xf32>
    %cst_464 = arith.constant 0.213005543 : f32
    %896 = vector.broadcast %cst_464 : f32 to vector<16x26xf32>
    %897 = arith.mulf %896, %895 : vector<16x26xf32>
    %898 = arith.addf %894, %897 : vector<16x26xf32>
    %c7_465 = arith.constant 7 : index
    %c0_466 = arith.constant 0 : index
    %899 = vector.load %arg8[%c7_465, %c0_466] : memref<26x26xf32, #tpu.memory_space<vmem>>, vector<16x26xf32>
    %cst_467 = arith.constant 0.109360695 : f32
    %900 = vector.broadcast %cst_467 : f32 to vector<16x26xf32>
    %901 = arith.mulf %900, %899 : vector<16x26xf32>
    %902 = arith.addf %898, %901 : vector<16x26xf32>
    %c8_468 = arith.constant 8 : index
    %c0_469 = arith.constant 0 : index
    %903 = vector.load %arg8[%c8_468, %c0_469] : memref<26x26xf32, #tpu.memory_space<vmem>>, vector<16x26xf32>
    %cst_470 = arith.constant 0.0360007733 : f32
    %904 = vector.broadcast %cst_470 : f32 to vector<16x26xf32>
    %905 = arith.mulf %904, %903 : vector<16x26xf32>
    %906 = arith.addf %902, %905 : vector<16x26xf32>
    %c9_471 = arith.constant 9 : index
    %c0_472 = arith.constant 0 : index
    %907 = vector.load %arg8[%c9_471, %c0_472] : memref<26x26xf32, #tpu.memory_space<vmem>>, vector<16x26xf32>
    %cst_473 = arith.constant 0.00759875868 : f32
    %908 = vector.broadcast %cst_473 : f32 to vector<16x26xf32>
    %909 = arith.mulf %908, %907 : vector<16x26xf32>
    %910 = arith.addf %906, %909 : vector<16x26xf32>
    %c10_474 = arith.constant 10 : index
    %c0_475 = arith.constant 0 : index
    %911 = vector.load %arg8[%c10_474, %c0_475] : memref<26x26xf32, #tpu.memory_space<vmem>>, vector<16x26xf32>
    %cst_476 = arith.constant 0.00102838024 : f32
    %912 = vector.broadcast %cst_476 : f32 to vector<16x26xf32>
    %913 = arith.mulf %912, %911 : vector<16x26xf32>
    %914 = arith.addf %910, %913 : vector<16x26xf32>
    %915 = vector.extract_strided_slice %914 {offsets = [0, 0], sizes = [16, 16], strides = [1, 1]} : vector<16x26xf32> to vector<16x16xf32>
    %cst_477 = arith.constant 0.00102838024 : f32
    %916 = vector.broadcast %cst_477 : f32 to vector<16x16xf32>
    %917 = arith.mulf %916, %915 : vector<16x16xf32>
    %918 = vector.extract_strided_slice %914 {offsets = [0, 1], sizes = [16, 16], strides = [1, 1]} : vector<16x26xf32> to vector<16x16xf32>
    %cst_478 = arith.constant 0.00759875868 : f32
    %919 = vector.broadcast %cst_478 : f32 to vector<16x16xf32>
    %920 = arith.mulf %919, %918 : vector<16x16xf32>
    %921 = arith.addf %917, %920 : vector<16x16xf32>
    %922 = vector.extract_strided_slice %914 {offsets = [0, 2], sizes = [16, 16], strides = [1, 1]} : vector<16x26xf32> to vector<16x16xf32>
    %cst_479 = arith.constant 0.0360007733 : f32
    %923 = vector.broadcast %cst_479 : f32 to vector<16x16xf32>
    %924 = arith.mulf %923, %922 : vector<16x16xf32>
    %925 = arith.addf %921, %924 : vector<16x16xf32>
    %926 = vector.extract_strided_slice %914 {offsets = [0, 3], sizes = [16, 16], strides = [1, 1]} : vector<16x26xf32> to vector<16x16xf32>
    %cst_480 = arith.constant 0.109360695 : f32
    %927 = vector.broadcast %cst_480 : f32 to vector<16x16xf32>
    %928 = arith.mulf %927, %926 : vector<16x16xf32>
    %929 = arith.addf %925, %928 : vector<16x16xf32>
    %930 = vector.extract_strided_slice %914 {offsets = [0, 4], sizes = [16, 16], strides = [1, 1]} : vector<16x26xf32> to vector<16x16xf32>
    %cst_481 = arith.constant 0.213005543 : f32
    %931 = vector.broadcast %cst_481 : f32 to vector<16x16xf32>
    %932 = arith.mulf %931, %930 : vector<16x16xf32>
    %933 = arith.addf %929, %932 : vector<16x16xf32>
    %934 = vector.extract_strided_slice %914 {offsets = [0, 5], sizes = [16, 16], strides = [1, 1]} : vector<16x26xf32> to vector<16x16xf32>
    %cst_482 = arith.constant 0.266011745 : f32
    %935 = vector.broadcast %cst_482 : f32 to vector<16x16xf32>
    %936 = arith.mulf %935, %934 : vector<16x16xf32>
    %937 = arith.addf %933, %936 : vector<16x16xf32>
    %938 = vector.extract_strided_slice %914 {offsets = [0, 6], sizes = [16, 16], strides = [1, 1]} : vector<16x26xf32> to vector<16x16xf32>
    %cst_483 = arith.constant 0.213005543 : f32
    %939 = vector.broadcast %cst_483 : f32 to vector<16x16xf32>
    %940 = arith.mulf %939, %938 : vector<16x16xf32>
    %941 = arith.addf %937, %940 : vector<16x16xf32>
    %942 = vector.extract_strided_slice %914 {offsets = [0, 7], sizes = [16, 16], strides = [1, 1]} : vector<16x26xf32> to vector<16x16xf32>
    %cst_484 = arith.constant 0.109360695 : f32
    %943 = vector.broadcast %cst_484 : f32 to vector<16x16xf32>
    %944 = arith.mulf %943, %942 : vector<16x16xf32>
    %945 = arith.addf %941, %944 : vector<16x16xf32>
    %946 = vector.extract_strided_slice %914 {offsets = [0, 8], sizes = [16, 16], strides = [1, 1]} : vector<16x26xf32> to vector<16x16xf32>
    %cst_485 = arith.constant 0.0360007733 : f32
    %947 = vector.broadcast %cst_485 : f32 to vector<16x16xf32>
    %948 = arith.mulf %947, %946 : vector<16x16xf32>
    %949 = arith.addf %945, %948 : vector<16x16xf32>
    %950 = vector.extract_strided_slice %914 {offsets = [0, 9], sizes = [16, 16], strides = [1, 1]} : vector<16x26xf32> to vector<16x16xf32>
    %cst_486 = arith.constant 0.00759875868 : f32
    %951 = vector.broadcast %cst_486 : f32 to vector<16x16xf32>
    %952 = arith.mulf %951, %950 : vector<16x16xf32>
    %953 = arith.addf %949, %952 : vector<16x16xf32>
    %954 = vector.extract_strided_slice %914 {offsets = [0, 10], sizes = [16, 16], strides = [1, 1]} : vector<16x26xf32> to vector<16x16xf32>
    %cst_487 = arith.constant 0.00102838024 : f32
    %955 = vector.broadcast %cst_487 : f32 to vector<16x16xf32>
    %956 = arith.mulf %955, %954 : vector<16x16xf32>
    %957 = arith.addf %953, %956 : vector<16x16xf32>
    %958 = arith.mulf %841, %841 : vector<16x16xf32>
    %c5_488 = arith.constant 5 : index
    %c5_489 = arith.constant 5 : index
    %959 = vector.load %arg8[%c5_488, %c5_489] : memref<26x26xf32, #tpu.memory_space<vmem>>, vector<16x16xf32>
    tpu.vector_store %arg8[%c5_488, %c5_489], %958 {strides = array<i32>} : memref<26x26xf32, #tpu.memory_space<vmem>>, vector<16x16xf32>,
    %c0_490 = arith.constant 0 : index
    %c0_491 = arith.constant 0 : index
    %960 = vector.load %arg8[%c0_490, %c0_491] : memref<26x26xf32, #tpu.memory_space<vmem>>, vector<16x26xf32>
    %cst_492 = arith.constant 0.00102838024 : f32
    %961 = vector.broadcast %cst_492 : f32 to vector<16x26xf32>
    %962 = arith.mulf %961, %960 : vector<16x26xf32>
    %c1_493 = arith.constant 1 : index
    %c0_494 = arith.constant 0 : index
    %963 = vector.load %arg8[%c1_493, %c0_494] : memref<26x26xf32, #tpu.memory_space<vmem>>, vector<16x26xf32>
    %cst_495 = arith.constant 0.00759875868 : f32
    %964 = vector.broadcast %cst_495 : f32 to vector<16x26xf32>
    %965 = arith.mulf %964, %963 : vector<16x26xf32>
    %966 = arith.addf %962, %965 : vector<16x26xf32>
    %c2_496 = arith.constant 2 : index
    %c0_497 = arith.constant 0 : index
    %967 = vector.load %arg8[%c2_496, %c0_497] : memref<26x26xf32, #tpu.memory_space<vmem>>, vector<16x26xf32>
    %cst_498 = arith.constant 0.0360007733 : f32
    %968 = vector.broadcast %cst_498 : f32 to vector<16x26xf32>
    %969 = arith.mulf %968, %967 : vector<16x26xf32>
    %970 = arith.addf %966, %969 : vector<16x26xf32>
    %c3_499 = arith.constant 3 : index
    %c0_500 = arith.constant 0 : index
    %971 = vector.load %arg8[%c3_499, %c0_500] : memref<26x26xf32, #tpu.memory_space<vmem>>, vector<16x26xf32>
    %cst_501 = arith.constant 0.109360695 : f32
    %972 = vector.broadcast %cst_501 : f32 to vector<16x26xf32>
    %973 = arith.mulf %972, %971 : vector<16x26xf32>
    %974 = arith.addf %970, %973 : vector<16x26xf32>
    %c4_502 = arith.constant 4 : index
    %c0_503 = arith.constant 0 : index
    %975 = vector.load %arg8[%c4_502, %c0_503] : memref<26x26xf32, #tpu.memory_space<vmem>>, vector<16x26xf32>
    %cst_504 = arith.constant 0.213005543 : f32
    %976 = vector.broadcast %cst_504 : f32 to vector<16x26xf32>
    %977 = arith.mulf %976, %975 : vector<16x26xf32>
    %978 = arith.addf %974, %977 : vector<16x26xf32>
    %c5_505 = arith.constant 5 : index
    %c0_506 = arith.constant 0 : index
    %979 = vector.load %arg8[%c5_505, %c0_506] : memref<26x26xf32, #tpu.memory_space<vmem>>, vector<16x26xf32>
    %cst_507 = arith.constant 0.266011745 : f32
    %980 = vector.broadcast %cst_507 : f32 to vector<16x26xf32>
    %981 = arith.mulf %980, %979 : vector<16x26xf32>
    %982 = arith.addf %978, %981 : vector<16x26xf32>
    %c6_508 = arith.constant 6 : index
    %c0_509 = arith.constant 0 : index
    %983 = vector.load %arg8[%c6_508, %c0_509] : memref<26x26xf32, #tpu.memory_space<vmem>>, vector<16x26xf32>
    %cst_510 = arith.constant 0.213005543 : f32
    %984 = vector.broadcast %cst_510 : f32 to vector<16x26xf32>
    %985 = arith.mulf %984, %983 : vector<16x26xf32>
    %986 = arith.addf %982, %985 : vector<16x26xf32>
    %c7_511 = arith.constant 7 : index
    %c0_512 = arith.constant 0 : index
    %987 = vector.load %arg8[%c7_511, %c0_512] : memref<26x26xf32, #tpu.memory_space<vmem>>, vector<16x26xf32>
    %cst_513 = arith.constant 0.109360695 : f32
    %988 = vector.broadcast %cst_513 : f32 to vector<16x26xf32>
    %989 = arith.mulf %988, %987 : vector<16x26xf32>
    %990 = arith.addf %986, %989 : vector<16x26xf32>
    %c8_514 = arith.constant 8 : index
    %c0_515 = arith.constant 0 : index
    %991 = vector.load %arg8[%c8_514, %c0_515] : memref<26x26xf32, #tpu.memory_space<vmem>>, vector<16x26xf32>
    %cst_516 = arith.constant 0.0360007733 : f32
    %992 = vector.broadcast %cst_516 : f32 to vector<16x26xf32>
    %993 = arith.mulf %992, %991 : vector<16x26xf32>
    %994 = arith.addf %990, %993 : vector<16x26xf32>
    %c9_517 = arith.constant 9 : index
    %c0_518 = arith.constant 0 : index
    %995 = vector.load %arg8[%c9_517, %c0_518] : memref<26x26xf32, #tpu.memory_space<vmem>>, vector<16x26xf32>
    %cst_519 = arith.constant 0.00759875868 : f32
    %996 = vector.broadcast %cst_519 : f32 to vector<16x26xf32>
    %997 = arith.mulf %996, %995 : vector<16x26xf32>
    %998 = arith.addf %994, %997 : vector<16x26xf32>
    %c10_520 = arith.constant 10 : index
    %c0_521 = arith.constant 0 : index
    %999 = vector.load %arg8[%c10_520, %c0_521] : memref<26x26xf32, #tpu.memory_space<vmem>>, vector<16x26xf32>
    %cst_522 = arith.constant 0.00102838024 : f32
    %1000 = vector.broadcast %cst_522 : f32 to vector<16x26xf32>
    %1001 = arith.mulf %1000, %999 : vector<16x26xf32>
    %1002 = arith.addf %998, %1001 : vector<16x26xf32>
    %1003 = vector.extract_strided_slice %1002 {offsets = [0, 0], sizes = [16, 16], strides = [1, 1]} : vector<16x26xf32> to vector<16x16xf32>
    %cst_523 = arith.constant 0.00102838024 : f32
    %1004 = vector.broadcast %cst_523 : f32 to vector<16x16xf32>
    %1005 = arith.mulf %1004, %1003 : vector<16x16xf32>
    %1006 = vector.extract_strided_slice %1002 {offsets = [0, 1], sizes = [16, 16], strides = [1, 1]} : vector<16x26xf32> to vector<16x16xf32>
    %cst_524 = arith.constant 0.00759875868 : f32
    %1007 = vector.broadcast %cst_524 : f32 to vector<16x16xf32>
    %1008 = arith.mulf %1007, %1006 : vector<16x16xf32>
    %1009 = arith.addf %1005, %1008 : vector<16x16xf32>
    %1010 = vector.extract_strided_slice %1002 {offsets = [0, 2], sizes = [16, 16], strides = [1, 1]} : vector<16x26xf32> to vector<16x16xf32>
    %cst_525 = arith.constant 0.0360007733 : f32
    %1011 = vector.broadcast %cst_525 : f32 to vector<16x16xf32>
    %1012 = arith.mulf %1011, %1010 : vector<16x16xf32>
    %1013 = arith.addf %1009, %1012 : vector<16x16xf32>
    %1014 = vector.extract_strided_slice %1002 {offsets = [0, 3], sizes = [16, 16], strides = [1, 1]} : vector<16x26xf32> to vector<16x16xf32>
    %cst_526 = arith.constant 0.109360695 : f32
    %1015 = vector.broadcast %cst_526 : f32 to vector<16x16xf32>
    %1016 = arith.mulf %1015, %1014 : vector<16x16xf32>
    %1017 = arith.addf %1013, %1016 : vector<16x16xf32>
    %1018 = vector.extract_strided_slice %1002 {offsets = [0, 4], sizes = [16, 16], strides = [1, 1]} : vector<16x26xf32> to vector<16x16xf32>
    %cst_527 = arith.constant 0.213005543 : f32
    %1019 = vector.broadcast %cst_527 : f32 to vector<16x16xf32>
    %1020 = arith.mulf %1019, %1018 : vector<16x16xf32>
    %1021 = arith.addf %1017, %1020 : vector<16x16xf32>
    %1022 = vector.extract_strided_slice %1002 {offsets = [0, 5], sizes = [16, 16], strides = [1, 1]} : vector<16x26xf32> to vector<16x16xf32>
    %cst_528 = arith.constant 0.266011745 : f32
    %1023 = vector.broadcast %cst_528 : f32 to vector<16x16xf32>
    %1024 = arith.mulf %1023, %1022 : vector<16x16xf32>
    %1025 = arith.addf %1021, %1024 : vector<16x16xf32>
    %1026 = vector.extract_strided_slice %1002 {offsets = [0, 6], sizes = [16, 16], strides = [1, 1]} : vector<16x26xf32> to vector<16x16xf32>
    %cst_529 = arith.constant 0.213005543 : f32
    %1027 = vector.broadcast %cst_529 : f32 to vector<16x16xf32>
    %1028 = arith.mulf %1027, %1026 : vector<16x16xf32>
    %1029 = arith.addf %1025, %1028 : vector<16x16xf32>
    %1030 = vector.extract_strided_slice %1002 {offsets = [0, 7], sizes = [16, 16], strides = [1, 1]} : vector<16x26xf32> to vector<16x16xf32>
    %cst_530 = arith.constant 0.109360695 : f32
    %1031 = vector.broadcast %cst_530 : f32 to vector<16x16xf32>
    %1032 = arith.mulf %1031, %1030 : vector<16x16xf32>
    %1033 = arith.addf %1029, %1032 : vector<16x16xf32>
    %1034 = vector.extract_strided_slice %1002 {offsets = [0, 8], sizes = [16, 16], strides = [1, 1]} : vector<16x26xf32> to vector<16x16xf32>
    %cst_531 = arith.constant 0.0360007733 : f32
    %1035 = vector.broadcast %cst_531 : f32 to vector<16x16xf32>
    %1036 = arith.mulf %1035, %1034 : vector<16x16xf32>
    %1037 = arith.addf %1033, %1036 : vector<16x16xf32>
    %1038 = vector.extract_strided_slice %1002 {offsets = [0, 9], sizes = [16, 16], strides = [1, 1]} : vector<16x26xf32> to vector<16x16xf32>
    %cst_532 = arith.constant 0.00759875868 : f32
    %1039 = vector.broadcast %cst_532 : f32 to vector<16x16xf32>
    %1040 = arith.mulf %1039, %1038 : vector<16x16xf32>
    %1041 = arith.addf %1037, %1040 : vector<16x16xf32>
    %1042 = vector.extract_strided_slice %1002 {offsets = [0, 10], sizes = [16, 16], strides = [1, 1]} : vector<16x26xf32> to vector<16x16xf32>
    %cst_533 = arith.constant 0.00102838024 : f32
    %1043 = vector.broadcast %cst_533 : f32 to vector<16x16xf32>
    %1044 = arith.mulf %1043, %1042 : vector<16x16xf32>
    %1045 = arith.addf %1041, %1044 : vector<16x16xf32>
    %1046 = arith.mulf %957, %957 : vector<16x16xf32>
    %1047 = arith.subf %1045, %1046 : vector<16x16xf32>
    %c0_534 = arith.constant 0 : index
    %c0_535 = arith.constant 0 : index
    %1048 = vector.load %arg9[%c0_534, %c0_535] : memref<16x16xf32, #tpu.memory_space<vmem>>, vector<16x16xf32>
    %c0_536 = arith.constant 0 : index
    %c0_537 = arith.constant 0 : index
    %1049 = vector.load %arg10[%c0_536, %c0_537] : memref<16x16xf32, #tpu.memory_space<vmem>>, vector<16x16xf32>
    %1050 = arith.mulf %841, %4 : vector<16x16xf32>
    %c5_538 = arith.constant 5 : index
    %c5_539 = arith.constant 5 : index
    %1051 = vector.load %arg8[%c5_538, %c5_539] : memref<26x26xf32, #tpu.memory_space<vmem>>, vector<16x16xf32>
    tpu.vector_store %arg8[%c5_538, %c5_539], %1050 {strides = array<i32>} : memref<26x26xf32, #tpu.memory_space<vmem>>, vector<16x16xf32>,
    %c0_540 = arith.constant 0 : index
    %c0_541 = arith.constant 0 : index
    %1052 = vector.load %arg8[%c0_540, %c0_541] : memref<26x26xf32, #tpu.memory_space<vmem>>, vector<16x26xf32>
    %cst_542 = arith.constant 0.00102838024 : f32
    %1053 = vector.broadcast %cst_542 : f32 to vector<16x26xf32>
    %1054 = arith.mulf %1053, %1052 : vector<16x26xf32>
    %c1_543 = arith.constant 1 : index
    %c0_544 = arith.constant 0 : index
    %1055 = vector.load %arg8[%c1_543, %c0_544] : memref<26x26xf32, #tpu.memory_space<vmem>>, vector<16x26xf32>
    %cst_545 = arith.constant 0.00759875868 : f32
    %1056 = vector.broadcast %cst_545 : f32 to vector<16x26xf32>
    %1057 = arith.mulf %1056, %1055 : vector<16x26xf32>
    %1058 = arith.addf %1054, %1057 : vector<16x26xf32>
    %c2_546 = arith.constant 2 : index
    %c0_547 = arith.constant 0 : index
    %1059 = vector.load %arg8[%c2_546, %c0_547] : memref<26x26xf32, #tpu.memory_space<vmem>>, vector<16x26xf32>
    %cst_548 = arith.constant 0.0360007733 : f32
    %1060 = vector.broadcast %cst_548 : f32 to vector<16x26xf32>
    %1061 = arith.mulf %1060, %1059 : vector<16x26xf32>
    %1062 = arith.addf %1058, %1061 : vector<16x26xf32>
    %c3_549 = arith.constant 3 : index
    %c0_550 = arith.constant 0 : index
    %1063 = vector.load %arg8[%c3_549, %c0_550] : memref<26x26xf32, #tpu.memory_space<vmem>>, vector<16x26xf32>
    %cst_551 = arith.constant 0.109360695 : f32
    %1064 = vector.broadcast %cst_551 : f32 to vector<16x26xf32>
    %1065 = arith.mulf %1064, %1063 : vector<16x26xf32>
    %1066 = arith.addf %1062, %1065 : vector<16x26xf32>
    %c4_552 = arith.constant 4 : index
    %c0_553 = arith.constant 0 : index
    %1067 = vector.load %arg8[%c4_552, %c0_553] : memref<26x26xf32, #tpu.memory_space<vmem>>, vector<16x26xf32>
    %cst_554 = arith.constant 0.213005543 : f32
    %1068 = vector.broadcast %cst_554 : f32 to vector<16x26xf32>
    %1069 = arith.mulf %1068, %1067 : vector<16x26xf32>
    %1070 = arith.addf %1066, %1069 : vector<16x26xf32>
    %c5_555 = arith.constant 5 : index
    %c0_556 = arith.constant 0 : index
    %1071 = vector.load %arg8[%c5_555, %c0_556] : memref<26x26xf32, #tpu.memory_space<vmem>>, vector<16x26xf32>
    %cst_557 = arith.constant 0.266011745 : f32
    %1072 = vector.broadcast %cst_557 : f32 to vector<16x26xf32>
    %1073 = arith.mulf %1072, %1071 : vector<16x26xf32>
    %1074 = arith.addf %1070, %1073 : vector<16x26xf32>
    %c6_558 = arith.constant 6 : index
    %c0_559 = arith.constant 0 : index
    %1075 = vector.load %arg8[%c6_558, %c0_559] : memref<26x26xf32, #tpu.memory_space<vmem>>, vector<16x26xf32>
    %cst_560 = arith.constant 0.213005543 : f32
    %1076 = vector.broadcast %cst_560 : f32 to vector<16x26xf32>
    %1077 = arith.mulf %1076, %1075 : vector<16x26xf32>
    %1078 = arith.addf %1074, %1077 : vector<16x26xf32>
    %c7_561 = arith.constant 7 : index
    %c0_562 = arith.constant 0 : index
    %1079 = vector.load %arg8[%c7_561, %c0_562] : memref<26x26xf32, #tpu.memory_space<vmem>>, vector<16x26xf32>
    %cst_563 = arith.constant 0.109360695 : f32
    %1080 = vector.broadcast %cst_563 : f32 to vector<16x26xf32>
    %1081 = arith.mulf %1080, %1079 : vector<16x26xf32>
    %1082 = arith.addf %1078, %1081 : vector<16x26xf32>
    %c8_564 = arith.constant 8 : index
    %c0_565 = arith.constant 0 : index
    %1083 = vector.load %arg8[%c8_564, %c0_565] : memref<26x26xf32, #tpu.memory_space<vmem>>, vector<16x26xf32>
    %cst_566 = arith.constant 0.0360007733 : f32
    %1084 = vector.broadcast %cst_566 : f32 to vector<16x26xf32>
    %1085 = arith.mulf %1084, %1083 : vector<16x26xf32>
    %1086 = arith.addf %1082, %1085 : vector<16x26xf32>
    %c9_567 = arith.constant 9 : index
    %c0_568 = arith.constant 0 : index
    %1087 = vector.load %arg8[%c9_567, %c0_568] : memref<26x26xf32, #tpu.memory_space<vmem>>, vector<16x26xf32>
    %cst_569 = arith.constant 0.00759875868 : f32
    %1088 = vector.broadcast %cst_569 : f32 to vector<16x26xf32>
    %1089 = arith.mulf %1088, %1087 : vector<16x26xf32>
    %1090 = arith.addf %1086, %1089 : vector<16x26xf32>
    %c10_570 = arith.constant 10 : index
    %c0_571 = arith.constant 0 : index
    %1091 = vector.load %arg8[%c10_570, %c0_571] : memref<26x26xf32, #tpu.memory_space<vmem>>, vector<16x26xf32>
    %cst_572 = arith.constant 0.00102838024 : f32
    %1092 = vector.broadcast %cst_572 : f32 to vector<16x26xf32>
    %1093 = arith.mulf %1092, %1091 : vector<16x26xf32>
    %1094 = arith.addf %1090, %1093 : vector<16x26xf32>
    %1095 = vector.extract_strided_slice %1094 {offsets = [0, 0], sizes = [16, 16], strides = [1, 1]} : vector<16x26xf32> to vector<16x16xf32>
    %cst_573 = arith.constant 0.00102838024 : f32
    %1096 = vector.broadcast %cst_573 : f32 to vector<16x16xf32>
    %1097 = arith.mulf %1096, %1095 : vector<16x16xf32>
    %1098 = vector.extract_strided_slice %1094 {offsets = [0, 1], sizes = [16, 16], strides = [1, 1]} : vector<16x26xf32> to vector<16x16xf32>
    %cst_574 = arith.constant 0.00759875868 : f32
    %1099 = vector.broadcast %cst_574 : f32 to vector<16x16xf32>
    %1100 = arith.mulf %1099, %1098 : vector<16x16xf32>
    %1101 = arith.addf %1097, %1100 : vector<16x16xf32>
    %1102 = vector.extract_strided_slice %1094 {offsets = [0, 2], sizes = [16, 16], strides = [1, 1]} : vector<16x26xf32> to vector<16x16xf32>
    %cst_575 = arith.constant 0.0360007733 : f32
    %1103 = vector.broadcast %cst_575 : f32 to vector<16x16xf32>
    %1104 = arith.mulf %1103, %1102 : vector<16x16xf32>
    %1105 = arith.addf %1101, %1104 : vector<16x16xf32>
    %1106 = vector.extract_strided_slice %1094 {offsets = [0, 3], sizes = [16, 16], strides = [1, 1]} : vector<16x26xf32> to vector<16x16xf32>
    %cst_576 = arith.constant 0.109360695 : f32
    %1107 = vector.broadcast %cst_576 : f32 to vector<16x16xf32>
    %1108 = arith.mulf %1107, %1106 : vector<16x16xf32>
    %1109 = arith.addf %1105, %1108 : vector<16x16xf32>
    %1110 = vector.extract_strided_slice %1094 {offsets = [0, 4], sizes = [16, 16], strides = [1, 1]} : vector<16x26xf32> to vector<16x16xf32>
    %cst_577 = arith.constant 0.213005543 : f32
    %1111 = vector.broadcast %cst_577 : f32 to vector<16x16xf32>
    %1112 = arith.mulf %1111, %1110 : vector<16x16xf32>
    %1113 = arith.addf %1109, %1112 : vector<16x16xf32>
    %1114 = vector.extract_strided_slice %1094 {offsets = [0, 5], sizes = [16, 16], strides = [1, 1]} : vector<16x26xf32> to vector<16x16xf32>
    %cst_578 = arith.constant 0.266011745 : f32
    %1115 = vector.broadcast %cst_578 : f32 to vector<16x16xf32>
    %1116 = arith.mulf %1115, %1114 : vector<16x16xf32>
    %1117 = arith.addf %1113, %1116 : vector<16x16xf32>
    %1118 = vector.extract_strided_slice %1094 {offsets = [0, 6], sizes = [16, 16], strides = [1, 1]} : vector<16x26xf32> to vector<16x16xf32>
    %cst_579 = arith.constant 0.213005543 : f32
    %1119 = vector.broadcast %cst_579 : f32 to vector<16x16xf32>
    %1120 = arith.mulf %1119, %1118 : vector<16x16xf32>
    %1121 = arith.addf %1117, %1120 : vector<16x16xf32>
    %1122 = vector.extract_strided_slice %1094 {offsets = [0, 7], sizes = [16, 16], strides = [1, 1]} : vector<16x26xf32> to vector<16x16xf32>
    %cst_580 = arith.constant 0.109360695 : f32
    %1123 = vector.broadcast %cst_580 : f32 to vector<16x16xf32>
    %1124 = arith.mulf %1123, %1122 : vector<16x16xf32>
    %1125 = arith.addf %1121, %1124 : vector<16x16xf32>
    %1126 = vector.extract_strided_slice %1094 {offsets = [0, 8], sizes = [16, 16], strides = [1, 1]} : vector<16x26xf32> to vector<16x16xf32>
    %cst_581 = arith.constant 0.0360007733 : f32
    %1127 = vector.broadcast %cst_581 : f32 to vector<16x16xf32>
    %1128 = arith.mulf %1127, %1126 : vector<16x16xf32>
    %1129 = arith.addf %1125, %1128 : vector<16x16xf32>
    %1130 = vector.extract_strided_slice %1094 {offsets = [0, 9], sizes = [16, 16], strides = [1, 1]} : vector<16x26xf32> to vector<16x16xf32>
    %cst_582 = arith.constant 0.00759875868 : f32
    %1131 = vector.broadcast %cst_582 : f32 to vector<16x16xf32>
    %1132 = arith.mulf %1131, %1130 : vector<16x16xf32>
    %1133 = arith.addf %1129, %1132 : vector<16x16xf32>
    %1134 = vector.extract_strided_slice %1094 {offsets = [0, 10], sizes = [16, 16], strides = [1, 1]} : vector<16x26xf32> to vector<16x16xf32>
    %cst_583 = arith.constant 0.00102838024 : f32
    %1135 = vector.broadcast %cst_583 : f32 to vector<16x16xf32>
    %1136 = arith.mulf %1135, %1134 : vector<16x16xf32>
    %1137 = arith.addf %1133, %1136 : vector<16x16xf32>
    %1138 = arith.mulf %957, %1048 : vector<16x16xf32>
    %1139 = arith.subf %1137, %1138 : vector<16x16xf32>
    %cst_584 = arith.constant 2.000000e+00 : f32
    %1140 = vector.broadcast %cst_584 : f32 to vector<16x16xf32>
    %1141 = arith.mulf %1140, %957 : vector<16x16xf32>
    %1142 = arith.mulf %1141, %1048 : vector<16x16xf32>
    %cst_585 = arith.constant 9.99999974E-5 : f32
    %1143 = vector.broadcast %cst_585 : f32 to vector<16x16xf32>
    %1144 = arith.addf %1142, %1143 : vector<16x16xf32>
    %cst_586 = arith.constant 2.000000e+00 : f32
    %1145 = vector.broadcast %cst_586 : f32 to vector<16x16xf32>
    %1146 = arith.mulf %1145, %1139 : vector<16x16xf32>
    %cst_587 = arith.constant 8.99999984E-4 : f32
    %1147 = vector.broadcast %cst_587 : f32 to vector<16x16xf32>
    %1148 = arith.addf %1146, %1147 : vector<16x16xf32>
    %1149 = arith.mulf %1144, %1148 : vector<16x16xf32>
    %1150 = arith.mulf %957, %957 : vector<16x16xf32>
    %1151 = arith.mulf %1048, %1048 : vector<16x16xf32>
    %1152 = arith.addf %1150, %1151 : vector<16x16xf32>
    %cst_588 = arith.constant 9.99999974E-5 : f32
    %1153 = vector.broadcast %cst_588 : f32 to vector<16x16xf32>
    %1154 = arith.addf %1152, %1153 : vector<16x16xf32>
    %1155 = arith.addf %1047, %1049 : vector<16x16xf32>
    %cst_589 = arith.constant 8.99999984E-4 : f32
    %1156 = vector.broadcast %cst_589 : f32 to vector<16x16xf32>
    %1157 = arith.addf %1155, %1156 : vector<16x16xf32>
    %1158 = arith.mulf %1154, %1157 : vector<16x16xf32>
    %1159 = arith.divf %1149, %1158 : vector<16x16xf32>
    %c2_590 = arith.constant 2 : index
    %c0_591 = arith.constant 0 : index
    %1160 = vector.load %arg12[%c2_590, %c0_591] : memref<8x128xf32, #tpu.memory_space<vmem>>, vector<1x128xf32>
    %1161 = vector.shape_cast %1159 : vector<16x16xf32> to vector<1x16x16xf32>
    %cst_592 = arith.constant dense<0.000000e+00> : vector<1xf32>
    %1162 = vector.multi_reduction <add>, %1161, %cst_592 [1, 2] : vector<1x16x16xf32> to vector<1xf32>
    %1163 = vector.shape_cast %1162 : vector<1xf32> to vector<1x1x1xf32>
    %1164 = vector.extract %1163[0, 0, 0] : f32 from vector<1x1x1xf32>
    %1165 = vector.broadcast %1164 : f32 to vector<1x128xf32>
    %1166 = arith.addf %1160, %1165 : vector<1x128xf32>
    %c2_593 = arith.constant 2 : index
    %c0_594 = arith.constant 0 : index
    %1167 = vector.load %arg12[%c2_593, %c0_594] : memref<8x128xf32, #tpu.memory_space<vmem>>, vector<1x128xf32>
    tpu.vector_store %arg12[%c2_593, %c0_594], %1166 {strides = array<i32>} : memref<8x128xf32, #tpu.memory_space<vmem>>, vector<1x128xf32>,
    %c0_595 = arith.constant 0 : index
    %c0_596 = arith.constant 0 : index
    %c0_597 = arith.constant 0 : index
    %1168 = vector.load %arg4[%c0_595, %c0_596, %c0_597] : memref<1x16x16xf32, #tpu.memory_space<vmem>>, vector<1x16x16xf32>
    %1169 = vector.shape_cast %1168 : vector<1x16x16xf32> to vector<16x16xf32>
    %c5_598 = arith.constant 5 : index
    %c5_599 = arith.constant 5 : index
    %1170 = vector.load %arg8[%c5_598, %c5_599] : memref<26x26xf32, #tpu.memory_space<vmem>>, vector<16x16xf32>
    tpu.vector_store %arg8[%c5_598, %c5_599], %1169 {strides = array<i32>} : memref<26x26xf32, #tpu.memory_space<vmem>>, vector<16x16xf32>,
    %c4_600 = arith.constant 4 : index
    %c4_601 = arith.constant 4 : index
    %1171 = vector.load %arg8[%c4_600, %c4_601] : memref<26x26xf32, #tpu.memory_space<vmem>>, vector<16x18xf32>
    %c5_602 = arith.constant 5 : index
    %c4_603 = arith.constant 4 : index
    %1172 = vector.load %arg8[%c5_602, %c4_603] : memref<26x26xf32, #tpu.memory_space<vmem>>, vector<16x18xf32>
    %c6_604 = arith.constant 6 : index
    %c4_605 = arith.constant 4 : index
    %1173 = vector.load %arg8[%c6_604, %c4_605] : memref<26x26xf32, #tpu.memory_space<vmem>>, vector<16x18xf32>
    %cst_606 = arith.constant 2.000000e+00 : f32
    %1174 = vector.broadcast %cst_606 : f32 to vector<16x18xf32>
    %1175 = arith.mulf %1174, %1172 : vector<16x18xf32>
    %1176 = arith.addf %1171, %1175 : vector<16x18xf32>
    %1177 = arith.addf %1176, %1173 : vector<16x18xf32>
    %1178 = arith.subf %1171, %1173 : vector<16x18xf32>
    %1179 = vector.extract_strided_slice %1177 {offsets = [0, 2], sizes = [16, 16], strides = [1, 1]} : vector<16x18xf32> to vector<16x16xf32>
    %1180 = vector.extract_strided_slice %1177 {offsets = [0, 0], sizes = [16, 16], strides = [1, 1]} : vector<16x18xf32> to vector<16x16xf32>
    %1181 = arith.subf %1179, %1180 : vector<16x16xf32>
    %1182 = vector.extract_strided_slice %1178 {offsets = [0, 0], sizes = [16, 16], strides = [1, 1]} : vector<16x18xf32> to vector<16x16xf32>
    %1183 = vector.extract_strided_slice %1178 {offsets = [0, 1], sizes = [16, 16], strides = [1, 1]} : vector<16x18xf32> to vector<16x16xf32>
    %cst_607 = arith.constant 2.000000e+00 : f32
    %1184 = vector.broadcast %cst_607 : f32 to vector<16x16xf32>
    %1185 = arith.mulf %1184, %1183 : vector<16x16xf32>
    %1186 = arith.addf %1182, %1185 : vector<16x16xf32>
    %1187 = vector.extract_strided_slice %1178 {offsets = [0, 2], sizes = [16, 16], strides = [1, 1]} : vector<16x18xf32> to vector<16x16xf32>
    %1188 = arith.addf %1186, %1187 : vector<16x16xf32>
    %1189 = math.absf %1181 : vector<16x16xf32>
    %1190 = math.absf %1188 : vector<16x16xf32>
    %1191 = arith.addf %1189, %1190 : vector<16x16xf32>
    %c3_608 = arith.constant 3 : index
    %c0_609 = arith.constant 0 : index
    %1192 = vector.load %arg11[%c3_608, %c0_609] : memref<8x128xf32, #tpu.memory_space<vmem>>, vector<1x128xf32>
    %1193 = vector.shape_cast %1191 : vector<16x16xf32> to vector<1x16x16xf32>
    %cst_610 = arith.constant dense<0.000000e+00> : vector<1xf32>
    %1194 = vector.multi_reduction <add>, %1193, %cst_610 [1, 2] : vector<1x16x16xf32> to vector<1xf32>
    %1195 = vector.shape_cast %1194 : vector<1xf32> to vector<1x1x1xf32>
    %1196 = vector.extract %1195[0, 0, 0] : f32 from vector<1x1x1xf32>
    %1197 = vector.broadcast %1196 : f32 to vector<1x128xf32>
    %1198 = arith.addf %1192, %1197 : vector<1x128xf32>
    %c3_611 = arith.constant 3 : index
    %c0_612 = arith.constant 0 : index
    %1199 = vector.load %arg11[%c3_611, %c0_612] : memref<8x128xf32, #tpu.memory_space<vmem>>, vector<1x128xf32>
    tpu.vector_store %arg11[%c3_611, %c0_612], %1198 {strides = array<i32>} : memref<8x128xf32, #tpu.memory_space<vmem>>, vector<1x128xf32>,
    %c0_613 = arith.constant 0 : index
    %c0_614 = arith.constant 0 : index
    %1200 = vector.load %arg8[%c0_613, %c0_614] : memref<26x26xf32, #tpu.memory_space<vmem>>, vector<16x26xf32>
    %cst_615 = arith.constant 0.00102838024 : f32
    %1201 = vector.broadcast %cst_615 : f32 to vector<16x26xf32>
    %1202 = arith.mulf %1201, %1200 : vector<16x26xf32>
    %c1_616 = arith.constant 1 : index
    %c0_617 = arith.constant 0 : index
    %1203 = vector.load %arg8[%c1_616, %c0_617] : memref<26x26xf32, #tpu.memory_space<vmem>>, vector<16x26xf32>
    %cst_618 = arith.constant 0.00759875868 : f32
    %1204 = vector.broadcast %cst_618 : f32 to vector<16x26xf32>
    %1205 = arith.mulf %1204, %1203 : vector<16x26xf32>
    %1206 = arith.addf %1202, %1205 : vector<16x26xf32>
    %c2_619 = arith.constant 2 : index
    %c0_620 = arith.constant 0 : index
    %1207 = vector.load %arg8[%c2_619, %c0_620] : memref<26x26xf32, #tpu.memory_space<vmem>>, vector<16x26xf32>
    %cst_621 = arith.constant 0.0360007733 : f32
    %1208 = vector.broadcast %cst_621 : f32 to vector<16x26xf32>
    %1209 = arith.mulf %1208, %1207 : vector<16x26xf32>
    %1210 = arith.addf %1206, %1209 : vector<16x26xf32>
    %c3_622 = arith.constant 3 : index
    %c0_623 = arith.constant 0 : index
    %1211 = vector.load %arg8[%c3_622, %c0_623] : memref<26x26xf32, #tpu.memory_space<vmem>>, vector<16x26xf32>
    %cst_624 = arith.constant 0.109360695 : f32
    %1212 = vector.broadcast %cst_624 : f32 to vector<16x26xf32>
    %1213 = arith.mulf %1212, %1211 : vector<16x26xf32>
    %1214 = arith.addf %1210, %1213 : vector<16x26xf32>
    %c4_625 = arith.constant 4 : index
    %c0_626 = arith.constant 0 : index
    %1215 = vector.load %arg8[%c4_625, %c0_626] : memref<26x26xf32, #tpu.memory_space<vmem>>, vector<16x26xf32>
    %cst_627 = arith.constant 0.213005543 : f32
    %1216 = vector.broadcast %cst_627 : f32 to vector<16x26xf32>
    %1217 = arith.mulf %1216, %1215 : vector<16x26xf32>
    %1218 = arith.addf %1214, %1217 : vector<16x26xf32>
    %c5_628 = arith.constant 5 : index
    %c0_629 = arith.constant 0 : index
    %1219 = vector.load %arg8[%c5_628, %c0_629] : memref<26x26xf32, #tpu.memory_space<vmem>>, vector<16x26xf32>
    %cst_630 = arith.constant 0.266011745 : f32
    %1220 = vector.broadcast %cst_630 : f32 to vector<16x26xf32>
    %1221 = arith.mulf %1220, %1219 : vector<16x26xf32>
    %1222 = arith.addf %1218, %1221 : vector<16x26xf32>
    %c6_631 = arith.constant 6 : index
    %c0_632 = arith.constant 0 : index
    %1223 = vector.load %arg8[%c6_631, %c0_632] : memref<26x26xf32, #tpu.memory_space<vmem>>, vector<16x26xf32>
    %cst_633 = arith.constant 0.213005543 : f32
    %1224 = vector.broadcast %cst_633 : f32 to vector<16x26xf32>
    %1225 = arith.mulf %1224, %1223 : vector<16x26xf32>
    %1226 = arith.addf %1222, %1225 : vector<16x26xf32>
    %c7_634 = arith.constant 7 : index
    %c0_635 = arith.constant 0 : index
    %1227 = vector.load %arg8[%c7_634, %c0_635] : memref<26x26xf32, #tpu.memory_space<vmem>>, vector<16x26xf32>
    %cst_636 = arith.constant 0.109360695 : f32
    %1228 = vector.broadcast %cst_636 : f32 to vector<16x26xf32>
    %1229 = arith.mulf %1228, %1227 : vector<16x26xf32>
    %1230 = arith.addf %1226, %1229 : vector<16x26xf32>
    %c8_637 = arith.constant 8 : index
    %c0_638 = arith.constant 0 : index
    %1231 = vector.load %arg8[%c8_637, %c0_638] : memref<26x26xf32, #tpu.memory_space<vmem>>, vector<16x26xf32>
    %cst_639 = arith.constant 0.0360007733 : f32
    %1232 = vector.broadcast %cst_639 : f32 to vector<16x26xf32>
    %1233 = arith.mulf %1232, %1231 : vector<16x26xf32>
    %1234 = arith.addf %1230, %1233 : vector<16x26xf32>
    %c9_640 = arith.constant 9 : index
    %c0_641 = arith.constant 0 : index
    %1235 = vector.load %arg8[%c9_640, %c0_641] : memref<26x26xf32, #tpu.memory_space<vmem>>, vector<16x26xf32>
    %cst_642 = arith.constant 0.00759875868 : f32
    %1236 = vector.broadcast %cst_642 : f32 to vector<16x26xf32>
    %1237 = arith.mulf %1236, %1235 : vector<16x26xf32>
    %1238 = arith.addf %1234, %1237 : vector<16x26xf32>
    %c10_643 = arith.constant 10 : index
    %c0_644 = arith.constant 0 : index
    %1239 = vector.load %arg8[%c10_643, %c0_644] : memref<26x26xf32, #tpu.memory_space<vmem>>, vector<16x26xf32>
    %cst_645 = arith.constant 0.00102838024 : f32
    %1240 = vector.broadcast %cst_645 : f32 to vector<16x26xf32>
    %1241 = arith.mulf %1240, %1239 : vector<16x26xf32>
    %1242 = arith.addf %1238, %1241 : vector<16x26xf32>
    %1243 = vector.extract_strided_slice %1242 {offsets = [0, 0], sizes = [16, 16], strides = [1, 1]} : vector<16x26xf32> to vector<16x16xf32>
    %cst_646 = arith.constant 0.00102838024 : f32
    %1244 = vector.broadcast %cst_646 : f32 to vector<16x16xf32>
    %1245 = arith.mulf %1244, %1243 : vector<16x16xf32>
    %1246 = vector.extract_strided_slice %1242 {offsets = [0, 1], sizes = [16, 16], strides = [1, 1]} : vector<16x26xf32> to vector<16x16xf32>
    %cst_647 = arith.constant 0.00759875868 : f32
    %1247 = vector.broadcast %cst_647 : f32 to vector<16x16xf32>
    %1248 = arith.mulf %1247, %1246 : vector<16x16xf32>
    %1249 = arith.addf %1245, %1248 : vector<16x16xf32>
    %1250 = vector.extract_strided_slice %1242 {offsets = [0, 2], sizes = [16, 16], strides = [1, 1]} : vector<16x26xf32> to vector<16x16xf32>
    %cst_648 = arith.constant 0.0360007733 : f32
    %1251 = vector.broadcast %cst_648 : f32 to vector<16x16xf32>
    %1252 = arith.mulf %1251, %1250 : vector<16x16xf32>
    %1253 = arith.addf %1249, %1252 : vector<16x16xf32>
    %1254 = vector.extract_strided_slice %1242 {offsets = [0, 3], sizes = [16, 16], strides = [1, 1]} : vector<16x26xf32> to vector<16x16xf32>
    %cst_649 = arith.constant 0.109360695 : f32
    %1255 = vector.broadcast %cst_649 : f32 to vector<16x16xf32>
    %1256 = arith.mulf %1255, %1254 : vector<16x16xf32>
    %1257 = arith.addf %1253, %1256 : vector<16x16xf32>
    %1258 = vector.extract_strided_slice %1242 {offsets = [0, 4], sizes = [16, 16], strides = [1, 1]} : vector<16x26xf32> to vector<16x16xf32>
    %cst_650 = arith.constant 0.213005543 : f32
    %1259 = vector.broadcast %cst_650 : f32 to vector<16x16xf32>
    %1260 = arith.mulf %1259, %1258 : vector<16x16xf32>
    %1261 = arith.addf %1257, %1260 : vector<16x16xf32>
    %1262 = vector.extract_strided_slice %1242 {offsets = [0, 5], sizes = [16, 16], strides = [1, 1]} : vector<16x26xf32> to vector<16x16xf32>
    %cst_651 = arith.constant 0.266011745 : f32
    %1263 = vector.broadcast %cst_651 : f32 to vector<16x16xf32>
    %1264 = arith.mulf %1263, %1262 : vector<16x16xf32>
    %1265 = arith.addf %1261, %1264 : vector<16x16xf32>
    %1266 = vector.extract_strided_slice %1242 {offsets = [0, 6], sizes = [16, 16], strides = [1, 1]} : vector<16x26xf32> to vector<16x16xf32>
    %cst_652 = arith.constant 0.213005543 : f32
    %1267 = vector.broadcast %cst_652 : f32 to vector<16x16xf32>
    %1268 = arith.mulf %1267, %1266 : vector<16x16xf32>
    %1269 = arith.addf %1265, %1268 : vector<16x16xf32>
    %1270 = vector.extract_strided_slice %1242 {offsets = [0, 7], sizes = [16, 16], strides = [1, 1]} : vector<16x26xf32> to vector<16x16xf32>
    %cst_653 = arith.constant 0.109360695 : f32
    %1271 = vector.broadcast %cst_653 : f32 to vector<16x16xf32>
    %1272 = arith.mulf %1271, %1270 : vector<16x16xf32>
    %1273 = arith.addf %1269, %1272 : vector<16x16xf32>
    %1274 = vector.extract_strided_slice %1242 {offsets = [0, 8], sizes = [16, 16], strides = [1, 1]} : vector<16x26xf32> to vector<16x16xf32>
    %cst_654 = arith.constant 0.0360007733 : f32
    %1275 = vector.broadcast %cst_654 : f32 to vector<16x16xf32>
    %1276 = arith.mulf %1275, %1274 : vector<16x16xf32>
    %1277 = arith.addf %1273, %1276 : vector<16x16xf32>
    %1278 = vector.extract_strided_slice %1242 {offsets = [0, 9], sizes = [16, 16], strides = [1, 1]} : vector<16x26xf32> to vector<16x16xf32>
    %cst_655 = arith.constant 0.00759875868 : f32
    %1279 = vector.broadcast %cst_655 : f32 to vector<16x16xf32>
    %1280 = arith.mulf %1279, %1278 : vector<16x16xf32>
    %1281 = arith.addf %1277, %1280 : vector<16x16xf32>
    %1282 = vector.extract_strided_slice %1242 {offsets = [0, 10], sizes = [16, 16], strides = [1, 1]} : vector<16x26xf32> to vector<16x16xf32>
    %cst_656 = arith.constant 0.00102838024 : f32
    %1283 = vector.broadcast %cst_656 : f32 to vector<16x16xf32>
    %1284 = arith.mulf %1283, %1282 : vector<16x16xf32>
    %1285 = arith.addf %1281, %1284 : vector<16x16xf32>
    %1286 = arith.mulf %1169, %1169 : vector<16x16xf32>
    %c5_657 = arith.constant 5 : index
    %c5_658 = arith.constant 5 : index
    %1287 = vector.load %arg8[%c5_657, %c5_658] : memref<26x26xf32, #tpu.memory_space<vmem>>, vector<16x16xf32>
    tpu.vector_store %arg8[%c5_657, %c5_658], %1286 {strides = array<i32>} : memref<26x26xf32, #tpu.memory_space<vmem>>, vector<16x16xf32>,
    %c0_659 = arith.constant 0 : index
    %c0_660 = arith.constant 0 : index
    %1288 = vector.load %arg8[%c0_659, %c0_660] : memref<26x26xf32, #tpu.memory_space<vmem>>, vector<16x26xf32>
    %cst_661 = arith.constant 0.00102838024 : f32
    %1289 = vector.broadcast %cst_661 : f32 to vector<16x26xf32>
    %1290 = arith.mulf %1289, %1288 : vector<16x26xf32>
    %c1_662 = arith.constant 1 : index
    %c0_663 = arith.constant 0 : index
    %1291 = vector.load %arg8[%c1_662, %c0_663] : memref<26x26xf32, #tpu.memory_space<vmem>>, vector<16x26xf32>
    %cst_664 = arith.constant 0.00759875868 : f32
    %1292 = vector.broadcast %cst_664 : f32 to vector<16x26xf32>
    %1293 = arith.mulf %1292, %1291 : vector<16x26xf32>
    %1294 = arith.addf %1290, %1293 : vector<16x26xf32>
    %c2_665 = arith.constant 2 : index
    %c0_666 = arith.constant 0 : index
    %1295 = vector.load %arg8[%c2_665, %c0_666] : memref<26x26xf32, #tpu.memory_space<vmem>>, vector<16x26xf32>
    %cst_667 = arith.constant 0.0360007733 : f32
    %1296 = vector.broadcast %cst_667 : f32 to vector<16x26xf32>
    %1297 = arith.mulf %1296, %1295 : vector<16x26xf32>
    %1298 = arith.addf %1294, %1297 : vector<16x26xf32>
    %c3_668 = arith.constant 3 : index
    %c0_669 = arith.constant 0 : index
    %1299 = vector.load %arg8[%c3_668, %c0_669] : memref<26x26xf32, #tpu.memory_space<vmem>>, vector<16x26xf32>
    %cst_670 = arith.constant 0.109360695 : f32
    %1300 = vector.broadcast %cst_670 : f32 to vector<16x26xf32>
    %1301 = arith.mulf %1300, %1299 : vector<16x26xf32>
    %1302 = arith.addf %1298, %1301 : vector<16x26xf32>
    %c4_671 = arith.constant 4 : index
    %c0_672 = arith.constant 0 : index
    %1303 = vector.load %arg8[%c4_671, %c0_672] : memref<26x26xf32, #tpu.memory_space<vmem>>, vector<16x26xf32>
    %cst_673 = arith.constant 0.213005543 : f32
    %1304 = vector.broadcast %cst_673 : f32 to vector<16x26xf32>
    %1305 = arith.mulf %1304, %1303 : vector<16x26xf32>
    %1306 = arith.addf %1302, %1305 : vector<16x26xf32>
    %c5_674 = arith.constant 5 : index
    %c0_675 = arith.constant 0 : index
    %1307 = vector.load %arg8[%c5_674, %c0_675] : memref<26x26xf32, #tpu.memory_space<vmem>>, vector<16x26xf32>
    %cst_676 = arith.constant 0.266011745 : f32
    %1308 = vector.broadcast %cst_676 : f32 to vector<16x26xf32>
    %1309 = arith.mulf %1308, %1307 : vector<16x26xf32>
    %1310 = arith.addf %1306, %1309 : vector<16x26xf32>
    %c6_677 = arith.constant 6 : index
    %c0_678 = arith.constant 0 : index
    %1311 = vector.load %arg8[%c6_677, %c0_678] : memref<26x26xf32, #tpu.memory_space<vmem>>, vector<16x26xf32>
    %cst_679 = arith.constant 0.213005543 : f32
    %1312 = vector.broadcast %cst_679 : f32 to vector<16x26xf32>
    %1313 = arith.mulf %1312, %1311 : vector<16x26xf32>
    %1314 = arith.addf %1310, %1313 : vector<16x26xf32>
    %c7_680 = arith.constant 7 : index
    %c0_681 = arith.constant 0 : index
    %1315 = vector.load %arg8[%c7_680, %c0_681] : memref<26x26xf32, #tpu.memory_space<vmem>>, vector<16x26xf32>
    %cst_682 = arith.constant 0.109360695 : f32
    %1316 = vector.broadcast %cst_682 : f32 to vector<16x26xf32>
    %1317 = arith.mulf %1316, %1315 : vector<16x26xf32>
    %1318 = arith.addf %1314, %1317 : vector<16x26xf32>
    %c8_683 = arith.constant 8 : index
    %c0_684 = arith.constant 0 : index
    %1319 = vector.load %arg8[%c8_683, %c0_684] : memref<26x26xf32, #tpu.memory_space<vmem>>, vector<16x26xf32>
    %cst_685 = arith.constant 0.0360007733 : f32
    %1320 = vector.broadcast %cst_685 : f32 to vector<16x26xf32>
    %1321 = arith.mulf %1320, %1319 : vector<16x26xf32>
    %1322 = arith.addf %1318, %1321 : vector<16x26xf32>
    %c9_686 = arith.constant 9 : index
    %c0_687 = arith.constant 0 : index
    %1323 = vector.load %arg8[%c9_686, %c0_687] : memref<26x26xf32, #tpu.memory_space<vmem>>, vector<16x26xf32>
    %cst_688 = arith.constant 0.00759875868 : f32
    %1324 = vector.broadcast %cst_688 : f32 to vector<16x26xf32>
    %1325 = arith.mulf %1324, %1323 : vector<16x26xf32>
    %1326 = arith.addf %1322, %1325 : vector<16x26xf32>
    %c10_689 = arith.constant 10 : index
    %c0_690 = arith.constant 0 : index
    %1327 = vector.load %arg8[%c10_689, %c0_690] : memref<26x26xf32, #tpu.memory_space<vmem>>, vector<16x26xf32>
    %cst_691 = arith.constant 0.00102838024 : f32
    %1328 = vector.broadcast %cst_691 : f32 to vector<16x26xf32>
    %1329 = arith.mulf %1328, %1327 : vector<16x26xf32>
    %1330 = arith.addf %1326, %1329 : vector<16x26xf32>
    %1331 = vector.extract_strided_slice %1330 {offsets = [0, 0], sizes = [16, 16], strides = [1, 1]} : vector<16x26xf32> to vector<16x16xf32>
    %cst_692 = arith.constant 0.00102838024 : f32
    %1332 = vector.broadcast %cst_692 : f32 to vector<16x16xf32>
    %1333 = arith.mulf %1332, %1331 : vector<16x16xf32>
    %1334 = vector.extract_strided_slice %1330 {offsets = [0, 1], sizes = [16, 16], strides = [1, 1]} : vector<16x26xf32> to vector<16x16xf32>
    %cst_693 = arith.constant 0.00759875868 : f32
    %1335 = vector.broadcast %cst_693 : f32 to vector<16x16xf32>
    %1336 = arith.mulf %1335, %1334 : vector<16x16xf32>
    %1337 = arith.addf %1333, %1336 : vector<16x16xf32>
    %1338 = vector.extract_strided_slice %1330 {offsets = [0, 2], sizes = [16, 16], strides = [1, 1]} : vector<16x26xf32> to vector<16x16xf32>
    %cst_694 = arith.constant 0.0360007733 : f32
    %1339 = vector.broadcast %cst_694 : f32 to vector<16x16xf32>
    %1340 = arith.mulf %1339, %1338 : vector<16x16xf32>
    %1341 = arith.addf %1337, %1340 : vector<16x16xf32>
    %1342 = vector.extract_strided_slice %1330 {offsets = [0, 3], sizes = [16, 16], strides = [1, 1]} : vector<16x26xf32> to vector<16x16xf32>
    %cst_695 = arith.constant 0.109360695 : f32
    %1343 = vector.broadcast %cst_695 : f32 to vector<16x16xf32>
    %1344 = arith.mulf %1343, %1342 : vector<16x16xf32>
    %1345 = arith.addf %1341, %1344 : vector<16x16xf32>
    %1346 = vector.extract_strided_slice %1330 {offsets = [0, 4], sizes = [16, 16], strides = [1, 1]} : vector<16x26xf32> to vector<16x16xf32>
    %cst_696 = arith.constant 0.213005543 : f32
    %1347 = vector.broadcast %cst_696 : f32 to vector<16x16xf32>
    %1348 = arith.mulf %1347, %1346 : vector<16x16xf32>
    %1349 = arith.addf %1345, %1348 : vector<16x16xf32>
    %1350 = vector.extract_strided_slice %1330 {offsets = [0, 5], sizes = [16, 16], strides = [1, 1]} : vector<16x26xf32> to vector<16x16xf32>
    %cst_697 = arith.constant 0.266011745 : f32
    %1351 = vector.broadcast %cst_697 : f32 to vector<16x16xf32>
    %1352 = arith.mulf %1351, %1350 : vector<16x16xf32>
    %1353 = arith.addf %1349, %1352 : vector<16x16xf32>
    %1354 = vector.extract_strided_slice %1330 {offsets = [0, 6], sizes = [16, 16], strides = [1, 1]} : vector<16x26xf32> to vector<16x16xf32>
    %cst_698 = arith.constant 0.213005543 : f32
    %1355 = vector.broadcast %cst_698 : f32 to vector<16x16xf32>
    %1356 = arith.mulf %1355, %1354 : vector<16x16xf32>
    %1357 = arith.addf %1353, %1356 : vector<16x16xf32>
    %1358 = vector.extract_strided_slice %1330 {offsets = [0, 7], sizes = [16, 16], strides = [1, 1]} : vector<16x26xf32> to vector<16x16xf32>
    %cst_699 = arith.constant 0.109360695 : f32
    %1359 = vector.broadcast %cst_699 : f32 to vector<16x16xf32>
    %1360 = arith.mulf %1359, %1358 : vector<16x16xf32>
    %1361 = arith.addf %1357, %1360 : vector<16x16xf32>
    %1362 = vector.extract_strided_slice %1330 {offsets = [0, 8], sizes = [16, 16], strides = [1, 1]} : vector<16x26xf32> to vector<16x16xf32>
    %cst_700 = arith.constant 0.0360007733 : f32
    %1363 = vector.broadcast %cst_700 : f32 to vector<16x16xf32>
    %1364 = arith.mulf %1363, %1362 : vector<16x16xf32>
    %1365 = arith.addf %1361, %1364 : vector<16x16xf32>
    %1366 = vector.extract_strided_slice %1330 {offsets = [0, 9], sizes = [16, 16], strides = [1, 1]} : vector<16x26xf32> to vector<16x16xf32>
    %cst_701 = arith.constant 0.00759875868 : f32
    %1367 = vector.broadcast %cst_701 : f32 to vector<16x16xf32>
    %1368 = arith.mulf %1367, %1366 : vector<16x16xf32>
    %1369 = arith.addf %1365, %1368 : vector<16x16xf32>
    %1370 = vector.extract_strided_slice %1330 {offsets = [0, 10], sizes = [16, 16], strides = [1, 1]} : vector<16x26xf32> to vector<16x16xf32>
    %cst_702 = arith.constant 0.00102838024 : f32
    %1371 = vector.broadcast %cst_702 : f32 to vector<16x16xf32>
    %1372 = arith.mulf %1371, %1370 : vector<16x16xf32>
    %1373 = arith.addf %1369, %1372 : vector<16x16xf32>
    %1374 = arith.mulf %1285, %1285 : vector<16x16xf32>
    %1375 = arith.subf %1373, %1374 : vector<16x16xf32>
    %c0_703 = arith.constant 0 : index
    %c0_704 = arith.constant 0 : index
    %1376 = vector.load %arg9[%c0_703, %c0_704] : memref<16x16xf32, #tpu.memory_space<vmem>>, vector<16x16xf32>
    %c0_705 = arith.constant 0 : index
    %c0_706 = arith.constant 0 : index
    %1377 = vector.load %arg10[%c0_705, %c0_706] : memref<16x16xf32, #tpu.memory_space<vmem>>, vector<16x16xf32>
    %1378 = arith.mulf %1169, %4 : vector<16x16xf32>
    %c5_707 = arith.constant 5 : index
    %c5_708 = arith.constant 5 : index
    %1379 = vector.load %arg8[%c5_707, %c5_708] : memref<26x26xf32, #tpu.memory_space<vmem>>, vector<16x16xf32>
    tpu.vector_store %arg8[%c5_707, %c5_708], %1378 {strides = array<i32>} : memref<26x26xf32, #tpu.memory_space<vmem>>, vector<16x16xf32>,
    %c0_709 = arith.constant 0 : index
    %c0_710 = arith.constant 0 : index
    %1380 = vector.load %arg8[%c0_709, %c0_710] : memref<26x26xf32, #tpu.memory_space<vmem>>, vector<16x26xf32>
    %cst_711 = arith.constant 0.00102838024 : f32
    %1381 = vector.broadcast %cst_711 : f32 to vector<16x26xf32>
    %1382 = arith.mulf %1381, %1380 : vector<16x26xf32>
    %c1_712 = arith.constant 1 : index
    %c0_713 = arith.constant 0 : index
    %1383 = vector.load %arg8[%c1_712, %c0_713] : memref<26x26xf32, #tpu.memory_space<vmem>>, vector<16x26xf32>
    %cst_714 = arith.constant 0.00759875868 : f32
    %1384 = vector.broadcast %cst_714 : f32 to vector<16x26xf32>
    %1385 = arith.mulf %1384, %1383 : vector<16x26xf32>
    %1386 = arith.addf %1382, %1385 : vector<16x26xf32>
    %c2_715 = arith.constant 2 : index
    %c0_716 = arith.constant 0 : index
    %1387 = vector.load %arg8[%c2_715, %c0_716] : memref<26x26xf32, #tpu.memory_space<vmem>>, vector<16x26xf32>
    %cst_717 = arith.constant 0.0360007733 : f32
    %1388 = vector.broadcast %cst_717 : f32 to vector<16x26xf32>
    %1389 = arith.mulf %1388, %1387 : vector<16x26xf32>
    %1390 = arith.addf %1386, %1389 : vector<16x26xf32>
    %c3_718 = arith.constant 3 : index
    %c0_719 = arith.constant 0 : index
    %1391 = vector.load %arg8[%c3_718, %c0_719] : memref<26x26xf32, #tpu.memory_space<vmem>>, vector<16x26xf32>
    %cst_720 = arith.constant 0.109360695 : f32
    %1392 = vector.broadcast %cst_720 : f32 to vector<16x26xf32>
    %1393 = arith.mulf %1392, %1391 : vector<16x26xf32>
    %1394 = arith.addf %1390, %1393 : vector<16x26xf32>
    %c4_721 = arith.constant 4 : index
    %c0_722 = arith.constant 0 : index
    %1395 = vector.load %arg8[%c4_721, %c0_722] : memref<26x26xf32, #tpu.memory_space<vmem>>, vector<16x26xf32>
    %cst_723 = arith.constant 0.213005543 : f32
    %1396 = vector.broadcast %cst_723 : f32 to vector<16x26xf32>
    %1397 = arith.mulf %1396, %1395 : vector<16x26xf32>
    %1398 = arith.addf %1394, %1397 : vector<16x26xf32>
    %c5_724 = arith.constant 5 : index
    %c0_725 = arith.constant 0 : index
    %1399 = vector.load %arg8[%c5_724, %c0_725] : memref<26x26xf32, #tpu.memory_space<vmem>>, vector<16x26xf32>
    %cst_726 = arith.constant 0.266011745 : f32
    %1400 = vector.broadcast %cst_726 : f32 to vector<16x26xf32>
    %1401 = arith.mulf %1400, %1399 : vector<16x26xf32>
    %1402 = arith.addf %1398, %1401 : vector<16x26xf32>
    %c6_727 = arith.constant 6 : index
    %c0_728 = arith.constant 0 : index
    %1403 = vector.load %arg8[%c6_727, %c0_728] : memref<26x26xf32, #tpu.memory_space<vmem>>, vector<16x26xf32>
    %cst_729 = arith.constant 0.213005543 : f32
    %1404 = vector.broadcast %cst_729 : f32 to vector<16x26xf32>
    %1405 = arith.mulf %1404, %1403 : vector<16x26xf32>
    %1406 = arith.addf %1402, %1405 : vector<16x26xf32>
    %c7_730 = arith.constant 7 : index
    %c0_731 = arith.constant 0 : index
    %1407 = vector.load %arg8[%c7_730, %c0_731] : memref<26x26xf32, #tpu.memory_space<vmem>>, vector<16x26xf32>
    %cst_732 = arith.constant 0.109360695 : f32
    %1408 = vector.broadcast %cst_732 : f32 to vector<16x26xf32>
    %1409 = arith.mulf %1408, %1407 : vector<16x26xf32>
    %1410 = arith.addf %1406, %1409 : vector<16x26xf32>
    %c8_733 = arith.constant 8 : index
    %c0_734 = arith.constant 0 : index
    %1411 = vector.load %arg8[%c8_733, %c0_734] : memref<26x26xf32, #tpu.memory_space<vmem>>, vector<16x26xf32>
    %cst_735 = arith.constant 0.0360007733 : f32
    %1412 = vector.broadcast %cst_735 : f32 to vector<16x26xf32>
    %1413 = arith.mulf %1412, %1411 : vector<16x26xf32>
    %1414 = arith.addf %1410, %1413 : vector<16x26xf32>
    %c9_736 = arith.constant 9 : index
    %c0_737 = arith.constant 0 : index
    %1415 = vector.load %arg8[%c9_736, %c0_737] : memref<26x26xf32, #tpu.memory_space<vmem>>, vector<16x26xf32>
    %cst_738 = arith.constant 0.00759875868 : f32
    %1416 = vector.broadcast %cst_738 : f32 to vector<16x26xf32>
    %1417 = arith.mulf %1416, %1415 : vector<16x26xf32>
    %1418 = arith.addf %1414, %1417 : vector<16x26xf32>
    %c10_739 = arith.constant 10 : index
    %c0_740 = arith.constant 0 : index
    %1419 = vector.load %arg8[%c10_739, %c0_740] : memref<26x26xf32, #tpu.memory_space<vmem>>, vector<16x26xf32>
    %cst_741 = arith.constant 0.00102838024 : f32
    %1420 = vector.broadcast %cst_741 : f32 to vector<16x26xf32>
    %1421 = arith.mulf %1420, %1419 : vector<16x26xf32>
    %1422 = arith.addf %1418, %1421 : vector<16x26xf32>
    %1423 = vector.extract_strided_slice %1422 {offsets = [0, 0], sizes = [16, 16], strides = [1, 1]} : vector<16x26xf32> to vector<16x16xf32>
    %cst_742 = arith.constant 0.00102838024 : f32
    %1424 = vector.broadcast %cst_742 : f32 to vector<16x16xf32>
    %1425 = arith.mulf %1424, %1423 : vector<16x16xf32>
    %1426 = vector.extract_strided_slice %1422 {offsets = [0, 1], sizes = [16, 16], strides = [1, 1]} : vector<16x26xf32> to vector<16x16xf32>
    %cst_743 = arith.constant 0.00759875868 : f32
    %1427 = vector.broadcast %cst_743 : f32 to vector<16x16xf32>
    %1428 = arith.mulf %1427, %1426 : vector<16x16xf32>
    %1429 = arith.addf %1425, %1428 : vector<16x16xf32>
    %1430 = vector.extract_strided_slice %1422 {offsets = [0, 2], sizes = [16, 16], strides = [1, 1]} : vector<16x26xf32> to vector<16x16xf32>
    %cst_744 = arith.constant 0.0360007733 : f32
    %1431 = vector.broadcast %cst_744 : f32 to vector<16x16xf32>
    %1432 = arith.mulf %1431, %1430 : vector<16x16xf32>
    %1433 = arith.addf %1429, %1432 : vector<16x16xf32>
    %1434 = vector.extract_strided_slice %1422 {offsets = [0, 3], sizes = [16, 16], strides = [1, 1]} : vector<16x26xf32> to vector<16x16xf32>
    %cst_745 = arith.constant 0.109360695 : f32
    %1435 = vector.broadcast %cst_745 : f32 to vector<16x16xf32>
    %1436 = arith.mulf %1435, %1434 : vector<16x16xf32>
    %1437 = arith.addf %1433, %1436 : vector<16x16xf32>
    %1438 = vector.extract_strided_slice %1422 {offsets = [0, 4], sizes = [16, 16], strides = [1, 1]} : vector<16x26xf32> to vector<16x16xf32>
    %cst_746 = arith.constant 0.213005543 : f32
    %1439 = vector.broadcast %cst_746 : f32 to vector<16x16xf32>
    %1440 = arith.mulf %1439, %1438 : vector<16x16xf32>
    %1441 = arith.addf %1437, %1440 : vector<16x16xf32>
    %1442 = vector.extract_strided_slice %1422 {offsets = [0, 5], sizes = [16, 16], strides = [1, 1]} : vector<16x26xf32> to vector<16x16xf32>
    %cst_747 = arith.constant 0.266011745 : f32
    %1443 = vector.broadcast %cst_747 : f32 to vector<16x16xf32>
    %1444 = arith.mulf %1443, %1442 : vector<16x16xf32>
    %1445 = arith.addf %1441, %1444 : vector<16x16xf32>
    %1446 = vector.extract_strided_slice %1422 {offsets = [0, 6], sizes = [16, 16], strides = [1, 1]} : vector<16x26xf32> to vector<16x16xf32>
    %cst_748 = arith.constant 0.213005543 : f32
    %1447 = vector.broadcast %cst_748 : f32 to vector<16x16xf32>
    %1448 = arith.mulf %1447, %1446 : vector<16x16xf32>
    %1449 = arith.addf %1445, %1448 : vector<16x16xf32>
    %1450 = vector.extract_strided_slice %1422 {offsets = [0, 7], sizes = [16, 16], strides = [1, 1]} : vector<16x26xf32> to vector<16x16xf32>
    %cst_749 = arith.constant 0.109360695 : f32
    %1451 = vector.broadcast %cst_749 : f32 to vector<16x16xf32>
    %1452 = arith.mulf %1451, %1450 : vector<16x16xf32>
    %1453 = arith.addf %1449, %1452 : vector<16x16xf32>
    %1454 = vector.extract_strided_slice %1422 {offsets = [0, 8], sizes = [16, 16], strides = [1, 1]} : vector<16x26xf32> to vector<16x16xf32>
    %cst_750 = arith.constant 0.0360007733 : f32
    %1455 = vector.broadcast %cst_750 : f32 to vector<16x16xf32>
    %1456 = arith.mulf %1455, %1454 : vector<16x16xf32>
    %1457 = arith.addf %1453, %1456 : vector<16x16xf32>
    %1458 = vector.extract_strided_slice %1422 {offsets = [0, 9], sizes = [16, 16], strides = [1, 1]} : vector<16x26xf32> to vector<16x16xf32>
    %cst_751 = arith.constant 0.00759875868 : f32
    %1459 = vector.broadcast %cst_751 : f32 to vector<16x16xf32>
    %1460 = arith.mulf %1459, %1458 : vector<16x16xf32>
    %1461 = arith.addf %1457, %1460 : vector<16x16xf32>
    %1462 = vector.extract_strided_slice %1422 {offsets = [0, 10], sizes = [16, 16], strides = [1, 1]} : vector<16x26xf32> to vector<16x16xf32>
    %cst_752 = arith.constant 0.00102838024 : f32
    %1463 = vector.broadcast %cst_752 : f32 to vector<16x16xf32>
    %1464 = arith.mulf %1463, %1462 : vector<16x16xf32>
    %1465 = arith.addf %1461, %1464 : vector<16x16xf32>
    %1466 = arith.mulf %1285, %1376 : vector<16x16xf32>
    %1467 = arith.subf %1465, %1466 : vector<16x16xf32>
    %cst_753 = arith.constant 2.000000e+00 : f32
    %1468 = vector.broadcast %cst_753 : f32 to vector<16x16xf32>
    %1469 = arith.mulf %1468, %1285 : vector<16x16xf32>
    %1470 = arith.mulf %1469, %1376 : vector<16x16xf32>
    %cst_754 = arith.constant 9.99999974E-5 : f32
    %1471 = vector.broadcast %cst_754 : f32 to vector<16x16xf32>
    %1472 = arith.addf %1470, %1471 : vector<16x16xf32>
    %cst_755 = arith.constant 2.000000e+00 : f32
    %1473 = vector.broadcast %cst_755 : f32 to vector<16x16xf32>
    %1474 = arith.mulf %1473, %1467 : vector<16x16xf32>
    %cst_756 = arith.constant 8.99999984E-4 : f32
    %1475 = vector.broadcast %cst_756 : f32 to vector<16x16xf32>
    %1476 = arith.addf %1474, %1475 : vector<16x16xf32>
    %1477 = arith.mulf %1472, %1476 : vector<16x16xf32>
    %1478 = arith.mulf %1285, %1285 : vector<16x16xf32>
    %1479 = arith.mulf %1376, %1376 : vector<16x16xf32>
    %1480 = arith.addf %1478, %1479 : vector<16x16xf32>
    %cst_757 = arith.constant 9.99999974E-5 : f32
    %1481 = vector.broadcast %cst_757 : f32 to vector<16x16xf32>
    %1482 = arith.addf %1480, %1481 : vector<16x16xf32>
    %1483 = arith.addf %1375, %1377 : vector<16x16xf32>
    %cst_758 = arith.constant 8.99999984E-4 : f32
    %1484 = vector.broadcast %cst_758 : f32 to vector<16x16xf32>
    %1485 = arith.addf %1483, %1484 : vector<16x16xf32>
    %1486 = arith.mulf %1482, %1485 : vector<16x16xf32>
    %1487 = arith.divf %1477, %1486 : vector<16x16xf32>
    %c3_759 = arith.constant 3 : index
    %c0_760 = arith.constant 0 : index
    %1488 = vector.load %arg12[%c3_759, %c0_760] : memref<8x128xf32, #tpu.memory_space<vmem>>, vector<1x128xf32>
    %1489 = vector.shape_cast %1487 : vector<16x16xf32> to vector<1x16x16xf32>
    %cst_761 = arith.constant dense<0.000000e+00> : vector<1xf32>
    %1490 = vector.multi_reduction <add>, %1489, %cst_761 [1, 2] : vector<1x16x16xf32> to vector<1xf32>
    %1491 = vector.shape_cast %1490 : vector<1xf32> to vector<1x1x1xf32>
    %1492 = vector.extract %1491[0, 0, 0] : f32 from vector<1x1x1xf32>
    %1493 = vector.broadcast %1492 : f32 to vector<1x128xf32>
    %1494 = arith.addf %1488, %1493 : vector<1x128xf32>
    %c3_762 = arith.constant 3 : index
    %c0_763 = arith.constant 0 : index
    %1495 = vector.load %arg12[%c3_762, %c0_763] : memref<8x128xf32, #tpu.memory_space<vmem>>, vector<1x128xf32>
    tpu.vector_store %arg12[%c3_762, %c0_763], %1494 {strides = array<i32>} : memref<8x128xf32, #tpu.memory_space<vmem>>, vector<1x128xf32>,
    %c0_764 = arith.constant 0 : index
    %c0_765 = arith.constant 0 : index
    %c0_766 = arith.constant 0 : index
    %1496 = vector.load %arg5[%c0_764, %c0_765, %c0_766] : memref<1x16x16xf32, #tpu.memory_space<vmem>>, vector<1x16x16xf32>
    %1497 = vector.shape_cast %1496 : vector<1x16x16xf32> to vector<16x16xf32>
    %c5_767 = arith.constant 5 : index
    %c5_768 = arith.constant 5 : index
    %1498 = vector.load %arg8[%c5_767, %c5_768] : memref<26x26xf32, #tpu.memory_space<vmem>>, vector<16x16xf32>
    tpu.vector_store %arg8[%c5_767, %c5_768], %1497 {strides = array<i32>} : memref<26x26xf32, #tpu.memory_space<vmem>>, vector<16x16xf32>,
    %c4_769 = arith.constant 4 : index
    %c4_770 = arith.constant 4 : index
    %1499 = vector.load %arg8[%c4_769, %c4_770] : memref<26x26xf32, #tpu.memory_space<vmem>>, vector<16x18xf32>
    %c5_771 = arith.constant 5 : index
    %c4_772 = arith.constant 4 : index
    %1500 = vector.load %arg8[%c5_771, %c4_772] : memref<26x26xf32, #tpu.memory_space<vmem>>, vector<16x18xf32>
    %c6_773 = arith.constant 6 : index
    %c4_774 = arith.constant 4 : index
    %1501 = vector.load %arg8[%c6_773, %c4_774] : memref<26x26xf32, #tpu.memory_space<vmem>>, vector<16x18xf32>
    %cst_775 = arith.constant 2.000000e+00 : f32
    %1502 = vector.broadcast %cst_775 : f32 to vector<16x18xf32>
    %1503 = arith.mulf %1502, %1500 : vector<16x18xf32>
    %1504 = arith.addf %1499, %1503 : vector<16x18xf32>
    %1505 = arith.addf %1504, %1501 : vector<16x18xf32>
    %1506 = arith.subf %1499, %1501 : vector<16x18xf32>
    %1507 = vector.extract_strided_slice %1505 {offsets = [0, 2], sizes = [16, 16], strides = [1, 1]} : vector<16x18xf32> to vector<16x16xf32>
    %1508 = vector.extract_strided_slice %1505 {offsets = [0, 0], sizes = [16, 16], strides = [1, 1]} : vector<16x18xf32> to vector<16x16xf32>
    %1509 = arith.subf %1507, %1508 : vector<16x16xf32>
    %1510 = vector.extract_strided_slice %1506 {offsets = [0, 0], sizes = [16, 16], strides = [1, 1]} : vector<16x18xf32> to vector<16x16xf32>
    %1511 = vector.extract_strided_slice %1506 {offsets = [0, 1], sizes = [16, 16], strides = [1, 1]} : vector<16x18xf32> to vector<16x16xf32>
    %cst_776 = arith.constant 2.000000e+00 : f32
    %1512 = vector.broadcast %cst_776 : f32 to vector<16x16xf32>
    %1513 = arith.mulf %1512, %1511 : vector<16x16xf32>
    %1514 = arith.addf %1510, %1513 : vector<16x16xf32>
    %1515 = vector.extract_strided_slice %1506 {offsets = [0, 2], sizes = [16, 16], strides = [1, 1]} : vector<16x18xf32> to vector<16x16xf32>
    %1516 = arith.addf %1514, %1515 : vector<16x16xf32>
    %1517 = math.absf %1509 : vector<16x16xf32>
    %1518 = math.absf %1516 : vector<16x16xf32>
    %1519 = arith.addf %1517, %1518 : vector<16x16xf32>
    %c4_777 = arith.constant 4 : index
    %c0_778 = arith.constant 0 : index
    %1520 = vector.load %arg11[%c4_777, %c0_778] : memref<8x128xf32, #tpu.memory_space<vmem>>, vector<1x128xf32>
    %1521 = vector.shape_cast %1519 : vector<16x16xf32> to vector<1x16x16xf32>
    %cst_779 = arith.constant dense<0.000000e+00> : vector<1xf32>
    %1522 = vector.multi_reduction <add>, %1521, %cst_779 [1, 2] : vector<1x16x16xf32> to vector<1xf32>
    %1523 = vector.shape_cast %1522 : vector<1xf32> to vector<1x1x1xf32>
    %1524 = vector.extract %1523[0, 0, 0] : f32 from vector<1x1x1xf32>
    %1525 = vector.broadcast %1524 : f32 to vector<1x128xf32>
    %1526 = arith.addf %1520, %1525 : vector<1x128xf32>
    %c4_780 = arith.constant 4 : index
    %c0_781 = arith.constant 0 : index
    %1527 = vector.load %arg11[%c4_780, %c0_781] : memref<8x128xf32, #tpu.memory_space<vmem>>, vector<1x128xf32>
    tpu.vector_store %arg11[%c4_780, %c0_781], %1526 {strides = array<i32>} : memref<8x128xf32, #tpu.memory_space<vmem>>, vector<1x128xf32>,
    %c0_782 = arith.constant 0 : index
    %c0_783 = arith.constant 0 : index
    %1528 = vector.load %arg8[%c0_782, %c0_783] : memref<26x26xf32, #tpu.memory_space<vmem>>, vector<16x26xf32>
    %cst_784 = arith.constant 0.00102838024 : f32
    %1529 = vector.broadcast %cst_784 : f32 to vector<16x26xf32>
    %1530 = arith.mulf %1529, %1528 : vector<16x26xf32>
    %c1_785 = arith.constant 1 : index
    %c0_786 = arith.constant 0 : index
    %1531 = vector.load %arg8[%c1_785, %c0_786] : memref<26x26xf32, #tpu.memory_space<vmem>>, vector<16x26xf32>
    %cst_787 = arith.constant 0.00759875868 : f32
    %1532 = vector.broadcast %cst_787 : f32 to vector<16x26xf32>
    %1533 = arith.mulf %1532, %1531 : vector<16x26xf32>
    %1534 = arith.addf %1530, %1533 : vector<16x26xf32>
    %c2_788 = arith.constant 2 : index
    %c0_789 = arith.constant 0 : index
    %1535 = vector.load %arg8[%c2_788, %c0_789] : memref<26x26xf32, #tpu.memory_space<vmem>>, vector<16x26xf32>
    %cst_790 = arith.constant 0.0360007733 : f32
    %1536 = vector.broadcast %cst_790 : f32 to vector<16x26xf32>
    %1537 = arith.mulf %1536, %1535 : vector<16x26xf32>
    %1538 = arith.addf %1534, %1537 : vector<16x26xf32>
    %c3_791 = arith.constant 3 : index
    %c0_792 = arith.constant 0 : index
    %1539 = vector.load %arg8[%c3_791, %c0_792] : memref<26x26xf32, #tpu.memory_space<vmem>>, vector<16x26xf32>
    %cst_793 = arith.constant 0.109360695 : f32
    %1540 = vector.broadcast %cst_793 : f32 to vector<16x26xf32>
    %1541 = arith.mulf %1540, %1539 : vector<16x26xf32>
    %1542 = arith.addf %1538, %1541 : vector<16x26xf32>
    %c4_794 = arith.constant 4 : index
    %c0_795 = arith.constant 0 : index
    %1543 = vector.load %arg8[%c4_794, %c0_795] : memref<26x26xf32, #tpu.memory_space<vmem>>, vector<16x26xf32>
    %cst_796 = arith.constant 0.213005543 : f32
    %1544 = vector.broadcast %cst_796 : f32 to vector<16x26xf32>
    %1545 = arith.mulf %1544, %1543 : vector<16x26xf32>
    %1546 = arith.addf %1542, %1545 : vector<16x26xf32>
    %c5_797 = arith.constant 5 : index
    %c0_798 = arith.constant 0 : index
    %1547 = vector.load %arg8[%c5_797, %c0_798] : memref<26x26xf32, #tpu.memory_space<vmem>>, vector<16x26xf32>
    %cst_799 = arith.constant 0.266011745 : f32
    %1548 = vector.broadcast %cst_799 : f32 to vector<16x26xf32>
    %1549 = arith.mulf %1548, %1547 : vector<16x26xf32>
    %1550 = arith.addf %1546, %1549 : vector<16x26xf32>
    %c6_800 = arith.constant 6 : index
    %c0_801 = arith.constant 0 : index
    %1551 = vector.load %arg8[%c6_800, %c0_801] : memref<26x26xf32, #tpu.memory_space<vmem>>, vector<16x26xf32>
    %cst_802 = arith.constant 0.213005543 : f32
    %1552 = vector.broadcast %cst_802 : f32 to vector<16x26xf32>
    %1553 = arith.mulf %1552, %1551 : vector<16x26xf32>
    %1554 = arith.addf %1550, %1553 : vector<16x26xf32>
    %c7_803 = arith.constant 7 : index
    %c0_804 = arith.constant 0 : index
    %1555 = vector.load %arg8[%c7_803, %c0_804] : memref<26x26xf32, #tpu.memory_space<vmem>>, vector<16x26xf32>
    %cst_805 = arith.constant 0.109360695 : f32
    %1556 = vector.broadcast %cst_805 : f32 to vector<16x26xf32>
    %1557 = arith.mulf %1556, %1555 : vector<16x26xf32>
    %1558 = arith.addf %1554, %1557 : vector<16x26xf32>
    %c8_806 = arith.constant 8 : index
    %c0_807 = arith.constant 0 : index
    %1559 = vector.load %arg8[%c8_806, %c0_807] : memref<26x26xf32, #tpu.memory_space<vmem>>, vector<16x26xf32>
    %cst_808 = arith.constant 0.0360007733 : f32
    %1560 = vector.broadcast %cst_808 : f32 to vector<16x26xf32>
    %1561 = arith.mulf %1560, %1559 : vector<16x26xf32>
    %1562 = arith.addf %1558, %1561 : vector<16x26xf32>
    %c9_809 = arith.constant 9 : index
    %c0_810 = arith.constant 0 : index
    %1563 = vector.load %arg8[%c9_809, %c0_810] : memref<26x26xf32, #tpu.memory_space<vmem>>, vector<16x26xf32>
    %cst_811 = arith.constant 0.00759875868 : f32
    %1564 = vector.broadcast %cst_811 : f32 to vector<16x26xf32>
    %1565 = arith.mulf %1564, %1563 : vector<16x26xf32>
    %1566 = arith.addf %1562, %1565 : vector<16x26xf32>
    %c10_812 = arith.constant 10 : index
    %c0_813 = arith.constant 0 : index
    %1567 = vector.load %arg8[%c10_812, %c0_813] : memref<26x26xf32, #tpu.memory_space<vmem>>, vector<16x26xf32>
    %cst_814 = arith.constant 0.00102838024 : f32
    %1568 = vector.broadcast %cst_814 : f32 to vector<16x26xf32>
    %1569 = arith.mulf %1568, %1567 : vector<16x26xf32>
    %1570 = arith.addf %1566, %1569 : vector<16x26xf32>
    %1571 = vector.extract_strided_slice %1570 {offsets = [0, 0], sizes = [16, 16], strides = [1, 1]} : vector<16x26xf32> to vector<16x16xf32>
    %cst_815 = arith.constant 0.00102838024 : f32
    %1572 = vector.broadcast %cst_815 : f32 to vector<16x16xf32>
    %1573 = arith.mulf %1572, %1571 : vector<16x16xf32>
    %1574 = vector.extract_strided_slice %1570 {offsets = [0, 1], sizes = [16, 16], strides = [1, 1]} : vector<16x26xf32> to vector<16x16xf32>
    %cst_816 = arith.constant 0.00759875868 : f32
    %1575 = vector.broadcast %cst_816 : f32 to vector<16x16xf32>
    %1576 = arith.mulf %1575, %1574 : vector<16x16xf32>
    %1577 = arith.addf %1573, %1576 : vector<16x16xf32>
    %1578 = vector.extract_strided_slice %1570 {offsets = [0, 2], sizes = [16, 16], strides = [1, 1]} : vector<16x26xf32> to vector<16x16xf32>
    %cst_817 = arith.constant 0.0360007733 : f32
    %1579 = vector.broadcast %cst_817 : f32 to vector<16x16xf32>
    %1580 = arith.mulf %1579, %1578 : vector<16x16xf32>
    %1581 = arith.addf %1577, %1580 : vector<16x16xf32>
    %1582 = vector.extract_strided_slice %1570 {offsets = [0, 3], sizes = [16, 16], strides = [1, 1]} : vector<16x26xf32> to vector<16x16xf32>
    %cst_818 = arith.constant 0.109360695 : f32
    %1583 = vector.broadcast %cst_818 : f32 to vector<16x16xf32>
    %1584 = arith.mulf %1583, %1582 : vector<16x16xf32>
    %1585 = arith.addf %1581, %1584 : vector<16x16xf32>
    %1586 = vector.extract_strided_slice %1570 {offsets = [0, 4], sizes = [16, 16], strides = [1, 1]} : vector<16x26xf32> to vector<16x16xf32>
    %cst_819 = arith.constant 0.213005543 : f32
    %1587 = vector.broadcast %cst_819 : f32 to vector<16x16xf32>
    %1588 = arith.mulf %1587, %1586 : vector<16x16xf32>
    %1589 = arith.addf %1585, %1588 : vector<16x16xf32>
    %1590 = vector.extract_strided_slice %1570 {offsets = [0, 5], sizes = [16, 16], strides = [1, 1]} : vector<16x26xf32> to vector<16x16xf32>
    %cst_820 = arith.constant 0.266011745 : f32
    %1591 = vector.broadcast %cst_820 : f32 to vector<16x16xf32>
    %1592 = arith.mulf %1591, %1590 : vector<16x16xf32>
    %1593 = arith.addf %1589, %1592 : vector<16x16xf32>
    %1594 = vector.extract_strided_slice %1570 {offsets = [0, 6], sizes = [16, 16], strides = [1, 1]} : vector<16x26xf32> to vector<16x16xf32>
    %cst_821 = arith.constant 0.213005543 : f32
    %1595 = vector.broadcast %cst_821 : f32 to vector<16x16xf32>
    %1596 = arith.mulf %1595, %1594 : vector<16x16xf32>
    %1597 = arith.addf %1593, %1596 : vector<16x16xf32>
    %1598 = vector.extract_strided_slice %1570 {offsets = [0, 7], sizes = [16, 16], strides = [1, 1]} : vector<16x26xf32> to vector<16x16xf32>
    %cst_822 = arith.constant 0.109360695 : f32
    %1599 = vector.broadcast %cst_822 : f32 to vector<16x16xf32>
    %1600 = arith.mulf %1599, %1598 : vector<16x16xf32>
    %1601 = arith.addf %1597, %1600 : vector<16x16xf32>
    %1602 = vector.extract_strided_slice %1570 {offsets = [0, 8], sizes = [16, 16], strides = [1, 1]} : vector<16x26xf32> to vector<16x16xf32>
    %cst_823 = arith.constant 0.0360007733 : f32
    %1603 = vector.broadcast %cst_823 : f32 to vector<16x16xf32>
    %1604 = arith.mulf %1603, %1602 : vector<16x16xf32>
    %1605 = arith.addf %1601, %1604 : vector<16x16xf32>
    %1606 = vector.extract_strided_slice %1570 {offsets = [0, 9], sizes = [16, 16], strides = [1, 1]} : vector<16x26xf32> to vector<16x16xf32>
    %cst_824 = arith.constant 0.00759875868 : f32
    %1607 = vector.broadcast %cst_824 : f32 to vector<16x16xf32>
    %1608 = arith.mulf %1607, %1606 : vector<16x16xf32>
    %1609 = arith.addf %1605, %1608 : vector<16x16xf32>
    %1610 = vector.extract_strided_slice %1570 {offsets = [0, 10], sizes = [16, 16], strides = [1, 1]} : vector<16x26xf32> to vector<16x16xf32>
    %cst_825 = arith.constant 0.00102838024 : f32
    %1611 = vector.broadcast %cst_825 : f32 to vector<16x16xf32>
    %1612 = arith.mulf %1611, %1610 : vector<16x16xf32>
    %1613 = arith.addf %1609, %1612 : vector<16x16xf32>
    %1614 = arith.mulf %1497, %1497 : vector<16x16xf32>
    %c5_826 = arith.constant 5 : index
    %c5_827 = arith.constant 5 : index
    %1615 = vector.load %arg8[%c5_826, %c5_827] : memref<26x26xf32, #tpu.memory_space<vmem>>, vector<16x16xf32>
    tpu.vector_store %arg8[%c5_826, %c5_827], %1614 {strides = array<i32>} : memref<26x26xf32, #tpu.memory_space<vmem>>, vector<16x16xf32>,
    %c0_828 = arith.constant 0 : index
    %c0_829 = arith.constant 0 : index
    %1616 = vector.load %arg8[%c0_828, %c0_829] : memref<26x26xf32, #tpu.memory_space<vmem>>, vector<16x26xf32>
    %cst_830 = arith.constant 0.00102838024 : f32
    %1617 = vector.broadcast %cst_830 : f32 to vector<16x26xf32>
    %1618 = arith.mulf %1617, %1616 : vector<16x26xf32>
    %c1_831 = arith.constant 1 : index
    %c0_832 = arith.constant 0 : index
    %1619 = vector.load %arg8[%c1_831, %c0_832] : memref<26x26xf32, #tpu.memory_space<vmem>>, vector<16x26xf32>
    %cst_833 = arith.constant 0.00759875868 : f32
    %1620 = vector.broadcast %cst_833 : f32 to vector<16x26xf32>
    %1621 = arith.mulf %1620, %1619 : vector<16x26xf32>
    %1622 = arith.addf %1618, %1621 : vector<16x26xf32>
    %c2_834 = arith.constant 2 : index
    %c0_835 = arith.constant 0 : index
    %1623 = vector.load %arg8[%c2_834, %c0_835] : memref<26x26xf32, #tpu.memory_space<vmem>>, vector<16x26xf32>
    %cst_836 = arith.constant 0.0360007733 : f32
    %1624 = vector.broadcast %cst_836 : f32 to vector<16x26xf32>
    %1625 = arith.mulf %1624, %1623 : vector<16x26xf32>
    %1626 = arith.addf %1622, %1625 : vector<16x26xf32>
    %c3_837 = arith.constant 3 : index
    %c0_838 = arith.constant 0 : index
    %1627 = vector.load %arg8[%c3_837, %c0_838] : memref<26x26xf32, #tpu.memory_space<vmem>>, vector<16x26xf32>
    %cst_839 = arith.constant 0.109360695 : f32
    %1628 = vector.broadcast %cst_839 : f32 to vector<16x26xf32>
    %1629 = arith.mulf %1628, %1627 : vector<16x26xf32>
    %1630 = arith.addf %1626, %1629 : vector<16x26xf32>
    %c4_840 = arith.constant 4 : index
    %c0_841 = arith.constant 0 : index
    %1631 = vector.load %arg8[%c4_840, %c0_841] : memref<26x26xf32, #tpu.memory_space<vmem>>, vector<16x26xf32>
    %cst_842 = arith.constant 0.213005543 : f32
    %1632 = vector.broadcast %cst_842 : f32 to vector<16x26xf32>
    %1633 = arith.mulf %1632, %1631 : vector<16x26xf32>
    %1634 = arith.addf %1630, %1633 : vector<16x26xf32>
    %c5_843 = arith.constant 5 : index
    %c0_844 = arith.constant 0 : index
    %1635 = vector.load %arg8[%c5_843, %c0_844] : memref<26x26xf32, #tpu.memory_space<vmem>>, vector<16x26xf32>
    %cst_845 = arith.constant 0.266011745 : f32
    %1636 = vector.broadcast %cst_845 : f32 to vector<16x26xf32>
    %1637 = arith.mulf %1636, %1635 : vector<16x26xf32>
    %1638 = arith.addf %1634, %1637 : vector<16x26xf32>
    %c6_846 = arith.constant 6 : index
    %c0_847 = arith.constant 0 : index
    %1639 = vector.load %arg8[%c6_846, %c0_847] : memref<26x26xf32, #tpu.memory_space<vmem>>, vector<16x26xf32>
    %cst_848 = arith.constant 0.213005543 : f32
    %1640 = vector.broadcast %cst_848 : f32 to vector<16x26xf32>
    %1641 = arith.mulf %1640, %1639 : vector<16x26xf32>
    %1642 = arith.addf %1638, %1641 : vector<16x26xf32>
    %c7_849 = arith.constant 7 : index
    %c0_850 = arith.constant 0 : index
    %1643 = vector.load %arg8[%c7_849, %c0_850] : memref<26x26xf32, #tpu.memory_space<vmem>>, vector<16x26xf32>
    %cst_851 = arith.constant 0.109360695 : f32
    %1644 = vector.broadcast %cst_851 : f32 to vector<16x26xf32>
    %1645 = arith.mulf %1644, %1643 : vector<16x26xf32>
    %1646 = arith.addf %1642, %1645 : vector<16x26xf32>
    %c8_852 = arith.constant 8 : index
    %c0_853 = arith.constant 0 : index
    %1647 = vector.load %arg8[%c8_852, %c0_853] : memref<26x26xf32, #tpu.memory_space<vmem>>, vector<16x26xf32>
    %cst_854 = arith.constant 0.0360007733 : f32
    %1648 = vector.broadcast %cst_854 : f32 to vector<16x26xf32>
    %1649 = arith.mulf %1648, %1647 : vector<16x26xf32>
    %1650 = arith.addf %1646, %1649 : vector<16x26xf32>
    %c9_855 = arith.constant 9 : index
    %c0_856 = arith.constant 0 : index
    %1651 = vector.load %arg8[%c9_855, %c0_856] : memref<26x26xf32, #tpu.memory_space<vmem>>, vector<16x26xf32>
    %cst_857 = arith.constant 0.00759875868 : f32
    %1652 = vector.broadcast %cst_857 : f32 to vector<16x26xf32>
    %1653 = arith.mulf %1652, %1651 : vector<16x26xf32>
    %1654 = arith.addf %1650, %1653 : vector<16x26xf32>
    %c10_858 = arith.constant 10 : index
    %c0_859 = arith.constant 0 : index
    %1655 = vector.load %arg8[%c10_858, %c0_859] : memref<26x26xf32, #tpu.memory_space<vmem>>, vector<16x26xf32>
    %cst_860 = arith.constant 0.00102838024 : f32
    %1656 = vector.broadcast %cst_860 : f32 to vector<16x26xf32>
    %1657 = arith.mulf %1656, %1655 : vector<16x26xf32>
    %1658 = arith.addf %1654, %1657 : vector<16x26xf32>
    %1659 = vector.extract_strided_slice %1658 {offsets = [0, 0], sizes = [16, 16], strides = [1, 1]} : vector<16x26xf32> to vector<16x16xf32>
    %cst_861 = arith.constant 0.00102838024 : f32
    %1660 = vector.broadcast %cst_861 : f32 to vector<16x16xf32>
    %1661 = arith.mulf %1660, %1659 : vector<16x16xf32>
    %1662 = vector.extract_strided_slice %1658 {offsets = [0, 1], sizes = [16, 16], strides = [1, 1]} : vector<16x26xf32> to vector<16x16xf32>
    %cst_862 = arith.constant 0.00759875868 : f32
    %1663 = vector.broadcast %cst_862 : f32 to vector<16x16xf32>
    %1664 = arith.mulf %1663, %1662 : vector<16x16xf32>
    %1665 = arith.addf %1661, %1664 : vector<16x16xf32>
    %1666 = vector.extract_strided_slice %1658 {offsets = [0, 2], sizes = [16, 16], strides = [1, 1]} : vector<16x26xf32> to vector<16x16xf32>
    %cst_863 = arith.constant 0.0360007733 : f32
    %1667 = vector.broadcast %cst_863 : f32 to vector<16x16xf32>
    %1668 = arith.mulf %1667, %1666 : vector<16x16xf32>
    %1669 = arith.addf %1665, %1668 : vector<16x16xf32>
    %1670 = vector.extract_strided_slice %1658 {offsets = [0, 3], sizes = [16, 16], strides = [1, 1]} : vector<16x26xf32> to vector<16x16xf32>
    %cst_864 = arith.constant 0.109360695 : f32
    %1671 = vector.broadcast %cst_864 : f32 to vector<16x16xf32>
    %1672 = arith.mulf %1671, %1670 : vector<16x16xf32>
    %1673 = arith.addf %1669, %1672 : vector<16x16xf32>
    %1674 = vector.extract_strided_slice %1658 {offsets = [0, 4], sizes = [16, 16], strides = [1, 1]} : vector<16x26xf32> to vector<16x16xf32>
    %cst_865 = arith.constant 0.213005543 : f32
    %1675 = vector.broadcast %cst_865 : f32 to vector<16x16xf32>
    %1676 = arith.mulf %1675, %1674 : vector<16x16xf32>
    %1677 = arith.addf %1673, %1676 : vector<16x16xf32>
    %1678 = vector.extract_strided_slice %1658 {offsets = [0, 5], sizes = [16, 16], strides = [1, 1]} : vector<16x26xf32> to vector<16x16xf32>
    %cst_866 = arith.constant 0.266011745 : f32
    %1679 = vector.broadcast %cst_866 : f32 to vector<16x16xf32>
    %1680 = arith.mulf %1679, %1678 : vector<16x16xf32>
    %1681 = arith.addf %1677, %1680 : vector<16x16xf32>
    %1682 = vector.extract_strided_slice %1658 {offsets = [0, 6], sizes = [16, 16], strides = [1, 1]} : vector<16x26xf32> to vector<16x16xf32>
    %cst_867 = arith.constant 0.213005543 : f32
    %1683 = vector.broadcast %cst_867 : f32 to vector<16x16xf32>
    %1684 = arith.mulf %1683, %1682 : vector<16x16xf32>
    %1685 = arith.addf %1681, %1684 : vector<16x16xf32>
    %1686 = vector.extract_strided_slice %1658 {offsets = [0, 7], sizes = [16, 16], strides = [1, 1]} : vector<16x26xf32> to vector<16x16xf32>
    %cst_868 = arith.constant 0.109360695 : f32
    %1687 = vector.broadcast %cst_868 : f32 to vector<16x16xf32>
    %1688 = arith.mulf %1687, %1686 : vector<16x16xf32>
    %1689 = arith.addf %1685, %1688 : vector<16x16xf32>
    %1690 = vector.extract_strided_slice %1658 {offsets = [0, 8], sizes = [16, 16], strides = [1, 1]} : vector<16x26xf32> to vector<16x16xf32>
    %cst_869 = arith.constant 0.0360007733 : f32
    %1691 = vector.broadcast %cst_869 : f32 to vector<16x16xf32>
    %1692 = arith.mulf %1691, %1690 : vector<16x16xf32>
    %1693 = arith.addf %1689, %1692 : vector<16x16xf32>
    %1694 = vector.extract_strided_slice %1658 {offsets = [0, 9], sizes = [16, 16], strides = [1, 1]} : vector<16x26xf32> to vector<16x16xf32>
    %cst_870 = arith.constant 0.00759875868 : f32
    %1695 = vector.broadcast %cst_870 : f32 to vector<16x16xf32>
    %1696 = arith.mulf %1695, %1694 : vector<16x16xf32>
    %1697 = arith.addf %1693, %1696 : vector<16x16xf32>
    %1698 = vector.extract_strided_slice %1658 {offsets = [0, 10], sizes = [16, 16], strides = [1, 1]} : vector<16x26xf32> to vector<16x16xf32>
    %cst_871 = arith.constant 0.00102838024 : f32
    %1699 = vector.broadcast %cst_871 : f32 to vector<16x16xf32>
    %1700 = arith.mulf %1699, %1698 : vector<16x16xf32>
    %1701 = arith.addf %1697, %1700 : vector<16x16xf32>
    %1702 = arith.mulf %1613, %1613 : vector<16x16xf32>
    %1703 = arith.subf %1701, %1702 : vector<16x16xf32>
    %c0_872 = arith.constant 0 : index
    %c0_873 = arith.constant 0 : index
    %1704 = vector.load %arg9[%c0_872, %c0_873] : memref<16x16xf32, #tpu.memory_space<vmem>>, vector<16x16xf32>
    %c0_874 = arith.constant 0 : index
    %c0_875 = arith.constant 0 : index
    %1705 = vector.load %arg10[%c0_874, %c0_875] : memref<16x16xf32, #tpu.memory_space<vmem>>, vector<16x16xf32>
    %1706 = arith.mulf %1497, %4 : vector<16x16xf32>
    %c5_876 = arith.constant 5 : index
    %c5_877 = arith.constant 5 : index
    %1707 = vector.load %arg8[%c5_876, %c5_877] : memref<26x26xf32, #tpu.memory_space<vmem>>, vector<16x16xf32>
    tpu.vector_store %arg8[%c5_876, %c5_877], %1706 {strides = array<i32>} : memref<26x26xf32, #tpu.memory_space<vmem>>, vector<16x16xf32>,
    %c0_878 = arith.constant 0 : index
    %c0_879 = arith.constant 0 : index
    %1708 = vector.load %arg8[%c0_878, %c0_879] : memref<26x26xf32, #tpu.memory_space<vmem>>, vector<16x26xf32>
    %cst_880 = arith.constant 0.00102838024 : f32
    %1709 = vector.broadcast %cst_880 : f32 to vector<16x26xf32>
    %1710 = arith.mulf %1709, %1708 : vector<16x26xf32>
    %c1_881 = arith.constant 1 : index
    %c0_882 = arith.constant 0 : index
    %1711 = vector.load %arg8[%c1_881, %c0_882] : memref<26x26xf32, #tpu.memory_space<vmem>>, vector<16x26xf32>
    %cst_883 = arith.constant 0.00759875868 : f32
    %1712 = vector.broadcast %cst_883 : f32 to vector<16x26xf32>
    %1713 = arith.mulf %1712, %1711 : vector<16x26xf32>
    %1714 = arith.addf %1710, %1713 : vector<16x26xf32>
    %c2_884 = arith.constant 2 : index
    %c0_885 = arith.constant 0 : index
    %1715 = vector.load %arg8[%c2_884, %c0_885] : memref<26x26xf32, #tpu.memory_space<vmem>>, vector<16x26xf32>
    %cst_886 = arith.constant 0.0360007733 : f32
    %1716 = vector.broadcast %cst_886 : f32 to vector<16x26xf32>
    %1717 = arith.mulf %1716, %1715 : vector<16x26xf32>
    %1718 = arith.addf %1714, %1717 : vector<16x26xf32>
    %c3_887 = arith.constant 3 : index
    %c0_888 = arith.constant 0 : index
    %1719 = vector.load %arg8[%c3_887, %c0_888] : memref<26x26xf32, #tpu.memory_space<vmem>>, vector<16x26xf32>
    %cst_889 = arith.constant 0.109360695 : f32
    %1720 = vector.broadcast %cst_889 : f32 to vector<16x26xf32>
    %1721 = arith.mulf %1720, %1719 : vector<16x26xf32>
    %1722 = arith.addf %1718, %1721 : vector<16x26xf32>
    %c4_890 = arith.constant 4 : index
    %c0_891 = arith.constant 0 : index
    %1723 = vector.load %arg8[%c4_890, %c0_891] : memref<26x26xf32, #tpu.memory_space<vmem>>, vector<16x26xf32>
    %cst_892 = arith.constant 0.213005543 : f32
    %1724 = vector.broadcast %cst_892 : f32 to vector<16x26xf32>
    %1725 = arith.mulf %1724, %1723 : vector<16x26xf32>
    %1726 = arith.addf %1722, %1725 : vector<16x26xf32>
    %c5_893 = arith.constant 5 : index
    %c0_894 = arith.constant 0 : index
    %1727 = vector.load %arg8[%c5_893, %c0_894] : memref<26x26xf32, #tpu.memory_space<vmem>>, vector<16x26xf32>
    %cst_895 = arith.constant 0.266011745 : f32
    %1728 = vector.broadcast %cst_895 : f32 to vector<16x26xf32>
    %1729 = arith.mulf %1728, %1727 : vector<16x26xf32>
    %1730 = arith.addf %1726, %1729 : vector<16x26xf32>
    %c6_896 = arith.constant 6 : index
    %c0_897 = arith.constant 0 : index
    %1731 = vector.load %arg8[%c6_896, %c0_897] : memref<26x26xf32, #tpu.memory_space<vmem>>, vector<16x26xf32>
    %cst_898 = arith.constant 0.213005543 : f32
    %1732 = vector.broadcast %cst_898 : f32 to vector<16x26xf32>
    %1733 = arith.mulf %1732, %1731 : vector<16x26xf32>
    %1734 = arith.addf %1730, %1733 : vector<16x26xf32>
    %c7_899 = arith.constant 7 : index
    %c0_900 = arith.constant 0 : index
    %1735 = vector.load %arg8[%c7_899, %c0_900] : memref<26x26xf32, #tpu.memory_space<vmem>>, vector<16x26xf32>
    %cst_901 = arith.constant 0.109360695 : f32
    %1736 = vector.broadcast %cst_901 : f32 to vector<16x26xf32>
    %1737 = arith.mulf %1736, %1735 : vector<16x26xf32>
    %1738 = arith.addf %1734, %1737 : vector<16x26xf32>
    %c8_902 = arith.constant 8 : index
    %c0_903 = arith.constant 0 : index
    %1739 = vector.load %arg8[%c8_902, %c0_903] : memref<26x26xf32, #tpu.memory_space<vmem>>, vector<16x26xf32>
    %cst_904 = arith.constant 0.0360007733 : f32
    %1740 = vector.broadcast %cst_904 : f32 to vector<16x26xf32>
    %1741 = arith.mulf %1740, %1739 : vector<16x26xf32>
    %1742 = arith.addf %1738, %1741 : vector<16x26xf32>
    %c9_905 = arith.constant 9 : index
    %c0_906 = arith.constant 0 : index
    %1743 = vector.load %arg8[%c9_905, %c0_906] : memref<26x26xf32, #tpu.memory_space<vmem>>, vector<16x26xf32>
    %cst_907 = arith.constant 0.00759875868 : f32
    %1744 = vector.broadcast %cst_907 : f32 to vector<16x26xf32>
    %1745 = arith.mulf %1744, %1743 : vector<16x26xf32>
    %1746 = arith.addf %1742, %1745 : vector<16x26xf32>
    %c10_908 = arith.constant 10 : index
    %c0_909 = arith.constant 0 : index
    %1747 = vector.load %arg8[%c10_908, %c0_909] : memref<26x26xf32, #tpu.memory_space<vmem>>, vector<16x26xf32>
    %cst_910 = arith.constant 0.00102838024 : f32
    %1748 = vector.broadcast %cst_910 : f32 to vector<16x26xf32>
    %1749 = arith.mulf %1748, %1747 : vector<16x26xf32>
    %1750 = arith.addf %1746, %1749 : vector<16x26xf32>
    %1751 = vector.extract_strided_slice %1750 {offsets = [0, 0], sizes = [16, 16], strides = [1, 1]} : vector<16x26xf32> to vector<16x16xf32>
    %cst_911 = arith.constant 0.00102838024 : f32
    %1752 = vector.broadcast %cst_911 : f32 to vector<16x16xf32>
    %1753 = arith.mulf %1752, %1751 : vector<16x16xf32>
    %1754 = vector.extract_strided_slice %1750 {offsets = [0, 1], sizes = [16, 16], strides = [1, 1]} : vector<16x26xf32> to vector<16x16xf32>
    %cst_912 = arith.constant 0.00759875868 : f32
    %1755 = vector.broadcast %cst_912 : f32 to vector<16x16xf32>
    %1756 = arith.mulf %1755, %1754 : vector<16x16xf32>
    %1757 = arith.addf %1753, %1756 : vector<16x16xf32>
    %1758 = vector.extract_strided_slice %1750 {offsets = [0, 2], sizes = [16, 16], strides = [1, 1]} : vector<16x26xf32> to vector<16x16xf32>
    %cst_913 = arith.constant 0.0360007733 : f32
    %1759 = vector.broadcast %cst_913 : f32 to vector<16x16xf32>
    %1760 = arith.mulf %1759, %1758 : vector<16x16xf32>
    %1761 = arith.addf %1757, %1760 : vector<16x16xf32>
    %1762 = vector.extract_strided_slice %1750 {offsets = [0, 3], sizes = [16, 16], strides = [1, 1]} : vector<16x26xf32> to vector<16x16xf32>
    %cst_914 = arith.constant 0.109360695 : f32
    %1763 = vector.broadcast %cst_914 : f32 to vector<16x16xf32>
    %1764 = arith.mulf %1763, %1762 : vector<16x16xf32>
    %1765 = arith.addf %1761, %1764 : vector<16x16xf32>
    %1766 = vector.extract_strided_slice %1750 {offsets = [0, 4], sizes = [16, 16], strides = [1, 1]} : vector<16x26xf32> to vector<16x16xf32>
    %cst_915 = arith.constant 0.213005543 : f32
    %1767 = vector.broadcast %cst_915 : f32 to vector<16x16xf32>
    %1768 = arith.mulf %1767, %1766 : vector<16x16xf32>
    %1769 = arith.addf %1765, %1768 : vector<16x16xf32>
    %1770 = vector.extract_strided_slice %1750 {offsets = [0, 5], sizes = [16, 16], strides = [1, 1]} : vector<16x26xf32> to vector<16x16xf32>
    %cst_916 = arith.constant 0.266011745 : f32
    %1771 = vector.broadcast %cst_916 : f32 to vector<16x16xf32>
    %1772 = arith.mulf %1771, %1770 : vector<16x16xf32>
    %1773 = arith.addf %1769, %1772 : vector<16x16xf32>
    %1774 = vector.extract_strided_slice %1750 {offsets = [0, 6], sizes = [16, 16], strides = [1, 1]} : vector<16x26xf32> to vector<16x16xf32>
    %cst_917 = arith.constant 0.213005543 : f32
    %1775 = vector.broadcast %cst_917 : f32 to vector<16x16xf32>
    %1776 = arith.mulf %1775, %1774 : vector<16x16xf32>
    %1777 = arith.addf %1773, %1776 : vector<16x16xf32>
    %1778 = vector.extract_strided_slice %1750 {offsets = [0, 7], sizes = [16, 16], strides = [1, 1]} : vector<16x26xf32> to vector<16x16xf32>
    %cst_918 = arith.constant 0.109360695 : f32
    %1779 = vector.broadcast %cst_918 : f32 to vector<16x16xf32>
    %1780 = arith.mulf %1779, %1778 : vector<16x16xf32>
    %1781 = arith.addf %1777, %1780 : vector<16x16xf32>
    %1782 = vector.extract_strided_slice %1750 {offsets = [0, 8], sizes = [16, 16], strides = [1, 1]} : vector<16x26xf32> to vector<16x16xf32>
    %cst_919 = arith.constant 0.0360007733 : f32
    %1783 = vector.broadcast %cst_919 : f32 to vector<16x16xf32>
    %1784 = arith.mulf %1783, %1782 : vector<16x16xf32>
    %1785 = arith.addf %1781, %1784 : vector<16x16xf32>
    %1786 = vector.extract_strided_slice %1750 {offsets = [0, 9], sizes = [16, 16], strides = [1, 1]} : vector<16x26xf32> to vector<16x16xf32>
    %cst_920 = arith.constant 0.00759875868 : f32
    %1787 = vector.broadcast %cst_920 : f32 to vector<16x16xf32>
    %1788 = arith.mulf %1787, %1786 : vector<16x16xf32>
    %1789 = arith.addf %1785, %1788 : vector<16x16xf32>
    %1790 = vector.extract_strided_slice %1750 {offsets = [0, 10], sizes = [16, 16], strides = [1, 1]} : vector<16x26xf32> to vector<16x16xf32>
    %cst_921 = arith.constant 0.00102838024 : f32
    %1791 = vector.broadcast %cst_921 : f32 to vector<16x16xf32>
    %1792 = arith.mulf %1791, %1790 : vector<16x16xf32>
    %1793 = arith.addf %1789, %1792 : vector<16x16xf32>
    %1794 = arith.mulf %1613, %1704 : vector<16x16xf32>
    %1795 = arith.subf %1793, %1794 : vector<16x16xf32>
    %cst_922 = arith.constant 2.000000e+00 : f32
    %1796 = vector.broadcast %cst_922 : f32 to vector<16x16xf32>
    %1797 = arith.mulf %1796, %1613 : vector<16x16xf32>
    %1798 = arith.mulf %1797, %1704 : vector<16x16xf32>
    %cst_923 = arith.constant 9.99999974E-5 : f32
    %1799 = vector.broadcast %cst_923 : f32 to vector<16x16xf32>
    %1800 = arith.addf %1798, %1799 : vector<16x16xf32>
    %cst_924 = arith.constant 2.000000e+00 : f32
    %1801 = vector.broadcast %cst_924 : f32 to vector<16x16xf32>
    %1802 = arith.mulf %1801, %1795 : vector<16x16xf32>
    %cst_925 = arith.constant 8.99999984E-4 : f32
    %1803 = vector.broadcast %cst_925 : f32 to vector<16x16xf32>
    %1804 = arith.addf %1802, %1803 : vector<16x16xf32>
    %1805 = arith.mulf %1800, %1804 : vector<16x16xf32>
    %1806 = arith.mulf %1613, %1613 : vector<16x16xf32>
    %1807 = arith.mulf %1704, %1704 : vector<16x16xf32>
    %1808 = arith.addf %1806, %1807 : vector<16x16xf32>
    %cst_926 = arith.constant 9.99999974E-5 : f32
    %1809 = vector.broadcast %cst_926 : f32 to vector<16x16xf32>
    %1810 = arith.addf %1808, %1809 : vector<16x16xf32>
    %1811 = arith.addf %1703, %1705 : vector<16x16xf32>
    %cst_927 = arith.constant 8.99999984E-4 : f32
    %1812 = vector.broadcast %cst_927 : f32 to vector<16x16xf32>
    %1813 = arith.addf %1811, %1812 : vector<16x16xf32>
    %1814 = arith.mulf %1810, %1813 : vector<16x16xf32>
    %1815 = arith.divf %1805, %1814 : vector<16x16xf32>
    %c4_928 = arith.constant 4 : index
    %c0_929 = arith.constant 0 : index
    %1816 = vector.load %arg12[%c4_928, %c0_929] : memref<8x128xf32, #tpu.memory_space<vmem>>, vector<1x128xf32>
    %1817 = vector.shape_cast %1815 : vector<16x16xf32> to vector<1x16x16xf32>
    %cst_930 = arith.constant dense<0.000000e+00> : vector<1xf32>
    %1818 = vector.multi_reduction <add>, %1817, %cst_930 [1, 2] : vector<1x16x16xf32> to vector<1xf32>
    %1819 = vector.shape_cast %1818 : vector<1xf32> to vector<1x1x1xf32>
    %1820 = vector.extract %1819[0, 0, 0] : f32 from vector<1x1x1xf32>
    %1821 = vector.broadcast %1820 : f32 to vector<1x128xf32>
    %1822 = arith.addf %1816, %1821 : vector<1x128xf32>
    %c4_931 = arith.constant 4 : index
    %c0_932 = arith.constant 0 : index
    %1823 = vector.load %arg12[%c4_931, %c0_932] : memref<8x128xf32, #tpu.memory_space<vmem>>, vector<1x128xf32>
    tpu.vector_store %arg12[%c4_931, %c0_932], %1822 {strides = array<i32>} : memref<8x128xf32, #tpu.memory_space<vmem>>, vector<1x128xf32>,
    %c1_i32 = arith.constant 1 : i32
    %1824 = arith.cmpi eq, %arg0, %c1_i32 : i32
    %1825 = arith.extui %1824 : i1 to i32
    %c0_i32_933 = arith.constant 0 : i32
    %1826 = arith.cmpi ne, %1825, %c0_i32_933 : i32
    scf.if %1826 {
      %c0_934 = arith.constant 0 : index
      %c0_935 = arith.constant 0 : index
      %1827 = vector.load %arg11[%c0_934, %c0_935] : memref<8x128xf32, #tpu.memory_space<vmem>>, vector<1x1xf32>
      %cst_936 = arith.constant 0.001953125 : f32
      %1828 = vector.broadcast %cst_936 : f32 to vector<1x1xf32>
      %1829 = arith.mulf %1827, %1828 : vector<1x1xf32>
      %c1_937 = arith.constant 1 : index
      %c0_938 = arith.constant 0 : index
      %1830 = vector.load %arg11[%c1_937, %c0_938] : memref<8x128xf32, #tpu.memory_space<vmem>>, vector<1x1xf32>
      %cst_939 = arith.constant 0.001953125 : f32
      %1831 = vector.broadcast %cst_939 : f32 to vector<1x1xf32>
      %1832 = arith.mulf %1830, %1831 : vector<1x1xf32>
      %c2_940 = arith.constant 2 : index
      %c0_941 = arith.constant 0 : index
      %1833 = vector.load %arg11[%c2_940, %c0_941] : memref<8x128xf32, #tpu.memory_space<vmem>>, vector<1x1xf32>
      %cst_942 = arith.constant 0.001953125 : f32
      %1834 = vector.broadcast %cst_942 : f32 to vector<1x1xf32>
      %1835 = arith.mulf %1833, %1834 : vector<1x1xf32>
      %c3_943 = arith.constant 3 : index
      %c0_944 = arith.constant 0 : index
      %1836 = vector.load %arg11[%c3_943, %c0_944] : memref<8x128xf32, #tpu.memory_space<vmem>>, vector<1x1xf32>
      %cst_945 = arith.constant 0.001953125 : f32
      %1837 = vector.broadcast %cst_945 : f32 to vector<1x1xf32>
      %1838 = arith.mulf %1836, %1837 : vector<1x1xf32>
      %c4_946 = arith.constant 4 : index
      %c0_947 = arith.constant 0 : index
      %1839 = vector.load %arg11[%c4_946, %c0_947] : memref<8x128xf32, #tpu.memory_space<vmem>>, vector<1x1xf32>
      %cst_948 = arith.constant 0.001953125 : f32
      %1840 = vector.broadcast %cst_948 : f32 to vector<1x1xf32>
      %1841 = arith.mulf %1839, %1840 : vector<1x1xf32>
      %c0_949 = arith.constant 0 : index
      %c0_950 = arith.constant 0 : index
      %1842 = vector.load %arg12[%c0_949, %c0_950] : memref<8x128xf32, #tpu.memory_space<vmem>>, vector<1x1xf32>
      %cst_951 = arith.constant 0.001953125 : f32
      %1843 = vector.broadcast %cst_951 : f32 to vector<1x1xf32>
      %1844 = arith.mulf %1842, %1843 : vector<1x1xf32>
      %c1_952 = arith.constant 1 : index
      %c0_953 = arith.constant 0 : index
      %1845 = vector.load %arg12[%c1_952, %c0_953] : memref<8x128xf32, #tpu.memory_space<vmem>>, vector<1x1xf32>
      %cst_954 = arith.constant 0.001953125 : f32
      %1846 = vector.broadcast %cst_954 : f32 to vector<1x1xf32>
      %1847 = arith.mulf %1845, %1846 : vector<1x1xf32>
      %c2_955 = arith.constant 2 : index
      %c0_956 = arith.constant 0 : index
      %1848 = vector.load %arg12[%c2_955, %c0_956] : memref<8x128xf32, #tpu.memory_space<vmem>>, vector<1x1xf32>
      %cst_957 = arith.constant 0.001953125 : f32
      %1849 = vector.broadcast %cst_957 : f32 to vector<1x1xf32>
      %1850 = arith.mulf %1848, %1849 : vector<1x1xf32>
      %c3_958 = arith.constant 3 : index
      %c0_959 = arith.constant 0 : index
      %1851 = vector.load %arg12[%c3_958, %c0_959] : memref<8x128xf32, #tpu.memory_space<vmem>>, vector<1x1xf32>
      %cst_960 = arith.constant 0.001953125 : f32
      %1852 = vector.broadcast %cst_960 : f32 to vector<1x1xf32>
      %1853 = arith.mulf %1851, %1852 : vector<1x1xf32>
      %c4_961 = arith.constant 4 : index
      %c0_962 = arith.constant 0 : index
      %1854 = vector.load %arg12[%c4_961, %c0_962] : memref<8x128xf32, #tpu.memory_space<vmem>>, vector<1x1xf32>
      %cst_963 = arith.constant 0.001953125 : f32
      %1855 = vector.broadcast %cst_963 : f32 to vector<1x1xf32>
      %1856 = arith.mulf %1854, %1855 : vector<1x1xf32>
      %1857 = arith.addf %1829, %1832 : vector<1x1xf32>
      %1858 = arith.addf %1835, %1838 : vector<1x1xf32>
      %1859 = arith.addf %1858, %1841 : vector<1x1xf32>
      %1860 = arith.divf %1829, %1857 : vector<1x1xf32>
      %1861 = arith.addf %1860, %1859 : vector<1x1xf32>
      %1862 = arith.mulf %1861, %1844 : vector<1x1xf32>
      %1863 = arith.divf %1832, %1857 : vector<1x1xf32>
      %1864 = arith.addf %1863, %1859 : vector<1x1xf32>
      %1865 = arith.mulf %1864, %1847 : vector<1x1xf32>
      %1866 = arith.addf %1862, %1865 : vector<1x1xf32>
      %1867 = arith.divf %1835, %1857 : vector<1x1xf32>
      %1868 = arith.addf %1867, %1859 : vector<1x1xf32>
      %1869 = arith.mulf %1868, %1850 : vector<1x1xf32>
      %1870 = arith.addf %1866, %1869 : vector<1x1xf32>
      %1871 = arith.divf %1838, %1857 : vector<1x1xf32>
      %1872 = arith.addf %1871, %1859 : vector<1x1xf32>
      %1873 = arith.mulf %1872, %1853 : vector<1x1xf32>
      %1874 = arith.addf %1870, %1873 : vector<1x1xf32>
      %1875 = arith.divf %1841, %1857 : vector<1x1xf32>
      %1876 = arith.addf %1875, %1859 : vector<1x1xf32>
      %1877 = arith.mulf %1876, %1856 : vector<1x1xf32>
      %1878 = arith.addf %1874, %1877 : vector<1x1xf32>
      %c0_964 = arith.constant 0 : index
      %c0_965 = arith.constant 0 : index
      %1879 = vector.load %arg7[%c0_964, %c0_965] : memref<1x1xf32, #tpu.memory_space<vmem>>, vector<1x1xf32>
      tpu.vector_store %arg7[%c0_964, %c0_965], %1878 {strides = array<i32>} : memref<1x1xf32, #tpu.memory_space<vmem>>, vector<1x1xf32>,
    } else {
    }
    return
  }
  func.func @transform_0(%arg0: i32) -> (i32, i32, i32) {
    %c0_i32 = arith.constant 0 : i32
    %c0_i32_0 = arith.constant 0 : i32
    %c0_i32_1 = arith.constant 0 : i32
    return %arg0, %c0_i32, %c0_i32_0 : i32, i32, i32
  }
  func.func @transform_1(%arg0: i32) -> (i32, i32, i32) {
    %c0_i32 = arith.constant 0 : i32
    %c0_i32_0 = arith.constant 0 : i32
    %c0_i32_1 = arith.constant 0 : i32
    return %arg0, %c0_i32, %c0_i32_0 : i32, i32, i32
  }
  func.func @transform_2(%arg0: i32) -> (i32, i32, i32) {
    %c0_i32 = arith.constant 0 : i32
    %c0_i32_0 = arith.constant 0 : i32
    %c0_i32_1 = arith.constant 0 : i32
    return %arg0, %c0_i32, %c0_i32_0 : i32, i32, i32
  }
  func.func @transform_3(%arg0: i32) -> (i32, i32, i32) {
    %c0_i32 = arith.constant 0 : i32
    %c0_i32_0 = arith.constant 0 : i32
    %c0_i32_1 = arith.constant 0 : i32
    return %arg0, %c0_i32, %c0_i32_0 : i32, i32, i32
  }
  func.func @transform_4(%arg0: i32) -> (i32, i32, i32) {
    %c0_i32 = arith.constant 0 : i32
    %c0_i32_0 = arith.constant 0 : i32
    %c0_i32_1 = arith.constant 0 : i32
    return %arg0, %c0_i32, %c0_i32_0 : i32, i32, i32
  }
  func.func @transform_5(%arg0: i32) -> (i32, i32, i32) {
    %c0_i32 = arith.constant 0 : i32
    %c0_i32_0 = arith.constant 0 : i32
    %c0_i32_1 = arith.constant 0 : i32
    return %arg0, %c0_i32, %c0_i32_0 : i32, i32, i32
  }
  func.func @transform_6(%arg0: i32) -> (i32, i32) {
    %c0_i32 = arith.constant 0 : i32
    %c0_i32_0 = arith.constant 0 : i32
    %c0_i32_1 = arith.constant 0 : i32
    return %c0_i32, %c0_i32_0 : i32, i32
  }
}

</mosaic_0001>

<llo_original>
// kernel: tpu_custom_call.1
$region0: #{tpu_custom_call.1}
  #allocation0 [shape = 'u32[]', space=smem, size = 0x4, offset = 0x4, fixed_abs, tag = 'smem constant byte address 0x4 - core index']
  #allocation1 [shape = 'u32[144,128]{1,0:T(1,128)}', space=vmem, size = 0x12000, scoped, tag = 'internal scratch']
  #allocation2 [shape = 'f32[26,26]{1,0:T(8,128)}', space=vmem, size = 0x4000, scoped, tag = 'scratch operand']
  #allocation3 [shape = 'f32[16,16]{1,0:T(8,128)}', space=vmem, size = 0x2000, scoped, tag = 'scratch operand']
  #allocation4 [shape = 'f32[16,16]{1,0:T(8,128)}', space=vmem, size = 0x2000, scoped, tag = 'scratch operand']
  #allocation5 [shape = 'f32[8,128]{1,0:T(8,128)}', space=vmem, size = 0x1000, scoped, tag = 'scratch operand']
  #allocation6 [shape = 'f32[8,128]{1,0:T(8,128)}', space=vmem, size = 0x1000, scoped, tag = 'scratch operand']
  %s0 = inlined_call_operand.hbm [shape: f32[2,16,16], index: 0, kind: input, shape index: {}]
  %s1 = inlined_call_operand.hbm [shape: f32[2,16,16], index: 1, kind: input, shape index: {}]
  %s2 = inlined_call_operand.hbm [shape: f32[2,16,16], index: 2, kind: input, shape index: {}]
  %s3 = inlined_call_operand.hbm [shape: f32[2,16,16], index: 3, kind: input, shape index: {}]
  %s4 = inlined_call_operand.hbm [shape: f32[2,16,16], index: 4, kind: input, shape index: {}]
  %s5 = inlined_call_operand.hbm [shape: f32[2,16,16], index: 5, kind: input, shape index: {}]
  %s6 = inlined_call_operand.hbm [shape: f32[1,1], index: 6, kind: output, shape index: {}]
  %s7 = sld [smem:[#allocation0]]
  $region89: #{tpu_custom_call.1} parent=0
    _
  %s9 = ssub.s32 1, %s7
  %s10 = scalar_select 0, %s9, %s7
  $region1: #{tpu_custom_call.1} parent=0
    #allocation7 [shape = 'u8[16384]{0}', space=vmem, size = 0x4000, scoped, tag = 'input window, operand 0']
    #allocation8 [shape = 's32[2]{0}', space=sflag, size = 0x8, scoped, tag = 'scoped memory for tpu_custom_call.1']
    #allocation9 [shape = 's32[2]{0}', space=sflag, size = 0x8, scoped, tag = 'scoped memory for tpu_custom_call.1']
    #allocation10 [shape = 'u8[16384]{0}', space=vmem, size = 0x4000, scoped, tag = 'input window, operand 1']
    #allocation11 [shape = 's32[2]{0}', space=sflag, size = 0x8, scoped, tag = 'scoped memory for tpu_custom_call.1']
    #allocation12 [shape = 'u8[16384]{0}', space=vmem, size = 0x4000, scoped, tag = 'input window, operand 2']
    #allocation13 [shape = 'u8[16384]{0}', space=vmem, size = 0x4000, scoped, tag = 'input window, operand 3']
    #allocation14 [shape = 's32[2]{0}', space=sflag, size = 0x8, scoped, tag = 'scoped memory for tpu_custom_call.1']
    #allocation15 [shape = 'u8[16384]{0}', space=vmem, size = 0x4000, scoped, tag = 'input window, operand 4']
    #allocation16 [shape = 'u8[16384]{0}', space=vmem, size = 0x4000, scoped, tag = 'input window, operand 5']
    #allocation17 [shape = 's32[2]{0}', space=sflag, size = 0x8, scoped, tag = 'scoped memory for tpu_custom_call.1']
    #allocation18 [shape = 'u8[512]{0}', space=vmem, size = 0x400, scoped, tag = 'output window, operand 0, single buffered']
    %11 = vsyncpa [#allocation8], 0
    %s12 = scalar_lea.sflag [#allocation8], 1
    %13 = vsyncpa %s12, 0
    %14 = vsyncpa [#allocation11], 0
    %s15 = scalar_lea.sflag [#allocation11], 1
    %16 = vsyncpa %s15, 0
    %17 = vsyncpa [#allocation14], 0
    %s18 = scalar_lea.sflag [#allocation14], 1
    %19 = vsyncpa %s18, 0
    %20 = vsyncpa [#allocation17], 0
    %s21 = scalar_lea.sflag [#allocation17], 1
    %22 = vsyncpa %s21, 0
    %23 = vsyncpa [#allocation9], 0
    loop: start=0, step=1, limit=4
    $region2: #{tpu_custom_call.1} parent=1 // loop_pre_header
      _
    $region3: #{tpu_custom_call.1} parent=1 // loop_header
      %s25 = sphi 0, %s29
      %p26 = scmp.ge.s32.totalorder %s25, 4
      %s35 = sphi 0, %s37
      %s38 = sphi 0, %s35
      %s39 = sphi 0, %s38
      %s55 = sphi 0, %s39
      %s61 = sphi 0, %s63
      %s64 = sphi 0, %s61
      %s65 = sphi 0, %s64
      %s81 = sphi 0, %s65
      %s87 = sphi 0, %s89
      %s90 = sphi 0, %s87
      %s91 = sphi 0, %s90
      %s107 = sphi 0, %s91
      %s113 = sphi 0, %s115
      %s116 = sphi 0, %s113
      %s117 = sphi 0, %s116
      %s133 = sphi 0, %s117
      %s139 = sphi 0, %s141
      %s142 = sphi 0, %s139
      %s143 = sphi 0, %s142
      %s159 = sphi 0, %s143
      %s165 = sphi 0, %s167
      %s168 = sphi 0, %s165
      %s169 = sphi 0, %s168
      %s185 = sphi 0, %s169
      %s189 = sphi 0, %s189
      %s191 = sphi 0, %s189
      %s192 = sphi 0, %s191
      %s206 = sphi 0, %s192
    $region4: #{tpu_custom_call.1} parent=1 // loop_header_branch
      %28 = sbr.rel (%p26) target = $region8
    $region5: #{tpu_custom_call.1} parent=1 // loop_body
      %s30 = ssub.s32 %s25, 1
      %s31 = ssub.s32 %s25, 2
      %s32 = sadd.s32 %s25, 1
      %s33 = ssub.s32 %s25, %s32
      %p34 = scmp.eq.s32.totalorder %s33, 0
      %s36 = sadd.s32 %s35, 1
      %s37 = scalar_select %p34, %s35, %s36
      %p40 = pneg %p34
      %p41 = scmp.eq.s32.totalorder %s25, 1
      %p42 = por %p40, %p41
      %p43 = scmp.ne.s32.totalorder %s35, %s38
      %p44 = scmp.eq.s32.totalorder %s25, 0
      %p45 = por %p43, %p44
      %p46 = scmp.ne.s32.totalorder %s35, %s38
      %p47 = scmp.eq.s32.totalorder %s30, 1
      %p48 = por %p46, %p47
      %p49 = scmp.ne.s32.totalorder %s38, %s39
      %p50 = scmp.eq.s32.totalorder %s30, 0
      %p51 = por %p49, %p50
      %p52 = scmp.ne.s32.totalorder %s38, %s39
      %p53 = scmp.eq.s32.totalorder %s31, 1
      %p54 = por %p52, %p53
      %p56 = scmp.ne.s32.totalorder %s39, %s55
      %p57 = scmp.eq.s32.totalorder %s31, 0
      %p58 = por %p56, %p57
      %s59 = ssub.s32 %s25, %s32
      %p60 = scmp.eq.s32.totalorder %s59, 0
      %s62 = sadd.s32 %s61, 1
      %s63 = scalar_select %p60, %s61, %s62
      %p66 = pneg %p60
      %p67 = scmp.eq.s32.totalorder %s25, 1
      %p68 = por %p66, %p67
      %p69 = scmp.ne.s32.totalorder %s61, %s64
      %p70 = scmp.eq.s32.totalorder %s25, 0
      %p71 = por %p69, %p70
      %p72 = scmp.ne.s32.totalorder %s61, %s64
      %p73 = scmp.eq.s32.totalorder %s30, 1
      %p74 = por %p72, %p73
      %p75 = scmp.ne.s32.totalorder %s64, %s65
      %p76 = scmp.eq.s32.totalorder %s30, 0
      %p77 = por %p75, %p76
      %p78 = scmp.ne.s32.totalorder %s64, %s65
      %p79 = scmp.eq.s32.totalorder %s31, 1
      %p80 = por %p78, %p79
      %p82 = scmp.ne.s32.totalorder %s65, %s81
      %p83 = scmp.eq.s32.totalorder %s31, 0
      %p84 = por %p82, %p83
      %s85 = ssub.s32 %s25, %s32
      %p86 = scmp.eq.s32.totalorder %s85, 0
      %s88 = sadd.s32 %s87, 1
      %s89 = scalar_select %p86, %s87, %s88
      %p92 = pneg %p86
      %p93 = scmp.eq.s32.totalorder %s25, 1
      %p94 = por %p92, %p93
      %p95 = scmp.ne.s32.totalorder %s87, %s90
      %p96 = scmp.eq.s32.totalorder %s25, 0
      %p97 = por %p95, %p96
      %p98 = scmp.ne.s32.totalorder %s87, %s90
      %p99 = scmp.eq.s32.totalorder %s30, 1
      %p100 = por %p98, %p99
      %p101 = scmp.ne.s32.totalorder %s90, %s91
      %p102 = scmp.eq.s32.totalorder %s30, 0
      %p103 = por %p101, %p102
      %p104 = scmp.ne.s32.totalorder %s90, %s91
      %p105 = scmp.eq.s32.totalorder %s31, 1
      %p106 = por %p104, %p105
      %p108 = scmp.ne.s32.totalorder %s91, %s107
      %p109 = scmp.eq.s32.totalorder %s31, 0
      %p110 = por %p108, %p109
      %s111 = ssub.s32 %s25, %s32
      %p112 = scmp.eq.s32.totalorder %s111, 0
      %s114 = sadd.s32 %s113, 1
      %s115 = scalar_select %p112, %s113, %s114
      %p118 = pneg %p112
      %p119 = scmp.eq.s32.totalorder %s25, 1
      %p120 = por %p118, %p119
      %p121 = scmp.ne.s32.totalorder %s113, %s116
      %p122 = scmp.eq.s32.totalorder %s25, 0
      %p123 = por %p121, %p122
      %p124 = scmp.ne.s32.totalorder %s113, %s116
      %p125 = scmp.eq.s32.totalorder %s30, 1
      %p126 = por %p124, %p125
      %p127 = scmp.ne.s32.totalorder %s116, %s117
      %p128 = scmp.eq.s32.totalorder %s30, 0
      %p129 = por %p127, %p128
      %p130 = scmp.ne.s32.totalorder %s116, %s117
      %p131 = scmp.eq.s32.totalorder %s31, 1
      %p132 = por %p130, %p131
      %p134 = scmp.ne.s32.totalorder %s117, %s133
      %p135 = scmp.eq.s32.totalorder %s31, 0
      %p136 = por %p134, %p135
      %s137 = ssub.s32 %s25, %s32
      %p138 = scmp.eq.s32.totalorder %s137, 0
      %s140 = sadd.s32 %s139, 1
      %s141 = scalar_select %p138, %s139, %s140
      %p144 = pneg %p138
      %p145 = scmp.eq.s32.totalorder %s25, 1
      %p146 = por %p144, %p145
      %p147 = scmp.ne.s32.totalorder %s139, %s142
      %p148 = scmp.eq.s32.totalorder %s25, 0
      %p149 = por %p147, %p148
      %p150 = scmp.ne.s32.totalorder %s139, %s142
      %p151 = scmp.eq.s32.totalorder %s30, 1
      %p152 = por %p150, %p151
      %p153 = scmp.ne.s32.totalorder %s142, %s143
      %p154 = scmp.eq.s32.totalorder %s30, 0
      %p155 = por %p153, %p154
      %p156 = scmp.ne.s32.totalorder %s142, %s143
      %p157 = scmp.eq.s32.totalorder %s31, 1
      %p158 = por %p156, %p157
      %p160 = scmp.ne.s32.totalorder %s143, %s159
      %p161 = scmp.eq.s32.totalorder %s31, 0
      %p162 = por %p160, %p161
      %s163 = ssub.s32 %s25, %s32
      %p164 = scmp.eq.s32.totalorder %s163, 0
      %s166 = sadd.s32 %s165, 1
      %s167 = scalar_select %p164, %s165, %s166
      %p170 = pneg %p164
      %p171 = scmp.eq.s32.totalorder %s25, 1
      %p172 = por %p170, %p171
      %p173 = scmp.ne.s32.totalorder %s165, %s168
      %p174 = scmp.eq.s32.totalorder %s25, 0
      %p175 = por %p173, %p174
      %p176 = scmp.ne.s32.totalorder %s165, %s168
      %p177 = scmp.eq.s32.totalorder %s30, 1
      %p178 = por %p176, %p177
      %p179 = scmp.ne.s32.totalorder %s168, %s169
      %p180 = scmp.eq.s32.totalorder %s30, 0
      %p181 = por %p179, %p180
      %p182 = scmp.ne.s32.totalorder %s168, %s169
      %p183 = scmp.eq.s32.totalorder %s31, 1
      %p184 = por %p182, %p183
      %p186 = scmp.ne.s32.totalorder %s169, %s185
      %p187 = scmp.eq.s32.totalorder %s31, 0
      %p188 = por %p186, %p187
      %s190 = sadd.s32 %s189, 1
      %p193 = scmp.eq.s32.totalorder %s25, 1
      %p194 = scmp.ne.s32.totalorder %s189, %s191
      %p195 = scmp.eq.s32.totalorder %s25, 0
      %p196 = por %p194, %p195
      %p197 = scmp.ne.s32.totalorder %s189, %s191
      %p198 = scmp.eq.s32.totalorder %s30, 1
      %p199 = por %p197, %p198
      %p200 = scmp.ne.s32.totalorder %s191, %s192
      %p201 = scmp.eq.s32.totalorder %s30, 0
      %p202 = por %p200, %p201
      %p203 = scmp.ne.s32.totalorder %s191, %s192
      %p204 = scmp.eq.s32.totalorder %s31, 1
      %p205 = por %p203, %p204
      %p207 = scmp.ne.s32.totalorder %s192, %s206
      %p208 = scmp.eq.s32.totalorder %s31, 0
      %p209 = por %p207, %p208
      %p210 = scmp.le.s32.totalorder 1, %s25
      %p211 = scmp.lt.s32.totalorder %s25, 3
      %p212 = pnand %p210, %p211
      %p213 = pneg %p212
      // Predicated region
      $region9: #{tpu_custom_call.1} parent=5 // pred_check
        _
      $region10: #{tpu_custom_call.1} parent=5 // pred_check_branch
        %215 = sbr.rel (%p212) target = $region12
      $region11: #{tpu_custom_call.1} parent=5 // pred_region
        %s216 = ssub.s32 %s25, 1
      $region12: #{tpu_custom_call.1} parent=5 // pred_fallthru
        _
      %p217 = scmp.lt.s32.totalorder %s25, 2
      // Predicated region
      $region13: #{tpu_custom_call.1} parent=5 // pred_check
        %p218 = pneg %p217
      $region14: #{tpu_custom_call.1} parent=5 // pred_check_branch
        %220 = sbr.rel (%p218) target = $region16
      $region15: #{tpu_custom_call.1} parent=5 // pred_region
        // Predicated region
        $region17: #{tpu_custom_call.1} parent=15 // pred_check
          %p221 = pneg %p45
        $region18: #{tpu_custom_call.1} parent=15 // pred_check_branch
          %223 = sbr.rel (%p221) target = $region20
        $region19: #{tpu_custom_call.1} parent=15 // pred_region
          %s224 = sand.u32 %s35, 1
          %s225 = scalar_lea.sflag [#allocation8], %s224
          %s226 = sand.u32 %s35, 1
          %s227 = smul.addr %s226, 16
          %s228 = scalar_lea.vmem [#allocation7], %s227
          %s230 = ssub.s32 256, 256
          %231 = vsyncadd %s225, %s230
          %s232 = smul.addr %s25, 2
          %s233 = smul.addr %s232, 128
          %s234 = scalar_lea.hbm %s0, %s233
          %s235 = sshll.u32 %s228, 4
          %s236 = int_to_ptr.vmem [resolvable:$true] %s235
          %241 = dma.hbm_to_vmem [thread:$0]  %s234, 256, %s236, %s225, 128, 128, 8
        $region20: #{tpu_custom_call.1} parent=15 // pred_fallthru
          _
        // Predicated region
        $region21: #{tpu_custom_call.1} parent=15 // pred_check
          %p242 = pneg %p71
        $region22: #{tpu_custom_call.1} parent=15 // pred_check_branch
          %244 = sbr.rel (%p242) target = $region24
        $region23: #{tpu_custom_call.1} parent=15 // pred_region
          %s245 = sand.u32 %s25, 1
          %s246 = scalar_lea.sflag [#allocation11], %s245
          %s247 = sand.u32 %s61, 1
          %s248 = smul.addr %s247, 16
          %s249 = scalar_lea.vmem [#allocation10], %s248
          %s251 = ssub.s32 256, 256
          %252 = vsyncadd %s246, %s251
          %s253 = smul.addr %s25, 2
          %s254 = smul.addr %s253, 128
          %s255 = scalar_lea.hbm %s1, %s254
          %s256 = sshll.u32 %s249, 4
          %s257 = int_to_ptr.vmem [resolvable:$true] %s256
          %262 = dma.hbm_to_vmem [thread:$0]  %s255, 256, %s257, %s246, 128, 128, 8
        $region24: #{tpu_custom_call.1} parent=15 // pred_fallthru
          _
        // Predicated region
        $region25: #{tpu_custom_call.1} parent=15 // pred_check
          %p263 = pneg %p97
        $region26: #{tpu_custom_call.1} parent=15 // pred_check_branch
          %265 = sbr.rel (%p263) target = $region28
        $region27: #{tpu_custom_call.1} parent=15 // pred_region
          %s266 = sand.u32 %s25, 1
          %s267 = scalar_lea.sflag [#allocation11], %s266
          %s268 = sand.u32 %s87, 1
          %s269 = smul.addr %s268, 16
          %s270 = scalar_lea.vmem [#allocation12], %s269
          %s272 = ssub.s32 256, 256
          %273 = vsyncadd %s267, %s272
          %s274 = smul.addr %s25, 2
          %s275 = smul.addr %s274, 128
          %s276 = scalar_lea.hbm %s2, %s275
          %s277 = sshll.u32 %s270, 4
          %s278 = int_to_ptr.vmem [resolvable:$true] %s277
          %283 = dma.hbm_to_vmem [thread:$0]  %s276, 256, %s278, %s267, 128, 128, 8
        $region28: #{tpu_custom_call.1} parent=15 // pred_fallthru
          _
        // Predicated region
        $region29: #{tpu_custom_call.1} parent=15 // pred_check
          %p284 = pneg %p123
        $region30: #{tpu_custom_call.1} parent=15 // pred_check_branch
          %286 = sbr.rel (%p284) target = $region32
        $region31: #{tpu_custom_call.1} parent=15 // pred_region
          %s287 = sand.u32 %s25, 1
          %s288 = scalar_lea.sflag [#allocation14], %s287
          %s289 = sand.u32 %s113, 1
          %s290 = smul.addr %s289, 16
          %s291 = scalar_lea.vmem [#allocation13], %s290
          %s293 = ssub.s32 256, 256
          %294 = vsyncadd %s288, %s293
          %s295 = smul.addr %s25, 2
          %s296 = smul.addr %s295, 128
          %s297 = scalar_lea.hbm %s3, %s296
          %s298 = sshll.u32 %s291, 4
          %s299 = int_to_ptr.vmem [resolvable:$true] %s298
          %304 = dma.hbm_to_vmem [thread:$0]  %s297, 256, %s299, %s288, 128, 128, 8
        $region32: #{tpu_custom_call.1} parent=15 // pred_fallthru
          _
        // Predicated region
        $region33: #{tpu_custom_call.1} parent=15 // pred_check
          %p305 = pneg %p149
        $region34: #{tpu_custom_call.1} parent=15 // pred_check_branch
          %307 = sbr.rel (%p305) target = $region36
        $region35: #{tpu_custom_call.1} parent=15 // pred_region
          %s308 = sand.u32 %s25, 1
          %s309 = scalar_lea.sflag [#allocation14], %s308
          %s310 = sand.u32 %s139, 1
          %s311 = smul.addr %s310, 16
          %s312 = scalar_lea.vmem [#allocation15], %s311
          %s314 = ssub.s32 256, 256
          %315 = vsyncadd %s309, %s314
          %s316 = smul.addr %s25, 2
          %s317 = smul.addr %s316, 128
          %s318 = scalar_lea.hbm %s4, %s317
          %s319 = sshll.u32 %s312, 4
          %s320 = int_to_ptr.vmem [resolvable:$true] %s319
          %325 = dma.hbm_to_vmem [thread:$0]  %s318, 256, %s320, %s309, 128, 128, 8
        $region36: #{tpu_custom_call.1} parent=15 // pred_fallthru
          _
        // Predicated region
        $region37: #{tpu_custom_call.1} parent=15 // pred_check
          %p326 = pneg %p175
        $region38: #{tpu_custom_call.1} parent=15 // pred_check_branch
          %328 = sbr.rel (%p326) target = $region40
        $region39: #{tpu_custom_call.1} parent=15 // pred_region
          %s329 = sand.u32 %s165, 1
          %s330 = scalar_lea.sflag [#allocation17], %s329
          %s331 = sand.u32 %s165, 1
          %s332 = smul.addr %s331, 16
          %s333 = scalar_lea.vmem [#allocation16], %s332
          %s335 = ssub.s32 256, 256
          %336 = vsyncadd %s330, %s335
          %s337 = smul.addr %s25, 2
          %s338 = smul.addr %s337, 128
          %s339 = scalar_lea.hbm %s5, %s338
          %s340 = sshll.u32 %s333, 4
          %s341 = int_to_ptr.vmem [resolvable:$true] %s340
          %346 = dma.hbm_to_vmem [thread:$0]  %s339, 256, %s341, %s330, 128, 128, 8
        $region40: #{tpu_custom_call.1} parent=15 // pred_fallthru
          _
      $region16: #{tpu_custom_call.1} parent=5 // pred_fallthru
        _
      %p347 = scmp.le.s32.totalorder 1, %s25
      %p348 = scmp.lt.s32.totalorder %s25, 3
      %p349 = pnand %p347, %p348
      %p350 = pneg %p349
      // Predicated region
      $region41: #{tpu_custom_call.1} parent=5 // pred_check
        _
      $region42: #{tpu_custom_call.1} parent=5 // pred_check_branch
        %352 = sbr.rel (%p349) target = $region44
      $region43: #{tpu_custom_call.1} parent=5 // pred_region
        %s353 = ssub.s32 %s25, 1
        %s354 = sand.u32 %s38, 1
        %s355 = scalar_lea.sflag [#allocation8], %s354
        %s356 = sand.u32 %s38, 1
        %s357 = smul.addr %s356, 16
        %s358 = scalar_lea.vmem [#allocation7], %s357
        // Predicated region
        $region45: #{tpu_custom_call.1} parent=43 // pred_check
          %p359 = pneg %p51
        $region46: #{tpu_custom_call.1} parent=43 // pred_check_branch
          %361 = sbr.rel (%p359) target = $region48
        $region47: #{tpu_custom_call.1} parent=43 // pred_region
          %362 = dma.done %s355, 256
        $region48: #{tpu_custom_call.1} parent=43 // pred_fallthru
          _
        %s363 = sand.u32 %s30, 1
        %s364 = scalar_lea.sflag [#allocation11], %s363
        %s365 = sand.u32 %s64, 1
        %s366 = smul.addr %s365, 16
        %s367 = scalar_lea.vmem [#allocation10], %s366
        // Predicated region
        $region49: #{tpu_custom_call.1} parent=43 // pred_check
          %p368 = pneg %p77
        $region50: #{tpu_custom_call.1} parent=43 // pred_check_branch
          %370 = sbr.rel (%p368) target = $region52
        $region51: #{tpu_custom_call.1} parent=43 // pred_region
          %371 = dma.done %s364, 256
        $region52: #{tpu_custom_call.1} parent=43 // pred_fallthru
          _
        %s372 = sand.u32 %s30, 1
        %s373 = scalar_lea.sflag [#allocation11], %s372
        %s374 = sand.u32 %s90, 1
        %s375 = smul.addr %s374, 16
        %s376 = scalar_lea.vmem [#allocation12], %s375
        // Predicated region
        $region53: #{tpu_custom_call.1} parent=43 // pred_check
          %p377 = pneg %p103
        $region54: #{tpu_custom_call.1} parent=43 // pred_check_branch
          %379 = sbr.rel (%p377) target = $region56
        $region55: #{tpu_custom_call.1} parent=43 // pred_region
          %380 = dma.done %s373, 256
        $region56: #{tpu_custom_call.1} parent=43 // pred_fallthru
          _
        %s381 = sand.u32 %s30, 1
        %s382 = scalar_lea.sflag [#allocation14], %s381
        %s383 = sand.u32 %s116, 1
        %s384 = smul.addr %s383, 16
        %s385 = scalar_lea.vmem [#allocation13], %s384
        // Predicated region
        $region57: #{tpu_custom_call.1} parent=43 // pred_check
          %p386 = pneg %p129
        $region58: #{tpu_custom_call.1} parent=43 // pred_check_branch
          %388 = sbr.rel (%p386) target = $region60
        $region59: #{tpu_custom_call.1} parent=43 // pred_region
          %389 = dma.done %s382, 256
        $region60: #{tpu_custom_call.1} parent=43 // pred_fallthru
          _
        %s390 = sand.u32 %s30, 1
        %s391 = scalar_lea.sflag [#allocation14], %s390
        %s392 = sand.u32 %s142, 1
        %s393 = smul.addr %s392, 16
        %s394 = scalar_lea.vmem [#allocation15], %s393
        // Predicated region
        $region61: #{tpu_custom_call.1} parent=43 // pred_check
          %p395 = pneg %p155
        $region62: #{tpu_custom_call.1} parent=43 // pred_check_branch
          %397 = sbr.rel (%p395) target = $region64
        $region63: #{tpu_custom_call.1} parent=43 // pred_region
          %398 = dma.done %s391, 256
        $region64: #{tpu_custom_call.1} parent=43 // pred_fallthru
          _
        %s399 = sand.u32 %s168, 1
        %s400 = scalar_lea.sflag [#allocation17], %s399
        %s401 = sand.u32 %s168, 1
        %s402 = smul.addr %s401, 16
        %s403 = scalar_lea.vmem [#allocation16], %s402
        // Predicated region
        $region65: #{tpu_custom_call.1} parent=43 // pred_check
          %p404 = pneg %p181
        $region66: #{tpu_custom_call.1} parent=43 // pred_check_branch
          %406 = sbr.rel (%p404) target = $region68
        $region67: #{tpu_custom_call.1} parent=43 // pred_region
          %407 = dma.done %s400, 256
        $region68: #{tpu_custom_call.1} parent=43 // pred_fallthru
          _
        %s408 = sand.u32 %s38, 1
        %s409 = scalar_lea.sflag [#allocation8], %s408
        %s410 = sand.u32 %s38, 1
        %s411 = smul.addr %s410, 16
        %s412 = scalar_lea.vmem [#allocation7], %s411
        %p413 = pneg %p51
        %p414 = pneg %p48
        %s415 = sand.u32 %s30, 1
        %s416 = scalar_lea.sflag [#allocation11], %s415
        %s417 = sand.u32 %s64, 1
        %s418 = smul.addr %s417, 16
        %s419 = scalar_lea.vmem [#allocation10], %s418
        %p420 = pneg %p77
        %p421 = pneg %p74
        %s422 = sand.u32 %s30, 1
        %s423 = scalar_lea.sflag [#allocation11], %s422
        %s424 = sand.u32 %s90, 1
        %s425 = smul.addr %s424, 16
        %s426 = scalar_lea.vmem [#allocation12], %s425
        %p427 = pneg %p103
        %p428 = pneg %p100
        %s429 = sand.u32 %s30, 1
        %s430 = scalar_lea.sflag [#allocation14], %s429
        %s431 = sand.u32 %s116, 1
        %s432 = smul.addr %s431, 16
        %s433 = scalar_lea.vmem [#allocation13], %s432
        %p434 = pneg %p129
        %p435 = pneg %p126
        %s436 = sand.u32 %s30, 1
        %s437 = scalar_lea.sflag [#allocation14], %s436
        %s438 = sand.u32 %s142, 1
        %s439 = smul.addr %s438, 16
        %s440 = scalar_lea.vmem [#allocation15], %s439
        %p441 = pneg %p155
        %p442 = pneg %p152
        %s443 = sand.u32 %s168, 1
        %s444 = scalar_lea.sflag [#allocation17], %s443
        %s445 = sand.u32 %s168, 1
        %s446 = smul.addr %s445, 16
        %s447 = scalar_lea.vmem [#allocation16], %s446
        %p448 = pneg %p181
        %p449 = pneg %p178
        %p450 = pneg %p202
        %p451 = pneg %p199
        %p452 = scmp.eq.s32.totalorder %s30, 0
        // Predicated region
        $region69: #{tpu_custom_call.1} parent=43 // pred_check
          %p453 = pneg %p452
        $region70: #{tpu_custom_call.1} parent=43 // pred_check_branch
          %455 = sbr.rel (%p453) target = $region72
        $region71: #{tpu_custom_call.1} parent=43 // pred_region
          %vm456 = vcmask 211968
          %457 = vst.msk [vmem:[#allocation2] sm:$0xff] %vm456, 0.0
          %458 = vst.msk [vmem:[#allocation2 + $0x8] sm:$0xff] %vm456, 0.0
          %459 = vst.msk [vmem:[#allocation2 + $0x10] sm:$0xff] %vm456, 0.0
          %vm460 = vcmask 205824
          %461 = vst.msk [vmem:[#allocation2 + $0x18] sm:$0x3] %vm460, 0.0
          %462 = vst [vmem:[#allocation5] sm:$0xff] 0.0
          %463 = vst [vmem:[#allocation6] sm:$0xff] 0.0
        $region72: #{tpu_custom_call.1} parent=43 // pred_fallthru
          _
        %v464 = vld [vmem:[%s403] sm:$0xff]
        %v465 = vld [vmem:[%s403 + $0x8] sm:$0xff]
        %468 = vrot.lane.b32.xlu0 %v464, 5
        %v469 = vpop.permute.xlu0 %468
        %470 = vrot.lane.b32.xlu0 %v465, 5
        %v471 = vpop.permute.xlu0 %470
        %vm474 = vcmask 171048
        %475 = vst.msk [vmem:[#allocation2 + $0x5] sm:$0xff] %vm474, %v469
        %476 = vst.msk [vmem:[#allocation2 + $0xd] sm:$0xff] %vm474, %v471
        %v477 = vld [vmem:[#allocation2] sm:$0xff]
        %v478 = vld [vmem:[#allocation2 + $0x8] sm:$0xff]
        %v479 = vmul.f32 %v477, 0.0010283802
        %v480 = vmul.f32 %v478, 0.0010283802
        %v481 = vld [vmem:[#allocation2 + $0x1] sm:$0xff]
        %v482 = vld [vmem:[#allocation2 + $0x9] sm:$0xff]
        %v483 = vmul.f32 %v481, 0.0075987587
        %v484 = vmul.f32 %v482, 0.0075987587
        %v485 = vadd.f32 %v479, %v483
        %v486 = vadd.f32 %v480, %v484
        %v487 = vld [vmem:[#allocation2 + $0x2] sm:$0xff]
        %v488 = vld [vmem:[#allocation2 + $0xa] sm:$0xff]
        %v489 = vmul.f32 %v487, 0.036000773
        %v490 = vmul.f32 %v488, 0.036000773
        %v491 = vadd.f32 %v485, %v489
        %v492 = vadd.f32 %v486, %v490
        %v493 = vld [vmem:[#allocation2 + $0x3] sm:$0xff]
        %v494 = vld [vmem:[#allocation2 + $0xb] sm:$0xff]
        %v495 = vmul.f32 %v493, 0.109360695
        %v496 = vmul.f32 %v494, 0.109360695
        %v497 = vadd.f32 %v491, %v495
        %v498 = vadd.f32 %v492, %v496
        %v499 = vld [vmem:[#allocation2 + $0x4] sm:$0xff]
        %v500 = vld [vmem:[#allocation2 + $0xc] sm:$0xff]
        %v501 = vmul.f32 %v499, 0.21300554
        %v502 = vmul.f32 %v500, 0.21300554
        %v503 = vadd.f32 %v497, %v501
        %v504 = vadd.f32 %v498, %v502
        %v505 = vld [vmem:[#allocation2 + $0x5] sm:$0xff]
        %v506 = vld [vmem:[#allocation2 + $0xd] sm:$0xff]
        %v507 = vmul.f32 %v505, 0.26601174
        %v508 = vmul.f32 %v506, 0.26601174
        %v509 = vadd.f32 %v503, %v507
        %v510 = vadd.f32 %v504, %v508
        %v511 = vld [vmem:[#allocation2 + $0x6] sm:$0xff]
        %v512 = vld [vmem:[#allocation2 + $0xe] sm:$0xff]
        %v513 = vmul.f32 %v511, 0.21300554
        %v514 = vmul.f32 %v512, 0.21300554
        %v515 = vadd.f32 %v509, %v513
        %v516 = vadd.f32 %v510, %v514
        %v517 = vld [vmem:[#allocation2 + $0x7] sm:$0xff]
        %v518 = vld [vmem:[#allocation2 + $0xf] sm:$0xff]
        %v519 = vmul.f32 %v517, 0.109360695
        %v520 = vmul.f32 %v518, 0.109360695
        %v521 = vadd.f32 %v515, %v519
        %v522 = vadd.f32 %v516, %v520
        %v523 = vld [vmem:[#allocation2 + $0x10] sm:$0xff]
        %v524 = vmul.f32 %v478, 0.036000773
        %v525 = vmul.f32 %v523, 0.036000773
        %v526 = vadd.f32 %v521, %v524
        %v527 = vadd.f32 %v522, %v525
        %v528 = vld [vmem:[#allocation2 + $0x11] sm:$0xff]
        %v529 = vmul.f32 %v528, 0.0075987587
        %v530 = vadd.f32 %v526, %v484
        %v531 = vadd.f32 %v527, %v529
        %v532 = vld [vmem:[#allocation2 + $0x12] sm:$0xff]
        %v533 = vmul.f32 %v488, 0.0010283802
        %v534 = vmul.f32 %v532, 0.0010283802
        %v535 = vadd.f32 %v530, %v533
        %v536 = vadd.f32 %v531, %v534
        %v537 = vmul.f32 %v535, 0.0010283802
        %v538 = vmul.f32 %v536, 0.0010283802
        %v539 = vmul.f32 %v535, 0.0075987587
        %v540 = vmul.f32 %v536, 0.0075987587
        %543 = vrot.lane.b32.xlu0 %v539, 127
        %v544 = vpop.permute.xlu0 %543
        %545 = vrot.lane.b32.xlu0 %v540, 127
        %v546 = vpop.permute.xlu0 %545
        %v549 = vadd.f32 %v537, %v544
        %v550 = vadd.f32 %v538, %v546
        %v551 = vmul.f32 %v535, 0.036000773
        %v552 = vmul.f32 %v536, 0.036000773
        %555 = vrot.lane.b32.xlu0 %v551, 126
        %v556 = vpop.permute.xlu0 %555
        %557 = vrot.lane.b32.xlu0 %v552, 126
        %v558 = vpop.permute.xlu0 %557
        %v561 = vadd.f32 %v549, %v556
        %v562 = vadd.f32 %v550, %v558
        %v563 = vmul.f32 %v535, 0.109360695
        %v564 = vmul.f32 %v536, 0.109360695
        %567 = vrot.lane.b32.xlu0 %v563, 125
        %v568 = vpop.permute.xlu0 %567
        %569 = vrot.lane.b32.xlu0 %v564, 125
        %v570 = vpop.permute.xlu0 %569
        %v573 = vadd.f32 %v561, %v568
        %v574 = vadd.f32 %v562, %v570
        %v575 = vmul.f32 %v535, 0.21300554
        %v576 = vmul.f32 %v536, 0.21300554
        %579 = vrot.lane.b32.xlu0 %v575, 124
        %v580 = vpop.permute.xlu0 %579
        %581 = vrot.lane.b32.xlu0 %v576, 124
        %v582 = vpop.permute.xlu0 %581
        %v585 = vadd.f32 %v573, %v580
        %v586 = vadd.f32 %v574, %v582
        %v587 = vmul.f32 %v535, 0.26601174
        %v588 = vmul.f32 %v536, 0.26601174
        %591 = vrot.lane.b32.xlu0 %v587, 123
        %v592 = vpop.permute.xlu0 %591
        %593 = vrot.lane.b32.xlu0 %v588, 123
        %v594 = vpop.permute.xlu0 %593
        %v597 = vadd.f32 %v585, %v592
        %v598 = vadd.f32 %v586, %v594
        %599 = vrot.lane.b32.xlu0 %v575, 122
        %v600 = vpop.permute.xlu0 %599
        %601 = vrot.lane.b32.xlu0 %v576, 122
        %v602 = vpop.permute.xlu0 %601
        %v605 = vadd.f32 %v597, %v600
        %v606 = vadd.f32 %v598, %v602
        %607 = vrot.lane.b32.xlu0 %v563, 121
        %v608 = vpop.permute.xlu0 %607
        %609 = vrot.lane.b32.xlu0 %v564, 121
        %v610 = vpop.permute.xlu0 %609
        %v613 = vadd.f32 %v605, %v608
        %v614 = vadd.f32 %v606, %v610
        %615 = vrot.lane.b32.xlu0 %v551, 120
        %v616 = vpop.permute.xlu0 %615
        %617 = vrot.lane.b32.xlu0 %v552, 120
        %v618 = vpop.permute.xlu0 %617
        %v621 = vadd.f32 %v613, %v616
        %v622 = vadd.f32 %v614, %v618
        %623 = vrot.lane.b32.xlu0 %v539, 119
        %v624 = vpop.permute.xlu0 %623
        %625 = vrot.lane.b32.xlu0 %v540, 119
        %v626 = vpop.permute.xlu0 %625
        %v629 = vadd.f32 %v621, %v624
        %v630 = vadd.f32 %v622, %v626
        %633 = vrot.lane.b32.xlu0 %v537, 118
        %v634 = vpop.permute.xlu0 %633
        %635 = vrot.lane.b32.xlu0 %v538, 118
        %v636 = vpop.permute.xlu0 %635
        %v639 = vadd.f32 %v629, %v634
        %v640 = vadd.f32 %v630, %v636
        %v641 = vmul.f32 %v464, %v464
        %v642 = vmul.f32 %v465, %v465
        %645 = vrot.lane.b32.xlu0 %v641, 5
        %v646 = vpop.permute.xlu0 %645
        %647 = vrot.lane.b32.xlu0 %v642, 5
        %v648 = vpop.permute.xlu0 %647
        %651 = vst.msk [vmem:[#allocation2 + $0x5] sm:$0xff] %vm474, %v646
        %652 = vst.msk [vmem:[#allocation2 + $0xd] sm:$0xff] %vm474, %v648
        %v653 = vld [vmem:[#allocation2] sm:$0xff]
        %v654 = vld [vmem:[#allocation2 + $0x8] sm:$0xff]
        %v655 = vmul.f32 %v653, 0.0010283802
        %v656 = vmul.f32 %v654, 0.0010283802
        %v657 = vld [vmem:[#allocation2 + $0x1] sm:$0xff]
        %v658 = vld [vmem:[#allocation2 + $0x9] sm:$0xff]
        %v659 = vmul.f32 %v657, 0.0075987587
        %v660 = vmul.f32 %v658, 0.0075987587
        %v661 = vadd.f32 %v655, %v659
        %v662 = vadd.f32 %v656, %v660
        %v663 = vld [vmem:[#allocation2 + $0x2] sm:$0xff]
        %v664 = vld [vmem:[#allocation2 + $0xa] sm:$0xff]
        %v665 = vmul.f32 %v663, 0.036000773
        %v666 = vmul.f32 %v664, 0.036000773
        %v667 = vadd.f32 %v661, %v665
        %v668 = vadd.f32 %v662, %v666
        %v669 = vld [vmem:[#allocation2 + $0x3] sm:$0xff]
        %v670 = vld [vmem:[#allocation2 + $0xb] sm:$0xff]
        %v671 = vmul.f32 %v669, 0.109360695
        %v672 = vmul.f32 %v670, 0.109360695
        %v673 = vadd.f32 %v667, %v671
        %v674 = vadd.f32 %v668, %v672
        %v675 = vld [vmem:[#allocation2 + $0x4] sm:$0xff]
        %v676 = vld [vmem:[#allocation2 + $0xc] sm:$0xff]
        %v677 = vmul.f32 %v675, 0.21300554
        %v678 = vmul.f32 %v676, 0.21300554
        %v679 = vadd.f32 %v673, %v677
        %v680 = vadd.f32 %v674, %v678
        %v681 = vld [vmem:[#allocation2 + $0x5] sm:$0xff]
        %v682 = vld [vmem:[#allocation2 + $0xd] sm:$0xff]
        %v683 = vmul.f32 %v681, 0.26601174
        %v684 = vmul.f32 %v682, 0.26601174
        %v685 = vadd.f32 %v679, %v683
        %v686 = vadd.f32 %v680, %v684
        %v687 = vld [vmem:[#allocation2 + $0x6] sm:$0xff]
        %v688 = vld [vmem:[#allocation2 + $0xe] sm:$0xff]
        %v689 = vmul.f32 %v687, 0.21300554
        %v690 = vmul.f32 %v688, 0.21300554
        %v691 = vadd.f32 %v685, %v689
        %v692 = vadd.f32 %v686, %v690
        %v693 = vld [vmem:[#allocation2 + $0x7] sm:$0xff]
        %v694 = vld [vmem:[#allocation2 + $0xf] sm:$0xff]
        %v695 = vmul.f32 %v693, 0.109360695
        %v696 = vmul.f32 %v694, 0.109360695
        %v697 = vadd.f32 %v691, %v695
        %v698 = vadd.f32 %v692, %v696
        %v699 = vld [vmem:[#allocation2 + $0x10] sm:$0xff]
        %v700 = vmul.f32 %v654, 0.036000773
        %v701 = vmul.f32 %v699, 0.036000773
        %v702 = vadd.f32 %v697, %v700
        %v703 = vadd.f32 %v698, %v701
        %v704 = vld [vmem:[#allocation2 + $0x11] sm:$0xff]
        %v705 = vmul.f32 %v704, 0.0075987587
        %v706 = vadd.f32 %v702, %v660
        %v707 = vadd.f32 %v703, %v705
        %v708 = vld [vmem:[#allocation2 + $0x12] sm:$0xff]
        %v709 = vmul.f32 %v664, 0.0010283802
        %v710 = vmul.f32 %v708, 0.0010283802
        %v711 = vadd.f32 %v706, %v709
        %v712 = vadd.f32 %v707, %v710
        %v713 = vmul.f32 %v711, 0.0010283802
        %v714 = vmul.f32 %v712, 0.0010283802
        %v715 = vmul.f32 %v711, 0.0075987587
        %v716 = vmul.f32 %v712, 0.0075987587
        %719 = vrot.lane.b32.xlu0 %v715, 127
        %v720 = vpop.permute.xlu0 %719
        %721 = vrot.lane.b32.xlu0 %v716, 127
        %v722 = vpop.permute.xlu0 %721
        %v725 = vadd.f32 %v713, %v720
        %v726 = vadd.f32 %v714, %v722
        %v727 = vmul.f32 %v711, 0.036000773
        %v728 = vmul.f32 %v712, 0.036000773
        %731 = vrot.lane.b32.xlu0 %v727, 126
        %v732 = vpop.permute.xlu0 %731
        %733 = vrot.lane.b32.xlu0 %v728, 126
        %v734 = vpop.permute.xlu0 %733
        %v737 = vadd.f32 %v725, %v732
        %v738 = vadd.f32 %v726, %v734
        %v739 = vmul.f32 %v711, 0.109360695
        %v740 = vmul.f32 %v712, 0.109360695
        %743 = vrot.lane.b32.xlu0 %v739, 125
        %v744 = vpop.permute.xlu0 %743
        %745 = vrot.lane.b32.xlu0 %v740, 125
        %v746 = vpop.permute.xlu0 %745
        %v749 = vadd.f32 %v737, %v744
        %v750 = vadd.f32 %v738, %v746
        %v751 = vmul.f32 %v711, 0.21300554
        %v752 = vmul.f32 %v712, 0.21300554
        %755 = vrot.lane.b32.xlu0 %v751, 124
        %v756 = vpop.permute.xlu0 %755
        %757 = vrot.lane.b32.xlu0 %v752, 124
        %v758 = vpop.permute.xlu0 %757
        %v761 = vadd.f32 %v749, %v756
        %v762 = vadd.f32 %v750, %v758
        %v763 = vmul.f32 %v711, 0.26601174
        %v764 = vmul.f32 %v712, 0.26601174
        %767 = vrot.lane.b32.xlu0 %v763, 123
        %v768 = vpop.permute.xlu0 %767
        %769 = vrot.lane.b32.xlu0 %v764, 123
        %v770 = vpop.permute.xlu0 %769
        %v773 = vadd.f32 %v761, %v768
        %v774 = vadd.f32 %v762, %v770
        %775 = vrot.lane.b32.xlu0 %v751, 122
        %v776 = vpop.permute.xlu0 %775
        %777 = vrot.lane.b32.xlu0 %v752, 122
        %v778 = vpop.permute.xlu0 %777
        %v781 = vadd.f32 %v773, %v776
        %v782 = vadd.f32 %v774, %v778
        %783 = vrot.lane.b32.xlu0 %v739, 121
        %v784 = vpop.permute.xlu0 %783
        %785 = vrot.lane.b32.xlu0 %v740, 121
        %v786 = vpop.permute.xlu0 %785
        %v789 = vadd.f32 %v781, %v784
        %v790 = vadd.f32 %v782, %v786
        %791 = vrot.lane.b32.xlu0 %v727, 120
        %v792 = vpop.permute.xlu0 %791
        %793 = vrot.lane.b32.xlu0 %v728, 120
        %v794 = vpop.permute.xlu0 %793
        %v797 = vadd.f32 %v789, %v792
        %v798 = vadd.f32 %v790, %v794
        %799 = vrot.lane.b32.xlu0 %v715, 119
        %v800 = vpop.permute.xlu0 %799
        %801 = vrot.lane.b32.xlu0 %v716, 119
        %v802 = vpop.permute.xlu0 %801
        %v805 = vadd.f32 %v797, %v800
        %v806 = vadd.f32 %v798, %v802
        %809 = vrot.lane.b32.xlu0 %v713, 118
        %v810 = vpop.permute.xlu0 %809
        %811 = vrot.lane.b32.xlu0 %v714, 118
        %v812 = vpop.permute.xlu0 %811
        %v815 = vadd.f32 %v805, %v810
        %v816 = vadd.f32 %v806, %v812
        %v817 = vmul.f32 %v639, %v639
        %v818 = vmul.f32 %v640, %v640
        %v819 = vsub.f32 %v815, %v817
        %v820 = vsub.f32 %v816, %v818
        %vm821 = vcmask 130048
        %822 = vst.msk [vmem:[#allocation3] sm:$0xff] %vm821, %v639
        %823 = vst.msk [vmem:[#allocation3 + $0x8] sm:$0xff] %vm821, %v640
        %824 = vst.msk [vmem:[#allocation4] sm:$0xff] %vm821, %v819
        %825 = vst.msk [vmem:[#allocation4 + $0x8] sm:$0xff] %vm821, %v820
        %v826 = vld [vmem:[%s358] sm:$0xff]
        %v827 = vld [vmem:[%s358 + $0x8] sm:$0xff]
        %830 = vrot.lane.b32.xlu0 %v826, 5
        %v831 = vpop.permute.xlu0 %830
        %832 = vrot.lane.b32.xlu0 %v827, 5
        %v833 = vpop.permute.xlu0 %832
        %836 = vst.msk [vmem:[#allocation2 + $0x5] sm:$0xff] %vm474, %v831
        %837 = vst.msk [vmem:[#allocation2 + $0xd] sm:$0xff] %vm474, %v833
        %v838 = vld [vmem:[#allocation2 + $0x4] sm:$0xff]
        %v839 = vld [vmem:[#allocation2 + $0xc] sm:$0xff]
        %v840 = vld [vmem:[#allocation2 + $0x5] sm:$0xff]
        %v841 = vld [vmem:[#allocation2 + $0xd] sm:$0xff]
        %v842 = vld [vmem:[#allocation2 + $0x6] sm:$0xff]
        %v843 = vld [vmem:[#allocation2 + $0xe] sm:$0xff]
        %v844 = vmul.f32 %v840, 2.0
        %v845 = vmul.f32 %v841, 2.0
        %v846 = vadd.f32 %v838, %v844
        %v847 = vadd.f32 %v839, %v845
        %v848 = vadd.f32 %v846, %v842
        %v849 = vadd.f32 %v847, %v843
        %v850 = vsub.f32 %v838, %v842
        %v851 = vsub.f32 %v839, %v843
        %854 = vrot.lane.b32.xlu0 %v848, 2
        %v855 = vpop.permute.xlu0 %854
        %856 = vrot.lane.b32.xlu0 %v849, 2
        %v857 = vpop.permute.xlu0 %856
        %v860 = vsub.f32 %v848, %v855
        %v861 = vsub.f32 %v849, %v857
        %v862 = vmul.f32 %v850, 2.0
        %v863 = vmul.f32 %v851, 2.0
        %866 = vrot.lane.b32.xlu0 %v862, 127
        %v867 = vpop.permute.xlu0 %866
        %868 = vrot.lane.b32.xlu0 %v863, 127
        %v869 = vpop.permute.xlu0 %868
        %v872 = vadd.f32 %v850, %v867
        %v873 = vadd.f32 %v851, %v869
        %876 = vrot.lane.b32.xlu0 %v850, 126
        %v877 = vpop.permute.xlu0 %876
        %878 = vrot.lane.b32.xlu0 %v851, 126
        %v879 = vpop.permute.xlu0 %878
        %v882 = vadd.f32 %v872, %v877
        %v883 = vadd.f32 %v873, %v879
        %v884 = vand.u32 2147483647, %v860
        %v885 = vand.u32 2147483647, %v861
        %v886 = vand.u32 2147483647, %v882
        %v887 = vand.u32 2147483647, %v883
        %890 = vrot.lane.b32.xlu0 %v886, 2
        %v891 = vpop.permute.xlu0 %890
        %892 = vrot.lane.b32.xlu0 %v887, 2
        %v893 = vpop.permute.xlu0 %892
        %v896 = vadd.f32 %v884, %v891
        %v897 = vadd.f32 %v885, %v893
        %v898 = vld [vmem:[#allocation5] sm:$0x1]
        %901 = vrot.lane.b32.xlu0 %v896, 122
        %v902 = vpop.permute.xlu0 %901
        %903 = vrot.lane.b32.xlu0 %v897, 122
        %v904 = vpop.permute.xlu0 %903
        %v907 = vsel %vm821, %v902, 0.0
        %v908 = vsel %vm821, %v904, 0.0
        %v909 = vadd.f32 %v907, %v908
        %910 = vadd.xlane.f32.xlu0 %v909
        %v911 = vpop.xlane.xlu0 %910
        %v912 = vrot.slane %v911, 4
        %v913 = vadd.f32 %v911, %v912
        %v914 = vrot.slane %v913, 2
        %v915 = vadd.f32 %v913, %v914
        %v916 = vrot.slane %v915, 1
        %v917 = vadd.f32 %v915, %v916
        %s918 = vtos %v917
        %v919 = vstv %s918
        %v920 = vadd.f32 %v898, %v919
        %921 = vst [vmem:[#allocation5] sm:$0x1] %v920
        %v922 = vld [vmem:[#allocation2] sm:$0xff]
        %v923 = vld [vmem:[#allocation2 + $0x8] sm:$0xff]
        %v924 = vmul.f32 %v922, 0.0010283802
        %v925 = vmul.f32 %v923, 0.0010283802
        %v926 = vld [vmem:[#allocation2 + $0x1] sm:$0xff]
        %v927 = vld [vmem:[#allocation2 + $0x9] sm:$0xff]
        %v928 = vmul.f32 %v926, 0.0075987587
        %v929 = vmul.f32 %v927, 0.0075987587
        %v930 = vadd.f32 %v924, %v928
        %v931 = vadd.f32 %v925, %v929
        %v932 = vld [vmem:[#allocation2 + $0x2] sm:$0xff]
        %v933 = vld [vmem:[#allocation2 + $0xa] sm:$0xff]
        %v934 = vmul.f32 %v932, 0.036000773
        %v935 = vmul.f32 %v933, 0.036000773
        %v936 = vadd.f32 %v930, %v934
        %v937 = vadd.f32 %v931, %v935
        %v938 = vld [vmem:[#allocation2 + $0x3] sm:$0xff]
        %v939 = vld [vmem:[#allocation2 + $0xb] sm:$0xff]
        %v940 = vmul.f32 %v938, 0.109360695
        %v941 = vmul.f32 %v939, 0.109360695
        %v942 = vadd.f32 %v936, %v940
        %v943 = vadd.f32 %v937, %v941
        %v944 = vld [vmem:[#allocation2 + $0x4] sm:$0xff]
        %v945 = vld [vmem:[#allocation2 + $0xc] sm:$0xff]
        %v946 = vmul.f32 %v944, 0.21300554
        %v947 = vmul.f32 %v945, 0.21300554
        %v948 = vadd.f32 %v942, %v946
        %v949 = vadd.f32 %v943, %v947
        %v950 = vld [vmem:[#allocation2 + $0x5] sm:$0xff]
        %v951 = vld [vmem:[#allocation2 + $0xd] sm:$0xff]
        %v952 = vmul.f32 %v950, 0.26601174
        %v953 = vmul.f32 %v951, 0.26601174
        %v954 = vadd.f32 %v948, %v952
        %v955 = vadd.f32 %v949, %v953
        %v956 = vld [vmem:[#allocation2 + $0x6] sm:$0xff]
        %v957 = vld [vmem:[#allocation2 + $0xe] sm:$0xff]
        %v958 = vmul.f32 %v956, 0.21300554
        %v959 = vmul.f32 %v957, 0.21300554
        %v960 = vadd.f32 %v954, %v958
        %v961 = vadd.f32 %v955, %v959
        %v962 = vld [vmem:[#allocation2 + $0x7] sm:$0xff]
        %v963 = vld [vmem:[#allocation2 + $0xf] sm:$0xff]
        %v964 = vmul.f32 %v962, 0.109360695
        %v965 = vmul.f32 %v963, 0.109360695
        %v966 = vadd.f32 %v960, %v964
        %v967 = vadd.f32 %v961, %v965
        %v968 = vld [vmem:[#allocation2 + $0x10] sm:$0xff]
        %v969 = vmul.f32 %v923, 0.036000773
        %v970 = vmul.f32 %v968, 0.036000773
        %v971 = vadd.f32 %v966, %v969
        %v972 = vadd.f32 %v967, %v970
        %v973 = vld [vmem:[#allocation2 + $0x11] sm:$0xff]
        %v974 = vmul.f32 %v973, 0.0075987587
        %v975 = vadd.f32 %v971, %v929
        %v976 = vadd.f32 %v972, %v974
        %v977 = vld [vmem:[#allocation2 + $0x12] sm:$0xff]
        %v978 = vmul.f32 %v933, 0.0010283802
        %v979 = vmul.f32 %v977, 0.0010283802
        %v980 = vadd.f32 %v975, %v978
        %v981 = vadd.f32 %v976, %v979
        %v982 = vmul.f32 %v980, 0.0010283802
        %v983 = vmul.f32 %v981, 0.0010283802
        %v984 = vmul.f32 %v980, 0.0075987587
        %v985 = vmul.f32 %v981, 0.0075987587
        %988 = vrot.lane.b32.xlu0 %v984, 127
        %v989 = vpop.permute.xlu0 %988
        %990 = vrot.lane.b32.xlu0 %v985, 127
        %v991 = vpop.permute.xlu0 %990
        %v994 = vadd.f32 %v982, %v989
        %v995 = vadd.f32 %v983, %v991
        %v996 = vmul.f32 %v980, 0.036000773
        %v997 = vmul.f32 %v981, 0.036000773
        %1000 = vrot.lane.b32.xlu0 %v996, 126
        %v1001 = vpop.permute.xlu0 %1000
        %1002 = vrot.lane.b32.xlu0 %v997, 126
        %v1003 = vpop.permute.xlu0 %1002
        %v1006 = vadd.f32 %v994, %v1001
        %v1007 = vadd.f32 %v995, %v1003
        %v1008 = vmul.f32 %v980, 0.109360695
        %v1009 = vmul.f32 %v981, 0.109360695
        %1012 = vrot.lane.b32.xlu0 %v1008, 125
        %v1013 = vpop.permute.xlu0 %1012
        %1014 = vrot.lane.b32.xlu0 %v1009, 125
        %v1015 = vpop.permute.xlu0 %1014
        %v1018 = vadd.f32 %v1006, %v1013
        %v1019 = vadd.f32 %v1007, %v1015
        %v1020 = vmul.f32 %v980, 0.21300554
        %v1021 = vmul.f32 %v981, 0.21300554
        %1024 = vrot.lane.b32.xlu0 %v1020, 124
        %v1025 = vpop.permute.xlu0 %1024
        %1026 = vrot.lane.b32.xlu0 %v1021, 124
        %v1027 = vpop.permute.xlu0 %1026
        %v1030 = vadd.f32 %v1018, %v1025
        %v1031 = vadd.f32 %v1019, %v1027
        %v1032 = vmul.f32 %v980, 0.26601174
        %v1033 = vmul.f32 %v981, 0.26601174
        %1036 = vrot.lane.b32.xlu0 %v1032, 123
        %v1037 = vpop.permute.xlu0 %1036
        %1038 = vrot.lane.b32.xlu0 %v1033, 123
        %v1039 = vpop.permute.xlu0 %1038
        %v1042 = vadd.f32 %v1030, %v1037
        %v1043 = vadd.f32 %v1031, %v1039
        %1044 = vrot.lane.b32.xlu0 %v1020, 122
        %v1045 = vpop.permute.xlu0 %1044
        %1046 = vrot.lane.b32.xlu0 %v1021, 122
        %v1047 = vpop.permute.xlu0 %1046
        %v1050 = vadd.f32 %v1042, %v1045
        %v1051 = vadd.f32 %v1043, %v1047
        %1052 = vrot.lane.b32.xlu0 %v1008, 121
        %v1053 = vpop.permute.xlu0 %1052
        %1054 = vrot.lane.b32.xlu0 %v1009, 121
        %v1055 = vpop.permute.xlu0 %1054
        %v1058 = vadd.f32 %v1050, %v1053
        %v1059 = vadd.f32 %v1051, %v1055
        %1060 = vrot.lane.b32.xlu0 %v996, 120
        %v1061 = vpop.permute.xlu0 %1060
        %1062 = vrot.lane.b32.xlu0 %v997, 120
        %v1063 = vpop.permute.xlu0 %1062
        %v1066 = vadd.f32 %v1058, %v1061
        %v1067 = vadd.f32 %v1059, %v1063
        %1068 = vrot.lane.b32.xlu0 %v984, 119
        %v1069 = vpop.permute.xlu0 %1068
        %1070 = vrot.lane.b32.xlu0 %v985, 119
        %v1071 = vpop.permute.xlu0 %1070
        %v1074 = vadd.f32 %v1066, %v1069
        %v1075 = vadd.f32 %v1067, %v1071
        %1078 = vrot.lane.b32.xlu0 %v982, 118
        %v1079 = vpop.permute.xlu0 %1078
        %1080 = vrot.lane.b32.xlu0 %v983, 118
        %v1081 = vpop.permute.xlu0 %1080
        %v1084 = vadd.f32 %v1074, %v1079
        %v1085 = vadd.f32 %v1075, %v1081
        %v1086 = vmul.f32 %v826, %v826
        %v1087 = vmul.f32 %v827, %v827
        %1090 = vrot.lane.b32.xlu0 %v1086, 5
        %v1091 = vpop.permute.xlu0 %1090
        %1092 = vrot.lane.b32.xlu0 %v1087, 5
        %v1093 = vpop.permute.xlu0 %1092
        %1096 = vst.msk [vmem:[#allocation2 + $0x5] sm:$0xff] %vm474, %v1091
        %1097 = vst.msk [vmem:[#allocation2 + $0xd] sm:$0xff] %vm474, %v1093
        %v1098 = vld [vmem:[#allocation2] sm:$0xff]
        %v1099 = vld [vmem:[#allocation2 + $0x8] sm:$0xff]
        %v1100 = vmul.f32 %v1098, 0.0010283802
        %v1101 = vmul.f32 %v1099, 0.0010283802
        %v1102 = vld [vmem:[#allocation2 + $0x1] sm:$0xff]
        %v1103 = vld [vmem:[#allocation2 + $0x9] sm:$0xff]
        %v1104 = vmul.f32 %v1102, 0.0075987587
        %v1105 = vmul.f32 %v1103, 0.0075987587
        %v1106 = vadd.f32 %v1100, %v1104
        %v1107 = vadd.f32 %v1101, %v1105
        %v1108 = vld [vmem:[#allocation2 + $0x2] sm:$0xff]
        %v1109 = vld [vmem:[#allocation2 + $0xa] sm:$0xff]
        %v1110 = vmul.f32 %v1108, 0.036000773
        %v1111 = vmul.f32 %v1109, 0.036000773
        %v1112 = vadd.f32 %v1106, %v1110
        %v1113 = vadd.f32 %v1107, %v1111
        %v1114 = vld [vmem:[#allocation2 + $0x3] sm:$0xff]
        %v1115 = vld [vmem:[#allocation2 + $0xb] sm:$0xff]
        %v1116 = vmul.f32 %v1114, 0.109360695
        %v1117 = vmul.f32 %v1115, 0.109360695
        %v1118 = vadd.f32 %v1112, %v1116
        %v1119 = vadd.f32 %v1113, %v1117
        %v1120 = vld [vmem:[#allocation2 + $0x4] sm:$0xff]
        %v1121 = vld [vmem:[#allocation2 + $0xc] sm:$0xff]
        %v1122 = vmul.f32 %v1120, 0.21300554
        %v1123 = vmul.f32 %v1121, 0.21300554
        %v1124 = vadd.f32 %v1118, %v1122
        %v1125 = vadd.f32 %v1119, %v1123
        %v1126 = vld [vmem:[#allocation2 + $0x5] sm:$0xff]
        %v1127 = vld [vmem:[#allocation2 + $0xd] sm:$0xff]
        %v1128 = vmul.f32 %v1126, 0.26601174
        %v1129 = vmul.f32 %v1127, 0.26601174
        %v1130 = vadd.f32 %v1124, %v1128
        %v1131 = vadd.f32 %v1125, %v1129
        %v1132 = vld [vmem:[#allocation2 + $0x6] sm:$0xff]
        %v1133 = vld [vmem:[#allocation2 + $0xe] sm:$0xff]
        %v1134 = vmul.f32 %v1132, 0.21300554
        %v1135 = vmul.f32 %v1133, 0.21300554
        %v1136 = vadd.f32 %v1130, %v1134
        %v1137 = vadd.f32 %v1131, %v1135
        %v1138 = vld [vmem:[#allocation2 + $0x7] sm:$0xff]
        %v1139 = vld [vmem:[#allocation2 + $0xf] sm:$0xff]
        %v1140 = vmul.f32 %v1138, 0.109360695
        %v1141 = vmul.f32 %v1139, 0.109360695
        %v1142 = vadd.f32 %v1136, %v1140
        %v1143 = vadd.f32 %v1137, %v1141
        %v1144 = vld [vmem:[#allocation2 + $0x10] sm:$0xff]
        %v1145 = vmul.f32 %v1099, 0.036000773
        %v1146 = vmul.f32 %v1144, 0.036000773
        %v1147 = vadd.f32 %v1142, %v1145
        %v1148 = vadd.f32 %v1143, %v1146
        %v1149 = vld [vmem:[#allocation2 + $0x11] sm:$0xff]
        %v1150 = vmul.f32 %v1149, 0.0075987587
        %v1151 = vadd.f32 %v1147, %v1105
        %v1152 = vadd.f32 %v1148, %v1150
        %v1153 = vld [vmem:[#allocation2 + $0x12] sm:$0xff]
        %v1154 = vmul.f32 %v1109, 0.0010283802
        %v1155 = vmul.f32 %v1153, 0.0010283802
        %v1156 = vadd.f32 %v1151, %v1154
        %v1157 = vadd.f32 %v1152, %v1155
        %v1158 = vmul.f32 %v1156, 0.0010283802
        %v1159 = vmul.f32 %v1157, 0.0010283802
        %v1160 = vmul.f32 %v1156, 0.0075987587
        %v1161 = vmul.f32 %v1157, 0.0075987587
        %1164 = vrot.lane.b32.xlu0 %v1160, 127
        %v1165 = vpop.permute.xlu0 %1164
        %1166 = vrot.lane.b32.xlu0 %v1161, 127
        %v1167 = vpop.permute.xlu0 %1166
        %v1170 = vadd.f32 %v1158, %v1165
        %v1171 = vadd.f32 %v1159, %v1167
        %v1172 = vmul.f32 %v1156, 0.036000773
        %v1173 = vmul.f32 %v1157, 0.036000773
        %1176 = vrot.lane.b32.xlu0 %v1172, 126
        %v1177 = vpop.permute.xlu0 %1176
        %1178 = vrot.lane.b32.xlu0 %v1173, 126
        %v1179 = vpop.permute.xlu0 %1178
        %v1182 = vadd.f32 %v1170, %v1177
        %v1183 = vadd.f32 %v1171, %v1179
        %v1184 = vmul.f32 %v1156, 0.109360695
        %v1185 = vmul.f32 %v1157, 0.109360695
        %1188 = vrot.lane.b32.xlu0 %v1184, 125
        %v1189 = vpop.permute.xlu0 %1188
        %1190 = vrot.lane.b32.xlu0 %v1185, 125
        %v1191 = vpop.permute.xlu0 %1190
        %v1194 = vadd.f32 %v1182, %v1189
        %v1195 = vadd.f32 %v1183, %v1191
        %v1196 = vmul.f32 %v1156, 0.21300554
        %v1197 = vmul.f32 %v1157, 0.21300554
        %1200 = vrot.lane.b32.xlu0 %v1196, 124
        %v1201 = vpop.permute.xlu0 %1200
        %1202 = vrot.lane.b32.xlu0 %v1197, 124
        %v1203 = vpop.permute.xlu0 %1202
        %v1206 = vadd.f32 %v1194, %v1201
        %v1207 = vadd.f32 %v1195, %v1203
        %v1208 = vmul.f32 %v1156, 0.26601174
        %v1209 = vmul.f32 %v1157, 0.26601174
        %1212 = vrot.lane.b32.xlu0 %v1208, 123
        %v1213 = vpop.permute.xlu0 %1212
        %1214 = vrot.lane.b32.xlu0 %v1209, 123
        %v1215 = vpop.permute.xlu0 %1214
        %v1218 = vadd.f32 %v1206, %v1213
        %v1219 = vadd.f32 %v1207, %v1215
        %1220 = vrot.lane.b32.xlu0 %v1196, 122
        %v1221 = vpop.permute.xlu0 %1220
        %1222 = vrot.lane.b32.xlu0 %v1197, 122
        %v1223 = vpop.permute.xlu0 %1222
        %v1226 = vadd.f32 %v1218, %v1221
        %v1227 = vadd.f32 %v1219, %v1223
        %1228 = vrot.lane.b32.xlu0 %v1184, 121
        %v1229 = vpop.permute.xlu0 %1228
        %1230 = vrot.lane.b32.xlu0 %v1185, 121
        %v1231 = vpop.permute.xlu0 %1230
        %v1234 = vadd.f32 %v1226, %v1229
        %v1235 = vadd.f32 %v1227, %v1231
        %1236 = vrot.lane.b32.xlu0 %v1172, 120
        %v1237 = vpop.permute.xlu0 %1236
        %1238 = vrot.lane.b32.xlu0 %v1173, 120
        %v1239 = vpop.permute.xlu0 %1238
        %v1242 = vadd.f32 %v1234, %v1237
        %v1243 = vadd.f32 %v1235, %v1239
        %1244 = vrot.lane.b32.xlu0 %v1160, 119
        %v1245 = vpop.permute.xlu0 %1244
        %1246 = vrot.lane.b32.xlu0 %v1161, 119
        %v1247 = vpop.permute.xlu0 %1246
        %v1250 = vadd.f32 %v1242, %v1245
        %v1251 = vadd.f32 %v1243, %v1247
        %1254 = vrot.lane.b32.xlu0 %v1158, 118
        %v1255 = vpop.permute.xlu0 %1254
        %1256 = vrot.lane.b32.xlu0 %v1159, 118
        %v1257 = vpop.permute.xlu0 %1256
        %v1260 = vadd.f32 %v1250, %v1255
        %v1261 = vadd.f32 %v1251, %v1257
        %v1262 = vmul.f32 %v1084, %v1084
        %v1263 = vmul.f32 %v1085, %v1085
        %v1264 = vsub.f32 %v1260, %v1262
        %v1265 = vsub.f32 %v1261, %v1263
        %v1266 = vld [vmem:[#allocation3] sm:$0xff]
        %v1267 = vld [vmem:[#allocation3 + $0x8] sm:$0xff]
        %v1268 = vld [vmem:[#allocation4] sm:$0xff]
        %v1269 = vld [vmem:[#allocation4 + $0x8] sm:$0xff]
        %v1270 = vmul.f32 %v826, %v464
        %v1271 = vmul.f32 %v827, %v465
        %1274 = vrot.lane.b32.xlu0 %v1270, 5
        %v1275 = vpop.permute.xlu0 %1274
        %1276 = vrot.lane.b32.xlu0 %v1271, 5
        %v1277 = vpop.permute.xlu0 %1276
        %1280 = vst.msk [vmem:[#allocation2 + $0x5] sm:$0xff] %vm474, %v1275
        %1281 = vst.msk [vmem:[#allocation2 + $0xd] sm:$0xff] %vm474, %v1277
        %v1282 = vld [vmem:[#allocation2] sm:$0xff]
        %v1283 = vld [vmem:[#allocation2 + $0x8] sm:$0xff]
        %v1284 = vmul.f32 %v1282, 0.0010283802
        %v1285 = vmul.f32 %v1283, 0.0010283802
        %v1286 = vld [vmem:[#allocation2 + $0x1] sm:$0xff]
        %v1287 = vld [vmem:[#allocation2 + $0x9] sm:$0xff]
        %v1288 = vmul.f32 %v1286, 0.0075987587
        %v1289 = vmul.f32 %v1287, 0.0075987587
        %v1290 = vadd.f32 %v1284, %v1288
        %v1291 = vadd.f32 %v1285, %v1289
        %v1292 = vld [vmem:[#allocation2 + $0x2] sm:$0xff]
        %v1293 = vld [vmem:[#allocation2 + $0xa] sm:$0xff]
        %v1294 = vmul.f32 %v1292, 0.036000773
        %v1295 = vmul.f32 %v1293, 0.036000773
        %v1296 = vadd.f32 %v1290, %v1294
        %v1297 = vadd.f32 %v1291, %v1295
        %v1298 = vld [vmem:[#allocation2 + $0x3] sm:$0xff]
        %v1299 = vld [vmem:[#allocation2 + $0xb] sm:$0xff]
        %v1300 = vmul.f32 %v1298, 0.109360695
        %v1301 = vmul.f32 %v1299, 0.109360695
        %v1302 = vadd.f32 %v1296, %v1300
        %v1303 = vadd.f32 %v1297, %v1301
        %v1304 = vld [vmem:[#allocation2 + $0x4] sm:$0xff]
        %v1305 = vld [vmem:[#allocation2 + $0xc] sm:$0xff]
        %v1306 = vmul.f32 %v1304, 0.21300554
        %v1307 = vmul.f32 %v1305, 0.21300554
        %v1308 = vadd.f32 %v1302, %v1306
        %v1309 = vadd.f32 %v1303, %v1307
        %v1310 = vld [vmem:[#allocation2 + $0x5] sm:$0xff]
        %v1311 = vld [vmem:[#allocation2 + $0xd] sm:$0xff]
        %v1312 = vmul.f32 %v1310, 0.26601174
        %v1313 = vmul.f32 %v1311, 0.26601174
        %v1314 = vadd.f32 %v1308, %v1312
        %v1315 = vadd.f32 %v1309, %v1313
        %v1316 = vld [vmem:[#allocation2 + $0x6] sm:$0xff]
        %v1317 = vld [vmem:[#allocation2 + $0xe] sm:$0xff]
        %v1318 = vmul.f32 %v1316, 0.21300554
        %v1319 = vmul.f32 %v1317, 0.21300554
        %v1320 = vadd.f32 %v1314, %v1318
        %v1321 = vadd.f32 %v1315, %v1319
        %v1322 = vld [vmem:[#allocation2 + $0x7] sm:$0xff]
        %v1323 = vld [vmem:[#allocation2 + $0xf] sm:$0xff]
        %v1324 = vmul.f32 %v1322, 0.109360695
        %v1325 = vmul.f32 %v1323, 0.109360695
        %v1326 = vadd.f32 %v1320, %v1324
        %v1327 = vadd.f32 %v1321, %v1325
        %v1328 = vld [vmem:[#allocation2 + $0x10] sm:$0xff]
        %v1329 = vmul.f32 %v1283, 0.036000773
        %v1330 = vmul.f32 %v1328, 0.036000773
        %v1331 = vadd.f32 %v1326, %v1329
        %v1332 = vadd.f32 %v1327, %v1330
        %v1333 = vld [vmem:[#allocation2 + $0x11] sm:$0xff]
        %v1334 = vmul.f32 %v1333, 0.0075987587
        %v1335 = vadd.f32 %v1331, %v1289
        %v1336 = vadd.f32 %v1332, %v1334
        %v1337 = vld [vmem:[#allocation2 + $0x12] sm:$0xff]
        %v1338 = vmul.f32 %v1293, 0.0010283802
        %v1339 = vmul.f32 %v1337, 0.0010283802
        %v1340 = vadd.f32 %v1335, %v1338
        %v1341 = vadd.f32 %v1336, %v1339
        %v1342 = vmul.f32 %v1340, 0.0010283802
        %v1343 = vmul.f32 %v1341, 0.0010283802
        %v1344 = vmul.f32 %v1340, 0.0075987587
        %v1345 = vmul.f32 %v1341, 0.0075987587
        %1348 = vrot.lane.b32.xlu0 %v1344, 127
        %v1349 = vpop.permute.xlu0 %1348
        %1350 = vrot.lane.b32.xlu0 %v1345, 127
        %v1351 = vpop.permute.xlu0 %1350
        %v1354 = vadd.f32 %v1342, %v1349
        %v1355 = vadd.f32 %v1343, %v1351
        %v1356 = vmul.f32 %v1340, 0.036000773
        %v1357 = vmul.f32 %v1341, 0.036000773
        %1360 = vrot.lane.b32.xlu0 %v1356, 126
        %v1361 = vpop.permute.xlu0 %1360
        %1362 = vrot.lane.b32.xlu0 %v1357, 126
        %v1363 = vpop.permute.xlu0 %1362
        %v1366 = vadd.f32 %v1354, %v1361
        %v1367 = vadd.f32 %v1355, %v1363
        %v1368 = vmul.f32 %v1340, 0.109360695
        %v1369 = vmul.f32 %v1341, 0.109360695
        %1372 = vrot.lane.b32.xlu0 %v1368, 125
        %v1373 = vpop.permute.xlu0 %1372
        %1374 = vrot.lane.b32.xlu0 %v1369, 125
        %v1375 = vpop.permute.xlu0 %1374
        %v1378 = vadd.f32 %v1366, %v1373
        %v1379 = vadd.f32 %v1367, %v1375
        %v1380 = vmul.f32 %v1340, 0.21300554
        %v1381 = vmul.f32 %v1341, 0.21300554
        %1384 = vrot.lane.b32.xlu0 %v1380, 124
        %v1385 = vpop.permute.xlu0 %1384
        %1386 = vrot.lane.b32.xlu0 %v1381, 124
        %v1387 = vpop.permute.xlu0 %1386
        %v1390 = vadd.f32 %v1378, %v1385
        %v1391 = vadd.f32 %v1379, %v1387
        %v1392 = vmul.f32 %v1340, 0.26601174
        %v1393 = vmul.f32 %v1341, 0.26601174
        %1396 = vrot.lane.b32.xlu0 %v1392, 123
        %v1397 = vpop.permute.xlu0 %1396
        %1398 = vrot.lane.b32.xlu0 %v1393, 123
        %v1399 = vpop.permute.xlu0 %1398
        %v1402 = vadd.f32 %v1390, %v1397
        %v1403 = vadd.f32 %v1391, %v1399
        %1404 = vrot.lane.b32.xlu0 %v1380, 122
        %v1405 = vpop.permute.xlu0 %1404
        %1406 = vrot.lane.b32.xlu0 %v1381, 122
        %v1407 = vpop.permute.xlu0 %1406
        %v1410 = vadd.f32 %v1402, %v1405
        %v1411 = vadd.f32 %v1403, %v1407
        %1412 = vrot.lane.b32.xlu0 %v1368, 121
        %v1413 = vpop.permute.xlu0 %1412
        %1414 = vrot.lane.b32.xlu0 %v1369, 121
        %v1415 = vpop.permute.xlu0 %1414
        %v1418 = vadd.f32 %v1410, %v1413
        %v1419 = vadd.f32 %v1411, %v1415
        %1420 = vrot.lane.b32.xlu0 %v1356, 120
        %v1421 = vpop.permute.xlu0 %1420
        %1422 = vrot.lane.b32.xlu0 %v1357, 120
        %v1423 = vpop.permute.xlu0 %1422
        %v1426 = vadd.f32 %v1418, %v1421
        %v1427 = vadd.f32 %v1419, %v1423
        %1428 = vrot.lane.b32.xlu0 %v1344, 119
        %v1429 = vpop.permute.xlu0 %1428
        %1430 = vrot.lane.b32.xlu0 %v1345, 119
        %v1431 = vpop.permute.xlu0 %1430
        %v1434 = vadd.f32 %v1426, %v1429
        %v1435 = vadd.f32 %v1427, %v1431
        %1438 = vrot.lane.b32.xlu0 %v1342, 118
        %v1439 = vpop.permute.xlu0 %1438
        %1440 = vrot.lane.b32.xlu0 %v1343, 118
        %v1441 = vpop.permute.xlu0 %1440
        %v1444 = vadd.f32 %v1434, %v1439
        %v1445 = vadd.f32 %v1435, %v1441
        %v1446 = vmul.f32 %v1084, %v1266
        %v1447 = vmul.f32 %v1085, %v1267
        %v1448 = vsub.f32 %v1444, %v1446
        %v1449 = vsub.f32 %v1445, %v1447
        %v1450 = vmul.f32 %v1084, 2.0
        %v1451 = vmul.f32 %v1085, 2.0
        %v1452 = vmul.f32 %v1450, %v1266
        %v1453 = vmul.f32 %v1451, %v1267
        %v1454 = vadd.f32 %v1452, 0.0001
        %v1455 = vadd.f32 %v1453, 0.0001
        %v1456 = vmul.f32 %v1448, 2.0
        %v1457 = vmul.f32 %v1449, 2.0
        %v1458 = vadd.f32 %v1456, 0.0009
        %v1459 = vadd.f32 %v1457, 0.0009
        %v1460 = vmul.f32 %v1454, %v1458
        %v1461 = vmul.f32 %v1455, %v1459
        %v1462 = vmul.f32 %v1266, %v1266
        %v1463 = vmul.f32 %v1267, %v1267
        %v1464 = vadd.f32 %v1262, %v1462
        %v1465 = vadd.f32 %v1263, %v1463
        %v1466 = vadd.f32 %v1464, 0.0001
        %v1467 = vadd.f32 %v1465, 0.0001
        %v1468 = vadd.f32 %v1264, %v1268
        %v1469 = vadd.f32 %v1265, %v1269
        %v1470 = vadd.f32 %v1468, 0.0009
        %v1471 = vadd.f32 %v1469, 0.0009
        %v1472 = vmul.f32 %v1466, %v1470
        %v1473 = vmul.f32 %v1467, %v1471
        %v1474 = vrcp.pop %v1472
        %v1475 = vmul.f32 %v1460, %v1474
        %v1476 = vrcp.pop %v1473
        %v1477 = vmul.f32 %v1461, %v1476
        %v1478 = vld [vmem:[#allocation6] sm:$0x1]
        %v1479 = vsel %vm821, %v1475, 0.0
        %v1480 = vsel %vm821, %v1477, 0.0
        %v1481 = vadd.f32 %v1479, %v1480
        %1482 = vadd.xlane.f32.xlu0 %v1481
        %v1483 = vpop.xlane.xlu0 %1482
        %v1484 = vrot.slane %v1483, 4
        %v1485 = vadd.f32 %v1483, %v1484
        %v1486 = vrot.slane %v1485, 2
        %v1487 = vadd.f32 %v1485, %v1486
        %v1488 = vrot.slane %v1487, 1
        %v1489 = vadd.f32 %v1487, %v1488
        %s1490 = vtos %v1489
        %v1491 = vstv %s1490
        %v1492 = vadd.f32 %v1478, %v1491
        %1493 = vst [vmem:[#allocation6] sm:$0x1] %v1492
        %v1494 = vld [vmem:[%s367] sm:$0xff]
        %v1495 = vld [vmem:[%s367 + $0x8] sm:$0xff]
        %1498 = vrot.lane.b32.xlu0 %v1494, 5
        %v1499 = vpop.permute.xlu0 %1498
        %1500 = vrot.lane.b32.xlu0 %v1495, 5
        %v1501 = vpop.permute.xlu0 %1500
        %1504 = vst.msk [vmem:[#allocation2 + $0x5] sm:$0xff] %vm474, %v1499
        %1505 = vst.msk [vmem:[#allocation2 + $0xd] sm:$0xff] %vm474, %v1501
        %v1506 = vld [vmem:[#allocation2 + $0x4] sm:$0xff]
        %v1507 = vld [vmem:[#allocation2 + $0xc] sm:$0xff]
        %v1508 = vld [vmem:[#allocation2 + $0x5] sm:$0xff]
        %v1509 = vld [vmem:[#allocation2 + $0xd] sm:$0xff]
        %v1510 = vld [vmem:[#allocation2 + $0x6] sm:$0xff]
        %v1511 = vld [vmem:[#allocation2 + $0xe] sm:$0xff]
        %v1512 = vmul.f32 %v1508, 2.0
        %v1513 = vmul.f32 %v1509, 2.0
        %v1514 = vadd.f32 %v1506, %v1512
        %v1515 = vadd.f32 %v1507, %v1513
        %v1516 = vadd.f32 %v1514, %v1510
        %v1517 = vadd.f32 %v1515, %v1511
        %v1518 = vsub.f32 %v1506, %v1510
        %v1519 = vsub.f32 %v1507, %v1511
        %1522 = vrot.lane.b32.xlu0 %v1516, 2
        %v1523 = vpop.permute.xlu0 %1522
        %1524 = vrot.lane.b32.xlu0 %v1517, 2
        %v1525 = vpop.permute.xlu0 %1524
        %v1528 = vsub.f32 %v1516, %v1523
        %v1529 = vsub.f32 %v1517, %v1525
        %v1530 = vmul.f32 %v1518, 2.0
        %v1531 = vmul.f32 %v1519, 2.0
        %1534 = vrot.lane.b32.xlu0 %v1530, 127
        %v1535 = vpop.permute.xlu0 %1534
        %1536 = vrot.lane.b32.xlu0 %v1531, 127
        %v1537 = vpop.permute.xlu0 %1536
        %v1540 = vadd.f32 %v1518, %v1535
        %v1541 = vadd.f32 %v1519, %v1537
        %1544 = vrot.lane.b32.xlu0 %v1518, 126
        %v1545 = vpop.permute.xlu0 %1544
        %1546 = vrot.lane.b32.xlu0 %v1519, 126
        %v1547 = vpop.permute.xlu0 %1546
        %v1550 = vadd.f32 %v1540, %v1545
        %v1551 = vadd.f32 %v1541, %v1547
        %v1552 = vand.u32 2147483647, %v1528
        %v1553 = vand.u32 2147483647, %v1529
        %v1554 = vand.u32 2147483647, %v1550
        %v1555 = vand.u32 2147483647, %v1551
        %1558 = vrot.lane.b32.xlu0 %v1554, 2
        %v1559 = vpop.permute.xlu0 %1558
        %1560 = vrot.lane.b32.xlu0 %v1555, 2
        %v1561 = vpop.permute.xlu0 %1560
        %v1564 = vadd.f32 %v1552, %v1559
        %v1565 = vadd.f32 %v1553, %v1561
        %v1566 = vld [vmem:[#allocation5 + $0x1] sm:$0x1]
        %1569 = vrot.lane.b32.xlu0 %v1564, 122
        %v1570 = vpop.permute.xlu0 %1569
        %1571 = vrot.lane.b32.xlu0 %v1565, 122
        %v1572 = vpop.permute.xlu0 %1571
        %v1575 = vsel %vm821, %v1570, 0.0
        %v1576 = vsel %vm821, %v1572, 0.0
        %v1577 = vadd.f32 %v1575, %v1576
        %1578 = vadd.xlane.f32.xlu0 %v1577
        %v1579 = vpop.xlane.xlu0 %1578
        %v1580 = vrot.slane %v1579, 4
        %v1581 = vadd.f32 %v1579, %v1580
        %v1582 = vrot.slane %v1581, 2
        %v1583 = vadd.f32 %v1581, %v1582
        %v1584 = vrot.slane %v1583, 1
        %v1585 = vadd.f32 %v1583, %v1584
        %s1586 = vtos %v1585
        %v1587 = vstv %s1586
        %v1588 = vadd.f32 %v1566, %v1587
        %1589 = vst [vmem:[#allocation5 + $0x1] sm:$0x1] %v1588
        %v1590 = vld [vmem:[#allocation2] sm:$0xff]
        %v1591 = vld [vmem:[#allocation2 + $0x8] sm:$0xff]
        %v1592 = vmul.f32 %v1590, 0.0010283802
        %v1593 = vmul.f32 %v1591, 0.0010283802
        %v1594 = vld [vmem:[#allocation2 + $0x1] sm:$0xff]
        %v1595 = vld [vmem:[#allocation2 + $0x9] sm:$0xff]
        %v1596 = vmul.f32 %v1594, 0.0075987587
        %v1597 = vmul.f32 %v1595, 0.0075987587
        %v1598 = vadd.f32 %v1592, %v1596
        %v1599 = vadd.f32 %v1593, %v1597
        %v1600 = vld [vmem:[#allocation2 + $0x2] sm:$0xff]
        %v1601 = vld [vmem:[#allocation2 + $0xa] sm:$0xff]
        %v1602 = vmul.f32 %v1600, 0.036000773
        %v1603 = vmul.f32 %v1601, 0.036000773
        %v1604 = vadd.f32 %v1598, %v1602
        %v1605 = vadd.f32 %v1599, %v1603
        %v1606 = vld [vmem:[#allocation2 + $0x3] sm:$0xff]
        %v1607 = vld [vmem:[#allocation2 + $0xb] sm:$0xff]
        %v1608 = vmul.f32 %v1606, 0.109360695
        %v1609 = vmul.f32 %v1607, 0.109360695
        %v1610 = vadd.f32 %v1604, %v1608
        %v1611 = vadd.f32 %v1605, %v1609
        %v1612 = vld [vmem:[#allocation2 + $0x4] sm:$0xff]
        %v1613 = vld [vmem:[#allocation2 + $0xc] sm:$0xff]
        %v1614 = vmul.f32 %v1612, 0.21300554
        %v1615 = vmul.f32 %v1613, 0.21300554
        %v1616 = vadd.f32 %v1610, %v1614
        %v1617 = vadd.f32 %v1611, %v1615
        %v1618 = vld [vmem:[#allocation2 + $0x5] sm:$0xff]
        %v1619 = vld [vmem:[#allocation2 + $0xd] sm:$0xff]
        %v1620 = vmul.f32 %v1618, 0.26601174
        %v1621 = vmul.f32 %v1619, 0.26601174
        %v1622 = vadd.f32 %v1616, %v1620
        %v1623 = vadd.f32 %v1617, %v1621
        %v1624 = vld [vmem:[#allocation2 + $0x6] sm:$0xff]
        %v1625 = vld [vmem:[#allocation2 + $0xe] sm:$0xff]
        %v1626 = vmul.f32 %v1624, 0.21300554
        %v1627 = vmul.f32 %v1625, 0.21300554
        %v1628 = vadd.f32 %v1622, %v1626
        %v1629 = vadd.f32 %v1623, %v1627
        %v1630 = vld [vmem:[#allocation2 + $0x7] sm:$0xff]
        %v1631 = vld [vmem:[#allocation2 + $0xf] sm:$0xff]
        %v1632 = vmul.f32 %v1630, 0.109360695
        %v1633 = vmul.f32 %v1631, 0.109360695
        %v1634 = vadd.f32 %v1628, %v1632
        %v1635 = vadd.f32 %v1629, %v1633
        %v1636 = vld [vmem:[#allocation2 + $0x10] sm:$0xff]
        %v1637 = vmul.f32 %v1591, 0.036000773
        %v1638 = vmul.f32 %v1636, 0.036000773
        %v1639 = vadd.f32 %v1634, %v1637
        %v1640 = vadd.f32 %v1635, %v1638
        %v1641 = vld [vmem:[#allocation2 + $0x11] sm:$0xff]
        %v1642 = vmul.f32 %v1641, 0.0075987587
        %v1643 = vadd.f32 %v1639, %v1597
        %v1644 = vadd.f32 %v1640, %v1642
        %v1645 = vld [vmem:[#allocation2 + $0x12] sm:$0xff]
        %v1646 = vmul.f32 %v1601, 0.0010283802
        %v1647 = vmul.f32 %v1645, 0.0010283802
        %v1648 = vadd.f32 %v1643, %v1646
        %v1649 = vadd.f32 %v1644, %v1647
        %v1650 = vmul.f32 %v1648, 0.0010283802
        %v1651 = vmul.f32 %v1649, 0.0010283802
        %v1652 = vmul.f32 %v1648, 0.0075987587
        %v1653 = vmul.f32 %v1649, 0.0075987587
        %1656 = vrot.lane.b32.xlu0 %v1652, 127
        %v1657 = vpop.permute.xlu0 %1656
        %1658 = vrot.lane.b32.xlu0 %v1653, 127
        %v1659 = vpop.permute.xlu0 %1658
        %v1662 = vadd.f32 %v1650, %v1657
        %v1663 = vadd.f32 %v1651, %v1659
        %v1664 = vmul.f32 %v1648, 0.036000773
        %v1665 = vmul.f32 %v1649, 0.036000773
        %1668 = vrot.lane.b32.xlu0 %v1664, 126
        %v1669 = vpop.permute.xlu0 %1668
        %1670 = vrot.lane.b32.xlu0 %v1665, 126
        %v1671 = vpop.permute.xlu0 %1670
        %v1674 = vadd.f32 %v1662, %v1669
        %v1675 = vadd.f32 %v1663, %v1671
        %v1676 = vmul.f32 %v1648, 0.109360695
        %v1677 = vmul.f32 %v1649, 0.109360695
        %1680 = vrot.lane.b32.xlu0 %v1676, 125
        %v1681 = vpop.permute.xlu0 %1680
        %1682 = vrot.lane.b32.xlu0 %v1677, 125
        %v1683 = vpop.permute.xlu0 %1682
        %v1686 = vadd.f32 %v1674, %v1681
        %v1687 = vadd.f32 %v1675, %v1683
        %v1688 = vmul.f32 %v1648, 0.21300554
        %v1689 = vmul.f32 %v1649, 0.21300554
        %1692 = vrot.lane.b32.xlu0 %v1688, 124
        %v1693 = vpop.permute.xlu0 %1692
        %1694 = vrot.lane.b32.xlu0 %v1689, 124
        %v1695 = vpop.permute.xlu0 %1694
        %v1698 = vadd.f32 %v1686, %v1693
        %v1699 = vadd.f32 %v1687, %v1695
        %v1700 = vmul.f32 %v1648, 0.26601174
        %v1701 = vmul.f32 %v1649, 0.26601174
        %1704 = vrot.lane.b32.xlu0 %v1700, 123
        %v1705 = vpop.permute.xlu0 %1704
        %1706 = vrot.lane.b32.xlu0 %v1701, 123
        %v1707 = vpop.permute.xlu0 %1706
        %v1710 = vadd.f32 %v1698, %v1705
        %v1711 = vadd.f32 %v1699, %v1707
        %1712 = vrot.lane.b32.xlu0 %v1688, 122
        %v1713 = vpop.permute.xlu0 %1712
        %1714 = vrot.lane.b32.xlu0 %v1689, 122
        %v1715 = vpop.permute.xlu0 %1714
        %v1718 = vadd.f32 %v1710, %v1713
        %v1719 = vadd.f32 %v1711, %v1715
        %1720 = vrot.lane.b32.xlu0 %v1676, 121
        %v1721 = vpop.permute.xlu0 %1720
        %1722 = vrot.lane.b32.xlu0 %v1677, 121
        %v1723 = vpop.permute.xlu0 %1722
        %v1726 = vadd.f32 %v1718, %v1721
        %v1727 = vadd.f32 %v1719, %v1723
        %1728 = vrot.lane.b32.xlu0 %v1664, 120
        %v1729 = vpop.permute.xlu0 %1728
        %1730 = vrot.lane.b32.xlu0 %v1665, 120
        %v1731 = vpop.permute.xlu0 %1730
        %v1734 = vadd.f32 %v1726, %v1729
        %v1735 = vadd.f32 %v1727, %v1731
        %1736 = vrot.lane.b32.xlu0 %v1652, 119
        %v1737 = vpop.permute.xlu0 %1736
        %1738 = vrot.lane.b32.xlu0 %v1653, 119
        %v1739 = vpop.permute.xlu0 %1738
        %v1742 = vadd.f32 %v1734, %v1737
        %v1743 = vadd.f32 %v1735, %v1739
        %1746 = vrot.lane.b32.xlu0 %v1650, 118
        %v1747 = vpop.permute.xlu0 %1746
        %1748 = vrot.lane.b32.xlu0 %v1651, 118
        %v1749 = vpop.permute.xlu0 %1748
        %v1752 = vadd.f32 %v1742, %v1747
        %v1753 = vadd.f32 %v1743, %v1749
        %v1754 = vmul.f32 %v1494, %v1494
        %v1755 = vmul.f32 %v1495, %v1495
        %1758 = vrot.lane.b32.xlu0 %v1754, 5
        %v1759 = vpop.permute.xlu0 %1758
        %1760 = vrot.lane.b32.xlu0 %v1755, 5
        %v1761 = vpop.permute.xlu0 %1760
        %1764 = vst.msk [vmem:[#allocation2 + $0x5] sm:$0xff] %vm474, %v1759
        %1765 = vst.msk [vmem:[#allocation2 + $0xd] sm:$0xff] %vm474, %v1761
        %v1766 = vld [vmem:[#allocation2] sm:$0xff]
        %v1767 = vld [vmem:[#allocation2 + $0x8] sm:$0xff]
        %v1768 = vmul.f32 %v1766, 0.0010283802
        %v1769 = vmul.f32 %v1767, 0.0010283802
        %v1770 = vld [vmem:[#allocation2 + $0x1] sm:$0xff]
        %v1771 = vld [vmem:[#allocation2 + $0x9] sm:$0xff]
        %v1772 = vmul.f32 %v1770, 0.0075987587
        %v1773 = vmul.f32 %v1771, 0.0075987587
        %v1774 = vadd.f32 %v1768, %v1772
        %v1775 = vadd.f32 %v1769, %v1773
        %v1776 = vld [vmem:[#allocation2 + $0x2] sm:$0xff]
        %v1777 = vld [vmem:[#allocation2 + $0xa] sm:$0xff]
        %v1778 = vmul.f32 %v1776, 0.036000773
        %v1779 = vmul.f32 %v1777, 0.036000773
        %v1780 = vadd.f32 %v1774, %v1778
        %v1781 = vadd.f32 %v1775, %v1779
        %v1782 = vld [vmem:[#allocation2 + $0x3] sm:$0xff]
        %v1783 = vld [vmem:[#allocation2 + $0xb] sm:$0xff]
        %v1784 = vmul.f32 %v1782, 0.109360695
        %v1785 = vmul.f32 %v1783, 0.109360695
        %v1786 = vadd.f32 %v1780, %v1784
        %v1787 = vadd.f32 %v1781, %v1785
        %v1788 = vld [vmem:[#allocation2 + $0x4] sm:$0xff]
        %v1789 = vld [vmem:[#allocation2 + $0xc] sm:$0xff]
        %v1790 = vmul.f32 %v1788, 0.21300554
        %v1791 = vmul.f32 %v1789, 0.21300554
        %v1792 = vadd.f32 %v1786, %v1790
        %v1793 = vadd.f32 %v1787, %v1791
        %v1794 = vld [vmem:[#allocation2 + $0x5] sm:$0xff]
        %v1795 = vld [vmem:[#allocation2 + $0xd] sm:$0xff]
        %v1796 = vmul.f32 %v1794, 0.26601174
        %v1797 = vmul.f32 %v1795, 0.26601174
        %v1798 = vadd.f32 %v1792, %v1796
        %v1799 = vadd.f32 %v1793, %v1797
        %v1800 = vld [vmem:[#allocation2 + $0x6] sm:$0xff]
        %v1801 = vld [vmem:[#allocation2 + $0xe] sm:$0xff]
        %v1802 = vmul.f32 %v1800, 0.21300554
        %v1803 = vmul.f32 %v1801, 0.21300554
        %v1804 = vadd.f32 %v1798, %v1802
        %v1805 = vadd.f32 %v1799, %v1803
        %v1806 = vld [vmem:[#allocation2 + $0x7] sm:$0xff]
        %v1807 = vld [vmem:[#allocation2 + $0xf] sm:$0xff]
        %v1808 = vmul.f32 %v1806, 0.109360695
        %v1809 = vmul.f32 %v1807, 0.109360695
        %v1810 = vadd.f32 %v1804, %v1808
        %v1811 = vadd.f32 %v1805, %v1809
        %v1812 = vld [vmem:[#allocation2 + $0x10] sm:$0xff]
        %v1813 = vmul.f32 %v1767, 0.036000773
        %v1814 = vmul.f32 %v1812, 0.036000773
        %v1815 = vadd.f32 %v1810, %v1813
        %v1816 = vadd.f32 %v1811, %v1814
        %v1817 = vld [vmem:[#allocation2 + $0x11] sm:$0xff]
        %v1818 = vmul.f32 %v1817, 0.0075987587
        %v1819 = vadd.f32 %v1815, %v1773
        %v1820 = vadd.f32 %v1816, %v1818
        %v1821 = vld [vmem:[#allocation2 + $0x12] sm:$0xff]
        %v1822 = vmul.f32 %v1777, 0.0010283802
        %v1823 = vmul.f32 %v1821, 0.0010283802
        %v1824 = vadd.f32 %v1819, %v1822
        %v1825 = vadd.f32 %v1820, %v1823
        %v1826 = vmul.f32 %v1824, 0.0010283802
        %v1827 = vmul.f32 %v1825, 0.0010283802
        %v1828 = vmul.f32 %v1824, 0.0075987587
        %v1829 = vmul.f32 %v1825, 0.0075987587
        %1832 = vrot.lane.b32.xlu0 %v1828, 127
        %v1833 = vpop.permute.xlu0 %1832
        %1834 = vrot.lane.b32.xlu0 %v1829, 127
        %v1835 = vpop.permute.xlu0 %1834
        %v1838 = vadd.f32 %v1826, %v1833
        %v1839 = vadd.f32 %v1827, %v1835
        %v1840 = vmul.f32 %v1824, 0.036000773
        %v1841 = vmul.f32 %v1825, 0.036000773
        %1844 = vrot.lane.b32.xlu0 %v1840, 126
        %v1845 = vpop.permute.xlu0 %1844
        %1846 = vrot.lane.b32.xlu0 %v1841, 126
        %v1847 = vpop.permute.xlu0 %1846
        %v1850 = vadd.f32 %v1838, %v1845
        %v1851 = vadd.f32 %v1839, %v1847
        %v1852 = vmul.f32 %v1824, 0.109360695
        %v1853 = vmul.f32 %v1825, 0.109360695
        %1856 = vrot.lane.b32.xlu0 %v1852, 125
        %v1857 = vpop.permute.xlu0 %1856
        %1858 = vrot.lane.b32.xlu0 %v1853, 125
        %v1859 = vpop.permute.xlu0 %1858
        %v1862 = vadd.f32 %v1850, %v1857
        %v1863 = vadd.f32 %v1851, %v1859
        %v1864 = vmul.f32 %v1824, 0.21300554
        %v1865 = vmul.f32 %v1825, 0.21300554
        %1868 = vrot.lane.b32.xlu0 %v1864, 124
        %v1869 = vpop.permute.xlu0 %1868
        %1870 = vrot.lane.b32.xlu0 %v1865, 124
        %v1871 = vpop.permute.xlu0 %1870
        %v1874 = vadd.f32 %v1862, %v1869
        %v1875 = vadd.f32 %v1863, %v1871
        %v1876 = vmul.f32 %v1824, 0.26601174
        %v1877 = vmul.f32 %v1825, 0.26601174
        %1880 = vrot.lane.b32.xlu0 %v1876, 123
        %v1881 = vpop.permute.xlu0 %1880
        %1882 = vrot.lane.b32.xlu0 %v1877, 123
        %v1883 = vpop.permute.xlu0 %1882
        %v1886 = vadd.f32 %v1874, %v1881
        %v1887 = vadd.f32 %v1875, %v1883
        %1888 = vrot.lane.b32.xlu0 %v1864, 122
        %v1889 = vpop.permute.xlu0 %1888
        %1890 = vrot.lane.b32.xlu0 %v1865, 122
        %v1891 = vpop.permute.xlu0 %1890
        %v1894 = vadd.f32 %v1886, %v1889
        %v1895 = vadd.f32 %v1887, %v1891
        %1896 = vrot.lane.b32.xlu0 %v1852, 121
        %v1897 = vpop.permute.xlu0 %1896
        %1898 = vrot.lane.b32.xlu0 %v1853, 121
        %v1899 = vpop.permute.xlu0 %1898
        %v1902 = vadd.f32 %v1894, %v1897
        %v1903 = vadd.f32 %v1895, %v1899
        %1904 = vrot.lane.b32.xlu0 %v1840, 120
        %v1905 = vpop.permute.xlu0 %1904
        %1906 = vrot.lane.b32.xlu0 %v1841, 120
        %v1907 = vpop.permute.xlu0 %1906
        %v1910 = vadd.f32 %v1902, %v1905
        %v1911 = vadd.f32 %v1903, %v1907
        %1912 = vrot.lane.b32.xlu0 %v1828, 119
        %v1913 = vpop.permute.xlu0 %1912
        %1914 = vrot.lane.b32.xlu0 %v1829, 119
        %v1915 = vpop.permute.xlu0 %1914
        %v1918 = vadd.f32 %v1910, %v1913
        %v1919 = vadd.f32 %v1911, %v1915
        %1922 = vrot.lane.b32.xlu0 %v1826, 118
        %v1923 = vpop.permute.xlu0 %1922
        %1924 = vrot.lane.b32.xlu0 %v1827, 118
        %v1925 = vpop.permute.xlu0 %1924
        %v1928 = vadd.f32 %v1918, %v1923
        %v1929 = vadd.f32 %v1919, %v1925
        %v1930 = vmul.f32 %v1752, %v1752
        %v1931 = vmul.f32 %v1753, %v1753
        %v1932 = vsub.f32 %v1928, %v1930
        %v1933 = vsub.f32 %v1929, %v1931
        %v1934 = vld [vmem:[#allocation3] sm:$0xff]
        %v1935 = vld [vmem:[#allocation3 + $0x8] sm:$0xff]
        %v1936 = vld [vmem:[#allocation4] sm:$0xff]
        %v1937 = vld [vmem:[#allocation4 + $0x8] sm:$0xff]
        %v1938 = vmul.f32 %v1494, %v464
        %v1939 = vmul.f32 %v1495, %v465
        %1942 = vrot.lane.b32.xlu0 %v1938, 5
        %v1943 = vpop.permute.xlu0 %1942
        %1944 = vrot.lane.b32.xlu0 %v1939, 5
        %v1945 = vpop.permute.xlu0 %1944
        %1948 = vst.msk [vmem:[#allocation2 + $0x5] sm:$0xff] %vm474, %v1943
        %1949 = vst.msk [vmem:[#allocation2 + $0xd] sm:$0xff] %vm474, %v1945
        %v1950 = vld [vmem:[#allocation2] sm:$0xff]
        %v1951 = vld [vmem:[#allocation2 + $0x8] sm:$0xff]
        %v1952 = vmul.f32 %v1950, 0.0010283802
        %v1953 = vmul.f32 %v1951, 0.0010283802
        %v1954 = vld [vmem:[#allocation2 + $0x1] sm:$0xff]
        %v1955 = vld [vmem:[#allocation2 + $0x9] sm:$0xff]
        %v1956 = vmul.f32 %v1954, 0.0075987587
        %v1957 = vmul.f32 %v1955, 0.0075987587
        %v1958 = vadd.f32 %v1952, %v1956
        %v1959 = vadd.f32 %v1953, %v1957
        %v1960 = vld [vmem:[#allocation2 + $0x2] sm:$0xff]
        %v1961 = vld [vmem:[#allocation2 + $0xa] sm:$0xff]
        %v1962 = vmul.f32 %v1960, 0.036000773
        %v1963 = vmul.f32 %v1961, 0.036000773
        %v1964 = vadd.f32 %v1958, %v1962
        %v1965 = vadd.f32 %v1959, %v1963
        %v1966 = vld [vmem:[#allocation2 + $0x3] sm:$0xff]
        %v1967 = vld [vmem:[#allocation2 + $0xb] sm:$0xff]
        %v1968 = vmul.f32 %v1966, 0.109360695
        %v1969 = vmul.f32 %v1967, 0.109360695
        %v1970 = vadd.f32 %v1964, %v1968
        %v1971 = vadd.f32 %v1965, %v1969
        %v1972 = vld [vmem:[#allocation2 + $0x4] sm:$0xff]
        %v1973 = vld [vmem:[#allocation2 + $0xc] sm:$0xff]
        %v1974 = vmul.f32 %v1972, 0.21300554
        %v1975 = vmul.f32 %v1973, 0.21300554
        %v1976 = vadd.f32 %v1970, %v1974
        %v1977 = vadd.f32 %v1971, %v1975
        %v1978 = vld [vmem:[#allocation2 + $0x5] sm:$0xff]
        %v1979 = vld [vmem:[#allocation2 + $0xd] sm:$0xff]
        %v1980 = vmul.f32 %v1978, 0.26601174
        %v1981 = vmul.f32 %v1979, 0.26601174
        %v1982 = vadd.f32 %v1976, %v1980
        %v1983 = vadd.f32 %v1977, %v1981
        %v1984 = vld [vmem:[#allocation2 + $0x6] sm:$0xff]
        %v1985 = vld [vmem:[#allocation2 + $0xe] sm:$0xff]
        %v1986 = vmul.f32 %v1984, 0.21300554
        %v1987 = vmul.f32 %v1985, 0.21300554
        %v1988 = vadd.f32 %v1982, %v1986
        %v1989 = vadd.f32 %v1983, %v1987
        %v1990 = vld [vmem:[#allocation2 + $0x7] sm:$0xff]
        %v1991 = vld [vmem:[#allocation2 + $0xf] sm:$0xff]
        %v1992 = vmul.f32 %v1990, 0.109360695
        %v1993 = vmul.f32 %v1991, 0.109360695
        %v1994 = vadd.f32 %v1988, %v1992
        %v1995 = vadd.f32 %v1989, %v1993
        %v1996 = vld [vmem:[#allocation2 + $0x10] sm:$0xff]
        %v1997 = vmul.f32 %v1951, 0.036000773
        %v1998 = vmul.f32 %v1996, 0.036000773
        %v1999 = vadd.f32 %v1994, %v1997
        %v2000 = vadd.f32 %v1995, %v1998
        %v2001 = vld [vmem:[#allocation2 + $0x11] sm:$0xff]
        %v2002 = vmul.f32 %v2001, 0.0075987587
        %v2003 = vadd.f32 %v1999, %v1957
        %v2004 = vadd.f32 %v2000, %v2002
        %v2005 = vld [vmem:[#allocation2 + $0x12] sm:$0xff]
        %v2006 = vmul.f32 %v1961, 0.0010283802
        %v2007 = vmul.f32 %v2005, 0.0010283802
        %v2008 = vadd.f32 %v2003, %v2006
        %v2009 = vadd.f32 %v2004, %v2007
        %v2010 = vmul.f32 %v2008, 0.0010283802
        %v2011 = vmul.f32 %v2009, 0.0010283802
        %v2012 = vmul.f32 %v2008, 0.0075987587
        %v2013 = vmul.f32 %v2009, 0.0075987587
        %2016 = vrot.lane.b32.xlu0 %v2012, 127
        %v2017 = vpop.permute.xlu0 %2016
        %2018 = vrot.lane.b32.xlu0 %v2013, 127
        %v2019 = vpop.permute.xlu0 %2018
        %v2022 = vadd.f32 %v2010, %v2017
        %v2023 = vadd.f32 %v2011, %v2019
        %v2024 = vmul.f32 %v2008, 0.036000773
        %v2025 = vmul.f32 %v2009, 0.036000773
        %2028 = vrot.lane.b32.xlu0 %v2024, 126
        %v2029 = vpop.permute.xlu0 %2028
        %2030 = vrot.lane.b32.xlu0 %v2025, 126
        %v2031 = vpop.permute.xlu0 %2030
        %v2034 = vadd.f32 %v2022, %v2029
        %v2035 = vadd.f32 %v2023, %v2031
        %v2036 = vmul.f32 %v2008, 0.109360695
        %v2037 = vmul.f32 %v2009, 0.109360695
        %2040 = vrot.lane.b32.xlu0 %v2036, 125
        %v2041 = vpop.permute.xlu0 %2040
        %2042 = vrot.lane.b32.xlu0 %v2037, 125
        %v2043 = vpop.permute.xlu0 %2042
        %v2046 = vadd.f32 %v2034, %v2041
        %v2047 = vadd.f32 %v2035, %v2043
        %v2048 = vmul.f32 %v2008, 0.21300554
        %v2049 = vmul.f32 %v2009, 0.21300554
        %2052 = vrot.lane.b32.xlu0 %v2048, 124
        %v2053 = vpop.permute.xlu0 %2052
        %2054 = vrot.lane.b32.xlu0 %v2049, 124
        %v2055 = vpop.permute.xlu0 %2054
        %v2058 = vadd.f32 %v2046, %v2053
        %v2059 = vadd.f32 %v2047, %v2055
        %v2060 = vmul.f32 %v2008, 0.26601174
        %v2061 = vmul.f32 %v2009, 0.26601174
        %2064 = vrot.lane.b32.xlu0 %v2060, 123
        %v2065 = vpop.permute.xlu0 %2064
        %2066 = vrot.lane.b32.xlu0 %v2061, 123
        %v2067 = vpop.permute.xlu0 %2066
        %v2070 = vadd.f32 %v2058, %v2065
        %v2071 = vadd.f32 %v2059, %v2067
        %2072 = vrot.lane.b32.xlu0 %v2048, 122
        %v2073 = vpop.permute.xlu0 %2072
        %2074 = vrot.lane.b32.xlu0 %v2049, 122
        %v2075 = vpop.permute.xlu0 %2074
        %v2078 = vadd.f32 %v2070, %v2073
        %v2079 = vadd.f32 %v2071, %v2075
        %2080 = vrot.lane.b32.xlu0 %v2036, 121
        %v2081 = vpop.permute.xlu0 %2080
        %2082 = vrot.lane.b32.xlu0 %v2037, 121
        %v2083 = vpop.permute.xlu0 %2082
        %v2086 = vadd.f32 %v2078, %v2081
        %v2087 = vadd.f32 %v2079, %v2083
        %2088 = vrot.lane.b32.xlu0 %v2024, 120
        %v2089 = vpop.permute.xlu0 %2088
        %2090 = vrot.lane.b32.xlu0 %v2025, 120
        %v2091 = vpop.permute.xlu0 %2090
        %v2094 = vadd.f32 %v2086, %v2089
        %v2095 = vadd.f32 %v2087, %v2091
        %2096 = vrot.lane.b32.xlu0 %v2012, 119
        %v2097 = vpop.permute.xlu0 %2096
        %2098 = vrot.lane.b32.xlu0 %v2013, 119
        %v2099 = vpop.permute.xlu0 %2098
        %v2102 = vadd.f32 %v2094, %v2097
        %v2103 = vadd.f32 %v2095, %v2099
        %2106 = vrot.lane.b32.xlu0 %v2010, 118
        %v2107 = vpop.permute.xlu0 %2106
        %2108 = vrot.lane.b32.xlu0 %v2011, 118
        %v2109 = vpop.permute.xlu0 %2108
        %v2112 = vadd.f32 %v2102, %v2107
        %v2113 = vadd.f32 %v2103, %v2109
        %v2114 = vmul.f32 %v1752, %v1934
        %v2115 = vmul.f32 %v1753, %v1935
        %v2116 = vsub.f32 %v2112, %v2114
        %v2117 = vsub.f32 %v2113, %v2115
        %v2118 = vmul.f32 %v1752, 2.0
        %v2119 = vmul.f32 %v1753, 2.0
        %v2120 = vmul.f32 %v2118, %v1934
        %v2121 = vmul.f32 %v2119, %v1935
        %v2122 = vadd.f32 %v2120, 0.0001
        %v2123 = vadd.f32 %v2121, 0.0001
        %v2124 = vmul.f32 %v2116, 2.0
        %v2125 = vmul.f32 %v2117, 2.0
        %v2126 = vadd.f32 %v2124, 0.0009
        %v2127 = vadd.f32 %v2125, 0.0009
        %v2128 = vmul.f32 %v2122, %v2126
        %v2129 = vmul.f32 %v2123, %v2127
        %v2130 = vmul.f32 %v1934, %v1934
        %v2131 = vmul.f32 %v1935, %v1935
        %v2132 = vadd.f32 %v1930, %v2130
        %v2133 = vadd.f32 %v1931, %v2131
        %v2134 = vadd.f32 %v2132, 0.0001
        %v2135 = vadd.f32 %v2133, 0.0001
        %v2136 = vadd.f32 %v1932, %v1936
        %v2137 = vadd.f32 %v1933, %v1937
        %v2138 = vadd.f32 %v2136, 0.0009
        %v2139 = vadd.f32 %v2137, 0.0009
        %v2140 = vmul.f32 %v2134, %v2138
        %v2141 = vmul.f32 %v2135, %v2139
        %v2142 = vrcp.pop %v2140
        %v2143 = vmul.f32 %v2128, %v2142
        %v2144 = vrcp.pop %v2141
        %v2145 = vmul.f32 %v2129, %v2144
        %v2146 = vld [vmem:[#allocation6 + $0x1] sm:$0x1]
        %v2147 = vsel %vm821, %v2143, 0.0
        %v2148 = vsel %vm821, %v2145, 0.0
        %v2149 = vadd.f32 %v2147, %v2148
        %2150 = vadd.xlane.f32.xlu0 %v2149
        %v2151 = vpop.xlane.xlu0 %2150
        %v2152 = vrot.slane %v2151, 4
        %v2153 = vadd.f32 %v2151, %v2152
        %v2154 = vrot.slane %v2153, 2
        %v2155 = vadd.f32 %v2153, %v2154
        %v2156 = vrot.slane %v2155, 1
        %v2157 = vadd.f32 %v2155, %v2156
        %s2158 = vtos %v2157
        %v2159 = vstv %s2158
        %v2160 = vadd.f32 %v2146, %v2159
        %2161 = vst [vmem:[#allocation6 + $0x1] sm:$0x1] %v2160
        %v2162 = vld [vmem:[%s376] sm:$0xff]
        %v2163 = vld [vmem:[%s376 + $0x8] sm:$0xff]
        %2166 = vrot.lane.b32.xlu0 %v2162, 5
        %v2167 = vpop.permute.xlu0 %2166
        %2168 = vrot.lane.b32.xlu0 %v2163, 5
        %v2169 = vpop.permute.xlu0 %2168
        %2172 = vst.msk [vmem:[#allocation2 + $0x5] sm:$0xff] %vm474, %v2167
        %2173 = vst.msk [vmem:[#allocation2 + $0xd] sm:$0xff] %vm474, %v2169
        %v2174 = vld [vmem:[#allocation2 + $0x4] sm:$0xff]
        %v2175 = vld [vmem:[#allocation2 + $0xc] sm:$0xff]
        %v2176 = vld [vmem:[#allocation2 + $0x5] sm:$0xff]
        %v2177 = vld [vmem:[#allocation2 + $0xd] sm:$0xff]
        %v2178 = vld [vmem:[#allocation2 + $0x6] sm:$0xff]
        %v2179 = vld [vmem:[#allocation2 + $0xe] sm:$0xff]
        %v2180 = vmul.f32 %v2176, 2.0
        %v2181 = vmul.f32 %v2177, 2.0
        %v2182 = vadd.f32 %v2174, %v2180
        %v2183 = vadd.f32 %v2175, %v2181
        %v2184 = vadd.f32 %v2182, %v2178
        %v2185 = vadd.f32 %v2183, %v2179
        %v2186 = vsub.f32 %v2174, %v2178
        %v2187 = vsub.f32 %v2175, %v2179
        %2190 = vrot.lane.b32.xlu0 %v2184, 2
        %v2191 = vpop.permute.xlu0 %2190
        %2192 = vrot.lane.b32.xlu0 %v2185, 2
        %v2193 = vpop.permute.xlu0 %2192
        %v2196 = vsub.f32 %v2184, %v2191
        %v2197 = vsub.f32 %v2185, %v2193
        %v2198 = vmul.f32 %v2186, 2.0
        %v2199 = vmul.f32 %v2187, 2.0
        %2202 = vrot.lane.b32.xlu0 %v2198, 127
        %v2203 = vpop.permute.xlu0 %2202
        %2204 = vrot.lane.b32.xlu0 %v2199, 127
        %v2205 = vpop.permute.xlu0 %2204
        %v2208 = vadd.f32 %v2186, %v2203
        %v2209 = vadd.f32 %v2187, %v2205
        %2212 = vrot.lane.b32.xlu0 %v2186, 126
        %v2213 = vpop.permute.xlu0 %2212
        %2214 = vrot.lane.b32.xlu0 %v2187, 126
        %v2215 = vpop.permute.xlu0 %2214
        %v2218 = vadd.f32 %v2208, %v2213
        %v2219 = vadd.f32 %v2209, %v2215
        %v2220 = vand.u32 2147483647, %v2196
        %v2221 = vand.u32 2147483647, %v2197
        %v2222 = vand.u32 2147483647, %v2218
        %v2223 = vand.u32 2147483647, %v2219
        %2226 = vrot.lane.b32.xlu0 %v2222, 2
        %v2227 = vpop.permute.xlu0 %2226
        %2228 = vrot.lane.b32.xlu0 %v2223, 2
        %v2229 = vpop.permute.xlu0 %2228
        %v2232 = vadd.f32 %v2220, %v2227
        %v2233 = vadd.f32 %v2221, %v2229
        %v2234 = vld [vmem:[#allocation5 + $0x2] sm:$0x1]
        %2237 = vrot.lane.b32.xlu0 %v2232, 122
        %v2238 = vpop.permute.xlu0 %2237
        %2239 = vrot.lane.b32.xlu0 %v2233, 122
        %v2240 = vpop.permute.xlu0 %2239
        %v2243 = vsel %vm821, %v2238, 0.0
        %v2244 = vsel %vm821, %v2240, 0.0
        %v2245 = vadd.f32 %v2243, %v2244
        %2246 = vadd.xlane.f32.xlu0 %v2245
        %v2247 = vpop.xlane.xlu0 %2246
        %v2248 = vrot.slane %v2247, 4
        %v2249 = vadd.f32 %v2247, %v2248
        %v2250 = vrot.slane %v2249, 2
        %v2251 = vadd.f32 %v2249, %v2250
        %v2252 = vrot.slane %v2251, 1
        %v2253 = vadd.f32 %v2251, %v2252
        %s2254 = vtos %v2253
        %v2255 = vstv %s2254
        %v2256 = vadd.f32 %v2234, %v2255
        %2257 = vst [vmem:[#allocation5 + $0x2] sm:$0x1] %v2256
        %v2258 = vld [vmem:[#allocation2] sm:$0xff]
        %v2259 = vld [vmem:[#allocation2 + $0x8] sm:$0xff]
        %v2260 = vmul.f32 %v2258, 0.0010283802
        %v2261 = vmul.f32 %v2259, 0.0010283802
        %v2262 = vld [vmem:[#allocation2 + $0x1] sm:$0xff]
        %v2263 = vld [vmem:[#allocation2 + $0x9] sm:$0xff]
        %v2264 = vmul.f32 %v2262, 0.0075987587
        %v2265 = vmul.f32 %v2263, 0.0075987587
        %v2266 = vadd.f32 %v2260, %v2264
        %v2267 = vadd.f32 %v2261, %v2265
        %v2268 = vld [vmem:[#allocation2 + $0x2] sm:$0xff]
        %v2269 = vld [vmem:[#allocation2 + $0xa] sm:$0xff]
        %v2270 = vmul.f32 %v2268, 0.036000773
        %v2271 = vmul.f32 %v2269, 0.036000773
        %v2272 = vadd.f32 %v2266, %v2270
        %v2273 = vadd.f32 %v2267, %v2271
        %v2274 = vld [vmem:[#allocation2 + $0x3] sm:$0xff]
        %v2275 = vld [vmem:[#allocation2 + $0xb] sm:$0xff]
        %v2276 = vmul.f32 %v2274, 0.109360695
        %v2277 = vmul.f32 %v2275, 0.109360695
        %v2278 = vadd.f32 %v2272, %v2276
        %v2279 = vadd.f32 %v2273, %v2277
        %v2280 = vld [vmem:[#allocation2 + $0x4] sm:$0xff]
        %v2281 = vld [vmem:[#allocation2 + $0xc] sm:$0xff]
        %v2282 = vmul.f32 %v2280, 0.21300554
        %v2283 = vmul.f32 %v2281, 0.21300554
        %v2284 = vadd.f32 %v2278, %v2282
        %v2285 = vadd.f32 %v2279, %v2283
        %v2286 = vld [vmem:[#allocation2 + $0x5] sm:$0xff]
        %v2287 = vld [vmem:[#allocation2 + $0xd] sm:$0xff]
        %v2288 = vmul.f32 %v2286, 0.26601174
        %v2289 = vmul.f32 %v2287, 0.26601174
        %v2290 = vadd.f32 %v2284, %v2288
        %v2291 = vadd.f32 %v2285, %v2289
        %v2292 = vld [vmem:[#allocation2 + $0x6] sm:$0xff]
        %v2293 = vld [vmem:[#allocation2 + $0xe] sm:$0xff]
        %v2294 = vmul.f32 %v2292, 0.21300554
        %v2295 = vmul.f32 %v2293, 0.21300554
        %v2296 = vadd.f32 %v2290, %v2294
        %v2297 = vadd.f32 %v2291, %v2295
        %v2298 = vld [vmem:[#allocation2 + $0x7] sm:$0xff]
        %v2299 = vld [vmem:[#allocation2 + $0xf] sm:$0xff]
        %v2300 = vmul.f32 %v2298, 0.109360695
        %v2301 = vmul.f32 %v2299, 0.109360695
        %v2302 = vadd.f32 %v2296, %v2300
        %v2303 = vadd.f32 %v2297, %v2301
        %v2304 = vld [vmem:[#allocation2 + $0x10] sm:$0xff]
        %v2305 = vmul.f32 %v2259, 0.036000773
        %v2306 = vmul.f32 %v2304, 0.036000773
        %v2307 = vadd.f32 %v2302, %v2305
        %v2308 = vadd.f32 %v2303, %v2306
        %v2309 = vld [vmem:[#allocation2 + $0x11] sm:$0xff]
        %v2310 = vmul.f32 %v2309, 0.0075987587
        %v2311 = vadd.f32 %v2307, %v2265
        %v2312 = vadd.f32 %v2308, %v2310
        %v2313 = vld [vmem:[#allocation2 + $0x12] sm:$0xff]
        %v2314 = vmul.f32 %v2269, 0.0010283802
        %v2315 = vmul.f32 %v2313, 0.0010283802
        %v2316 = vadd.f32 %v2311, %v2314
        %v2317 = vadd.f32 %v2312, %v2315
        %v2318 = vmul.f32 %v2316, 0.0010283802
        %v2319 = vmul.f32 %v2317, 0.0010283802
        %v2320 = vmul.f32 %v2316, 0.0075987587
        %v2321 = vmul.f32 %v2317, 0.0075987587
        %2324 = vrot.lane.b32.xlu0 %v2320, 127
        %v2325 = vpop.permute.xlu0 %2324
        %2326 = vrot.lane.b32.xlu0 %v2321, 127
        %v2327 = vpop.permute.xlu0 %2326
        %v2330 = vadd.f32 %v2318, %v2325
        %v2331 = vadd.f32 %v2319, %v2327
        %v2332 = vmul.f32 %v2316, 0.036000773
        %v2333 = vmul.f32 %v2317, 0.036000773
        %2336 = vrot.lane.b32.xlu0 %v2332, 126
        %v2337 = vpop.permute.xlu0 %2336
        %2338 = vrot.lane.b32.xlu0 %v2333, 126
        %v2339 = vpop.permute.xlu0 %2338
        %v2342 = vadd.f32 %v2330, %v2337
        %v2343 = vadd.f32 %v2331, %v2339
        %v2344 = vmul.f32 %v2316, 0.109360695
        %v2345 = vmul.f32 %v2317, 0.109360695
        %2348 = vrot.lane.b32.xlu0 %v2344, 125
        %v2349 = vpop.permute.xlu0 %2348
        %2350 = vrot.lane.b32.xlu0 %v2345, 125
        %v2351 = vpop.permute.xlu0 %2350
        %v2354 = vadd.f32 %v2342, %v2349
        %v2355 = vadd.f32 %v2343, %v2351
        %v2356 = vmul.f32 %v2316, 0.21300554
        %v2357 = vmul.f32 %v2317, 0.21300554
        %2360 = vrot.lane.b32.xlu0 %v2356, 124
        %v2361 = vpop.permute.xlu0 %2360
        %2362 = vrot.lane.b32.xlu0 %v2357, 124
        %v2363 = vpop.permute.xlu0 %2362
        %v2366 = vadd.f32 %v2354, %v2361
        %v2367 = vadd.f32 %v2355, %v2363
        %v2368 = vmul.f32 %v2316, 0.26601174
        %v2369 = vmul.f32 %v2317, 0.26601174
        %2372 = vrot.lane.b32.xlu0 %v2368, 123
        %v2373 = vpop.permute.xlu0 %2372
        %2374 = vrot.lane.b32.xlu0 %v2369, 123
        %v2375 = vpop.permute.xlu0 %2374
        %v2378 = vadd.f32 %v2366, %v2373
        %v2379 = vadd.f32 %v2367, %v2375
        %2380 = vrot.lane.b32.xlu0 %v2356, 122
        %v2381 = vpop.permute.xlu0 %2380
        %2382 = vrot.lane.b32.xlu0 %v2357, 122
        %v2383 = vpop.permute.xlu0 %2382
        %v2386 = vadd.f32 %v2378, %v2381
        %v2387 = vadd.f32 %v2379, %v2383
        %2388 = vrot.lane.b32.xlu0 %v2344, 121
        %v2389 = vpop.permute.xlu0 %2388
        %2390 = vrot.lane.b32.xlu0 %v2345, 121
        %v2391 = vpop.permute.xlu0 %2390
        %v2394 = vadd.f32 %v2386, %v2389
        %v2395 = vadd.f32 %v2387, %v2391
        %2396 = vrot.lane.b32.xlu0 %v2332, 120
        %v2397 = vpop.permute.xlu0 %2396
        %2398 = vrot.lane.b32.xlu0 %v2333, 120
        %v2399 = vpop.permute.xlu0 %2398
        %v2402 = vadd.f32 %v2394, %v2397
        %v2403 = vadd.f32 %v2395, %v2399
        %2404 = vrot.lane.b32.xlu0 %v2320, 119
        %v2405 = vpop.permute.xlu0 %2404
        %2406 = vrot.lane.b32.xlu0 %v2321, 119
        %v2407 = vpop.permute.xlu0 %2406
        %v2410 = vadd.f32 %v2402, %v2405
        %v2411 = vadd.f32 %v2403, %v2407
        %2414 = vrot.lane.b32.xlu0 %v2318, 118
        %v2415 = vpop.permute.xlu0 %2414
        %2416 = vrot.lane.b32.xlu0 %v2319, 118
        %v2417 = vpop.permute.xlu0 %2416
        %v2420 = vadd.f32 %v2410, %v2415
        %v2421 = vadd.f32 %v2411, %v2417
        %v2422 = vmul.f32 %v2162, %v2162
        %v2423 = vmul.f32 %v2163, %v2163
        %2426 = vrot.lane.b32.xlu0 %v2422, 5
        %v2427 = vpop.permute.xlu0 %2426
        %2428 = vrot.lane.b32.xlu0 %v2423, 5
        %v2429 = vpop.permute.xlu0 %2428
        %2432 = vst.msk [vmem:[#allocation2 + $0x5] sm:$0xff] %vm474, %v2427
        %2433 = vst.msk [vmem:[#allocation2 + $0xd] sm:$0xff] %vm474, %v2429
        %v2434 = vld [vmem:[#allocation2] sm:$0xff]
        %v2435 = vld [vmem:[#allocation2 + $0x8] sm:$0xff]
        %v2436 = vmul.f32 %v2434, 0.0010283802
        %v2437 = vmul.f32 %v2435, 0.0010283802
        %v2438 = vld [vmem:[#allocation2 + $0x1] sm:$0xff]
        %v2439 = vld [vmem:[#allocation2 + $0x9] sm:$0xff]
        %v2440 = vmul.f32 %v2438, 0.0075987587
        %v2441 = vmul.f32 %v2439, 0.0075987587
        %v2442 = vadd.f32 %v2436, %v2440
        %v2443 = vadd.f32 %v2437, %v2441
        %v2444 = vld [vmem:[#allocation2 + $0x2] sm:$0xff]
        %v2445 = vld [vmem:[#allocation2 + $0xa] sm:$0xff]
        %v2446 = vmul.f32 %v2444, 0.036000773
        %v2447 = vmul.f32 %v2445, 0.036000773
        %v2448 = vadd.f32 %v2442, %v2446
        %v2449 = vadd.f32 %v2443, %v2447
        %v2450 = vld [vmem:[#allocation2 + $0x3] sm:$0xff]
        %v2451 = vld [vmem:[#allocation2 + $0xb] sm:$0xff]
        %v2452 = vmul.f32 %v2450, 0.109360695
        %v2453 = vmul.f32 %v2451, 0.109360695
        %v2454 = vadd.f32 %v2448, %v2452
        %v2455 = vadd.f32 %v2449, %v2453
        %v2456 = vld [vmem:[#allocation2 + $0x4] sm:$0xff]
        %v2457 = vld [vmem:[#allocation2 + $0xc] sm:$0xff]
        %v2458 = vmul.f32 %v2456, 0.21300554
        %v2459 = vmul.f32 %v2457, 0.21300554
        %v2460 = vadd.f32 %v2454, %v2458
        %v2461 = vadd.f32 %v2455, %v2459
        %v2462 = vld [vmem:[#allocation2 + $0x5] sm:$0xff]
        %v2463 = vld [vmem:[#allocation2 + $0xd] sm:$0xff]
        %v2464 = vmul.f32 %v2462, 0.26601174
        %v2465 = vmul.f32 %v2463, 0.26601174
        %v2466 = vadd.f32 %v2460, %v2464
        %v2467 = vadd.f32 %v2461, %v2465
        %v2468 = vld [vmem:[#allocation2 + $0x6] sm:$0xff]
        %v2469 = vld [vmem:[#allocation2 + $0xe] sm:$0xff]
        %v2470 = vmul.f32 %v2468, 0.21300554
        %v2471 = vmul.f32 %v2469, 0.21300554
        %v2472 = vadd.f32 %v2466, %v2470
        %v2473 = vadd.f32 %v2467, %v2471
        %v2474 = vld [vmem:[#allocation2 + $0x7] sm:$0xff]
        %v2475 = vld [vmem:[#allocation2 + $0xf] sm:$0xff]
        %v2476 = vmul.f32 %v2474, 0.109360695
        %v2477 = vmul.f32 %v2475, 0.109360695
        %v2478 = vadd.f32 %v2472, %v2476
        %v2479 = vadd.f32 %v2473, %v2477
        %v2480 = vld [vmem:[#allocation2 + $0x10] sm:$0xff]
        %v2481 = vmul.f32 %v2435, 0.036000773
        %v2482 = vmul.f32 %v2480, 0.036000773
        %v2483 = vadd.f32 %v2478, %v2481
        %v2484 = vadd.f32 %v2479, %v2482
        %v2485 = vld [vmem:[#allocation2 + $0x11] sm:$0xff]
        %v2486 = vmul.f32 %v2485, 0.0075987587
        %v2487 = vadd.f32 %v2483, %v2441
        %v2488 = vadd.f32 %v2484, %v2486
        %v2489 = vld [vmem:[#allocation2 + $0x12] sm:$0xff]
        %v2490 = vmul.f32 %v2445, 0.0010283802
        %v2491 = vmul.f32 %v2489, 0.0010283802
        %v2492 = vadd.f32 %v2487, %v2490
        %v2493 = vadd.f32 %v2488, %v2491
        %v2494 = vmul.f32 %v2492, 0.0010283802
        %v2495 = vmul.f32 %v2493, 0.0010283802
        %v2496 = vmul.f32 %v2492, 0.0075987587
        %v2497 = vmul.f32 %v2493, 0.0075987587
        %2500 = vrot.lane.b32.xlu0 %v2496, 127
        %v2501 = vpop.permute.xlu0 %2500
        %2502 = vrot.lane.b32.xlu0 %v2497, 127
        %v2503 = vpop.permute.xlu0 %2502
        %v2506 = vadd.f32 %v2494, %v2501
        %v2507 = vadd.f32 %v2495, %v2503
        %v2508 = vmul.f32 %v2492, 0.036000773
        %v2509 = vmul.f32 %v2493, 0.036000773
        %2512 = vrot.lane.b32.xlu0 %v2508, 126
        %v2513 = vpop.permute.xlu0 %2512
        %2514 = vrot.lane.b32.xlu0 %v2509, 126
        %v2515 = vpop.permute.xlu0 %2514
        %v2518 = vadd.f32 %v2506, %v2513
        %v2519 = vadd.f32 %v2507, %v2515
        %v2520 = vmul.f32 %v2492, 0.109360695
        %v2521 = vmul.f32 %v2493, 0.109360695
        %2524 = vrot.lane.b32.xlu0 %v2520, 125
        %v2525 = vpop.permute.xlu0 %2524
        %2526 = vrot.lane.b32.xlu0 %v2521, 125
        %v2527 = vpop.permute.xlu0 %2526
        %v2530 = vadd.f32 %v2518, %v2525
        %v2531 = vadd.f32 %v2519, %v2527
        %v2532 = vmul.f32 %v2492, 0.21300554
        %v2533 = vmul.f32 %v2493, 0.21300554
        %2536 = vrot.lane.b32.xlu0 %v2532, 124
        %v2537 = vpop.permute.xlu0 %2536
        %2538 = vrot.lane.b32.xlu0 %v2533, 124
        %v2539 = vpop.permute.xlu0 %2538
        %v2542 = vadd.f32 %v2530, %v2537
        %v2543 = vadd.f32 %v2531, %v2539
        %v2544 = vmul.f32 %v2492, 0.26601174
        %v2545 = vmul.f32 %v2493, 0.26601174
        %2548 = vrot.lane.b32.xlu0 %v2544, 123
        %v2549 = vpop.permute.xlu0 %2548
        %2550 = vrot.lane.b32.xlu0 %v2545, 123
        %v2551 = vpop.permute.xlu0 %2550
        %v2554 = vadd.f32 %v2542, %v2549
        %v2555 = vadd.f32 %v2543, %v2551
        %2556 = vrot.lane.b32.xlu0 %v2532, 122
        %v2557 = vpop.permute.xlu0 %2556
        %2558 = vrot.lane.b32.xlu0 %v2533, 122
        %v2559 = vpop.permute.xlu0 %2558
        %v2562 = vadd.f32 %v2554, %v2557
        %v2563 = vadd.f32 %v2555, %v2559
        %2564 = vrot.lane.b32.xlu0 %v2520, 121
        %v2565 = vpop.permute.xlu0 %2564
        %2566 = vrot.lane.b32.xlu0 %v2521, 121
        %v2567 = vpop.permute.xlu0 %2566
        %v2570 = vadd.f32 %v2562, %v2565
        %v2571 = vadd.f32 %v2563, %v2567
        %2572 = vrot.lane.b32.xlu0 %v2508, 120
        %v2573 = vpop.permute.xlu0 %2572
        %2574 = vrot.lane.b32.xlu0 %v2509, 120
        %v2575 = vpop.permute.xlu0 %2574
        %v2578 = vadd.f32 %v2570, %v2573
        %v2579 = vadd.f32 %v2571, %v2575
        %2580 = vrot.lane.b32.xlu0 %v2496, 119
        %v2581 = vpop.permute.xlu0 %2580
        %2582 = vrot.lane.b32.xlu0 %v2497, 119
        %v2583 = vpop.permute.xlu0 %2582
        %v2586 = vadd.f32 %v2578, %v2581
        %v2587 = vadd.f32 %v2579, %v2583
        %2590 = vrot.lane.b32.xlu0 %v2494, 118
        %v2591 = vpop.permute.xlu0 %2590
        %2592 = vrot.lane.b32.xlu0 %v2495, 118
        %v2593 = vpop.permute.xlu0 %2592
        %v2596 = vadd.f32 %v2586, %v2591
        %v2597 = vadd.f32 %v2587, %v2593
        %v2598 = vmul.f32 %v2420, %v2420
        %v2599 = vmul.f32 %v2421, %v2421
        %v2600 = vsub.f32 %v2596, %v2598
        %v2601 = vsub.f32 %v2597, %v2599
        %v2602 = vld [vmem:[#allocation3] sm:$0xff]
        %v2603 = vld [vmem:[#allocation3 + $0x8] sm:$0xff]
        %v2604 = vld [vmem:[#allocation4] sm:$0xff]
        %v2605 = vld [vmem:[#allocation4 + $0x8] sm:$0xff]
        %v2606 = vmul.f32 %v2162, %v464
        %v2607 = vmul.f32 %v2163, %v465
        %2610 = vrot.lane.b32.xlu0 %v2606, 5
        %v2611 = vpop.permute.xlu0 %2610
        %2612 = vrot.lane.b32.xlu0 %v2607, 5
        %v2613 = vpop.permute.xlu0 %2612
        %2616 = vst.msk [vmem:[#allocation2 + $0x5] sm:$0xff] %vm474, %v2611
        %2617 = vst.msk [vmem:[#allocation2 + $0xd] sm:$0xff] %vm474, %v2613
        %v2618 = vld [vmem:[#allocation2] sm:$0xff]
        %v2619 = vld [vmem:[#allocation2 + $0x8] sm:$0xff]
        %v2620 = vmul.f32 %v2618, 0.0010283802
        %v2621 = vmul.f32 %v2619, 0.0010283802
        %v2622 = vld [vmem:[#allocation2 + $0x1] sm:$0xff]
        %v2623 = vld [vmem:[#allocation2 + $0x9] sm:$0xff]
        %v2624 = vmul.f32 %v2622, 0.0075987587
        %v2625 = vmul.f32 %v2623, 0.0075987587
        %v2626 = vadd.f32 %v2620, %v2624
        %v2627 = vadd.f32 %v2621, %v2625
        %v2628 = vld [vmem:[#allocation2 + $0x2] sm:$0xff]
        %v2629 = vld [vmem:[#allocation2 + $0xa] sm:$0xff]
        %v2630 = vmul.f32 %v2628, 0.036000773
        %v2631 = vmul.f32 %v2629, 0.036000773
        %v2632 = vadd.f32 %v2626, %v2630
        %v2633 = vadd.f32 %v2627, %v2631
        %v2634 = vld [vmem:[#allocation2 + $0x3] sm:$0xff]
        %v2635 = vld [vmem:[#allocation2 + $0xb] sm:$0xff]
        %v2636 = vmul.f32 %v2634, 0.109360695
        %v2637 = vmul.f32 %v2635, 0.109360695
        %v2638 = vadd.f32 %v2632, %v2636
        %v2639 = vadd.f32 %v2633, %v2637
        %v2640 = vld [vmem:[#allocation2 + $0x4] sm:$0xff]
        %v2641 = vld [vmem:[#allocation2 + $0xc] sm:$0xff]
        %v2642 = vmul.f32 %v2640, 0.21300554
        %v2643 = vmul.f32 %v2641, 0.21300554
        %v2644 = vadd.f32 %v2638, %v2642
        %v2645 = vadd.f32 %v2639, %v2643
        %v2646 = vld [vmem:[#allocation2 + $0x5] sm:$0xff]
        %v2647 = vld [vmem:[#allocation2 + $0xd] sm:$0xff]
        %v2648 = vmul.f32 %v2646, 0.26601174
        %v2649 = vmul.f32 %v2647, 0.26601174
        %v2650 = vadd.f32 %v2644, %v2648
        %v2651 = vadd.f32 %v2645, %v2649
        %v2652 = vld [vmem:[#allocation2 + $0x6] sm:$0xff]
        %v2653 = vld [vmem:[#allocation2 + $0xe] sm:$0xff]
        %v2654 = vmul.f32 %v2652, 0.21300554
        %v2655 = vmul.f32 %v2653, 0.21300554
        %v2656 = vadd.f32 %v2650, %v2654
        %v2657 = vadd.f32 %v2651, %v2655
        %v2658 = vld [vmem:[#allocation2 + $0x7] sm:$0xff]
        %v2659 = vld [vmem:[#allocation2 + $0xf] sm:$0xff]
        %v2660 = vmul.f32 %v2658, 0.109360695
        %v2661 = vmul.f32 %v2659, 0.109360695
        %v2662 = vadd.f32 %v2656, %v2660
        %v2663 = vadd.f32 %v2657, %v2661
        %v2664 = vld [vmem:[#allocation2 + $0x10] sm:$0xff]
        %v2665 = vmul.f32 %v2619, 0.036000773
        %v2666 = vmul.f32 %v2664, 0.036000773
        %v2667 = vadd.f32 %v2662, %v2665
        %v2668 = vadd.f32 %v2663, %v2666
        %v2669 = vld [vmem:[#allocation2 + $0x11] sm:$0xff]
        %v2670 = vmul.f32 %v2669, 0.0075987587
        %v2671 = vadd.f32 %v2667, %v2625
        %v2672 = vadd.f32 %v2668, %v2670
        %v2673 = vld [vmem:[#allocation2 + $0x12] sm:$0xff]
        %v2674 = vmul.f32 %v2629, 0.0010283802
        %v2675 = vmul.f32 %v2673, 0.0010283802
        %v2676 = vadd.f32 %v2671, %v2674
        %v2677 = vadd.f32 %v2672, %v2675
        %v2678 = vmul.f32 %v2676, 0.0010283802
        %v2679 = vmul.f32 %v2677, 0.0010283802
        %v2680 = vmul.f32 %v2676, 0.0075987587
        %v2681 = vmul.f32 %v2677, 0.0075987587
        %2684 = vrot.lane.b32.xlu0 %v2680, 127
        %v2685 = vpop.permute.xlu0 %2684
        %2686 = vrot.lane.b32.xlu0 %v2681, 127
        %v2687 = vpop.permute.xlu0 %2686
        %v2690 = vadd.f32 %v2678, %v2685
        %v2691 = vadd.f32 %v2679, %v2687
        %v2692 = vmul.f32 %v2676, 0.036000773
        %v2693 = vmul.f32 %v2677, 0.036000773
        %2696 = vrot.lane.b32.xlu0 %v2692, 126
        %v2697 = vpop.permute.xlu0 %2696
        %2698 = vrot.lane.b32.xlu0 %v2693, 126
        %v2699 = vpop.permute.xlu0 %2698
        %v2702 = vadd.f32 %v2690, %v2697
        %v2703 = vadd.f32 %v2691, %v2699
        %v2704 = vmul.f32 %v2676, 0.109360695
        %v2705 = vmul.f32 %v2677, 0.109360695
        %2708 = vrot.lane.b32.xlu0 %v2704, 125
        %v2709 = vpop.permute.xlu0 %2708
        %2710 = vrot.lane.b32.xlu0 %v2705, 125
        %v2711 = vpop.permute.xlu0 %2710
        %v2714 = vadd.f32 %v2702, %v2709
        %v2715 = vadd.f32 %v2703, %v2711
        %v2716 = vmul.f32 %v2676, 0.21300554
        %v2717 = vmul.f32 %v2677, 0.21300554
        %2720 = vrot.lane.b32.xlu0 %v2716, 124
        %v2721 = vpop.permute.xlu0 %2720
        %2722 = vrot.lane.b32.xlu0 %v2717, 124
        %v2723 = vpop.permute.xlu0 %2722
        %v2726 = vadd.f32 %v2714, %v2721
        %v2727 = vadd.f32 %v2715, %v2723
        %v2728 = vmul.f32 %v2676, 0.26601174
        %v2729 = vmul.f32 %v2677, 0.26601174
        %2732 = vrot.lane.b32.xlu0 %v2728, 123
        %v2733 = vpop.permute.xlu0 %2732
        %2734 = vrot.lane.b32.xlu0 %v2729, 123
        %v2735 = vpop.permute.xlu0 %2734
        %v2738 = vadd.f32 %v2726, %v2733
        %v2739 = vadd.f32 %v2727, %v2735
        %2740 = vrot.lane.b32.xlu0 %v2716, 122
        %v2741 = vpop.permute.xlu0 %2740
        %2742 = vrot.lane.b32.xlu0 %v2717, 122
        %v2743 = vpop.permute.xlu0 %2742
        %v2746 = vadd.f32 %v2738, %v2741
        %v2747 = vadd.f32 %v2739, %v2743
        %2748 = vrot.lane.b32.xlu0 %v2704, 121
        %v2749 = vpop.permute.xlu0 %2748
        %2750 = vrot.lane.b32.xlu0 %v2705, 121
        %v2751 = vpop.permute.xlu0 %2750
        %v2754 = vadd.f32 %v2746, %v2749
        %v2755 = vadd.f32 %v2747, %v2751
        %2756 = vrot.lane.b32.xlu0 %v2692, 120
        %v2757 = vpop.permute.xlu0 %2756
        %2758 = vrot.lane.b32.xlu0 %v2693, 120
        %v2759 = vpop.permute.xlu0 %2758
        %v2762 = vadd.f32 %v2754, %v2757
        %v2763 = vadd.f32 %v2755, %v2759
        %2764 = vrot.lane.b32.xlu0 %v2680, 119
        %v2765 = vpop.permute.xlu0 %2764
        %2766 = vrot.lane.b32.xlu0 %v2681, 119
        %v2767 = vpop.permute.xlu0 %2766
        %v2770 = vadd.f32 %v2762, %v2765
        %v2771 = vadd.f32 %v2763, %v2767
        %2774 = vrot.lane.b32.xlu0 %v2678, 118
        %v2775 = vpop.permute.xlu0 %2774
        %2776 = vrot.lane.b32.xlu0 %v2679, 118
        %v2777 = vpop.permute.xlu0 %2776
        %v2780 = vadd.f32 %v2770, %v2775
        %v2781 = vadd.f32 %v2771, %v2777
        %v2782 = vmul.f32 %v2420, %v2602
        %v2783 = vmul.f32 %v2421, %v2603
        %v2784 = vsub.f32 %v2780, %v2782
        %v2785 = vsub.f32 %v2781, %v2783
        %v2786 = vmul.f32 %v2420, 2.0
        %v2787 = vmul.f32 %v2421, 2.0
        %v2788 = vmul.f32 %v2786, %v2602
        %v2789 = vmul.f32 %v2787, %v2603
        %v2790 = vadd.f32 %v2788, 0.0001
        %v2791 = vadd.f32 %v2789, 0.0001
        %v2792 = vmul.f32 %v2784, 2.0
        %v2793 = vmul.f32 %v2785, 2.0
        %v2794 = vadd.f32 %v2792, 0.0009
        %v2795 = vadd.f32 %v2793, 0.0009
        %v2796 = vmul.f32 %v2790, %v2794
        %v2797 = vmul.f32 %v2791, %v2795
        %v2798 = vmul.f32 %v2602, %v2602
        %v2799 = vmul.f32 %v2603, %v2603
        %v2800 = vadd.f32 %v2598, %v2798
        %v2801 = vadd.f32 %v2599, %v2799
        %v2802 = vadd.f32 %v2800, 0.0001
        %v2803 = vadd.f32 %v2801, 0.0001
        %v2804 = vadd.f32 %v2600, %v2604
        %v2805 = vadd.f32 %v2601, %v2605
        %v2806 = vadd.f32 %v2804, 0.0009
        %v2807 = vadd.f32 %v2805, 0.0009
        %v2808 = vmul.f32 %v2802, %v2806
        %v2809 = vmul.f32 %v2803, %v2807
        %v2810 = vrcp.pop %v2808
        %v2811 = vmul.f32 %v2796, %v2810
        %v2812 = vrcp.pop %v2809
        %v2813 = vmul.f32 %v2797, %v2812
        %v2814 = vld [vmem:[#allocation6 + $0x2] sm:$0x1]
        %v2815 = vsel %vm821, %v2811, 0.0
        %v2816 = vsel %vm821, %v2813, 0.0
        %v2817 = vadd.f32 %v2815, %v2816
        %2818 = vadd.xlane.f32.xlu0 %v2817
        %v2819 = vpop.xlane.xlu0 %2818
        %v2820 = vrot.slane %v2819, 4
        %v2821 = vadd.f32 %v2819, %v2820
        %v2822 = vrot.slane %v2821, 2
        %v2823 = vadd.f32 %v2821, %v2822
        %v2824 = vrot.slane %v2823, 1
        %v2825 = vadd.f32 %v2823, %v2824
        %s2826 = vtos %v2825
        %v2827 = vstv %s2826
        %v2828 = vadd.f32 %v2814, %v2827
        %2829 = vst [vmem:[#allocation6 + $0x2] sm:$0x1] %v2828
        %v2830 = vld [vmem:[%s385] sm:$0xff]
        %v2831 = vld [vmem:[%s385 + $0x8] sm:$0xff]
        %2834 = vrot.lane.b32.xlu0 %v2830, 5
        %v2835 = vpop.permute.xlu0 %2834
        %2836 = vrot.lane.b32.xlu0 %v2831, 5
        %v2837 = vpop.permute.xlu0 %2836
        %2840 = vst.msk [vmem:[#allocation2 + $0x5] sm:$0xff] %vm474, %v2835
        %2841 = vst.msk [vmem:[#allocation2 + $0xd] sm:$0xff] %vm474, %v2837
        %v2842 = vld [vmem:[#allocation2 + $0x4] sm:$0xff]
        %v2843 = vld [vmem:[#allocation2 + $0xc] sm:$0xff]
        %v2844 = vld [vmem:[#allocation2 + $0x5] sm:$0xff]
        %v2845 = vld [vmem:[#allocation2 + $0xd] sm:$0xff]
        %v2846 = vld [vmem:[#allocation2 + $0x6] sm:$0xff]
        %v2847 = vld [vmem:[#allocation2 + $0xe] sm:$0xff]
        %v2848 = vmul.f32 %v2844, 2.0
        %v2849 = vmul.f32 %v2845, 2.0
        %v2850 = vadd.f32 %v2842, %v2848
        %v2851 = vadd.f32 %v2843, %v2849
        %v2852 = vadd.f32 %v2850, %v2846
        %v2853 = vadd.f32 %v2851, %v2847
        %v2854 = vsub.f32 %v2842, %v2846
        %v2855 = vsub.f32 %v2843, %v2847
        %2858 = vrot.lane.b32.xlu0 %v2852, 2
        %v2859 = vpop.permute.xlu0 %2858
        %2860 = vrot.lane.b32.xlu0 %v2853, 2
        %v2861 = vpop.permute.xlu0 %2860
        %v2864 = vsub.f32 %v2852, %v2859
        %v2865 = vsub.f32 %v2853, %v2861
        %v2866 = vmul.f32 %v2854, 2.0
        %v2867 = vmul.f32 %v2855, 2.0
        %2870 = vrot.lane.b32.xlu0 %v2866, 127
        %v2871 = vpop.permute.xlu0 %2870
        %2872 = vrot.lane.b32.xlu0 %v2867, 127
        %v2873 = vpop.permute.xlu0 %2872
        %v2876 = vadd.f32 %v2854, %v2871
        %v2877 = vadd.f32 %v2855, %v2873
        %2880 = vrot.lane.b32.xlu0 %v2854, 126
        %v2881 = vpop.permute.xlu0 %2880
        %2882 = vrot.lane.b32.xlu0 %v2855, 126
        %v2883 = vpop.permute.xlu0 %2882
        %v2886 = vadd.f32 %v2876, %v2881
        %v2887 = vadd.f32 %v2877, %v2883
        %v2888 = vand.u32 2147483647, %v2864
        %v2889 = vand.u32 2147483647, %v2865
        %v2890 = vand.u32 2147483647, %v2886
        %v2891 = vand.u32 2147483647, %v2887
        %2894 = vrot.lane.b32.xlu0 %v2890, 2
        %v2895 = vpop.permute.xlu0 %2894
        %2896 = vrot.lane.b32.xlu0 %v2891, 2
        %v2897 = vpop.permute.xlu0 %2896
        %v2900 = vadd.f32 %v2888, %v2895
        %v2901 = vadd.f32 %v2889, %v2897
        %v2902 = vld [vmem:[#allocation5 + $0x3] sm:$0x1]
        %2905 = vrot.lane.b32.xlu0 %v2900, 122
        %v2906 = vpop.permute.xlu0 %2905
        %2907 = vrot.lane.b32.xlu0 %v2901, 122
        %v2908 = vpop.permute.xlu0 %2907
        %v2911 = vsel %vm821, %v2906, 0.0
        %v2912 = vsel %vm821, %v2908, 0.0
        %v2913 = vadd.f32 %v2911, %v2912
        %2914 = vadd.xlane.f32.xlu0 %v2913
        %v2915 = vpop.xlane.xlu0 %2914
        %v2916 = vrot.slane %v2915, 4
        %v2917 = vadd.f32 %v2915, %v2916
        %v2918 = vrot.slane %v2917, 2
        %v2919 = vadd.f32 %v2917, %v2918
        %v2920 = vrot.slane %v2919, 1
        %v2921 = vadd.f32 %v2919, %v2920
        %s2922 = vtos %v2921
        %v2923 = vstv %s2922
        %v2924 = vadd.f32 %v2902, %v2923
        %2925 = vst [vmem:[#allocation5 + $0x3] sm:$0x1] %v2924
        %v2926 = vld [vmem:[#allocation2] sm:$0xff]
        %v2927 = vld [vmem:[#allocation2 + $0x8] sm:$0xff]
        %v2928 = vmul.f32 %v2926, 0.0010283802
        %v2929 = vmul.f32 %v2927, 0.0010283802
        %v2930 = vld [vmem:[#allocation2 + $0x1] sm:$0xff]
        %v2931 = vld [vmem:[#allocation2 + $0x9] sm:$0xff]
        %v2932 = vmul.f32 %v2930, 0.0075987587
        %v2933 = vmul.f32 %v2931, 0.0075987587
        %v2934 = vadd.f32 %v2928, %v2932
        %v2935 = vadd.f32 %v2929, %v2933
        %v2936 = vld [vmem:[#allocation2 + $0x2] sm:$0xff]
        %v2937 = vld [vmem:[#allocation2 + $0xa] sm:$0xff]
        %v2938 = vmul.f32 %v2936, 0.036000773
        %v2939 = vmul.f32 %v2937, 0.036000773
        %v2940 = vadd.f32 %v2934, %v2938
        %v2941 = vadd.f32 %v2935, %v2939
        %v2942 = vld [vmem:[#allocation2 + $0x3] sm:$0xff]
        %v2943 = vld [vmem:[#allocation2 + $0xb] sm:$0xff]
        %v2944 = vmul.f32 %v2942, 0.109360695
        %v2945 = vmul.f32 %v2943, 0.109360695
        %v2946 = vadd.f32 %v2940, %v2944
        %v2947 = vadd.f32 %v2941, %v2945
        %v2948 = vld [vmem:[#allocation2 + $0x4] sm:$0xff]
        %v2949 = vld [vmem:[#allocation2 + $0xc] sm:$0xff]
        %v2950 = vmul.f32 %v2948, 0.21300554
        %v2951 = vmul.f32 %v2949, 0.21300554
        %v2952 = vadd.f32 %v2946, %v2950
        %v2953 = vadd.f32 %v2947, %v2951
        %v2954 = vld [vmem:[#allocation2 + $0x5] sm:$0xff]
        %v2955 = vld [vmem:[#allocation2 + $0xd] sm:$0xff]
        %v2956 = vmul.f32 %v2954, 0.26601174
        %v2957 = vmul.f32 %v2955, 0.26601174
        %v2958 = vadd.f32 %v2952, %v2956
        %v2959 = vadd.f32 %v2953, %v2957
        %v2960 = vld [vmem:[#allocation2 + $0x6] sm:$0xff]
        %v2961 = vld [vmem:[#allocation2 + $0xe] sm:$0xff]
        %v2962 = vmul.f32 %v2960, 0.21300554
        %v2963 = vmul.f32 %v2961, 0.21300554
        %v2964 = vadd.f32 %v2958, %v2962
        %v2965 = vadd.f32 %v2959, %v2963
        %v2966 = vld [vmem:[#allocation2 + $0x7] sm:$0xff]
        %v2967 = vld [vmem:[#allocation2 + $0xf] sm:$0xff]
        %v2968 = vmul.f32 %v2966, 0.109360695
        %v2969 = vmul.f32 %v2967, 0.109360695
        %v2970 = vadd.f32 %v2964, %v2968
        %v2971 = vadd.f32 %v2965, %v2969
        %v2972 = vld [vmem:[#allocation2 + $0x10] sm:$0xff]
        %v2973 = vmul.f32 %v2927, 0.036000773
        %v2974 = vmul.f32 %v2972, 0.036000773
        %v2975 = vadd.f32 %v2970, %v2973
        %v2976 = vadd.f32 %v2971, %v2974
        %v2977 = vld [vmem:[#allocation2 + $0x11] sm:$0xff]
        %v2978 = vmul.f32 %v2977, 0.0075987587
        %v2979 = vadd.f32 %v2975, %v2933
        %v2980 = vadd.f32 %v2976, %v2978
        %v2981 = vld [vmem:[#allocation2 + $0x12] sm:$0xff]
        %v2982 = vmul.f32 %v2937, 0.0010283802
        %v2983 = vmul.f32 %v2981, 0.0010283802
        %v2984 = vadd.f32 %v2979, %v2982
        %v2985 = vadd.f32 %v2980, %v2983
        %v2986 = vmul.f32 %v2984, 0.0010283802
        %v2987 = vmul.f32 %v2985, 0.0010283802
        %v2988 = vmul.f32 %v2984, 0.0075987587
        %v2989 = vmul.f32 %v2985, 0.0075987587
        %2992 = vrot.lane.b32.xlu0 %v2988, 127
        %v2993 = vpop.permute.xlu0 %2992
        %2994 = vrot.lane.b32.xlu0 %v2989, 127
        %v2995 = vpop.permute.xlu0 %2994
        %v2998 = vadd.f32 %v2986, %v2993
        %v2999 = vadd.f32 %v2987, %v2995
        %v3000 = vmul.f32 %v2984, 0.036000773
        %v3001 = vmul.f32 %v2985, 0.036000773
        %3004 = vrot.lane.b32.xlu0 %v3000, 126
        %v3005 = vpop.permute.xlu0 %3004
        %3006 = vrot.lane.b32.xlu0 %v3001, 126
        %v3007 = vpop.permute.xlu0 %3006
        %v3010 = vadd.f32 %v2998, %v3005
        %v3011 = vadd.f32 %v2999, %v3007
        %v3012 = vmul.f32 %v2984, 0.109360695
        %v3013 = vmul.f32 %v2985, 0.109360695
        %3016 = vrot.lane.b32.xlu0 %v3012, 125
        %v3017 = vpop.permute.xlu0 %3016
        %3018 = vrot.lane.b32.xlu0 %v3013, 125
        %v3019 = vpop.permute.xlu0 %3018
        %v3022 = vadd.f32 %v3010, %v3017
        %v3023 = vadd.f32 %v3011, %v3019
        %v3024 = vmul.f32 %v2984, 0.21300554
        %v3025 = vmul.f32 %v2985, 0.21300554
        %3028 = vrot.lane.b32.xlu0 %v3024, 124
        %v3029 = vpop.permute.xlu0 %3028
        %3030 = vrot.lane.b32.xlu0 %v3025, 124
        %v3031 = vpop.permute.xlu0 %3030
        %v3034 = vadd.f32 %v3022, %v3029
        %v3035 = vadd.f32 %v3023, %v3031
        %v3036 = vmul.f32 %v2984, 0.26601174
        %v3037 = vmul.f32 %v2985, 0.26601174
        %3040 = vrot.lane.b32.xlu0 %v3036, 123
        %v3041 = vpop.permute.xlu0 %3040
        %3042 = vrot.lane.b32.xlu0 %v3037, 123
        %v3043 = vpop.permute.xlu0 %3042
        %v3046 = vadd.f32 %v3034, %v3041
        %v3047 = vadd.f32 %v3035, %v3043
        %3048 = vrot.lane.b32.xlu0 %v3024, 122
        %v3049 = vpop.permute.xlu0 %3048
        %3050 = vrot.lane.b32.xlu0 %v3025, 122
        %v3051 = vpop.permute.xlu0 %3050
        %v3054 = vadd.f32 %v3046, %v3049
        %v3055 = vadd.f32 %v3047, %v3051
        %3056 = vrot.lane.b32.xlu0 %v3012, 121
        %v3057 = vpop.permute.xlu0 %3056
        %3058 = vrot.lane.b32.xlu0 %v3013, 121
        %v3059 = vpop.permute.xlu0 %3058
        %v3062 = vadd.f32 %v3054, %v3057
        %v3063 = vadd.f32 %v3055, %v3059
        %3064 = vrot.lane.b32.xlu0 %v3000, 120
        %v3065 = vpop.permute.xlu0 %3064
        %3066 = vrot.lane.b32.xlu0 %v3001, 120
        %v3067 = vpop.permute.xlu0 %3066
        %v3070 = vadd.f32 %v3062, %v3065
        %v3071 = vadd.f32 %v3063, %v3067
        %3072 = vrot.lane.b32.xlu0 %v2988, 119
        %v3073 = vpop.permute.xlu0 %3072
        %3074 = vrot.lane.b32.xlu0 %v2989, 119
        %v3075 = vpop.permute.xlu0 %3074
        %v3078 = vadd.f32 %v3070, %v3073
        %v3079 = vadd.f32 %v3071, %v3075
        %3082 = vrot.lane.b32.xlu0 %v2986, 118
        %v3083 = vpop.permute.xlu0 %3082
        %3084 = vrot.lane.b32.xlu0 %v2987, 118
        %v3085 = vpop.permute.xlu0 %3084
        %v3088 = vadd.f32 %v3078, %v3083
        %v3089 = vadd.f32 %v3079, %v3085
        %v3090 = vmul.f32 %v2830, %v2830
        %v3091 = vmul.f32 %v2831, %v2831
        %3094 = vrot.lane.b32.xlu0 %v3090, 5
        %v3095 = vpop.permute.xlu0 %3094
        %3096 = vrot.lane.b32.xlu0 %v3091, 5
        %v3097 = vpop.permute.xlu0 %3096
        %3100 = vst.msk [vmem:[#allocation2 + $0x5] sm:$0xff] %vm474, %v3095
        %3101 = vst.msk [vmem:[#allocation2 + $0xd] sm:$0xff] %vm474, %v3097
        %v3102 = vld [vmem:[#allocation2] sm:$0xff]
        %v3103 = vld [vmem:[#allocation2 + $0x8] sm:$0xff]
        %v3104 = vmul.f32 %v3102, 0.0010283802
        %v3105 = vmul.f32 %v3103, 0.0010283802
        %v3106 = vld [vmem:[#allocation2 + $0x1] sm:$0xff]
        %v3107 = vld [vmem:[#allocation2 + $0x9] sm:$0xff]
        %v3108 = vmul.f32 %v3106, 0.0075987587
        %v3109 = vmul.f32 %v3107, 0.0075987587
        %v3110 = vadd.f32 %v3104, %v3108
        %v3111 = vadd.f32 %v3105, %v3109
        %v3112 = vld [vmem:[#allocation2 + $0x2] sm:$0xff]
        %v3113 = vld [vmem:[#allocation2 + $0xa] sm:$0xff]
        %v3114 = vmul.f32 %v3112, 0.036000773
        %v3115 = vmul.f32 %v3113, 0.036000773
        %v3116 = vadd.f32 %v3110, %v3114
        %v3117 = vadd.f32 %v3111, %v3115
        %v3118 = vld [vmem:[#allocation2 + $0x3] sm:$0xff]
        %v3119 = vld [vmem:[#allocation2 + $0xb] sm:$0xff]
        %v3120 = vmul.f32 %v3118, 0.109360695
        %v3121 = vmul.f32 %v3119, 0.109360695
        %v3122 = vadd.f32 %v3116, %v3120
        %v3123 = vadd.f32 %v3117, %v3121
        %v3124 = vld [vmem:[#allocation2 + $0x4] sm:$0xff]
        %v3125 = vld [vmem:[#allocation2 + $0xc] sm:$0xff]
        %v3126 = vmul.f32 %v3124, 0.21300554
        %v3127 = vmul.f32 %v3125, 0.21300554
        %v3128 = vadd.f32 %v3122, %v3126
        %v3129 = vadd.f32 %v3123, %v3127
        %v3130 = vld [vmem:[#allocation2 + $0x5] sm:$0xff]
        %v3131 = vld [vmem:[#allocation2 + $0xd] sm:$0xff]
        %v3132 = vmul.f32 %v3130, 0.26601174
        %v3133 = vmul.f32 %v3131, 0.26601174
        %v3134 = vadd.f32 %v3128, %v3132
        %v3135 = vadd.f32 %v3129, %v3133
        %v3136 = vld [vmem:[#allocation2 + $0x6] sm:$0xff]
        %v3137 = vld [vmem:[#allocation2 + $0xe] sm:$0xff]
        %v3138 = vmul.f32 %v3136, 0.21300554
        %v3139 = vmul.f32 %v3137, 0.21300554
        %v3140 = vadd.f32 %v3134, %v3138
        %v3141 = vadd.f32 %v3135, %v3139
        %v3142 = vld [vmem:[#allocation2 + $0x7] sm:$0xff]
        %v3143 = vld [vmem:[#allocation2 + $0xf] sm:$0xff]
        %v3144 = vmul.f32 %v3142, 0.109360695
        %v3145 = vmul.f32 %v3143, 0.109360695
        %v3146 = vadd.f32 %v3140, %v3144
        %v3147 = vadd.f32 %v3141, %v3145
        %v3148 = vld [vmem:[#allocation2 + $0x10] sm:$0xff]
        %v3149 = vmul.f32 %v3103, 0.036000773
        %v3150 = vmul.f32 %v3148, 0.036000773
        %v3151 = vadd.f32 %v3146, %v3149
        %v3152 = vadd.f32 %v3147, %v3150
        %v3153 = vld [vmem:[#allocation2 + $0x11] sm:$0xff]
        %v3154 = vmul.f32 %v3153, 0.0075987587
        %v3155 = vadd.f32 %v3151, %v3109
        %v3156 = vadd.f32 %v3152, %v3154
        %v3157 = vld [vmem:[#allocation2 + $0x12] sm:$0xff]
        %v3158 = vmul.f32 %v3113, 0.0010283802
        %v3159 = vmul.f32 %v3157, 0.0010283802
        %v3160 = vadd.f32 %v3155, %v3158
        %v3161 = vadd.f32 %v3156, %v3159
        %v3162 = vmul.f32 %v3160, 0.0010283802
        %v3163 = vmul.f32 %v3161, 0.0010283802
        %v3164 = vmul.f32 %v3160, 0.0075987587
        %v3165 = vmul.f32 %v3161, 0.0075987587
        %3168 = vrot.lane.b32.xlu0 %v3164, 127
        %v3169 = vpop.permute.xlu0 %3168
        %3170 = vrot.lane.b32.xlu0 %v3165, 127
        %v3171 = vpop.permute.xlu0 %3170
        %v3174 = vadd.f32 %v3162, %v3169
        %v3175 = vadd.f32 %v3163, %v3171
        %v3176 = vmul.f32 %v3160, 0.036000773
        %v3177 = vmul.f32 %v3161, 0.036000773
        %3180 = vrot.lane.b32.xlu0 %v3176, 126
        %v3181 = vpop.permute.xlu0 %3180
        %3182 = vrot.lane.b32.xlu0 %v3177, 126
        %v3183 = vpop.permute.xlu0 %3182
        %v3186 = vadd.f32 %v3174, %v3181
        %v3187 = vadd.f32 %v3175, %v3183
        %v3188 = vmul.f32 %v3160, 0.109360695
        %v3189 = vmul.f32 %v3161, 0.109360695
        %3192 = vrot.lane.b32.xlu0 %v3188, 125
        %v3193 = vpop.permute.xlu0 %3192
        %3194 = vrot.lane.b32.xlu0 %v3189, 125
        %v3195 = vpop.permute.xlu0 %3194
        %v3198 = vadd.f32 %v3186, %v3193
        %v3199 = vadd.f32 %v3187, %v3195
        %v3200 = vmul.f32 %v3160, 0.21300554
        %v3201 = vmul.f32 %v3161, 0.21300554
        %3204 = vrot.lane.b32.xlu0 %v3200, 124
        %v3205 = vpop.permute.xlu0 %3204
        %3206 = vrot.lane.b32.xlu0 %v3201, 124
        %v3207 = vpop.permute.xlu0 %3206
        %v3210 = vadd.f32 %v3198, %v3205
        %v3211 = vadd.f32 %v3199, %v3207
        %v3212 = vmul.f32 %v3160, 0.26601174
        %v3213 = vmul.f32 %v3161, 0.26601174
        %3216 = vrot.lane.b32.xlu0 %v3212, 123
        %v3217 = vpop.permute.xlu0 %3216
        %3218 = vrot.lane.b32.xlu0 %v3213, 123
        %v3219 = vpop.permute.xlu0 %3218
        %v3222 = vadd.f32 %v3210, %v3217
        %v3223 = vadd.f32 %v3211, %v3219
        %3224 = vrot.lane.b32.xlu0 %v3200, 122
        %v3225 = vpop.permute.xlu0 %3224
        %3226 = vrot.lane.b32.xlu0 %v3201, 122
        %v3227 = vpop.permute.xlu0 %3226
        %v3230 = vadd.f32 %v3222, %v3225
        %v3231 = vadd.f32 %v3223, %v3227
        %3232 = vrot.lane.b32.xlu0 %v3188, 121
        %v3233 = vpop.permute.xlu0 %3232
        %3234 = vrot.lane.b32.xlu0 %v3189, 121
        %v3235 = vpop.permute.xlu0 %3234
        %v3238 = vadd.f32 %v3230, %v3233
        %v3239 = vadd.f32 %v3231, %v3235
        %3240 = vrot.lane.b32.xlu0 %v3176, 120
        %v3241 = vpop.permute.xlu0 %3240
        %3242 = vrot.lane.b32.xlu0 %v3177, 120
        %v3243 = vpop.permute.xlu0 %3242
        %v3246 = vadd.f32 %v3238, %v3241
        %v3247 = vadd.f32 %v3239, %v3243
        %3248 = vrot.lane.b32.xlu0 %v3164, 119
        %v3249 = vpop.permute.xlu0 %3248
        %3250 = vrot.lane.b32.xlu0 %v3165, 119
        %v3251 = vpop.permute.xlu0 %3250
        %v3254 = vadd.f32 %v3246, %v3249
        %v3255 = vadd.f32 %v3247, %v3251
        %3258 = vrot.lane.b32.xlu0 %v3162, 118
        %v3259 = vpop.permute.xlu0 %3258
        %3260 = vrot.lane.b32.xlu0 %v3163, 118
        %v3261 = vpop.permute.xlu0 %3260
        %v3264 = vadd.f32 %v3254, %v3259
        %v3265 = vadd.f32 %v3255, %v3261
        %v3266 = vmul.f32 %v3088, %v3088
        %v3267 = vmul.f32 %v3089, %v3089
        %v3268 = vsub.f32 %v3264, %v3266
        %v3269 = vsub.f32 %v3265, %v3267
        %v3270 = vld [vmem:[#allocation3] sm:$0xff]
        %v3271 = vld [vmem:[#allocation3 + $0x8] sm:$0xff]
        %v3272 = vld [vmem:[#allocation4] sm:$0xff]
        %v3273 = vld [vmem:[#allocation4 + $0x8] sm:$0xff]
        %v3274 = vmul.f32 %v2830, %v464
        %v3275 = vmul.f32 %v2831, %v465
        %3278 = vrot.lane.b32.xlu0 %v3274, 5
        %v3279 = vpop.permute.xlu0 %3278
        %3280 = vrot.lane.b32.xlu0 %v3275, 5
        %v3281 = vpop.permute.xlu0 %3280
        %3284 = vst.msk [vmem:[#allocation2 + $0x5] sm:$0xff] %vm474, %v3279
        %3285 = vst.msk [vmem:[#allocation2 + $0xd] sm:$0xff] %vm474, %v3281
        %v3286 = vld [vmem:[#allocation2] sm:$0xff]
        %v3287 = vld [vmem:[#allocation2 + $0x8] sm:$0xff]
        %v3288 = vmul.f32 %v3286, 0.0010283802
        %v3289 = vmul.f32 %v3287, 0.0010283802
        %v3290 = vld [vmem:[#allocation2 + $0x1] sm:$0xff]
        %v3291 = vld [vmem:[#allocation2 + $0x9] sm:$0xff]
        %v3292 = vmul.f32 %v3290, 0.0075987587
        %v3293 = vmul.f32 %v3291, 0.0075987587
        %v3294 = vadd.f32 %v3288, %v3292
        %v3295 = vadd.f32 %v3289, %v3293
        %v3296 = vld [vmem:[#allocation2 + $0x2] sm:$0xff]
        %v3297 = vld [vmem:[#allocation2 + $0xa] sm:$0xff]
        %v3298 = vmul.f32 %v3296, 0.036000773
        %v3299 = vmul.f32 %v3297, 0.036000773
        %v3300 = vadd.f32 %v3294, %v3298
        %v3301 = vadd.f32 %v3295, %v3299
        %v3302 = vld [vmem:[#allocation2 + $0x3] sm:$0xff]
        %v3303 = vld [vmem:[#allocation2 + $0xb] sm:$0xff]
        %v3304 = vmul.f32 %v3302, 0.109360695
        %v3305 = vmul.f32 %v3303, 0.109360695
        %v3306 = vadd.f32 %v3300, %v3304
        %v3307 = vadd.f32 %v3301, %v3305
        %v3308 = vld [vmem:[#allocation2 + $0x4] sm:$0xff]
        %v3309 = vld [vmem:[#allocation2 + $0xc] sm:$0xff]
        %v3310 = vmul.f32 %v3308, 0.21300554
        %v3311 = vmul.f32 %v3309, 0.21300554
        %v3312 = vadd.f32 %v3306, %v3310
        %v3313 = vadd.f32 %v3307, %v3311
        %v3314 = vld [vmem:[#allocation2 + $0x5] sm:$0xff]
        %v3315 = vld [vmem:[#allocation2 + $0xd] sm:$0xff]
        %v3316 = vmul.f32 %v3314, 0.26601174
        %v3317 = vmul.f32 %v3315, 0.26601174
        %v3318 = vadd.f32 %v3312, %v3316
        %v3319 = vadd.f32 %v3313, %v3317
        %v3320 = vld [vmem:[#allocation2 + $0x6] sm:$0xff]
        %v3321 = vld [vmem:[#allocation2 + $0xe] sm:$0xff]
        %v3322 = vmul.f32 %v3320, 0.21300554
        %v3323 = vmul.f32 %v3321, 0.21300554
        %v3324 = vadd.f32 %v3318, %v3322
        %v3325 = vadd.f32 %v3319, %v3323
        %v3326 = vld [vmem:[#allocation2 + $0x7] sm:$0xff]
        %v3327 = vld [vmem:[#allocation2 + $0xf] sm:$0xff]
        %v3328 = vmul.f32 %v3326, 0.109360695
        %v3329 = vmul.f32 %v3327, 0.109360695
        %v3330 = vadd.f32 %v3324, %v3328
        %v3331 = vadd.f32 %v3325, %v3329
        %v3332 = vld [vmem:[#allocation2 + $0x10] sm:$0xff]
        %v3333 = vmul.f32 %v3287, 0.036000773
        %v3334 = vmul.f32 %v3332, 0.036000773
        %v3335 = vadd.f32 %v3330, %v3333
        %v3336 = vadd.f32 %v3331, %v3334
        %v3337 = vld [vmem:[#allocation2 + $0x11] sm:$0xff]
        %v3338 = vmul.f32 %v3337, 0.0075987587
        %v3339 = vadd.f32 %v3335, %v3293
        %v3340 = vadd.f32 %v3336, %v3338
        %v3341 = vld [vmem:[#allocation2 + $0x12] sm:$0xff]
        %v3342 = vmul.f32 %v3297, 0.0010283802
        %v3343 = vmul.f32 %v3341, 0.0010283802
        %v3344 = vadd.f32 %v3339, %v3342
        %v3345 = vadd.f32 %v3340, %v3343
        %v3346 = vmul.f32 %v3344, 0.0010283802
        %v3347 = vmul.f32 %v3345, 0.0010283802
        %v3348 = vmul.f32 %v3344, 0.0075987587
        %v3349 = vmul.f32 %v3345, 0.0075987587
        %3352 = vrot.lane.b32.xlu0 %v3348, 127
        %v3353 = vpop.permute.xlu0 %3352
        %3354 = vrot.lane.b32.xlu0 %v3349, 127
        %v3355 = vpop.permute.xlu0 %3354
        %v3358 = vadd.f32 %v3346, %v3353
        %v3359 = vadd.f32 %v3347, %v3355
        %v3360 = vmul.f32 %v3344, 0.036000773
        %v3361 = vmul.f32 %v3345, 0.036000773
        %3364 = vrot.lane.b32.xlu0 %v3360, 126
        %v3365 = vpop.permute.xlu0 %3364
        %3366 = vrot.lane.b32.xlu0 %v3361, 126
        %v3367 = vpop.permute.xlu0 %3366
        %v3370 = vadd.f32 %v3358, %v3365
        %v3371 = vadd.f32 %v3359, %v3367
        %v3372 = vmul.f32 %v3344, 0.109360695
        %v3373 = vmul.f32 %v3345, 0.109360695
        %3376 = vrot.lane.b32.xlu0 %v3372, 125
        %v3377 = vpop.permute.xlu0 %3376
        %3378 = vrot.lane.b32.xlu0 %v3373, 125
        %v3379 = vpop.permute.xlu0 %3378
        %v3382 = vadd.f32 %v3370, %v3377
        %v3383 = vadd.f32 %v3371, %v3379
        %v3384 = vmul.f32 %v3344, 0.21300554
        %v3385 = vmul.f32 %v3345, 0.21300554
        %3388 = vrot.lane.b32.xlu0 %v3384, 124
        %v3389 = vpop.permute.xlu0 %3388
        %3390 = vrot.lane.b32.xlu0 %v3385, 124
        %v3391 = vpop.permute.xlu0 %3390
        %v3394 = vadd.f32 %v3382, %v3389
        %v3395 = vadd.f32 %v3383, %v3391
        %v3396 = vmul.f32 %v3344, 0.26601174
        %v3397 = vmul.f32 %v3345, 0.26601174
        %3400 = vrot.lane.b32.xlu0 %v3396, 123
        %v3401 = vpop.permute.xlu0 %3400
        %3402 = vrot.lane.b32.xlu0 %v3397, 123
        %v3403 = vpop.permute.xlu0 %3402
        %v3406 = vadd.f32 %v3394, %v3401
        %v3407 = vadd.f32 %v3395, %v3403
        %3408 = vrot.lane.b32.xlu0 %v3384, 122
        %v3409 = vpop.permute.xlu0 %3408
        %3410 = vrot.lane.b32.xlu0 %v3385, 122
        %v3411 = vpop.permute.xlu0 %3410
        %v3414 = vadd.f32 %v3406, %v3409
        %v3415 = vadd.f32 %v3407, %v3411
        %3416 = vrot.lane.b32.xlu0 %v3372, 121
        %v3417 = vpop.permute.xlu0 %3416
        %3418 = vrot.lane.b32.xlu0 %v3373, 121
        %v3419 = vpop.permute.xlu0 %3418
        %v3422 = vadd.f32 %v3414, %v3417
        %v3423 = vadd.f32 %v3415, %v3419
        %3424 = vrot.lane.b32.xlu0 %v3360, 120
        %v3425 = vpop.permute.xlu0 %3424
        %3426 = vrot.lane.b32.xlu0 %v3361, 120
        %v3427 = vpop.permute.xlu0 %3426
        %v3430 = vadd.f32 %v3422, %v3425
        %v3431 = vadd.f32 %v3423, %v3427
        %3432 = vrot.lane.b32.xlu0 %v3348, 119
        %v3433 = vpop.permute.xlu0 %3432
        %3434 = vrot.lane.b32.xlu0 %v3349, 119
        %v3435 = vpop.permute.xlu0 %3434
        %v3438 = vadd.f32 %v3430, %v3433
        %v3439 = vadd.f32 %v3431, %v3435
        %3442 = vrot.lane.b32.xlu0 %v3346, 118
        %v3443 = vpop.permute.xlu0 %3442
        %3444 = vrot.lane.b32.xlu0 %v3347, 118
        %v3445 = vpop.permute.xlu0 %3444
        %v3448 = vadd.f32 %v3438, %v3443
        %v3449 = vadd.f32 %v3439, %v3445
        %v3450 = vmul.f32 %v3088, %v3270
        %v3451 = vmul.f32 %v3089, %v3271
        %v3452 = vsub.f32 %v3448, %v3450
        %v3453 = vsub.f32 %v3449, %v3451
        %v3454 = vmul.f32 %v3088, 2.0
        %v3455 = vmul.f32 %v3089, 2.0
        %v3456 = vmul.f32 %v3454, %v3270
        %v3457 = vmul.f32 %v3455, %v3271
        %v3458 = vadd.f32 %v3456, 0.0001
        %v3459 = vadd.f32 %v3457, 0.0001
        %v3460 = vmul.f32 %v3452, 2.0
        %v3461 = vmul.f32 %v3453, 2.0
        %v3462 = vadd.f32 %v3460, 0.0009
        %v3463 = vadd.f32 %v3461, 0.0009
        %v3464 = vmul.f32 %v3458, %v3462
        %v3465 = vmul.f32 %v3459, %v3463
        %v3466 = vmul.f32 %v3270, %v3270
        %v3467 = vmul.f32 %v3271, %v3271
        %v3468 = vadd.f32 %v3266, %v3466
        %v3469 = vadd.f32 %v3267, %v3467
        %v3470 = vadd.f32 %v3468, 0.0001
        %v3471 = vadd.f32 %v3469, 0.0001
        %v3472 = vadd.f32 %v3268, %v3272
        %v3473 = vadd.f32 %v3269, %v3273
        %v3474 = vadd.f32 %v3472, 0.0009
        %v3475 = vadd.f32 %v3473, 0.0009
        %v3476 = vmul.f32 %v3470, %v3474
        %v3477 = vmul.f32 %v3471, %v3475
        %v3478 = vrcp.pop %v3476
        %v3479 = vmul.f32 %v3464, %v3478
        %v3480 = vrcp.pop %v3477
        %v3481 = vmul.f32 %v3465, %v3480
        %v3482 = vld [vmem:[#allocation6 + $0x3] sm:$0x1]
        %v3483 = vsel %vm821, %v3479, 0.0
        %v3484 = vsel %vm821, %v3481, 0.0
        %v3485 = vadd.f32 %v3483, %v3484
        %3486 = vadd.xlane.f32.xlu0 %v3485
        %v3487 = vpop.xlane.xlu0 %3486
        %v3488 = vrot.slane %v3487, 4
        %v3489 = vadd.f32 %v3487, %v3488
        %v3490 = vrot.slane %v3489, 2
        %v3491 = vadd.f32 %v3489, %v3490
        %v3492 = vrot.slane %v3491, 1
        %v3493 = vadd.f32 %v3491, %v3492
        %s3494 = vtos %v3493
        %v3495 = vstv %s3494
        %v3496 = vadd.f32 %v3482, %v3495
        %3497 = vst [vmem:[#allocation6 + $0x3] sm:$0x1] %v3496
        %v3498 = vld [vmem:[%s394] sm:$0xff]
        %v3499 = vld [vmem:[%s394 + $0x8] sm:$0xff]
        %3502 = vrot.lane.b32.xlu0 %v3498, 5
        %v3503 = vpop.permute.xlu0 %3502
        %3504 = vrot.lane.b32.xlu0 %v3499, 5
        %v3505 = vpop.permute.xlu0 %3504
        %3508 = vst.msk [vmem:[#allocation2 + $0x5] sm:$0xff] %vm474, %v3503
        %3509 = vst.msk [vmem:[#allocation2 + $0xd] sm:$0xff] %vm474, %v3505
        %v3510 = vld [vmem:[#allocation2 + $0x4] sm:$0xff]
        %v3511 = vld [vmem:[#allocation2 + $0xc] sm:$0xff]
        %v3512 = vld [vmem:[#allocation2 + $0x5] sm:$0xff]
        %v3513 = vld [vmem:[#allocation2 + $0xd] sm:$0xff]
        %v3514 = vld [vmem:[#allocation2 + $0x6] sm:$0xff]
        %v3515 = vld [vmem:[#allocation2 + $0xe] sm:$0xff]
        %v3516 = vmul.f32 %v3512, 2.0
        %v3517 = vmul.f32 %v3513, 2.0
        %v3518 = vadd.f32 %v3510, %v3516
        %v3519 = vadd.f32 %v3511, %v3517
        %v3520 = vadd.f32 %v3518, %v3514
        %v3521 = vadd.f32 %v3519, %v3515
        %v3522 = vsub.f32 %v3510, %v3514
        %v3523 = vsub.f32 %v3511, %v3515
        %3526 = vrot.lane.b32.xlu0 %v3520, 2
        %v3527 = vpop.permute.xlu0 %3526
        %3528 = vrot.lane.b32.xlu0 %v3521, 2
        %v3529 = vpop.permute.xlu0 %3528
        %v3532 = vsub.f32 %v3520, %v3527
        %v3533 = vsub.f32 %v3521, %v3529
        %v3534 = vmul.f32 %v3522, 2.0
        %v3535 = vmul.f32 %v3523, 2.0
        %3538 = vrot.lane.b32.xlu0 %v3534, 127
        %v3539 = vpop.permute.xlu0 %3538
        %3540 = vrot.lane.b32.xlu0 %v3535, 127
        %v3541 = vpop.permute.xlu0 %3540
        %v3544 = vadd.f32 %v3522, %v3539
        %v3545 = vadd.f32 %v3523, %v3541
        %3548 = vrot.lane.b32.xlu0 %v3522, 126
        %v3549 = vpop.permute.xlu0 %3548
        %3550 = vrot.lane.b32.xlu0 %v3523, 126
        %v3551 = vpop.permute.xlu0 %3550
        %v3554 = vadd.f32 %v3544, %v3549
        %v3555 = vadd.f32 %v3545, %v3551
        %v3556 = vand.u32 2147483647, %v3532
        %v3557 = vand.u32 2147483647, %v3533
        %v3558 = vand.u32 2147483647, %v3554
        %v3559 = vand.u32 2147483647, %v3555
        %3562 = vrot.lane.b32.xlu0 %v3558, 2
        %v3563 = vpop.permute.xlu0 %3562
        %3564 = vrot.lane.b32.xlu0 %v3559, 2
        %v3565 = vpop.permute.xlu0 %3564
        %v3568 = vadd.f32 %v3556, %v3563
        %v3569 = vadd.f32 %v3557, %v3565
        %v3570 = vld [vmem:[#allocation5 + $0x4] sm:$0x1]
        %3573 = vrot.lane.b32.xlu0 %v3568, 122
        %v3574 = vpop.permute.xlu0 %3573
        %3575 = vrot.lane.b32.xlu0 %v3569, 122
        %v3576 = vpop.permute.xlu0 %3575
        %v3579 = vsel %vm821, %v3574, 0.0
        %v3580 = vsel %vm821, %v3576, 0.0
        %v3581 = vadd.f32 %v3579, %v3580
        %3582 = vadd.xlane.f32.xlu0 %v3581
        %v3583 = vpop.xlane.xlu0 %3582
        %v3584 = vrot.slane %v3583, 4
        %v3585 = vadd.f32 %v3583, %v3584
        %v3586 = vrot.slane %v3585, 2
        %v3587 = vadd.f32 %v3585, %v3586
        %v3588 = vrot.slane %v3587, 1
        %v3589 = vadd.f32 %v3587, %v3588
        %s3590 = vtos %v3589
        %v3591 = vstv %s3590
        %v3592 = vadd.f32 %v3570, %v3591
        %3593 = vst [vmem:[#allocation5 + $0x4] sm:$0x1] %v3592
        %v3594 = vld [vmem:[#allocation2] sm:$0xff]
        %v3595 = vld [vmem:[#allocation2 + $0x8] sm:$0xff]
        %v3596 = vmul.f32 %v3594, 0.0010283802
        %v3597 = vmul.f32 %v3595, 0.0010283802
        %v3598 = vld [vmem:[#allocation2 + $0x1] sm:$0xff]
        %v3599 = vld [vmem:[#allocation2 + $0x9] sm:$0xff]
        %v3600 = vmul.f32 %v3598, 0.0075987587
        %v3601 = vmul.f32 %v3599, 0.0075987587
        %v3602 = vadd.f32 %v3596, %v3600
        %v3603 = vadd.f32 %v3597, %v3601
        %v3604 = vld [vmem:[#allocation2 + $0x2] sm:$0xff]
        %v3605 = vld [vmem:[#allocation2 + $0xa] sm:$0xff]
        %v3606 = vmul.f32 %v3604, 0.036000773
        %v3607 = vmul.f32 %v3605, 0.036000773
        %v3608 = vadd.f32 %v3602, %v3606
        %v3609 = vadd.f32 %v3603, %v3607
        %v3610 = vld [vmem:[#allocation2 + $0x3] sm:$0xff]
        %v3611 = vld [vmem:[#allocation2 + $0xb] sm:$0xff]
        %v3612 = vmul.f32 %v3610, 0.109360695
        %v3613 = vmul.f32 %v3611, 0.109360695
        %v3614 = vadd.f32 %v3608, %v3612
        %v3615 = vadd.f32 %v3609, %v3613
        %v3616 = vld [vmem:[#allocation2 + $0x4] sm:$0xff]
        %v3617 = vld [vmem:[#allocation2 + $0xc] sm:$0xff]
        %v3618 = vmul.f32 %v3616, 0.21300554
        %v3619 = vmul.f32 %v3617, 0.21300554
        %v3620 = vadd.f32 %v3614, %v3618
        %v3621 = vadd.f32 %v3615, %v3619
        %v3622 = vld [vmem:[#allocation2 + $0x5] sm:$0xff]
        %v3623 = vld [vmem:[#allocation2 + $0xd] sm:$0xff]
        %v3624 = vmul.f32 %v3622, 0.26601174
        %v3625 = vmul.f32 %v3623, 0.26601174
        %v3626 = vadd.f32 %v3620, %v3624
        %v3627 = vadd.f32 %v3621, %v3625
        %v3628 = vld [vmem:[#allocation2 + $0x6] sm:$0xff]
        %v3629 = vld [vmem:[#allocation2 + $0xe] sm:$0xff]
        %v3630 = vmul.f32 %v3628, 0.21300554
        %v3631 = vmul.f32 %v3629, 0.21300554
        %v3632 = vadd.f32 %v3626, %v3630
        %v3633 = vadd.f32 %v3627, %v3631
        %v3634 = vld [vmem:[#allocation2 + $0x7] sm:$0xff]
        %v3635 = vld [vmem:[#allocation2 + $0xf] sm:$0xff]
        %v3636 = vmul.f32 %v3634, 0.109360695
        %v3637 = vmul.f32 %v3635, 0.109360695
        %v3638 = vadd.f32 %v3632, %v3636
        %v3639 = vadd.f32 %v3633, %v3637
        %v3640 = vld [vmem:[#allocation2 + $0x10] sm:$0xff]
        %v3641 = vmul.f32 %v3595, 0.036000773
        %v3642 = vmul.f32 %v3640, 0.036000773
        %v3643 = vadd.f32 %v3638, %v3641
        %v3644 = vadd.f32 %v3639, %v3642
        %v3645 = vld [vmem:[#allocation2 + $0x11] sm:$0xff]
        %v3646 = vmul.f32 %v3645, 0.0075987587
        %v3647 = vadd.f32 %v3643, %v3601
        %v3648 = vadd.f32 %v3644, %v3646
        %v3649 = vld [vmem:[#allocation2 + $0x12] sm:$0xff]
        %v3650 = vmul.f32 %v3605, 0.0010283802
        %v3651 = vmul.f32 %v3649, 0.0010283802
        %v3652 = vadd.f32 %v3647, %v3650
        %v3653 = vadd.f32 %v3648, %v3651
        %v3654 = vmul.f32 %v3652, 0.0010283802
        %v3655 = vmul.f32 %v3653, 0.0010283802
        %v3656 = vmul.f32 %v3652, 0.0075987587
        %v3657 = vmul.f32 %v3653, 0.0075987587
        %3660 = vrot.lane.b32.xlu0 %v3656, 127
        %v3661 = vpop.permute.xlu0 %3660
        %3662 = vrot.lane.b32.xlu0 %v3657, 127
        %v3663 = vpop.permute.xlu0 %3662
        %v3666 = vadd.f32 %v3654, %v3661
        %v3667 = vadd.f32 %v3655, %v3663
        %v3668 = vmul.f32 %v3652, 0.036000773
        %v3669 = vmul.f32 %v3653, 0.036000773
        %3672 = vrot.lane.b32.xlu0 %v3668, 126
        %v3673 = vpop.permute.xlu0 %3672
        %3674 = vrot.lane.b32.xlu0 %v3669, 126
        %v3675 = vpop.permute.xlu0 %3674
        %v3678 = vadd.f32 %v3666, %v3673
        %v3679 = vadd.f32 %v3667, %v3675
        %v3680 = vmul.f32 %v3652, 0.109360695
        %v3681 = vmul.f32 %v3653, 0.109360695
        %3684 = vrot.lane.b32.xlu0 %v3680, 125
        %v3685 = vpop.permute.xlu0 %3684
        %3686 = vrot.lane.b32.xlu0 %v3681, 125
        %v3687 = vpop.permute.xlu0 %3686
        %v3690 = vadd.f32 %v3678, %v3685
        %v3691 = vadd.f32 %v3679, %v3687
        %v3692 = vmul.f32 %v3652, 0.21300554
        %v3693 = vmul.f32 %v3653, 0.21300554
        %3696 = vrot.lane.b32.xlu0 %v3692, 124
        %v3697 = vpop.permute.xlu0 %3696
        %3698 = vrot.lane.b32.xlu0 %v3693, 124
        %v3699 = vpop.permute.xlu0 %3698
        %v3702 = vadd.f32 %v3690, %v3697
        %v3703 = vadd.f32 %v3691, %v3699
        %v3704 = vmul.f32 %v3652, 0.26601174
        %v3705 = vmul.f32 %v3653, 0.26601174
        %3708 = vrot.lane.b32.xlu0 %v3704, 123
        %v3709 = vpop.permute.xlu0 %3708
        %3710 = vrot.lane.b32.xlu0 %v3705, 123
        %v3711 = vpop.permute.xlu0 %3710
        %v3714 = vadd.f32 %v3702, %v3709
        %v3715 = vadd.f32 %v3703, %v3711
        %3716 = vrot.lane.b32.xlu0 %v3692, 122
        %v3717 = vpop.permute.xlu0 %3716
        %3718 = vrot.lane.b32.xlu0 %v3693, 122
        %v3719 = vpop.permute.xlu0 %3718
        %v3722 = vadd.f32 %v3714, %v3717
        %v3723 = vadd.f32 %v3715, %v3719
        %3724 = vrot.lane.b32.xlu0 %v3680, 121
        %v3725 = vpop.permute.xlu0 %3724
        %3726 = vrot.lane.b32.xlu0 %v3681, 121
        %v3727 = vpop.permute.xlu0 %3726
        %v3730 = vadd.f32 %v3722, %v3725
        %v3731 = vadd.f32 %v3723, %v3727
        %3732 = vrot.lane.b32.xlu0 %v3668, 120
        %v3733 = vpop.permute.xlu0 %3732
        %3734 = vrot.lane.b32.xlu0 %v3669, 120
        %v3735 = vpop.permute.xlu0 %3734
        %v3738 = vadd.f32 %v3730, %v3733
        %v3739 = vadd.f32 %v3731, %v3735
        %3740 = vrot.lane.b32.xlu0 %v3656, 119
        %v3741 = vpop.permute.xlu0 %3740
        %3742 = vrot.lane.b32.xlu0 %v3657, 119
        %v3743 = vpop.permute.xlu0 %3742
        %v3746 = vadd.f32 %v3738, %v3741
        %v3747 = vadd.f32 %v3739, %v3743
        %3750 = vrot.lane.b32.xlu0 %v3654, 118
        %v3751 = vpop.permute.xlu0 %3750
        %3752 = vrot.lane.b32.xlu0 %v3655, 118
        %v3753 = vpop.permute.xlu0 %3752
        %v3756 = vadd.f32 %v3746, %v3751
        %v3757 = vadd.f32 %v3747, %v3753
        %v3758 = vmul.f32 %v3498, %v3498
        %v3759 = vmul.f32 %v3499, %v3499
        %3762 = vrot.lane.b32.xlu0 %v3758, 5
        %v3763 = vpop.permute.xlu0 %3762
        %3764 = vrot.lane.b32.xlu0 %v3759, 5
        %v3765 = vpop.permute.xlu0 %3764
        %3768 = vst.msk [vmem:[#allocation2 + $0x5] sm:$0xff] %vm474, %v3763
        %3769 = vst.msk [vmem:[#allocation2 + $0xd] sm:$0xff] %vm474, %v3765
        %v3770 = vld [vmem:[#allocation2] sm:$0xff]
        %v3771 = vld [vmem:[#allocation2 + $0x8] sm:$0xff]
        %v3772 = vmul.f32 %v3770, 0.0010283802
        %v3773 = vmul.f32 %v3771, 0.0010283802
        %v3774 = vld [vmem:[#allocation2 + $0x1] sm:$0xff]
        %v3775 = vld [vmem:[#allocation2 + $0x9] sm:$0xff]
        %v3776 = vmul.f32 %v3774, 0.0075987587
        %v3777 = vmul.f32 %v3775, 0.0075987587
        %v3778 = vadd.f32 %v3772, %v3776
        %v3779 = vadd.f32 %v3773, %v3777
        %v3780 = vld [vmem:[#allocation2 + $0x2] sm:$0xff]
        %v3781 = vld [vmem:[#allocation2 + $0xa] sm:$0xff]
        %v3782 = vmul.f32 %v3780, 0.036000773
        %v3783 = vmul.f32 %v3781, 0.036000773
        %v3784 = vadd.f32 %v3778, %v3782
        %v3785 = vadd.f32 %v3779, %v3783
        %v3786 = vld [vmem:[#allocation2 + $0x3] sm:$0xff]
        %v3787 = vld [vmem:[#allocation2 + $0xb] sm:$0xff]
        %v3788 = vmul.f32 %v3786, 0.109360695
        %v3789 = vmul.f32 %v3787, 0.109360695
        %v3790 = vadd.f32 %v3784, %v3788
        %v3791 = vadd.f32 %v3785, %v3789
        %v3792 = vld [vmem:[#allocation2 + $0x4] sm:$0xff]
        %v3793 = vld [vmem:[#allocation2 + $0xc] sm:$0xff]
        %v3794 = vmul.f32 %v3792, 0.21300554
        %v3795 = vmul.f32 %v3793, 0.21300554
        %v3796 = vadd.f32 %v3790, %v3794
        %v3797 = vadd.f32 %v3791, %v3795
        %v3798 = vld [vmem:[#allocation2 + $0x5] sm:$0xff]
        %v3799 = vld [vmem:[#allocation2 + $0xd] sm:$0xff]
        %v3800 = vmul.f32 %v3798, 0.26601174
        %v3801 = vmul.f32 %v3799, 0.26601174
        %v3802 = vadd.f32 %v3796, %v3800
        %v3803 = vadd.f32 %v3797, %v3801
        %v3804 = vld [vmem:[#allocation2 + $0x6] sm:$0xff]
        %v3805 = vld [vmem:[#allocation2 + $0xe] sm:$0xff]
        %v3806 = vmul.f32 %v3804, 0.21300554
        %v3807 = vmul.f32 %v3805, 0.21300554
        %v3808 = vadd.f32 %v3802, %v3806
        %v3809 = vadd.f32 %v3803, %v3807
        %v3810 = vld [vmem:[#allocation2 + $0x7] sm:$0xff]
        %v3811 = vld [vmem:[#allocation2 + $0xf] sm:$0xff]
        %v3812 = vmul.f32 %v3810, 0.109360695
        %v3813 = vmul.f32 %v3811, 0.109360695
        %v3814 = vadd.f32 %v3808, %v3812
        %v3815 = vadd.f32 %v3809, %v3813
        %v3816 = vld [vmem:[#allocation2 + $0x10] sm:$0xff]
        %v3817 = vmul.f32 %v3771, 0.036000773
        %v3818 = vmul.f32 %v3816, 0.036000773
        %v3819 = vadd.f32 %v3814, %v3817
        %v3820 = vadd.f32 %v3815, %v3818
        %v3821 = vld [vmem:[#allocation2 + $0x11] sm:$0xff]
        %v3822 = vmul.f32 %v3821, 0.0075987587
        %v3823 = vadd.f32 %v3819, %v3777
        %v3824 = vadd.f32 %v3820, %v3822
        %v3825 = vld [vmem:[#allocation2 + $0x12] sm:$0xff]
        %v3826 = vmul.f32 %v3781, 0.0010283802
        %v3827 = vmul.f32 %v3825, 0.0010283802
        %v3828 = vadd.f32 %v3823, %v3826
        %v3829 = vadd.f32 %v3824, %v3827
        %v3830 = vmul.f32 %v3828, 0.0010283802
        %v3831 = vmul.f32 %v3829, 0.0010283802
        %v3832 = vmul.f32 %v3828, 0.0075987587
        %v3833 = vmul.f32 %v3829, 0.0075987587
        %3836 = vrot.lane.b32.xlu0 %v3832, 127
        %v3837 = vpop.permute.xlu0 %3836
        %3838 = vrot.lane.b32.xlu0 %v3833, 127
        %v3839 = vpop.permute.xlu0 %3838
        %v3842 = vadd.f32 %v3830, %v3837
        %v3843 = vadd.f32 %v3831, %v3839
        %v3844 = vmul.f32 %v3828, 0.036000773
        %v3845 = vmul.f32 %v3829, 0.036000773
        %3848 = vrot.lane.b32.xlu0 %v3844, 126
        %v3849 = vpop.permute.xlu0 %3848
        %3850 = vrot.lane.b32.xlu0 %v3845, 126
        %v3851 = vpop.permute.xlu0 %3850
        %v3854 = vadd.f32 %v3842, %v3849
        %v3855 = vadd.f32 %v3843, %v3851
        %v3856 = vmul.f32 %v3828, 0.109360695
        %v3857 = vmul.f32 %v3829, 0.109360695
        %3860 = vrot.lane.b32.xlu0 %v3856, 125
        %v3861 = vpop.permute.xlu0 %3860
        %3862 = vrot.lane.b32.xlu0 %v3857, 125
        %v3863 = vpop.permute.xlu0 %3862
        %v3866 = vadd.f32 %v3854, %v3861
        %v3867 = vadd.f32 %v3855, %v3863
        %v3868 = vmul.f32 %v3828, 0.21300554
        %v3869 = vmul.f32 %v3829, 0.21300554
        %3872 = vrot.lane.b32.xlu0 %v3868, 124
        %v3873 = vpop.permute.xlu0 %3872
        %3874 = vrot.lane.b32.xlu0 %v3869, 124
        %v3875 = vpop.permute.xlu0 %3874
        %v3878 = vadd.f32 %v3866, %v3873
        %v3879 = vadd.f32 %v3867, %v3875
        %v3880 = vmul.f32 %v3828, 0.26601174
        %v3881 = vmul.f32 %v3829, 0.26601174
        %3884 = vrot.lane.b32.xlu0 %v3880, 123
        %v3885 = vpop.permute.xlu0 %3884
        %3886 = vrot.lane.b32.xlu0 %v3881, 123
        %v3887 = vpop.permute.xlu0 %3886
        %v3890 = vadd.f32 %v3878, %v3885
        %v3891 = vadd.f32 %v3879, %v3887
        %3892 = vrot.lane.b32.xlu0 %v3868, 122
        %v3893 = vpop.permute.xlu0 %3892
        %3894 = vrot.lane.b32.xlu0 %v3869, 122
        %v3895 = vpop.permute.xlu0 %3894
        %v3898 = vadd.f32 %v3890, %v3893
        %v3899 = vadd.f32 %v3891, %v3895
        %3900 = vrot.lane.b32.xlu0 %v3856, 121
        %v3901 = vpop.permute.xlu0 %3900
        %3902 = vrot.lane.b32.xlu0 %v3857, 121
        %v3903 = vpop.permute.xlu0 %3902
        %v3906 = vadd.f32 %v3898, %v3901
        %v3907 = vadd.f32 %v3899, %v3903
        %3908 = vrot.lane.b32.xlu0 %v3844, 120
        %v3909 = vpop.permute.xlu0 %3908
        %3910 = vrot.lane.b32.xlu0 %v3845, 120
        %v3911 = vpop.permute.xlu0 %3910
        %v3914 = vadd.f32 %v3906, %v3909
        %v3915 = vadd.f32 %v3907, %v3911
        %3916 = vrot.lane.b32.xlu0 %v3832, 119
        %v3917 = vpop.permute.xlu0 %3916
        %3918 = vrot.lane.b32.xlu0 %v3833, 119
        %v3919 = vpop.permute.xlu0 %3918
        %v3922 = vadd.f32 %v3914, %v3917
        %v3923 = vadd.f32 %v3915, %v3919
        %3926 = vrot.lane.b32.xlu0 %v3830, 118
        %v3927 = vpop.permute.xlu0 %3926
        %3928 = vrot.lane.b32.xlu0 %v3831, 118
        %v3929 = vpop.permute.xlu0 %3928
        %v3932 = vadd.f32 %v3922, %v3927
        %v3933 = vadd.f32 %v3923, %v3929
        %v3934 = vmul.f32 %v3756, %v3756
        %v3935 = vmul.f32 %v3757, %v3757
        %v3936 = vsub.f32 %v3932, %v3934
        %v3937 = vsub.f32 %v3933, %v3935
        %v3938 = vld [vmem:[#allocation3] sm:$0xff]
        %v3939 = vld [vmem:[#allocation3 + $0x8] sm:$0xff]
        %v3940 = vld [vmem:[#allocation4] sm:$0xff]
        %v3941 = vld [vmem:[#allocation4 + $0x8] sm:$0xff]
        %v3942 = vmul.f32 %v3498, %v464
        %v3943 = vmul.f32 %v3499, %v465
        %3946 = vrot.lane.b32.xlu0 %v3942, 5
        %v3947 = vpop.permute.xlu0 %3946
        %3948 = vrot.lane.b32.xlu0 %v3943, 5
        %v3949 = vpop.permute.xlu0 %3948
        %3952 = vst.msk [vmem:[#allocation2 + $0x5] sm:$0xff] %vm474, %v3947
        %3953 = vst.msk [vmem:[#allocation2 + $0xd] sm:$0xff] %vm474, %v3949
        %v3954 = vld [vmem:[#allocation2] sm:$0xff]
        %v3955 = vld [vmem:[#allocation2 + $0x8] sm:$0xff]
        %v3956 = vmul.f32 %v3954, 0.0010283802
        %v3957 = vmul.f32 %v3955, 0.0010283802
        %v3958 = vld [vmem:[#allocation2 + $0x1] sm:$0xff]
        %v3959 = vld [vmem:[#allocation2 + $0x9] sm:$0xff]
        %v3960 = vmul.f32 %v3958, 0.0075987587
        %v3961 = vmul.f32 %v3959, 0.0075987587
        %v3962 = vadd.f32 %v3956, %v3960
        %v3963 = vadd.f32 %v3957, %v3961
        %v3964 = vld [vmem:[#allocation2 + $0x2] sm:$0xff]
        %v3965 = vld [vmem:[#allocation2 + $0xa] sm:$0xff]
        %v3966 = vmul.f32 %v3964, 0.036000773
        %v3967 = vmul.f32 %v3965, 0.036000773
        %v3968 = vadd.f32 %v3962, %v3966
        %v3969 = vadd.f32 %v3963, %v3967
        %v3970 = vld [vmem:[#allocation2 + $0x3] sm:$0xff]
        %v3971 = vld [vmem:[#allocation2 + $0xb] sm:$0xff]
        %v3972 = vmul.f32 %v3970, 0.109360695
        %v3973 = vmul.f32 %v3971, 0.109360695
        %v3974 = vadd.f32 %v3968, %v3972
        %v3975 = vadd.f32 %v3969, %v3973
        %v3976 = vld [vmem:[#allocation2 + $0x4] sm:$0xff]
        %v3977 = vld [vmem:[#allocation2 + $0xc] sm:$0xff]
        %v3978 = vmul.f32 %v3976, 0.21300554
        %v3979 = vmul.f32 %v3977, 0.21300554
        %v3980 = vadd.f32 %v3974, %v3978
        %v3981 = vadd.f32 %v3975, %v3979
        %v3982 = vld [vmem:[#allocation2 + $0x5] sm:$0xff]
        %v3983 = vld [vmem:[#allocation2 + $0xd] sm:$0xff]
        %v3984 = vmul.f32 %v3982, 0.26601174
        %v3985 = vmul.f32 %v3983, 0.26601174
        %v3986 = vadd.f32 %v3980, %v3984
        %v3987 = vadd.f32 %v3981, %v3985
        %v3988 = vld [vmem:[#allocation2 + $0x6] sm:$0xff]
        %v3989 = vld [vmem:[#allocation2 + $0xe] sm:$0xff]
        %v3990 = vmul.f32 %v3988, 0.21300554
        %v3991 = vmul.f32 %v3989, 0.21300554
        %v3992 = vadd.f32 %v3986, %v3990
        %v3993 = vadd.f32 %v3987, %v3991
        %v3994 = vld [vmem:[#allocation2 + $0x7] sm:$0xff]
        %v3995 = vld [vmem:[#allocation2 + $0xf] sm:$0xff]
        %v3996 = vmul.f32 %v3994, 0.109360695
        %v3997 = vmul.f32 %v3995, 0.109360695
        %v3998 = vadd.f32 %v3992, %v3996
        %v3999 = vadd.f32 %v3993, %v3997
        %v4000 = vld [vmem:[#allocation2 + $0x10] sm:$0xff]
        %v4001 = vmul.f32 %v3955, 0.036000773
        %v4002 = vmul.f32 %v4000, 0.036000773
        %v4003 = vadd.f32 %v3998, %v4001
        %v4004 = vadd.f32 %v3999, %v4002
        %v4005 = vld [vmem:[#allocation2 + $0x11] sm:$0xff]
        %v4006 = vmul.f32 %v4005, 0.0075987587
        %v4007 = vadd.f32 %v4003, %v3961
        %v4008 = vadd.f32 %v4004, %v4006
        %v4009 = vld [vmem:[#allocation2 + $0x12] sm:$0xff]
        %v4010 = vmul.f32 %v3965, 0.0010283802
        %v4011 = vmul.f32 %v4009, 0.0010283802
        %v4012 = vadd.f32 %v4007, %v4010
        %v4013 = vadd.f32 %v4008, %v4011
        %v4014 = vmul.f32 %v4012, 0.0010283802
        %v4015 = vmul.f32 %v4013, 0.0010283802
        %v4016 = vmul.f32 %v4012, 0.0075987587
        %v4017 = vmul.f32 %v4013, 0.0075987587
        %4020 = vrot.lane.b32.xlu0 %v4016, 127
        %v4021 = vpop.permute.xlu0 %4020
        %4022 = vrot.lane.b32.xlu0 %v4017, 127
        %v4023 = vpop.permute.xlu0 %4022
        %v4026 = vadd.f32 %v4014, %v4021
        %v4027 = vadd.f32 %v4015, %v4023
        %v4028 = vmul.f32 %v4012, 0.036000773
        %v4029 = vmul.f32 %v4013, 0.036000773
        %4032 = vrot.lane.b32.xlu0 %v4028, 126
        %v4033 = vpop.permute.xlu0 %4032
        %4034 = vrot.lane.b32.xlu0 %v4029, 126
        %v4035 = vpop.permute.xlu0 %4034
        %v4038 = vadd.f32 %v4026, %v4033
        %v4039 = vadd.f32 %v4027, %v4035
        %v4040 = vmul.f32 %v4012, 0.109360695
        %v4041 = vmul.f32 %v4013, 0.109360695
        %4044 = vrot.lane.b32.xlu0 %v4040, 125
        %v4045 = vpop.permute.xlu0 %4044
        %4046 = vrot.lane.b32.xlu0 %v4041, 125
        %v4047 = vpop.permute.xlu0 %4046
        %v4050 = vadd.f32 %v4038, %v4045
        %v4051 = vadd.f32 %v4039, %v4047
        %v4052 = vmul.f32 %v4012, 0.21300554
        %v4053 = vmul.f32 %v4013, 0.21300554
        %4056 = vrot.lane.b32.xlu0 %v4052, 124
        %v4057 = vpop.permute.xlu0 %4056
        %4058 = vrot.lane.b32.xlu0 %v4053, 124
        %v4059 = vpop.permute.xlu0 %4058
        %v4062 = vadd.f32 %v4050, %v4057
        %v4063 = vadd.f32 %v4051, %v4059
        %v4064 = vmul.f32 %v4012, 0.26601174
        %v4065 = vmul.f32 %v4013, 0.26601174
        %4068 = vrot.lane.b32.xlu0 %v4064, 123
        %v4069 = vpop.permute.xlu0 %4068
        %4070 = vrot.lane.b32.xlu0 %v4065, 123
        %v4071 = vpop.permute.xlu0 %4070
        %v4074 = vadd.f32 %v4062, %v4069
        %v4075 = vadd.f32 %v4063, %v4071
        %4076 = vrot.lane.b32.xlu0 %v4052, 122
        %v4077 = vpop.permute.xlu0 %4076
        %4078 = vrot.lane.b32.xlu0 %v4053, 122
        %v4079 = vpop.permute.xlu0 %4078
        %v4082 = vadd.f32 %v4074, %v4077
        %v4083 = vadd.f32 %v4075, %v4079
        %4084 = vrot.lane.b32.xlu0 %v4040, 121
        %v4085 = vpop.permute.xlu0 %4084
        %4086 = vrot.lane.b32.xlu0 %v4041, 121
        %v4087 = vpop.permute.xlu0 %4086
        %v4090 = vadd.f32 %v4082, %v4085
        %v4091 = vadd.f32 %v4083, %v4087
        %4092 = vrot.lane.b32.xlu0 %v4028, 120
        %v4093 = vpop.permute.xlu0 %4092
        %4094 = vrot.lane.b32.xlu0 %v4029, 120
        %v4095 = vpop.permute.xlu0 %4094
        %v4098 = vadd.f32 %v4090, %v4093
        %v4099 = vadd.f32 %v4091, %v4095
        %4100 = vrot.lane.b32.xlu0 %v4016, 119
        %v4101 = vpop.permute.xlu0 %4100
        %4102 = vrot.lane.b32.xlu0 %v4017, 119
        %v4103 = vpop.permute.xlu0 %4102
        %v4106 = vadd.f32 %v4098, %v4101
        %v4107 = vadd.f32 %v4099, %v4103
        %4110 = vrot.lane.b32.xlu0 %v4014, 118
        %v4111 = vpop.permute.xlu0 %4110
        %4112 = vrot.lane.b32.xlu0 %v4015, 118
        %v4113 = vpop.permute.xlu0 %4112
        %v4116 = vadd.f32 %v4106, %v4111
        %v4117 = vadd.f32 %v4107, %v4113
        %v4118 = vmul.f32 %v3756, %v3938
        %v4119 = vmul.f32 %v3757, %v3939
        %v4120 = vsub.f32 %v4116, %v4118
        %v4121 = vsub.f32 %v4117, %v4119
        %v4122 = vmul.f32 %v3756, 2.0
        %v4123 = vmul.f32 %v3757, 2.0
        %v4124 = vmul.f32 %v4122, %v3938
        %v4125 = vmul.f32 %v4123, %v3939
        %v4126 = vadd.f32 %v4124, 0.0001
        %v4127 = vadd.f32 %v4125, 0.0001
        %v4128 = vmul.f32 %v4120, 2.0
        %v4129 = vmul.f32 %v4121, 2.0
        %v4130 = vadd.f32 %v4128, 0.0009
        %v4131 = vadd.f32 %v4129, 0.0009
        %v4132 = vmul.f32 %v4126, %v4130
        %v4133 = vmul.f32 %v4127, %v4131
        %v4134 = vmul.f32 %v3938, %v3938
        %v4135 = vmul.f32 %v3939, %v3939
        %v4136 = vadd.f32 %v3934, %v4134
        %v4137 = vadd.f32 %v3935, %v4135
        %v4138 = vadd.f32 %v4136, 0.0001
        %v4139 = vadd.f32 %v4137, 0.0001
        %v4140 = vadd.f32 %v3936, %v3940
        %v4141 = vadd.f32 %v3937, %v3941
        %v4142 = vadd.f32 %v4140, 0.0009
        %v4143 = vadd.f32 %v4141, 0.0009
        %v4144 = vmul.f32 %v4138, %v4142
        %v4145 = vmul.f32 %v4139, %v4143
        %v4146 = vrcp.pop %v4144
        %v4147 = vmul.f32 %v4132, %v4146
        %v4148 = vrcp.pop %v4145
        %v4149 = vmul.f32 %v4133, %v4148
        %v4150 = vld [vmem:[#allocation6 + $0x4] sm:$0x1]
        %v4151 = vsel %vm821, %v4147, 0.0
        %v4152 = vsel %vm821, %v4149, 0.0
        %v4153 = vadd.f32 %v4151, %v4152
        %4154 = vadd.xlane.f32.xlu0 %v4153
        %v4155 = vpop.xlane.xlu0 %4154
        %v4156 = vrot.slane %v4155, 4
        %v4157 = vadd.f32 %v4155, %v4156
        %v4158 = vrot.slane %v4157, 2
        %v4159 = vadd.f32 %v4157, %v4158
        %v4160 = vrot.slane %v4159, 1
        %v4161 = vadd.f32 %v4159, %v4160
        %s4162 = vtos %v4161
        %v4163 = vstv %s4162
        %v4164 = vadd.f32 %v4150, %v4163
        %4165 = vst [vmem:[#allocation6 + $0x4] sm:$0x1] %v4164
        %p4166 = scmp.eq.s32.totalorder %s30, 1
        // Predicated region
        $region73: #{tpu_custom_call.1} parent=43 // pred_check
          %p4167 = pneg %p4166
        $region74: #{tpu_custom_call.1} parent=43 // pred_check_branch
          %4169 = sbr.rel (%p4167) target = $region76
        $region75: #{tpu_custom_call.1} parent=43 // pred_region
          %v4170 = vld [vmem:[#allocation5] sm:$0x1]
          %v4171 = vmul.f32 %v4170, 0.001953125
          %v4172 = vld [vmem:[#allocation5 + $0x1] sm:$0x1]
          %v4173 = vmul.f32 %v4172, 0.001953125
          %v4174 = vld [vmem:[#allocation5 + $0x2] sm:$0x1]
          %v4175 = vmul.f32 %v4174, 0.001953125
          %v4176 = vld [vmem:[#allocation5 + $0x3] sm:$0x1]
          %v4177 = vmul.f32 %v4176, 0.001953125
          %v4178 = vld [vmem:[#allocation5 + $0x4] sm:$0x1]
          %v4179 = vmul.f32 %v4178, 0.001953125
          %v4180 = vld [vmem:[#allocation6] sm:$0x1]
          %v4181 = vmul.f32 %v4180, 0.001953125
          %v4182 = vld [vmem:[#allocation6 + $0x1] sm:$0x1]
          %v4183 = vmul.f32 %v4182, 0.001953125
          %v4184 = vld [vmem:[#allocation6 + $0x2] sm:$0x1]
          %v4185 = vmul.f32 %v4184, 0.001953125
          %v4186 = vld [vmem:[#allocation6 + $0x3] sm:$0x1]
          %v4187 = vmul.f32 %v4186, 0.001953125
          %v4188 = vld [vmem:[#allocation6 + $0x4] sm:$0x1]
          %v4189 = vmul.f32 %v4188, 0.001953125
          %v4190 = vadd.f32 %v4171, %v4173
          %v4191 = vadd.f32 %v4175, %v4177
          %v4192 = vadd.f32 %v4191, %v4179
          %v4193 = vrcp.pop %v4190
          %v4194 = vmul.f32 %v4171, %v4193
          %v4195 = vadd.f32 %v4194, %v4192
          %v4196 = vmul.f32 %v4195, %v4181
          %v4197 = vmul.f32 %v4173, %v4193
          %v4198 = vadd.f32 %v4197, %v4192
          %v4199 = vmul.f32 %v4198, %v4183
          %v4200 = vadd.f32 %v4196, %v4199
          %v4201 = vmul.f32 %v4175, %v4193
          %v4202 = vadd.f32 %v4201, %v4192
          %v4203 = vmul.f32 %v4202, %v4185
          %v4204 = vadd.f32 %v4200, %v4203
          %v4205 = vmul.f32 %v4177, %v4193
          %v4206 = vadd.f32 %v4205, %v4192
          %v4207 = vmul.f32 %v4206, %v4187
          %v4208 = vadd.f32 %v4204, %v4207
          %v4209 = vmul.f32 %v4179, %v4193
          %v4210 = vadd.f32 %v4209, %v4192
          %v4211 = vmul.f32 %v4210, %v4189
          %v4212 = vadd.f32 %v4208, %v4211
          %vm4213 = vcmask 0
          %4214 = vst.msk [vmem:[#allocation18] sm:$0x1] %vm4213, %v4212
        $region76: #{tpu_custom_call.1} parent=43 // pred_fallthru
          _
        // Predicated region
        $region77: #{tpu_custom_call.1} parent=43 // pred_check
          %p4215 = pneg %p199
        $region78: #{tpu_custom_call.1} parent=43 // pred_check_branch
          %4217 = sbr.rel (%p4215) target = $region80
        $region79: #{tpu_custom_call.1} parent=43 // pred_region
          %s4219 = ssub.s32 16, 16
          %4220 = vsyncadd [#allocation9], %s4219
          %s4222 = sshll.u32 [#allocation18], 4
          %s4223 = int_to_ptr.vmem [resolvable:$true] %s4222
          %4225 = dma.vmem_to_hbm [thread:$0]  %s4223, 16, %s6, [#allocation9]
        $region80: #{tpu_custom_call.1} parent=43 // pred_fallthru
          _
        // Predicated region
        $region81: #{tpu_custom_call.1} parent=43 // pred_check
          %p4226 = pneg %p199
        $region82: #{tpu_custom_call.1} parent=43 // pred_check_branch
          %4228 = sbr.rel (%p4226) target = $region84
        $region83: #{tpu_custom_call.1} parent=43 // pred_region
          %4229 = dma.done [#allocation9], 16
        $region84: #{tpu_custom_call.1} parent=43 // pred_fallthru
          _
      $region44: #{tpu_custom_call.1} parent=5 // pred_fallthru
        _
      %p4230 = scmp.le.s32.totalorder 2, %s25
      // Predicated region
      $region85: #{tpu_custom_call.1} parent=5 // pred_check
        %p4231 = pneg %p4230
      $region86: #{tpu_custom_call.1} parent=5 // pred_check_branch
        %4233 = sbr.rel (%p4231) target = $region88
      $region87: #{tpu_custom_call.1} parent=5 // pred_region
        %s4234 = ssub.s32 %s25, 2
      $region88: #{tpu_custom_call.1} parent=5 // pred_fallthru
        _
    $region6: #{tpu_custom_call.1} parent=1 // loop_footer
      %s29 = sadd.s32 1, %s25
    $region7: #{tpu_custom_call.1} parent=1 // loop_footer_branch
      %24 = sbr.rel target = $region3
    $region8: #{tpu_custom_call.1} parent=1 // loop_exit
      _
    %4235 = vsyncpa [#allocation8], 1
    %s4236 = scalar_lea.sflag [#allocation8], 1
    %4237 = vsyncpa %s4236, 1
    %4238 = vsyncpa [#allocation11], 1
    %s4239 = scalar_lea.sflag [#allocation11], 1
    %4240 = vsyncpa %s4239, 1
    %4241 = vsyncpa [#allocation14], 1
    %s4242 = scalar_lea.sflag [#allocation14], 1
    %4243 = vsyncpa %s4242, 1
    %4244 = vsyncpa [#allocation17], 1
    %s4245 = scalar_lea.sflag [#allocation17], 1
    %4246 = vsyncpa %s4245, 1
    %4247 = vsyncpa [#allocation9], 1
    %s4248 = scalar_lea.sflag [#allocation9], 1
    %4249 = vsyncpa %s4248, 1

</llo_original>
